<compile_context>
chip_gen: v7x
topology: tpu7x:2x2x1
jax: 0.10.0
libtpu: 0.0.40
codegen_flags: <defaults>
</compile_context>

<pallas_src>
import functools
import math

import jax
import jax.numpy as jnp
from jax.experimental import pallas as pl
from jax.experimental.pallas import tpu as pltpu

_INV_SQRT2 = 1.0 / math.sqrt(2.0)
_SQRT_2_OVER_PI = math.sqrt(2.0 / math.pi)
_LANES = 128
_SUB = 8          # f32 sublane granule; the padded slabs are f32


def _round_up(v, m):
    return (v + m - 1) // m * m


# --------------------------------------------------------------------------
# pltpu.roll direction / availability probe (run once, outside jit)
# --------------------------------------------------------------------------
_ROLL_MODE = None


def _detect_roll_mode():
    """Empirically determine pltpu.roll's rotation direction on this backend
    (and that it lowers for our 3-D / axis=1 usage at all), so the depthwise
    realignment can run on the XLU.  Falls back to unaligned slices."""
    global _ROLL_MODE
    if _ROLL_MODE is not None:
        return _ROLL_MODE
    try:
        def probe(x_ref, o_ref):
            o_ref[...] = pltpu.roll(x_ref[...], 5, axis=1)

        # x[b, i, :] = i  -> value at out[0, 0, 0] identifies the direction.
        x = jnp.broadcast_to(
            jnp.arange(16, dtype=jnp.float32)[None, :, None], (2, 16, _LANES))
        out = pl.pallas_call(
            probe,
            out_shape=jax.ShapeDtypeStruct((2, 16, _LANES), jnp.float32))(x)
        r0 = float(jax.device_get(out[0, 0, 0]))
        if r0 == 11.0:        # matches jnp.roll: out[j] = in[(j - shift) % n]
            _ROLL_MODE = "numpy"
        elif r0 == 5.0:       # opposite direction: out[j] = in[(j + shift) % n]
            _ROLL_MODE = "reverse"
        else:                 # unexpected -> safe fallback
            _ROLL_MODE = "slice"
    except Exception:         # roll unavailable -> unaligned-slice fallback
        _ROLL_MODE = "slice"
    return _ROLL_MODE


# ------------------------------ fused kernel --------------------------------


def _fused_kernel(x_ref, w1_ref, b1_ref, w0_ref, b0_ref, ws_ref, bs_ref,
                  wfg_ref, bfg_ref, w2_ref, b2_ref, o_ref,
                  pad_a, pad_b, *,
                  H, W, Cp, d_k, dd_k, dilation, p1, p2, off1, off2,
                  roll_mode, dw_dtype):
    f32 = jnp.float32

    # ---- re-zero the halo border strips of both padded slabs EVERY step ----
    # Megacore-safe: with the batch axis marked "parallel" a core may never
    # execute step 0, so persistent-scratch init gated on program_id==0 is
    # unsafe.  All strip stores below are sublane(8)/lane(128) aligned.
    def zero_halo(pad, p, off):
        Hp, Wp, _ = pad.shape
        if p > 0:
            zrow = jnp.zeros((p, Wp, Cp), f32)
            pad[0:p] = zrow
            pad[Hp - p:Hp] = zrow
        if off > 0:
            pad[:, 0:off, :] = jnp.zeros((Hp, off, Cp), f32)
        if Wp - off - W > 0:
            pad[:, off + W:Wp, :] = jnp.zeros((Hp, Wp - off - W, Cp), f32)

    zero_halo(pad_a, p1, off1)
    zero_halo(pad_b, p2, off2)

    x = x_ref[0]                                   # (H, W, Cp) f32
    x2d = x.reshape(H * W, Cp)                     # residual + matmul operand

    # ---- proj_1 (1x1 conv) + tanh-approx GELU (transcendental on the EUP) --
    h = jnp.dot(x2d.astype(jnp.bfloat16), w1_ref[...],
                preferred_element_type=f32) + b1_ref[...]
    # TODO(synk): nn.GELU() default is exact erf; tanh form differs by <~1e-3.
    h = 0.5 * h * (1.0 + jnp.tanh(_SQRT_2_OVER_PI *
                                  (h + 0.044715 * h * h * h)))

    # Stage into the zero-padded slab (8-aligned column offset -> unmasked).
    pad_a[p1:p1 + H, off1:off1 + W, :] = h.reshape(H, W, Cp)

    # ---- depthwise conv: XLU-roll column realignment + bf16 MAC loop -------
    def depthwise(pad, w_ref, b_ref, K, dil, p, off):
        Hp, Wp, _ = pad.shape
        slab = None if roll_mode == "slice" else pad[...]   # aligned full load
        acc = jnp.broadcast_to(b_ref[...], (H, W, Cp))      # dw_dtype bias
        for kx in range(K):
            c0 = off - p + kx * dil                # first source column of tap
            if roll_mode == "slice":
                win = pad[:, c0:c0 + W, :]         # fallback: unaligned slice
            else:
                shift = (Wp - c0) % Wp if roll_mode == "numpy" else c0
                # Wrap-around lands beyond column W (never read): c0+W <= Wp.
                win = pltpu.roll(slab, shift, axis=1)[:, :W, :]
            win = win.astype(dw_dtype)             # one cast per kx, not per tap
            for ky in range(K):                    # leading-dim shifts are free
                acc = acc + win[ky * dil:ky * dil + H] * w_ref[ky * K + kx]
        return acc

    # conv0: depthwise d_k x d_k, dilation 1
    a0 = depthwise(pad_a, w0_ref, b0_ref, d_k, 1, p1, off1)
    pad_b[p2:p2 + H, off2:off2 + W, :] = a0.astype(f32)

    # conv_spatial: depthwise dd_k x dd_k, dilation `dilation`
    a1 = depthwise(pad_b, ws_ref, bs_ref, dd_k, dilation, p2, off2)

    # ---- conv1 (1x1, C -> 2C) as ONE matmul, then sigmoid(g) * f -----------
    a2d = a1.reshape(H * W, Cp).astype(jnp.bfloat16)
    fg = jnp.dot(a2d, wfg_ref[...], preferred_element_type=f32) + bfg_ref[...]
    f = fg[:, :Cp]
    g = fg[:, Cp:]
    y = jax.nn.sigmoid(g) * f

    # ---- proj_2 (1x1 conv) + residual shortcut ------------------------------
    out = jnp.dot(y.astype(jnp.bfloat16), w2_ref[...],
                  preferred_element_type=f32) + b2_ref[...] + x2d
    o_ref[0] = out.reshape(H, W, Cp)


# ------------------------------ wrapper --------------------------------------


def _pad_last(a, target):
    pad = target - a.shape[-1]
    if pad == 0:
        return a
    cfg = [(0, 0)] * (a.ndim - 1) + [(0, pad)]
    return jnp.pad(a, cfg)


@functools.partial(
    jax.jit, static_argnames=("dilation", "depthwise_dtype", "roll_mode"))
def _forward_impl(x, params, *, dilation, depthwise_dtype, roll_mode):
    N, H, W, C = x.shape
    Cp = _round_up(max(C, _LANES), _LANES)        # lane-dense channel axis
    d_k = params["w_conv0"].shape[0]
    dd_k = params["w_convsp"].shape[0]
    p1 = (d_k - 1) // 2
    p2 = dilation * (dd_k - 1) // 2
    off1 = _round_up(max(p1, 1), _SUB)            # aligned interior offsets
    off2 = _round_up(max(p2, 1), _SUB)
    Wpa = _round_up(off1 + W + p1, _SUB)          # slab widths (8-aligned)
    Wpb = _round_up(off2 + W + p2, _SUB)
    Hpa = H + 2 * p1
    Hpb = H + 2 * p2

    f32, bf16 = jnp.float32, jnp.bfloat16
    dwt = depthwise_dtype

    # --- zero-pad channel axis (zeros stay inert through every stage) ---
    x_p = _pad_last(x, Cp)

    def pad_sq(w):                                # (C, C) -> (Cp, Cp)
        return jnp.pad(w, ((0, Cp - C), (0, Cp - C)))

    w1 = pad_sq(params["w_proj1"]).astype(bf16)
    b1 = _pad_last(params["b_proj1"], Cp).astype(f32)
    w2 = pad_sq(params["w_proj2"]).astype(bf16)
    b2 = _pad_last(params["b_proj2"], Cp).astype(f32)

    w0 = _pad_last(params["w_conv0"].reshape(d_k * d_k, C), Cp).astype(dwt)
    b0 = _pad_last(params["b_conv0"], Cp).astype(dwt)
    ws = _pad_last(params["w_convsp"].reshape(dd_k * dd_k, C), Cp).astype(dwt)
    bs = _pad_last(params["b_convsp"], Cp).astype(dwt)

    # conv1 (C -> 2C) as one combined weight: cols [0,Cp) = f, [Cp,2Cp) = g.
    wfg = jnp.zeros((Cp, 2 * Cp), f32)
    wfg = wfg.at[:C, :C].set(params["w_f"]).at[:C, Cp:Cp + C].set(params["w_g"])
    wfg = wfg.astype(bf16)
    bfg = jnp.zeros((1, 2 * Cp), f32)
    bfg = bfg.at[:, :C].set(params["b_f"]).at[:, Cp:Cp + C].set(params["b_g"])

    kernel = functools.partial(
        _fused_kernel, H=H, W=W, Cp=Cp, d_k=d_k, dd_k=dd_k,
        dilation=dilation, p1=p1, p2=p2, off1=off1, off2=off2,
        roll_mode=roll_mode, dw_dtype=dwt)

    # ---- VMEM budget computed from the actual per-step buffers -------------
    dwb = jnp.dtype(dwt).itemsize
    slab_bytes = (Hpa * Wpa + Hpb * Wpb) * Cp * 4
    io_bytes = 2 * 2 * H * W * Cp * 4             # in + out, double buffered
    w_bytes = ((2 * Cp * Cp + Cp * 2 * Cp) * 2
               + (d_k * d_k + dd_k * dd_k + 2) * Cp * dwb
               + (3 * Cp + 2 * Cp) * 4)
    tmp_bytes = (slab_bytes                        # rolled slab copies
                 + 6 * H * W * Cp * 4              # h / fg / f / g / y / out
                 + 2 * H * W * Cp * dwb)           # depthwise accumulators
    est = slab_bytes + io_bytes + w_bytes + tmp_bytes
    vmem_limit = int(min(100 * 1024 * 1024, 2 * est + (16 << 20)))
    # TODO(synk): when `est` approaches the v7x 64 MiB/TC budget, switch to
    # H-row-tile blocks (with p1+p2 halo rows) instead of whole-image blocks.

    T = N * H * W
    cost = pl.CostEstimate(
        flops=int(2 * T * Cp * (4 * Cp + d_k * d_k + dd_k * dd_k)),
        transcendentals=int(2 * T * Cp),
        bytes_accessed=int(8 * T * Cp + 8 * Cp * Cp
                           + 4 * Cp * (d_k * d_k + dd_k * dd_k) + 32 * Cp),
    )

    full = lambda n: (0, 0)
    out = pl.pallas_call(
        kernel,
        out_shape=jax.ShapeDtypeStruct((N, H, W, Cp), f32),
        grid=(N,),
        in_specs=[
            pl.BlockSpec((1, H, W, Cp), lambda n: (n, 0, 0, 0)),   # x
            pl.BlockSpec((Cp, Cp), full),                          # w_proj1
            pl.BlockSpec((1, Cp), full),                           # b_proj1
            pl.BlockSpec((d_k * d_k, Cp), full),                   # w_conv0
            pl.BlockSpec((1, Cp), full),                           # b_conv0
            pl.BlockSpec((dd_k * dd_k, Cp), full),                 # w_convsp
            pl.BlockSpec((1, Cp), full),                           # b_convsp
            pl.BlockSpec((Cp, 2 * Cp), full),                      # w_fg
            pl.BlockSpec((1, 2 * Cp), full),                       # b_fg
            pl.BlockSpec((Cp, Cp), full),                          # w_proj2
            pl.BlockSpec((1, Cp), full),                           # b_proj2
        ],
        out_specs=pl.BlockSpec((1, H, W, Cp), lambda n: (n, 0, 0, 0)),
        scratch_shapes=[
            pltpu.VMEM((Hpa, Wpa, Cp), f32),      # zero-padded 5x5 slab
            pltpu.VMEM((Hpb, Wpb, Cp), f32),      # zero-padded 7x7 dil-3 slab
        ],
        compiler_params=pltpu.CompilerParams(
            dimension_semantics=("parallel",),
            vmem_limit_bytes=vmem_limit,
        ),
        cost_estimate=cost,
    )(x_p, w1, b1, w0, b0, ws, bs, wfg, bfg, w2, b2)

    return out[..., :C]


def spatial_attention_forward(x, params, dilation=3,
                              depthwise_dtype=jnp.bfloat16):
    """x: (N, H, W, C) float32 NHWC -> (N, H, W, C) float32.

    depthwise_dtype: bf16 is the fast path on v6e/v7x (packed VALU);
    pass jnp.float32 on v5e (no bf16 VALU there).
    """
    if x.shape[2] % _SUB != 0:
        # TODO(synk): pad-and-remask ragged widths; keeping W a multiple of 8
        # guarantees unmasked staging stores and zero-cost (H,W,C)<->(H*W,C).
        raise ValueError("W must be a multiple of 8 for this kernel")
    roll_mode = _detect_roll_mode()
    return _forward_impl(x, params, dilation=dilation,
                         depthwise_dtype=depthwise_dtype, roll_mode=roll_mode)


# --------------------------- params & reference ------------------------------


def init_params(key, d_model, kernel_size=21, dilation=3):
    """Deterministic synthetic parameters (shapes follow the PyTorch module)."""
    d_k = 2 * dilation - 1                                              # 5
    dd_k = kernel_size // dilation + (kernel_size // dilation % 2 - 1)  # 7
    ks = jax.random.split(key, 12)
    s = 0.1
    C = d_model
    return {
        "w_proj1": s * jax.random.normal(ks[0], (C, C), jnp.float32),
        "b_proj1": s * jax.random.normal(ks[1], (1, C), jnp.float32),
        "w_conv0": s * jax.random.normal(ks[2], (d_k, d_k, C), jnp.float32),
        "b_conv0": s * jax.random.normal(ks[3], (1, C), jnp.float32),
        "w_convsp": s * jax.random.normal(ks[4], (dd_k, dd_k, C), jnp.float32),
        "b_convsp": s * jax.random.normal(ks[5], (1, C), jnp.float32),
        "w_f": s * jax.random.normal(ks[6], (C, C), jnp.float32),
        "b_f": s * jax.random.normal(ks[7], (1, C), jnp.float32),
        "w_g": s * jax.random.normal(ks[8], (C, C), jnp.float32),
        "b_g": s * jax.random.normal(ks[9], (1, C), jnp.float32),
        "w_proj2": s * jax.random.normal(ks[10], (C, C), jnp.float32)
                   + jnp.eye(C, dtype=jnp.float32),
        "b_proj2": s * jax.random.normal(ks[11], (1, C), jnp.float32),
    }


def spatial_attention_reference(x, params, dilation=3):
    """Pure-jnp f32 reference of the PyTorch forward (NHWC, exact-erf GELU)."""
    N, H, W, C = x.shape

    def pw(t, w, b):
        return jnp.einsum("nhwc,cd->nhwd", t, w) + b

    def dw(t, w, b, dil):
        K = w.shape[0]
        p = dil * (K - 1) // 2
        tp = jnp.pad(t, ((0, 0), (p, p), (p, p), (0, 0)))
        acc = jnp.zeros_like(t) + b
        for ky in range(K):
            for kx in range(K):
                acc = acc + tp[:, ky * dil:ky * dil + H,
                               kx * dil:kx * dil + W, :] * w[ky, kx]
        return acc

    h = pw(x, params["w_proj1"], params["b_proj1"])
    h = 0.5 * h * (1.0 + jax.lax.erf(h * _INV_SQRT2))
    a = dw(h, params["w_conv0"], params["b_conv0"], 1)
    a = dw(a, params["w_convsp"], params["b_convsp"], dilation)
    f = pw(a, params["w_f"], params["b_f"])
    g = pw(a, params["w_g"], params["b_g"])
    y = jax.nn.sigmoid(g) * f
    return pw(y, params["w_proj2"], params["b_proj2"]) + x


if __name__ == "__main__":
    N, H, W, C = 2, 16, 16, 4   # NHWC; NCHW equivalent: (2, 4, 16, 16)
    key = jax.random.PRNGKey(0)
    k_x, k_p = jax.random.split(key)
    x = jax.random.normal(k_x, (N, H, W, C), jnp.float32)
    params = init_params(k_p, d_model=C, kernel_size=21, dilation=3)

    out = spatial_attention_forward(x, params, dilation=3)
    out = jax.block_until_ready(out)

    assert out.shape == (N, H, W, C)
    assert bool(jnp.all(jnp.isfinite(out)))

    ref = spatial_attention_reference(x, params, dilation=3)
    max_err = float(jnp.max(jnp.abs(out - ref)))
    assert max_err < 5e-2, f"max abs error vs reference: {max_err}"
    print("KERNEL_OK")
</pallas_src>

<mosaic_0001>
module attributes {stable_mosaic.version = 11 : i64} {
  func.func @probe(%arg0: memref<2x16x128xf32, #tpu.memory_space<vmem>>, %arg1: memref<2x16x128xf32, #tpu.memory_space<vmem>>) attributes {dimension_semantics = [], scalar_prefetch = 0 : i64, scratch_operands = 0 : i64, tpu.core_type = #tpu.core_type<tc>} {
    %c0 = arith.constant 0 : index
    %c0_0 = arith.constant 0 : index
    %c0_1 = arith.constant 0 : index
    %0 = vector.load %arg0[%c0, %c0_0, %c0_1] : memref<2x16x128xf32, #tpu.memory_space<vmem>>, vector<2x16x128xf32>
    %c5_i32 = arith.constant 5 : i32
    %1 = tpu.dynamic_rotate %0 by %c5_i32 dim 1 : vector<2x16x128xf32>, i32 -> vector<2x16x128xf32>
    %c0_2 = arith.constant 0 : index
    %c0_3 = arith.constant 0 : index
    %c0_4 = arith.constant 0 : index
    %2 = vector.load %arg1[%c0_2, %c0_3, %c0_4] : memref<2x16x128xf32, #tpu.memory_space<vmem>>, vector<2x16x128xf32>
    tpu.vector_store %arg1[%c0_2, %c0_3, %c0_4], %1 {strides = array<i32>} : memref<2x16x128xf32, #tpu.memory_space<vmem>>, vector<2x16x128xf32>,
    return
  }
}

module attributes {stable_mosaic.version = 11 : i64} {
  func.func @_fused_kernel(%arg0: i32, %arg1: memref<1x16x16x128xf32, #tpu.memory_space<vmem>>, %arg2: memref<128x128xbf16, #tpu.memory_space<vmem>>, %arg3: memref<1x128xf32, #tpu.memory_space<vmem>>, %arg4: memref<25x128xbf16, #tpu.memory_space<vmem>>, %arg5: memref<1x128xbf16, #tpu.memory_space<vmem>>, %arg6: memref<49x128xbf16, #tpu.memory_space<vmem>>, %arg7: memref<1x128xbf16, #tpu.memory_space<vmem>>, %arg8: memref<128x256xbf16, #tpu.memory_space<vmem>>, %arg9: memref<1x256xf32, #tpu.memory_space<vmem>>, %arg10: memref<128x128xbf16, #tpu.memory_space<vmem>>, %arg11: memref<1x128xf32, #tpu.memory_space<vmem>>, %arg12: memref<1x16x16x128xf32, #tpu.memory_space<vmem>>, %arg13: memref<20x32x128xf32, #tpu.memory_space<vmem>>, %arg14: memref<34x48x128xf32, #tpu.memory_space<vmem>>) attributes {dimension_semantics = [#tpu.dimension_semantics<parallel>], iteration_bounds = array<i64: 2>, scalar_prefetch = 0 : i64, scratch_operands = 2 : i64, tpu.core_type = #tpu.core_type<tc>, window_params = [{transform_indices = @transform_0, window_bounds = array<i64: 1, 16, 16, 128>}, {pipeline_mode = #tpu.pipeline_mode<synchronous>, transform_indices = @transform_1, window_bounds = array<i64: 128, 128>}, {pipeline_mode = #tpu.pipeline_mode<synchronous>, transform_indices = @transform_2, window_bounds = array<i64: 1, 128>}, {pipeline_mode = #tpu.pipeline_mode<synchronous>, transform_indices = @transform_3, window_bounds = array<i64: 25, 128>}, {pipeline_mode = #tpu.pipeline_mode<synchronous>, transform_indices = @transform_4, window_bounds = array<i64: 1, 128>}, {pipeline_mode = #tpu.pipeline_mode<synchronous>, transform_indices = @transform_5, window_bounds = array<i64: 49, 128>}, {pipeline_mode = #tpu.pipeline_mode<synchronous>, transform_indices = @transform_6, window_bounds = array<i64: 1, 128>}, {pipeline_mode = #tpu.pipeline_mode<synchronous>, transform_indices = @transform_7, window_bounds = array<i64: 128, 256>}, {pipeline_mode = #tpu.pipeline_mode<synchronous>, transform_indices = @transform_8, window_bounds = array<i64: 1, 256>}, {pipeline_mode = #tpu.pipeline_mode<synchronous>, transform_indices = @transform_9, window_bounds = array<i64: 128, 128>}, {pipeline_mode = #tpu.pipeline_mode<synchronous>, transform_indices = @transform_10, window_bounds = array<i64: 1, 128>}, {transform_indices = @transform_11, window_bounds = array<i64: 1, 16, 16, 128>}]} {
    %cst = arith.constant 0.000000e+00 : f32
    %0 = vector.broadcast %cst : f32 to vector<2x32x128xf32>
    %c0 = arith.constant 0 : index
    %c0_0 = arith.constant 0 : index
    %c0_1 = arith.constant 0 : index
    %1 = vector.load %arg13[%c0, %c0_0, %c0_1] : memref<20x32x128xf32, #tpu.memory_space<vmem>>, vector<2x32x128xf32>
    tpu.vector_store %arg13[%c0, %c0_0, %c0_1], %0 {strides = array<i32>} : memref<20x32x128xf32, #tpu.memory_space<vmem>>, vector<2x32x128xf32>,
    %c18 = arith.constant 18 : index
    %c0_2 = arith.constant 0 : index
    %c0_3 = arith.constant 0 : index
    %2 = vector.load %arg13[%c18, %c0_2, %c0_3] : memref<20x32x128xf32, #tpu.memory_space<vmem>>, vector<2x32x128xf32>
    tpu.vector_store %arg13[%c18, %c0_2, %c0_3], %0 {strides = array<i32>} : memref<20x32x128xf32, #tpu.memory_space<vmem>>, vector<2x32x128xf32>,
    %cst_4 = arith.constant 0.000000e+00 : f32
    %3 = vector.broadcast %cst_4 : f32 to vector<20x8x128xf32>
    %c0_5 = arith.constant 0 : index
    %c0_6 = arith.constant 0 : index
    %c0_7 = arith.constant 0 : index
    %4 = vector.load %arg13[%c0_5, %c0_6, %c0_7] : memref<20x32x128xf32, #tpu.memory_space<vmem>>, vector<20x8x128xf32>
    tpu.vector_store %arg13[%c0_5, %c0_6, %c0_7], %3 {strides = array<i32>} : memref<20x32x128xf32, #tpu.memory_space<vmem>>, vector<20x8x128xf32>,
    %cst_8 = arith.constant 0.000000e+00 : f32
    %5 = vector.broadcast %cst_8 : f32 to vector<20x8x128xf32>
    %c0_9 = arith.constant 0 : index
    %c24 = arith.constant 24 : index
    %c0_10 = arith.constant 0 : index
    %6 = vector.load %arg13[%c0_9, %c24, %c0_10] : memref<20x32x128xf32, #tpu.memory_space<vmem>>, vector<20x8x128xf32>
    tpu.vector_store %arg13[%c0_9, %c24, %c0_10], %5 {strides = array<i32>} : memref<20x32x128xf32, #tpu.memory_space<vmem>>, vector<20x8x128xf32>,
    %cst_11 = arith.constant 0.000000e+00 : f32
    %7 = vector.broadcast %cst_11 : f32 to vector<9x48x128xf32>
    %c0_12 = arith.constant 0 : index
    %c0_13 = arith.constant 0 : index
    %c0_14 = arith.constant 0 : index
    %8 = vector.load %arg14[%c0_12, %c0_13, %c0_14] : memref<34x48x128xf32, #tpu.memory_space<vmem>>, vector<9x48x128xf32>
    tpu.vector_store %arg14[%c0_12, %c0_13, %c0_14], %7 {strides = array<i32>} : memref<34x48x128xf32, #tpu.memory_space<vmem>>, vector<9x48x128xf32>,
    %c25 = arith.constant 25 : index
    %c0_15 = arith.constant 0 : index
    %c0_16 = arith.constant 0 : index
    %9 = vector.load %arg14[%c25, %c0_15, %c0_16] : memref<34x48x128xf32, #tpu.memory_space<vmem>>, vector<9x48x128xf32>
    tpu.vector_store %arg14[%c25, %c0_15, %c0_16], %7 {strides = array<i32>} : memref<34x48x128xf32, #tpu.memory_space<vmem>>, vector<9x48x128xf32>,
    %cst_17 = arith.constant 0.000000e+00 : f32
    %10 = vector.broadcast %cst_17 : f32 to vector<34x16x128xf32>
    %c0_18 = arith.constant 0 : index
    %c0_19 = arith.constant 0 : index
    %c0_20 = arith.constant 0 : index
    %11 = vector.load %arg14[%c0_18, %c0_19, %c0_20] : memref<34x48x128xf32, #tpu.memory_space<vmem>>, vector<34x16x128xf32>
    tpu.vector_store %arg14[%c0_18, %c0_19, %c0_20], %10 {strides = array<i32>} : memref<34x48x128xf32, #tpu.memory_space<vmem>>, vector<34x16x128xf32>,
    %cst_21 = arith.constant 0.000000e+00 : f32
    %12 = vector.broadcast %cst_21 : f32 to vector<34x16x128xf32>
    %c0_22 = arith.constant 0 : index
    %c32 = arith.constant 32 : index
    %c0_23 = arith.constant 0 : index
    %13 = vector.load %arg14[%c0_22, %c32, %c0_23] : memref<34x48x128xf32, #tpu.memory_space<vmem>>, vector<34x16x128xf32>
    tpu.vector_store %arg14[%c0_22, %c32, %c0_23], %12 {strides = array<i32>} : memref<34x48x128xf32, #tpu.memory_space<vmem>>, vector<34x16x128xf32>,
    %c0_24 = arith.constant 0 : index
    %c0_25 = arith.constant 0 : index
    %c0_26 = arith.constant 0 : index
    %c0_27 = arith.constant 0 : index
    %14 = vector.load %arg1[%c0_24, %c0_25, %c0_26, %c0_27] : memref<1x16x16x128xf32, #tpu.memory_space<vmem>>, vector<1x16x16x128xf32>
    %15 = vector.shape_cast %14 : vector<1x16x16x128xf32> to vector<16x16x128xf32>
    %16 = vector.shape_cast %15 : vector<16x16x128xf32> to vector<256x128xf32>
    %17 = arith.truncf %16 : vector<256x128xf32> to vector<256x128xbf16>
    %c0_28 = arith.constant 0 : index
    %c0_29 = arith.constant 0 : index
    %18 = vector.load %arg2[%c0_28, %c0_29] : memref<128x128xbf16, #tpu.memory_space<vmem>>, vector<128x128xbf16>
    %cst_30 = arith.constant dense<0.000000e+00> : vector<256x128xf32>
    %19 = tpu.matmul %17, %18, %cst_30 {dimension_numbers = #tpu.dot_dimension_numbers<[1], [0], [0], [1], [0, 0, 1, 1], [], []>} : vector<256x128xbf16>, vector<128x128xbf16>, vector<256x128xf32> -> vector<256x128xf32>
    %c0_31 = arith.constant 0 : index
    %c0_32 = arith.constant 0 : index
    %20 = vector.load %arg3[%c0_31, %c0_32] : memref<1x128xf32, #tpu.memory_space<vmem>>, vector<1x128xf32>
    %21 = vector.broadcast %20 : vector<1x128xf32> to vector<256x128xf32>
    %22 = arith.addf %19, %21 : vector<256x128xf32>
    %cst_33 = arith.constant 5.000000e-01 : f32
    %23 = vector.broadcast %cst_33 : f32 to vector<256x128xf32>
    %24 = arith.mulf %23, %22 : vector<256x128xf32>
    %cst_34 = arith.constant 4.471500e-02 : f32
    %25 = vector.broadcast %cst_34 : f32 to vector<256x128xf32>
    %26 = arith.mulf %25, %22 : vector<256x128xf32>
    %27 = arith.mulf %26, %22 : vector<256x128xf32>
    %28 = arith.mulf %27, %22 : vector<256x128xf32>
    %29 = arith.addf %22, %28 : vector<256x128xf32>
    %cst_35 = arith.constant 0.797884583 : f32
    %30 = vector.broadcast %cst_35 : f32 to vector<256x128xf32>
    %31 = arith.mulf %30, %29 : vector<256x128xf32>
    %32 = math.tanh %31 : vector<256x128xf32>
    %cst_36 = arith.constant 1.000000e+00 : f32
    %33 = vector.broadcast %cst_36 : f32 to vector<256x128xf32>
    %34 = arith.addf %33, %32 : vector<256x128xf32>
    %35 = arith.mulf %24, %34 : vector<256x128xf32>
    %36 = vector.shape_cast %35 : vector<256x128xf32> to vector<16x16x128xf32>
    %c2 = arith.constant 2 : index
    %c8 = arith.constant 8 : index
    %c0_37 = arith.constant 0 : index
    %37 = vector.load %arg13[%c2, %c8, %c0_37] : memref<20x32x128xf32, #tpu.memory_space<vmem>>, vector<16x16x128xf32>
    tpu.vector_store %arg13[%c2, %c8, %c0_37], %36 {strides = array<i32>} : memref<20x32x128xf32, #tpu.memory_space<vmem>>, vector<16x16x128xf32>,
    %c0_38 = arith.constant 0 : index
    %c0_39 = arith.constant 0 : index
    %38 = vector.load %arg5[%c0_38, %c0_39] : memref<1x128xbf16, #tpu.memory_space<vmem>>, vector<1x128xbf16>
    %39 = vector.shape_cast %38 : vector<1x128xbf16> to vector<1x1x128xbf16>
    %40 = vector.broadcast %39 : vector<1x1x128xbf16> to vector<16x16x128xbf16>
    %c0_40 = arith.constant 0 : index
    %c6 = arith.constant 6 : index
    %c0_41 = arith.constant 0 : index
    %41 = vector.load %arg13[%c0_40, %c6, %c0_41] : memref<20x32x128xf32, #tpu.memory_space<vmem>>, vector<20x16x128xf32>
    %42 = arith.truncf %41 : vector<20x16x128xf32> to vector<20x16x128xbf16>
    %43 = vector.extract_strided_slice %42 {offsets = [0, 0, 0], sizes = [16, 16, 128], strides = [1, 1, 1]} : vector<20x16x128xbf16> to vector<16x16x128xbf16>
    %c0_42 = arith.constant 0 : index
    %c0_43 = arith.constant 0 : index
    %44 = vector.load %arg4[%c0_42, %c0_43] : memref<25x128xbf16, #tpu.memory_space<vmem>>, vector<1x128xbf16>
    %45 = vector.shape_cast %44 : vector<1x128xbf16> to vector<128xbf16>
    %46 = vector.shape_cast %45 : vector<128xbf16> to vector<1x1x128xbf16>
    %47 = vector.broadcast %46 : vector<1x1x128xbf16> to vector<16x16x128xbf16>
    %48 = arith.mulf %43, %47 : vector<16x16x128xbf16>
    %49 = arith.addf %40, %48 : vector<16x16x128xbf16>
    %50 = vector.extract_strided_slice %42 {offsets = [1, 0, 0], sizes = [16, 16, 128], strides = [1, 1, 1]} : vector<20x16x128xbf16> to vector<16x16x128xbf16>
    %c5 = arith.constant 5 : index
    %c0_44 = arith.constant 0 : index
    %51 = vector.load %arg4[%c5, %c0_44] : memref<25x128xbf16, #tpu.memory_space<vmem>>, vector<1x128xbf16>
    %52 = vector.shape_cast %51 : vector<1x128xbf16> to vector<128xbf16>
    %53 = vector.shape_cast %52 : vector<128xbf16> to vector<1x1x128xbf16>
    %54 = vector.broadcast %53 : vector<1x1x128xbf16> to vector<16x16x128xbf16>
    %55 = arith.mulf %50, %54 : vector<16x16x128xbf16>
    %56 = arith.addf %49, %55 : vector<16x16x128xbf16>
    %57 = vector.extract_strided_slice %42 {offsets = [2, 0, 0], sizes = [16, 16, 128], strides = [1, 1, 1]} : vector<20x16x128xbf16> to vector<16x16x128xbf16>
    %c10 = arith.constant 10 : index
    %c0_45 = arith.constant 0 : index
    %58 = vector.load %arg4[%c10, %c0_45] : memref<25x128xbf16, #tpu.memory_space<vmem>>, vector<1x128xbf16>
    %59 = vector.shape_cast %58 : vector<1x128xbf16> to vector<128xbf16>
    %60 = vector.shape_cast %59 : vector<128xbf16> to vector<1x1x128xbf16>
    %61 = vector.broadcast %60 : vector<1x1x128xbf16> to vector<16x16x128xbf16>
    %62 = arith.mulf %57, %61 : vector<16x16x128xbf16>
    %63 = arith.addf %56, %62 : vector<16x16x128xbf16>
    %64 = vector.extract_strided_slice %42 {offsets = [3, 0, 0], sizes = [16, 16, 128], strides = [1, 1, 1]} : vector<20x16x128xbf16> to vector<16x16x128xbf16>
    %c15 = arith.constant 15 : index
    %c0_46 = arith.constant 0 : index
    %65 = vector.load %arg4[%c15, %c0_46] : memref<25x128xbf16, #tpu.memory_space<vmem>>, vector<1x128xbf16>
    %66 = vector.shape_cast %65 : vector<1x128xbf16> to vector<128xbf16>
    %67 = vector.shape_cast %66 : vector<128xbf16> to vector<1x1x128xbf16>
    %68 = vector.broadcast %67 : vector<1x1x128xbf16> to vector<16x16x128xbf16>
    %69 = arith.mulf %64, %68 : vector<16x16x128xbf16>
    %70 = arith.addf %63, %69 : vector<16x16x128xbf16>
    %71 = vector.extract_strided_slice %42 {offsets = [4, 0, 0], sizes = [16, 16, 128], strides = [1, 1, 1]} : vector<20x16x128xbf16> to vector<16x16x128xbf16>
    %c20 = arith.constant 20 : index
    %c0_47 = arith.constant 0 : index
    %72 = vector.load %arg4[%c20, %c0_47] : memref<25x128xbf16, #tpu.memory_space<vmem>>, vector<1x128xbf16>
    %73 = vector.shape_cast %72 : vector<1x128xbf16> to vector<128xbf16>
    %74 = vector.shape_cast %73 : vector<128xbf16> to vector<1x1x128xbf16>
    %75 = vector.broadcast %74 : vector<1x1x128xbf16> to vector<16x16x128xbf16>
    %76 = arith.mulf %71, %75 : vector<16x16x128xbf16>
    %77 = arith.addf %70, %76 : vector<16x16x128xbf16>
    %c0_48 = arith.constant 0 : index
    %c7 = arith.constant 7 : index
    %c0_49 = arith.constant 0 : index
    %78 = vector.load %arg13[%c0_48, %c7, %c0_49] : memref<20x32x128xf32, #tpu.memory_space<vmem>>, vector<20x16x128xf32>
    %79 = arith.truncf %78 : vector<20x16x128xf32> to vector<20x16x128xbf16>
    %80 = vector.extract_strided_slice %79 {offsets = [0, 0, 0], sizes = [16, 16, 128], strides = [1, 1, 1]} : vector<20x16x128xbf16> to vector<16x16x128xbf16>
    %c1 = arith.constant 1 : index
    %c0_50 = arith.constant 0 : index
    %81 = vector.load %arg4[%c1, %c0_50] : memref<25x128xbf16, #tpu.memory_space<vmem>>, vector<1x128xbf16>
    %82 = vector.shape_cast %81 : vector<1x128xbf16> to vector<128xbf16>
    %83 = vector.shape_cast %82 : vector<128xbf16> to vector<1x1x128xbf16>
    %84 = vector.broadcast %83 : vector<1x1x128xbf16> to vector<16x16x128xbf16>
    %85 = arith.mulf %80, %84 : vector<16x16x128xbf16>
    %86 = arith.addf %77, %85 : vector<16x16x128xbf16>
    %87 = vector.extract_strided_slice %79 {offsets = [1, 0, 0], sizes = [16, 16, 128], strides = [1, 1, 1]} : vector<20x16x128xbf16> to vector<16x16x128xbf16>
    %c6_51 = arith.constant 6 : index
    %c0_52 = arith.constant 0 : index
    %88 = vector.load %arg4[%c6_51, %c0_52] : memref<25x128xbf16, #tpu.memory_space<vmem>>, vector<1x128xbf16>
    %89 = vector.shape_cast %88 : vector<1x128xbf16> to vector<128xbf16>
    %90 = vector.shape_cast %89 : vector<128xbf16> to vector<1x1x128xbf16>
    %91 = vector.broadcast %90 : vector<1x1x128xbf16> to vector<16x16x128xbf16>
    %92 = arith.mulf %87, %91 : vector<16x16x128xbf16>
    %93 = arith.addf %86, %92 : vector<16x16x128xbf16>
    %94 = vector.extract_strided_slice %79 {offsets = [2, 0, 0], sizes = [16, 16, 128], strides = [1, 1, 1]} : vector<20x16x128xbf16> to vector<16x16x128xbf16>
    %c11 = arith.constant 11 : index
    %c0_53 = arith.constant 0 : index
    %95 = vector.load %arg4[%c11, %c0_53] : memref<25x128xbf16, #tpu.memory_space<vmem>>, vector<1x128xbf16>
    %96 = vector.shape_cast %95 : vector<1x128xbf16> to vector<128xbf16>
    %97 = vector.shape_cast %96 : vector<128xbf16> to vector<1x1x128xbf16>
    %98 = vector.broadcast %97 : vector<1x1x128xbf16> to vector<16x16x128xbf16>
    %99 = arith.mulf %94, %98 : vector<16x16x128xbf16>
    %100 = arith.addf %93, %99 : vector<16x16x128xbf16>
    %101 = vector.extract_strided_slice %79 {offsets = [3, 0, 0], sizes = [16, 16, 128], strides = [1, 1, 1]} : vector<20x16x128xbf16> to vector<16x16x128xbf16>
    %c16 = arith.constant 16 : index
    %c0_54 = arith.constant 0 : index
    %102 = vector.load %arg4[%c16, %c0_54] : memref<25x128xbf16, #tpu.memory_space<vmem>>, vector<1x128xbf16>
    %103 = vector.shape_cast %102 : vector<1x128xbf16> to vector<128xbf16>
    %104 = vector.shape_cast %103 : vector<128xbf16> to vector<1x1x128xbf16>
    %105 = vector.broadcast %104 : vector<1x1x128xbf16> to vector<16x16x128xbf16>
    %106 = arith.mulf %101, %105 : vector<16x16x128xbf16>
    %107 = arith.addf %100, %106 : vector<16x16x128xbf16>
    %108 = vector.extract_strided_slice %79 {offsets = [4, 0, 0], sizes = [16, 16, 128], strides = [1, 1, 1]} : vector<20x16x128xbf16> to vector<16x16x128xbf16>
    %c21 = arith.constant 21 : index
    %c0_55 = arith.constant 0 : index
    %109 = vector.load %arg4[%c21, %c0_55] : memref<25x128xbf16, #tpu.memory_space<vmem>>, vector<1x128xbf16>
    %110 = vector.shape_cast %109 : vector<1x128xbf16> to vector<128xbf16>
    %111 = vector.shape_cast %110 : vector<128xbf16> to vector<1x1x128xbf16>
    %112 = vector.broadcast %111 : vector<1x1x128xbf16> to vector<16x16x128xbf16>
    %113 = arith.mulf %108, %112 : vector<16x16x128xbf16>
    %114 = arith.addf %107, %113 : vector<16x16x128xbf16>
    %c0_56 = arith.constant 0 : index
    %c8_57 = arith.constant 8 : index
    %c0_58 = arith.constant 0 : index
    %115 = vector.load %arg13[%c0_56, %c8_57, %c0_58] : memref<20x32x128xf32, #tpu.memory_space<vmem>>, vector<20x16x128xf32>
    %116 = arith.truncf %115 : vector<20x16x128xf32> to vector<20x16x128xbf16>
    %117 = vector.extract_strided_slice %116 {offsets = [0, 0, 0], sizes = [16, 16, 128], strides = [1, 1, 1]} : vector<20x16x128xbf16> to vector<16x16x128xbf16>
    %c2_59 = arith.constant 2 : index
    %c0_60 = arith.constant 0 : index
    %118 = vector.load %arg4[%c2_59, %c0_60] : memref<25x128xbf16, #tpu.memory_space<vmem>>, vector<1x128xbf16>
    %119 = vector.shape_cast %118 : vector<1x128xbf16> to vector<128xbf16>
    %120 = vector.shape_cast %119 : vector<128xbf16> to vector<1x1x128xbf16>
    %121 = vector.broadcast %120 : vector<1x1x128xbf16> to vector<16x16x128xbf16>
    %122 = arith.mulf %117, %121 : vector<16x16x128xbf16>
    %123 = arith.addf %114, %122 : vector<16x16x128xbf16>
    %124 = vector.extract_strided_slice %116 {offsets = [1, 0, 0], sizes = [16, 16, 128], strides = [1, 1, 1]} : vector<20x16x128xbf16> to vector<16x16x128xbf16>
    %c7_61 = arith.constant 7 : index
    %c0_62 = arith.constant 0 : index
    %125 = vector.load %arg4[%c7_61, %c0_62] : memref<25x128xbf16, #tpu.memory_space<vmem>>, vector<1x128xbf16>
    %126 = vector.shape_cast %125 : vector<1x128xbf16> to vector<128xbf16>
    %127 = vector.shape_cast %126 : vector<128xbf16> to vector<1x1x128xbf16>
    %128 = vector.broadcast %127 : vector<1x1x128xbf16> to vector<16x16x128xbf16>
    %129 = arith.mulf %124, %128 : vector<16x16x128xbf16>
    %130 = arith.addf %123, %129 : vector<16x16x128xbf16>
    %131 = vector.extract_strided_slice %116 {offsets = [2, 0, 0], sizes = [16, 16, 128], strides = [1, 1, 1]} : vector<20x16x128xbf16> to vector<16x16x128xbf16>
    %c12 = arith.constant 12 : index
    %c0_63 = arith.constant 0 : index
    %132 = vector.load %arg4[%c12, %c0_63] : memref<25x128xbf16, #tpu.memory_space<vmem>>, vector<1x128xbf16>
    %133 = vector.shape_cast %132 : vector<1x128xbf16> to vector<128xbf16>
    %134 = vector.shape_cast %133 : vector<128xbf16> to vector<1x1x128xbf16>
    %135 = vector.broadcast %134 : vector<1x1x128xbf16> to vector<16x16x128xbf16>
    %136 = arith.mulf %131, %135 : vector<16x16x128xbf16>
    %137 = arith.addf %130, %136 : vector<16x16x128xbf16>
    %138 = vector.extract_strided_slice %116 {offsets = [3, 0, 0], sizes = [16, 16, 128], strides = [1, 1, 1]} : vector<20x16x128xbf16> to vector<16x16x128xbf16>
    %c17 = arith.constant 17 : index
    %c0_64 = arith.constant 0 : index
    %139 = vector.load %arg4[%c17, %c0_64] : memref<25x128xbf16, #tpu.memory_space<vmem>>, vector<1x128xbf16>
    %140 = vector.shape_cast %139 : vector<1x128xbf16> to vector<128xbf16>
    %141 = vector.shape_cast %140 : vector<128xbf16> to vector<1x1x128xbf16>
    %142 = vector.broadcast %141 : vector<1x1x128xbf16> to vector<16x16x128xbf16>
    %143 = arith.mulf %138, %142 : vector<16x16x128xbf16>
    %144 = arith.addf %137, %143 : vector<16x16x128xbf16>
    %145 = vector.extract_strided_slice %116 {offsets = [4, 0, 0], sizes = [16, 16, 128], strides = [1, 1, 1]} : vector<20x16x128xbf16> to vector<16x16x128xbf16>
    %c22 = arith.constant 22 : index
    %c0_65 = arith.constant 0 : index
    %146 = vector.load %arg4[%c22, %c0_65] : memref<25x128xbf16, #tpu.memory_space<vmem>>, vector<1x128xbf16>
    %147 = vector.shape_cast %146 : vector<1x128xbf16> to vector<128xbf16>
    %148 = vector.shape_cast %147 : vector<128xbf16> to vector<1x1x128xbf16>
    %149 = vector.broadcast %148 : vector<1x1x128xbf16> to vector<16x16x128xbf16>
    %150 = arith.mulf %145, %149 : vector<16x16x128xbf16>
    %151 = arith.addf %144, %150 : vector<16x16x128xbf16>
    %c0_66 = arith.constant 0 : index
    %c9 = arith.constant 9 : index
    %c0_67 = arith.constant 0 : index
    %152 = vector.load %arg13[%c0_66, %c9, %c0_67] : memref<20x32x128xf32, #tpu.memory_space<vmem>>, vector<20x16x128xf32>
    %153 = arith.truncf %152 : vector<20x16x128xf32> to vector<20x16x128xbf16>
    %154 = vector.extract_strided_slice %153 {offsets = [0, 0, 0], sizes = [16, 16, 128], strides = [1, 1, 1]} : vector<20x16x128xbf16> to vector<16x16x128xbf16>
    %c3 = arith.constant 3 : index
    %c0_68 = arith.constant 0 : index
    %155 = vector.load %arg4[%c3, %c0_68] : memref<25x128xbf16, #tpu.memory_space<vmem>>, vector<1x128xbf16>
    %156 = vector.shape_cast %155 : vector<1x128xbf16> to vector<128xbf16>
    %157 = vector.shape_cast %156 : vector<128xbf16> to vector<1x1x128xbf16>
    %158 = vector.broadcast %157 : vector<1x1x128xbf16> to vector<16x16x128xbf16>
    %159 = arith.mulf %154, %158 : vector<16x16x128xbf16>
    %160 = arith.addf %151, %159 : vector<16x16x128xbf16>
    %161 = vector.extract_strided_slice %153 {offsets = [1, 0, 0], sizes = [16, 16, 128], strides = [1, 1, 1]} : vector<20x16x128xbf16> to vector<16x16x128xbf16>
    %c8_69 = arith.constant 8 : index
    %c0_70 = arith.constant 0 : index
    %162 = vector.load %arg4[%c8_69, %c0_70] : memref<25x128xbf16, #tpu.memory_space<vmem>>, vector<1x128xbf16>
    %163 = vector.shape_cast %162 : vector<1x128xbf16> to vector<128xbf16>
    %164 = vector.shape_cast %163 : vector<128xbf16> to vector<1x1x128xbf16>
    %165 = vector.broadcast %164 : vector<1x1x128xbf16> to vector<16x16x128xbf16>
    %166 = arith.mulf %161, %165 : vector<16x16x128xbf16>
    %167 = arith.addf %160, %166 : vector<16x16x128xbf16>
    %168 = vector.extract_strided_slice %153 {offsets = [2, 0, 0], sizes = [16, 16, 128], strides = [1, 1, 1]} : vector<20x16x128xbf16> to vector<16x16x128xbf16>
    %c13 = arith.constant 13 : index
    %c0_71 = arith.constant 0 : index
    %169 = vector.load %arg4[%c13, %c0_71] : memref<25x128xbf16, #tpu.memory_space<vmem>>, vector<1x128xbf16>
    %170 = vector.shape_cast %169 : vector<1x128xbf16> to vector<128xbf16>
    %171 = vector.shape_cast %170 : vector<128xbf16> to vector<1x1x128xbf16>
    %172 = vector.broadcast %171 : vector<1x1x128xbf16> to vector<16x16x128xbf16>
    %173 = arith.mulf %168, %172 : vector<16x16x128xbf16>
    %174 = arith.addf %167, %173 : vector<16x16x128xbf16>
    %175 = vector.extract_strided_slice %153 {offsets = [3, 0, 0], sizes = [16, 16, 128], strides = [1, 1, 1]} : vector<20x16x128xbf16> to vector<16x16x128xbf16>
    %c18_72 = arith.constant 18 : index
    %c0_73 = arith.constant 0 : index
    %176 = vector.load %arg4[%c18_72, %c0_73] : memref<25x128xbf16, #tpu.memory_space<vmem>>, vector<1x128xbf16>
    %177 = vector.shape_cast %176 : vector<1x128xbf16> to vector<128xbf16>
    %178 = vector.shape_cast %177 : vector<128xbf16> to vector<1x1x128xbf16>
    %179 = vector.broadcast %178 : vector<1x1x128xbf16> to vector<16x16x128xbf16>
    %180 = arith.mulf %175, %179 : vector<16x16x128xbf16>
    %181 = arith.addf %174, %180 : vector<16x16x128xbf16>
    %182 = vector.extract_strided_slice %153 {offsets = [4, 0, 0], sizes = [16, 16, 128], strides = [1, 1, 1]} : vector<20x16x128xbf16> to vector<16x16x128xbf16>
    %c23 = arith.constant 23 : index
    %c0_74 = arith.constant 0 : index
    %183 = vector.load %arg4[%c23, %c0_74] : memref<25x128xbf16, #tpu.memory_space<vmem>>, vector<1x128xbf16>
    %184 = vector.shape_cast %183 : vector<1x128xbf16> to vector<128xbf16>
    %185 = vector.shape_cast %184 : vector<128xbf16> to vector<1x1x128xbf16>
    %186 = vector.broadcast %185 : vector<1x1x128xbf16> to vector<16x16x128xbf16>
    %187 = arith.mulf %182, %186 : vector<16x16x128xbf16>
    %188 = arith.addf %181, %187 : vector<16x16x128xbf16>
    %c0_75 = arith.constant 0 : index
    %c10_76 = arith.constant 10 : index
    %c0_77 = arith.constant 0 : index
    %189 = vector.load %arg13[%c0_75, %c10_76, %c0_77] : memref<20x32x128xf32, #tpu.memory_space<vmem>>, vector<20x16x128xf32>
    %190 = arith.truncf %189 : vector<20x16x128xf32> to vector<20x16x128xbf16>
    %191 = vector.extract_strided_slice %190 {offsets = [0, 0, 0], sizes = [16, 16, 128], strides = [1, 1, 1]} : vector<20x16x128xbf16> to vector<16x16x128xbf16>
    %c4 = arith.constant 4 : index
    %c0_78 = arith.constant 0 : index
    %192 = vector.load %arg4[%c4, %c0_78] : memref<25x128xbf16, #tpu.memory_space<vmem>>, vector<1x128xbf16>
    %193 = vector.shape_cast %192 : vector<1x128xbf16> to vector<128xbf16>
    %194 = vector.shape_cast %193 : vector<128xbf16> to vector<1x1x128xbf16>
    %195 = vector.broadcast %194 : vector<1x1x128xbf16> to vector<16x16x128xbf16>
    %196 = arith.mulf %191, %195 : vector<16x16x128xbf16>
    %197 = arith.addf %188, %196 : vector<16x16x128xbf16>
    %198 = vector.extract_strided_slice %190 {offsets = [1, 0, 0], sizes = [16, 16, 128], strides = [1, 1, 1]} : vector<20x16x128xbf16> to vector<16x16x128xbf16>
    %c9_79 = arith.constant 9 : index
    %c0_80 = arith.constant 0 : index
    %199 = vector.load %arg4[%c9_79, %c0_80] : memref<25x128xbf16, #tpu.memory_space<vmem>>, vector<1x128xbf16>
    %200 = vector.shape_cast %199 : vector<1x128xbf16> to vector<128xbf16>
    %201 = vector.shape_cast %200 : vector<128xbf16> to vector<1x1x128xbf16>
    %202 = vector.broadcast %201 : vector<1x1x128xbf16> to vector<16x16x128xbf16>
    %203 = arith.mulf %198, %202 : vector<16x16x128xbf16>
    %204 = arith.addf %197, %203 : vector<16x16x128xbf16>
    %205 = vector.extract_strided_slice %190 {offsets = [2, 0, 0], sizes = [16, 16, 128], strides = [1, 1, 1]} : vector<20x16x128xbf16> to vector<16x16x128xbf16>
    %c14 = arith.constant 14 : index
    %c0_81 = arith.constant 0 : index
    %206 = vector.load %arg4[%c14, %c0_81] : memref<25x128xbf16, #tpu.memory_space<vmem>>, vector<1x128xbf16>
    %207 = vector.shape_cast %206 : vector<1x128xbf16> to vector<128xbf16>
    %208 = vector.shape_cast %207 : vector<128xbf16> to vector<1x1x128xbf16>
    %209 = vector.broadcast %208 : vector<1x1x128xbf16> to vector<16x16x128xbf16>
    %210 = arith.mulf %205, %209 : vector<16x16x128xbf16>
    %211 = arith.addf %204, %210 : vector<16x16x128xbf16>
    %212 = vector.extract_strided_slice %190 {offsets = [3, 0, 0], sizes = [16, 16, 128], strides = [1, 1, 1]} : vector<20x16x128xbf16> to vector<16x16x128xbf16>
    %c19 = arith.constant 19 : index
    %c0_82 = arith.constant 0 : index
    %213 = vector.load %arg4[%c19, %c0_82] : memref<25x128xbf16, #tpu.memory_space<vmem>>, vector<1x128xbf16>
    %214 = vector.shape_cast %213 : vector<1x128xbf16> to vector<128xbf16>
    %215 = vector.shape_cast %214 : vector<128xbf16> to vector<1x1x128xbf16>
    %216 = vector.broadcast %215 : vector<1x1x128xbf16> to vector<16x16x128xbf16>
    %217 = arith.mulf %212, %216 : vector<16x16x128xbf16>
    %218 = arith.addf %211, %217 : vector<16x16x128xbf16>
    %219 = vector.extract_strided_slice %190 {offsets = [4, 0, 0], sizes = [16, 16, 128], strides = [1, 1, 1]} : vector<20x16x128xbf16> to vector<16x16x128xbf16>
    %c24_83 = arith.constant 24 : index
    %c0_84 = arith.constant 0 : index
    %220 = vector.load %arg4[%c24_83, %c0_84] : memref<25x128xbf16, #tpu.memory_space<vmem>>, vector<1x128xbf16>
    %221 = vector.shape_cast %220 : vector<1x128xbf16> to vector<128xbf16>
    %222 = vector.shape_cast %221 : vector<128xbf16> to vector<1x1x128xbf16>
    %223 = vector.broadcast %222 : vector<1x1x128xbf16> to vector<16x16x128xbf16>
    %224 = arith.mulf %219, %223 : vector<16x16x128xbf16>
    %225 = arith.addf %218, %224 : vector<16x16x128xbf16>
    %226 = arith.extf %225 : vector<16x16x128xbf16> to vector<16x16x128xf32>
    %c9_85 = arith.constant 9 : index
    %c16_86 = arith.constant 16 : index
    %c0_87 = arith.constant 0 : index
    %227 = vector.load %arg14[%c9_85, %c16_86, %c0_87] : memref<34x48x128xf32, #tpu.memory_space<vmem>>, vector<16x16x128xf32>
    tpu.vector_store %arg14[%c9_85, %c16_86, %c0_87], %226 {strides = array<i32>} : memref<34x48x128xf32, #tpu.memory_space<vmem>>, vector<16x16x128xf32>,
    %c0_88 = arith.constant 0 : index
    %c0_89 = arith.constant 0 : index
    %228 = vector.load %arg7[%c0_88, %c0_89] : memref<1x128xbf16, #tpu.memory_space<vmem>>, vector<1x128xbf16>
    %229 = vector.shape_cast %228 : vector<1x128xbf16> to vector<1x1x128xbf16>
    %230 = vector.broadcast %229 : vector<1x1x128xbf16> to vector<16x16x128xbf16>
    %c0_90 = arith.constant 0 : index
    %c7_91 = arith.constant 7 : index
    %c0_92 = arith.constant 0 : index
    %231 = vector.load %arg14[%c0_90, %c7_91, %c0_92] : memref<34x48x128xf32, #tpu.memory_space<vmem>>, vector<34x16x128xf32>
    %232 = arith.truncf %231 : vector<34x16x128xf32> to vector<34x16x128xbf16>
    %233 = vector.extract_strided_slice %232 {offsets = [0, 0, 0], sizes = [16, 16, 128], strides = [1, 1, 1]} : vector<34x16x128xbf16> to vector<16x16x128xbf16>
    %c0_93 = arith.constant 0 : index
    %c0_94 = arith.constant 0 : index
    %234 = vector.load %arg6[%c0_93, %c0_94] : memref<49x128xbf16, #tpu.memory_space<vmem>>, vector<1x128xbf16>
    %235 = vector.shape_cast %234 : vector<1x128xbf16> to vector<128xbf16>
    %236 = vector.shape_cast %235 : vector<128xbf16> to vector<1x1x128xbf16>
    %237 = vector.broadcast %236 : vector<1x1x128xbf16> to vector<16x16x128xbf16>
    %238 = arith.mulf %233, %237 : vector<16x16x128xbf16>
    %239 = arith.addf %230, %238 : vector<16x16x128xbf16>
    %240 = vector.extract_strided_slice %232 {offsets = [3, 0, 0], sizes = [16, 16, 128], strides = [1, 1, 1]} : vector<34x16x128xbf16> to vector<16x16x128xbf16>
    %c7_95 = arith.constant 7 : index
    %c0_96 = arith.constant 0 : index
    %241 = vector.load %arg6[%c7_95, %c0_96] : memref<49x128xbf16, #tpu.memory_space<vmem>>, vector<1x128xbf16>
    %242 = vector.shape_cast %241 : vector<1x128xbf16> to vector<128xbf16>
    %243 = vector.shape_cast %242 : vector<128xbf16> to vector<1x1x128xbf16>
    %244 = vector.broadcast %243 : vector<1x1x128xbf16> to vector<16x16x128xbf16>
    %245 = arith.mulf %240, %244 : vector<16x16x128xbf16>
    %246 = arith.addf %239, %245 : vector<16x16x128xbf16>
    %247 = vector.extract_strided_slice %232 {offsets = [6, 0, 0], sizes = [16, 16, 128], strides = [1, 1, 1]} : vector<34x16x128xbf16> to vector<16x16x128xbf16>
    %c14_97 = arith.constant 14 : index
    %c0_98 = arith.constant 0 : index
    %248 = vector.load %arg6[%c14_97, %c0_98] : memref<49x128xbf16, #tpu.memory_space<vmem>>, vector<1x128xbf16>
    %249 = vector.shape_cast %248 : vector<1x128xbf16> to vector<128xbf16>
    %250 = vector.shape_cast %249 : vector<128xbf16> to vector<1x1x128xbf16>
    %251 = vector.broadcast %250 : vector<1x1x128xbf16> to vector<16x16x128xbf16>
    %252 = arith.mulf %247, %251 : vector<16x16x128xbf16>
    %253 = arith.addf %246, %252 : vector<16x16x128xbf16>
    %254 = vector.extract_strided_slice %232 {offsets = [9, 0, 0], sizes = [16, 16, 128], strides = [1, 1, 1]} : vector<34x16x128xbf16> to vector<16x16x128xbf16>
    %c21_99 = arith.constant 21 : index
    %c0_100 = arith.constant 0 : index
    %255 = vector.load %arg6[%c21_99, %c0_100] : memref<49x128xbf16, #tpu.memory_space<vmem>>, vector<1x128xbf16>
    %256 = vector.shape_cast %255 : vector<1x128xbf16> to vector<128xbf16>
    %257 = vector.shape_cast %256 : vector<128xbf16> to vector<1x1x128xbf16>
    %258 = vector.broadcast %257 : vector<1x1x128xbf16> to vector<16x16x128xbf16>
    %259 = arith.mulf %254, %258 : vector<16x16x128xbf16>
    %260 = arith.addf %253, %259 : vector<16x16x128xbf16>
    %261 = vector.extract_strided_slice %232 {offsets = [12, 0, 0], sizes = [16, 16, 128], strides = [1, 1, 1]} : vector<34x16x128xbf16> to vector<16x16x128xbf16>
    %c28 = arith.constant 28 : index
    %c0_101 = arith.constant 0 : index
    %262 = vector.load %arg6[%c28, %c0_101] : memref<49x128xbf16, #tpu.memory_space<vmem>>, vector<1x128xbf16>
    %263 = vector.shape_cast %262 : vector<1x128xbf16> to vector<128xbf16>
    %264 = vector.shape_cast %263 : vector<128xbf16> to vector<1x1x128xbf16>
    %265 = vector.broadcast %264 : vector<1x1x128xbf16> to vector<16x16x128xbf16>
    %266 = arith.mulf %261, %265 : vector<16x16x128xbf16>
    %267 = arith.addf %260, %266 : vector<16x16x128xbf16>
    %268 = vector.extract_strided_slice %232 {offsets = [15, 0, 0], sizes = [16, 16, 128], strides = [1, 1, 1]} : vector<34x16x128xbf16> to vector<16x16x128xbf16>
    %c35 = arith.constant 35 : index
    %c0_102 = arith.constant 0 : index
    %269 = vector.load %arg6[%c35, %c0_102] : memref<49x128xbf16, #tpu.memory_space<vmem>>, vector<1x128xbf16>
    %270 = vector.shape_cast %269 : vector<1x128xbf16> to vector<128xbf16>
    %271 = vector.shape_cast %270 : vector<128xbf16> to vector<1x1x128xbf16>
    %272 = vector.broadcast %271 : vector<1x1x128xbf16> to vector<16x16x128xbf16>
    %273 = arith.mulf %268, %272 : vector<16x16x128xbf16>
    %274 = arith.addf %267, %273 : vector<16x16x128xbf16>
    %275 = vector.extract_strided_slice %232 {offsets = [18, 0, 0], sizes = [16, 16, 128], strides = [1, 1, 1]} : vector<34x16x128xbf16> to vector<16x16x128xbf16>
    %c42 = arith.constant 42 : index
    %c0_103 = arith.constant 0 : index
    %276 = vector.load %arg6[%c42, %c0_103] : memref<49x128xbf16, #tpu.memory_space<vmem>>, vector<1x128xbf16>
    %277 = vector.shape_cast %276 : vector<1x128xbf16> to vector<128xbf16>
    %278 = vector.shape_cast %277 : vector<128xbf16> to vector<1x1x128xbf16>
    %279 = vector.broadcast %278 : vector<1x1x128xbf16> to vector<16x16x128xbf16>
    %280 = arith.mulf %275, %279 : vector<16x16x128xbf16>
    %281 = arith.addf %274, %280 : vector<16x16x128xbf16>
    %c0_104 = arith.constant 0 : index
    %c10_105 = arith.constant 10 : index
    %c0_106 = arith.constant 0 : index
    %282 = vector.load %arg14[%c0_104, %c10_105, %c0_106] : memref<34x48x128xf32, #tpu.memory_space<vmem>>, vector<34x16x128xf32>
    %283 = arith.truncf %282 : vector<34x16x128xf32> to vector<34x16x128xbf16>
    %284 = vector.extract_strided_slice %283 {offsets = [0, 0, 0], sizes = [16, 16, 128], strides = [1, 1, 1]} : vector<34x16x128xbf16> to vector<16x16x128xbf16>
    %c1_107 = arith.constant 1 : index
    %c0_108 = arith.constant 0 : index
    %285 = vector.load %arg6[%c1_107, %c0_108] : memref<49x128xbf16, #tpu.memory_space<vmem>>, vector<1x128xbf16>
    %286 = vector.shape_cast %285 : vector<1x128xbf16> to vector<128xbf16>
    %287 = vector.shape_cast %286 : vector<128xbf16> to vector<1x1x128xbf16>
    %288 = vector.broadcast %287 : vector<1x1x128xbf16> to vector<16x16x128xbf16>
    %289 = arith.mulf %284, %288 : vector<16x16x128xbf16>
    %290 = arith.addf %281, %289 : vector<16x16x128xbf16>
    %291 = vector.extract_strided_slice %283 {offsets = [3, 0, 0], sizes = [16, 16, 128], strides = [1, 1, 1]} : vector<34x16x128xbf16> to vector<16x16x128xbf16>
    %c8_109 = arith.constant 8 : index
    %c0_110 = arith.constant 0 : index
    %292 = vector.load %arg6[%c8_109, %c0_110] : memref<49x128xbf16, #tpu.memory_space<vmem>>, vector<1x128xbf16>
    %293 = vector.shape_cast %292 : vector<1x128xbf16> to vector<128xbf16>
    %294 = vector.shape_cast %293 : vector<128xbf16> to vector<1x1x128xbf16>
    %295 = vector.broadcast %294 : vector<1x1x128xbf16> to vector<16x16x128xbf16>
    %296 = arith.mulf %291, %295 : vector<16x16x128xbf16>
    %297 = arith.addf %290, %296 : vector<16x16x128xbf16>
    %298 = vector.extract_strided_slice %283 {offsets = [6, 0, 0], sizes = [16, 16, 128], strides = [1, 1, 1]} : vector<34x16x128xbf16> to vector<16x16x128xbf16>
    %c15_111 = arith.constant 15 : index
    %c0_112 = arith.constant 0 : index
    %299 = vector.load %arg6[%c15_111, %c0_112] : memref<49x128xbf16, #tpu.memory_space<vmem>>, vector<1x128xbf16>
    %300 = vector.shape_cast %299 : vector<1x128xbf16> to vector<128xbf16>
    %301 = vector.shape_cast %300 : vector<128xbf16> to vector<1x1x128xbf16>
    %302 = vector.broadcast %301 : vector<1x1x128xbf16> to vector<16x16x128xbf16>
    %303 = arith.mulf %298, %302 : vector<16x16x128xbf16>
    %304 = arith.addf %297, %303 : vector<16x16x128xbf16>
    %305 = vector.extract_strided_slice %283 {offsets = [9, 0, 0], sizes = [16, 16, 128], strides = [1, 1, 1]} : vector<34x16x128xbf16> to vector<16x16x128xbf16>
    %c22_113 = arith.constant 22 : index
    %c0_114 = arith.constant 0 : index
    %306 = vector.load %arg6[%c22_113, %c0_114] : memref<49x128xbf16, #tpu.memory_space<vmem>>, vector<1x128xbf16>
    %307 = vector.shape_cast %306 : vector<1x128xbf16> to vector<128xbf16>
    %308 = vector.shape_cast %307 : vector<128xbf16> to vector<1x1x128xbf16>
    %309 = vector.broadcast %308 : vector<1x1x128xbf16> to vector<16x16x128xbf16>
    %310 = arith.mulf %305, %309 : vector<16x16x128xbf16>
    %311 = arith.addf %304, %310 : vector<16x16x128xbf16>
    %312 = vector.extract_strided_slice %283 {offsets = [12, 0, 0], sizes = [16, 16, 128], strides = [1, 1, 1]} : vector<34x16x128xbf16> to vector<16x16x128xbf16>
    %c29 = arith.constant 29 : index
    %c0_115 = arith.constant 0 : index
    %313 = vector.load %arg6[%c29, %c0_115] : memref<49x128xbf16, #tpu.memory_space<vmem>>, vector<1x128xbf16>
    %314 = vector.shape_cast %313 : vector<1x128xbf16> to vector<128xbf16>
    %315 = vector.shape_cast %314 : vector<128xbf16> to vector<1x1x128xbf16>
    %316 = vector.broadcast %315 : vector<1x1x128xbf16> to vector<16x16x128xbf16>
    %317 = arith.mulf %312, %316 : vector<16x16x128xbf16>
    %318 = arith.addf %311, %317 : vector<16x16x128xbf16>
    %319 = vector.extract_strided_slice %283 {offsets = [15, 0, 0], sizes = [16, 16, 128], strides = [1, 1, 1]} : vector<34x16x128xbf16> to vector<16x16x128xbf16>
    %c36 = arith.constant 36 : index
    %c0_116 = arith.constant 0 : index
    %320 = vector.load %arg6[%c36, %c0_116] : memref<49x128xbf16, #tpu.memory_space<vmem>>, vector<1x128xbf16>
    %321 = vector.shape_cast %320 : vector<1x128xbf16> to vector<128xbf16>
    %322 = vector.shape_cast %321 : vector<128xbf16> to vector<1x1x128xbf16>
    %323 = vector.broadcast %322 : vector<1x1x128xbf16> to vector<16x16x128xbf16>
    %324 = arith.mulf %319, %323 : vector<16x16x128xbf16>
    %325 = arith.addf %318, %324 : vector<16x16x128xbf16>
    %326 = vector.extract_strided_slice %283 {offsets = [18, 0, 0], sizes = [16, 16, 128], strides = [1, 1, 1]} : vector<34x16x128xbf16> to vector<16x16x128xbf16>
    %c43 = arith.constant 43 : index
    %c0_117 = arith.constant 0 : index
    %327 = vector.load %arg6[%c43, %c0_117] : memref<49x128xbf16, #tpu.memory_space<vmem>>, vector<1x128xbf16>
    %328 = vector.shape_cast %327 : vector<1x128xbf16> to vector<128xbf16>
    %329 = vector.shape_cast %328 : vector<128xbf16> to vector<1x1x128xbf16>
    %330 = vector.broadcast %329 : vector<1x1x128xbf16> to vector<16x16x128xbf16>
    %331 = arith.mulf %326, %330 : vector<16x16x128xbf16>
    %332 = arith.addf %325, %331 : vector<16x16x128xbf16>
    %c0_118 = arith.constant 0 : index
    %c13_119 = arith.constant 13 : index
    %c0_120 = arith.constant 0 : index
    %333 = vector.load %arg14[%c0_118, %c13_119, %c0_120] : memref<34x48x128xf32, #tpu.memory_space<vmem>>, vector<34x16x128xf32>
    %334 = arith.truncf %333 : vector<34x16x128xf32> to vector<34x16x128xbf16>
    %335 = vector.extract_strided_slice %334 {offsets = [0, 0, 0], sizes = [16, 16, 128], strides = [1, 1, 1]} : vector<34x16x128xbf16> to vector<16x16x128xbf16>
    %c2_121 = arith.constant 2 : index
    %c0_122 = arith.constant 0 : index
    %336 = vector.load %arg6[%c2_121, %c0_122] : memref<49x128xbf16, #tpu.memory_space<vmem>>, vector<1x128xbf16>
    %337 = vector.shape_cast %336 : vector<1x128xbf16> to vector<128xbf16>
    %338 = vector.shape_cast %337 : vector<128xbf16> to vector<1x1x128xbf16>
    %339 = vector.broadcast %338 : vector<1x1x128xbf16> to vector<16x16x128xbf16>
    %340 = arith.mulf %335, %339 : vector<16x16x128xbf16>
    %341 = arith.addf %332, %340 : vector<16x16x128xbf16>
    %342 = vector.extract_strided_slice %334 {offsets = [3, 0, 0], sizes = [16, 16, 128], strides = [1, 1, 1]} : vector<34x16x128xbf16> to vector<16x16x128xbf16>
    %c9_123 = arith.constant 9 : index
    %c0_124 = arith.constant 0 : index
    %343 = vector.load %arg6[%c9_123, %c0_124] : memref<49x128xbf16, #tpu.memory_space<vmem>>, vector<1x128xbf16>
    %344 = vector.shape_cast %343 : vector<1x128xbf16> to vector<128xbf16>
    %345 = vector.shape_cast %344 : vector<128xbf16> to vector<1x1x128xbf16>
    %346 = vector.broadcast %345 : vector<1x1x128xbf16> to vector<16x16x128xbf16>
    %347 = arith.mulf %342, %346 : vector<16x16x128xbf16>
    %348 = arith.addf %341, %347 : vector<16x16x128xbf16>
    %349 = vector.extract_strided_slice %334 {offsets = [6, 0, 0], sizes = [16, 16, 128], strides = [1, 1, 1]} : vector<34x16x128xbf16> to vector<16x16x128xbf16>
    %c16_125 = arith.constant 16 : index
    %c0_126 = arith.constant 0 : index
    %350 = vector.load %arg6[%c16_125, %c0_126] : memref<49x128xbf16, #tpu.memory_space<vmem>>, vector<1x128xbf16>
    %351 = vector.shape_cast %350 : vector<1x128xbf16> to vector<128xbf16>
    %352 = vector.shape_cast %351 : vector<128xbf16> to vector<1x1x128xbf16>
    %353 = vector.broadcast %352 : vector<1x1x128xbf16> to vector<16x16x128xbf16>
    %354 = arith.mulf %349, %353 : vector<16x16x128xbf16>
    %355 = arith.addf %348, %354 : vector<16x16x128xbf16>
    %356 = vector.extract_strided_slice %334 {offsets = [9, 0, 0], sizes = [16, 16, 128], strides = [1, 1, 1]} : vector<34x16x128xbf16> to vector<16x16x128xbf16>
    %c23_127 = arith.constant 23 : index
    %c0_128 = arith.constant 0 : index
    %357 = vector.load %arg6[%c23_127, %c0_128] : memref<49x128xbf16, #tpu.memory_space<vmem>>, vector<1x128xbf16>
    %358 = vector.shape_cast %357 : vector<1x128xbf16> to vector<128xbf16>
    %359 = vector.shape_cast %358 : vector<128xbf16> to vector<1x1x128xbf16>
    %360 = vector.broadcast %359 : vector<1x1x128xbf16> to vector<16x16x128xbf16>
    %361 = arith.mulf %356, %360 : vector<16x16x128xbf16>
    %362 = arith.addf %355, %361 : vector<16x16x128xbf16>
    %363 = vector.extract_strided_slice %334 {offsets = [12, 0, 0], sizes = [16, 16, 128], strides = [1, 1, 1]} : vector<34x16x128xbf16> to vector<16x16x128xbf16>
    %c30 = arith.constant 30 : index
    %c0_129 = arith.constant 0 : index
    %364 = vector.load %arg6[%c30, %c0_129] : memref<49x128xbf16, #tpu.memory_space<vmem>>, vector<1x128xbf16>
    %365 = vector.shape_cast %364 : vector<1x128xbf16> to vector<128xbf16>
    %366 = vector.shape_cast %365 : vector<128xbf16> to vector<1x1x128xbf16>
    %367 = vector.broadcast %366 : vector<1x1x128xbf16> to vector<16x16x128xbf16>
    %368 = arith.mulf %363, %367 : vector<16x16x128xbf16>
    %369 = arith.addf %362, %368 : vector<16x16x128xbf16>
    %370 = vector.extract_strided_slice %334 {offsets = [15, 0, 0], sizes = [16, 16, 128], strides = [1, 1, 1]} : vector<34x16x128xbf16> to vector<16x16x128xbf16>
    %c37 = arith.constant 37 : index
    %c0_130 = arith.constant 0 : index
    %371 = vector.load %arg6[%c37, %c0_130] : memref<49x128xbf16, #tpu.memory_space<vmem>>, vector<1x128xbf16>
    %372 = vector.shape_cast %371 : vector<1x128xbf16> to vector<128xbf16>
    %373 = vector.shape_cast %372 : vector<128xbf16> to vector<1x1x128xbf16>
    %374 = vector.broadcast %373 : vector<1x1x128xbf16> to vector<16x16x128xbf16>
    %375 = arith.mulf %370, %374 : vector<16x16x128xbf16>
    %376 = arith.addf %369, %375 : vector<16x16x128xbf16>
    %377 = vector.extract_strided_slice %334 {offsets = [18, 0, 0], sizes = [16, 16, 128], strides = [1, 1, 1]} : vector<34x16x128xbf16> to vector<16x16x128xbf16>
    %c44 = arith.constant 44 : index
    %c0_131 = arith.constant 0 : index
    %378 = vector.load %arg6[%c44, %c0_131] : memref<49x128xbf16, #tpu.memory_space<vmem>>, vector<1x128xbf16>
    %379 = vector.shape_cast %378 : vector<1x128xbf16> to vector<128xbf16>
    %380 = vector.shape_cast %379 : vector<128xbf16> to vector<1x1x128xbf16>
    %381 = vector.broadcast %380 : vector<1x1x128xbf16> to vector<16x16x128xbf16>
    %382 = arith.mulf %377, %381 : vector<16x16x128xbf16>
    %383 = arith.addf %376, %382 : vector<16x16x128xbf16>
    %c0_132 = arith.constant 0 : index
    %c16_133 = arith.constant 16 : index
    %c0_134 = arith.constant 0 : index
    %384 = vector.load %arg14[%c0_132, %c16_133, %c0_134] : memref<34x48x128xf32, #tpu.memory_space<vmem>>, vector<34x16x128xf32>
    %385 = arith.truncf %384 : vector<34x16x128xf32> to vector<34x16x128xbf16>
    %386 = vector.extract_strided_slice %385 {offsets = [0, 0, 0], sizes = [16, 16, 128], strides = [1, 1, 1]} : vector<34x16x128xbf16> to vector<16x16x128xbf16>
    %c3_135 = arith.constant 3 : index
    %c0_136 = arith.constant 0 : index
    %387 = vector.load %arg6[%c3_135, %c0_136] : memref<49x128xbf16, #tpu.memory_space<vmem>>, vector<1x128xbf16>
    %388 = vector.shape_cast %387 : vector<1x128xbf16> to vector<128xbf16>
    %389 = vector.shape_cast %388 : vector<128xbf16> to vector<1x1x128xbf16>
    %390 = vector.broadcast %389 : vector<1x1x128xbf16> to vector<16x16x128xbf16>
    %391 = arith.mulf %386, %390 : vector<16x16x128xbf16>
    %392 = arith.addf %383, %391 : vector<16x16x128xbf16>
    %393 = vector.extract_strided_slice %385 {offsets = [3, 0, 0], sizes = [16, 16, 128], strides = [1, 1, 1]} : vector<34x16x128xbf16> to vector<16x16x128xbf16>
    %c10_137 = arith.constant 10 : index
    %c0_138 = arith.constant 0 : index
    %394 = vector.load %arg6[%c10_137, %c0_138] : memref<49x128xbf16, #tpu.memory_space<vmem>>, vector<1x128xbf16>
    %395 = vector.shape_cast %394 : vector<1x128xbf16> to vector<128xbf16>
    %396 = vector.shape_cast %395 : vector<128xbf16> to vector<1x1x128xbf16>
    %397 = vector.broadcast %396 : vector<1x1x128xbf16> to vector<16x16x128xbf16>
    %398 = arith.mulf %393, %397 : vector<16x16x128xbf16>
    %399 = arith.addf %392, %398 : vector<16x16x128xbf16>
    %400 = vector.extract_strided_slice %385 {offsets = [6, 0, 0], sizes = [16, 16, 128], strides = [1, 1, 1]} : vector<34x16x128xbf16> to vector<16x16x128xbf16>
    %c17_139 = arith.constant 17 : index
    %c0_140 = arith.constant 0 : index
    %401 = vector.load %arg6[%c17_139, %c0_140] : memref<49x128xbf16, #tpu.memory_space<vmem>>, vector<1x128xbf16>
    %402 = vector.shape_cast %401 : vector<1x128xbf16> to vector<128xbf16>
    %403 = vector.shape_cast %402 : vector<128xbf16> to vector<1x1x128xbf16>
    %404 = vector.broadcast %403 : vector<1x1x128xbf16> to vector<16x16x128xbf16>
    %405 = arith.mulf %400, %404 : vector<16x16x128xbf16>
    %406 = arith.addf %399, %405 : vector<16x16x128xbf16>
    %407 = vector.extract_strided_slice %385 {offsets = [9, 0, 0], sizes = [16, 16, 128], strides = [1, 1, 1]} : vector<34x16x128xbf16> to vector<16x16x128xbf16>
    %c24_141 = arith.constant 24 : index
    %c0_142 = arith.constant 0 : index
    %408 = vector.load %arg6[%c24_141, %c0_142] : memref<49x128xbf16, #tpu.memory_space<vmem>>, vector<1x128xbf16>
    %409 = vector.shape_cast %408 : vector<1x128xbf16> to vector<128xbf16>
    %410 = vector.shape_cast %409 : vector<128xbf16> to vector<1x1x128xbf16>
    %411 = vector.broadcast %410 : vector<1x1x128xbf16> to vector<16x16x128xbf16>
    %412 = arith.mulf %407, %411 : vector<16x16x128xbf16>
    %413 = arith.addf %406, %412 : vector<16x16x128xbf16>
    %414 = vector.extract_strided_slice %385 {offsets = [12, 0, 0], sizes = [16, 16, 128], strides = [1, 1, 1]} : vector<34x16x128xbf16> to vector<16x16x128xbf16>
    %c31 = arith.constant 31 : index
    %c0_143 = arith.constant 0 : index
    %415 = vector.load %arg6[%c31, %c0_143] : memref<49x128xbf16, #tpu.memory_space<vmem>>, vector<1x128xbf16>
    %416 = vector.shape_cast %415 : vector<1x128xbf16> to vector<128xbf16>
    %417 = vector.shape_cast %416 : vector<128xbf16> to vector<1x1x128xbf16>
    %418 = vector.broadcast %417 : vector<1x1x128xbf16> to vector<16x16x128xbf16>
    %419 = arith.mulf %414, %418 : vector<16x16x128xbf16>
    %420 = arith.addf %413, %419 : vector<16x16x128xbf16>
    %421 = vector.extract_strided_slice %385 {offsets = [15, 0, 0], sizes = [16, 16, 128], strides = [1, 1, 1]} : vector<34x16x128xbf16> to vector<16x16x128xbf16>
    %c38 = arith.constant 38 : index
    %c0_144 = arith.constant 0 : index
    %422 = vector.load %arg6[%c38, %c0_144] : memref<49x128xbf16, #tpu.memory_space<vmem>>, vector<1x128xbf16>
    %423 = vector.shape_cast %422 : vector<1x128xbf16> to vector<128xbf16>
    %424 = vector.shape_cast %423 : vector<128xbf16> to vector<1x1x128xbf16>
    %425 = vector.broadcast %424 : vector<1x1x128xbf16> to vector<16x16x128xbf16>
    %426 = arith.mulf %421, %425 : vector<16x16x128xbf16>
    %427 = arith.addf %420, %426 : vector<16x16x128xbf16>
    %428 = vector.extract_strided_slice %385 {offsets = [18, 0, 0], sizes = [16, 16, 128], strides = [1, 1, 1]} : vector<34x16x128xbf16> to vector<16x16x128xbf16>
    %c45 = arith.constant 45 : index
    %c0_145 = arith.constant 0 : index
    %429 = vector.load %arg6[%c45, %c0_145] : memref<49x128xbf16, #tpu.memory_space<vmem>>, vector<1x128xbf16>
    %430 = vector.shape_cast %429 : vector<1x128xbf16> to vector<128xbf16>
    %431 = vector.shape_cast %430 : vector<128xbf16> to vector<1x1x128xbf16>
    %432 = vector.broadcast %431 : vector<1x1x128xbf16> to vector<16x16x128xbf16>
    %433 = arith.mulf %428, %432 : vector<16x16x128xbf16>
    %434 = arith.addf %427, %433 : vector<16x16x128xbf16>
    %c0_146 = arith.constant 0 : index
    %c19_147 = arith.constant 19 : index
    %c0_148 = arith.constant 0 : index
    %435 = vector.load %arg14[%c0_146, %c19_147, %c0_148] : memref<34x48x128xf32, #tpu.memory_space<vmem>>, vector<34x16x128xf32>
    %436 = arith.truncf %435 : vector<34x16x128xf32> to vector<34x16x128xbf16>
    %437 = vector.extract_strided_slice %436 {offsets = [0, 0, 0], sizes = [16, 16, 128], strides = [1, 1, 1]} : vector<34x16x128xbf16> to vector<16x16x128xbf16>
    %c4_149 = arith.constant 4 : index
    %c0_150 = arith.constant 0 : index
    %438 = vector.load %arg6[%c4_149, %c0_150] : memref<49x128xbf16, #tpu.memory_space<vmem>>, vector<1x128xbf16>
    %439 = vector.shape_cast %438 : vector<1x128xbf16> to vector<128xbf16>
    %440 = vector.shape_cast %439 : vector<128xbf16> to vector<1x1x128xbf16>
    %441 = vector.broadcast %440 : vector<1x1x128xbf16> to vector<16x16x128xbf16>
    %442 = arith.mulf %437, %441 : vector<16x16x128xbf16>
    %443 = arith.addf %434, %442 : vector<16x16x128xbf16>
    %444 = vector.extract_strided_slice %436 {offsets = [3, 0, 0], sizes = [16, 16, 128], strides = [1, 1, 1]} : vector<34x16x128xbf16> to vector<16x16x128xbf16>
    %c11_151 = arith.constant 11 : index
    %c0_152 = arith.constant 0 : index
    %445 = vector.load %arg6[%c11_151, %c0_152] : memref<49x128xbf16, #tpu.memory_space<vmem>>, vector<1x128xbf16>
    %446 = vector.shape_cast %445 : vector<1x128xbf16> to vector<128xbf16>
    %447 = vector.shape_cast %446 : vector<128xbf16> to vector<1x1x128xbf16>
    %448 = vector.broadcast %447 : vector<1x1x128xbf16> to vector<16x16x128xbf16>
    %449 = arith.mulf %444, %448 : vector<16x16x128xbf16>
    %450 = arith.addf %443, %449 : vector<16x16x128xbf16>
    %451 = vector.extract_strided_slice %436 {offsets = [6, 0, 0], sizes = [16, 16, 128], strides = [1, 1, 1]} : vector<34x16x128xbf16> to vector<16x16x128xbf16>
    %c18_153 = arith.constant 18 : index
    %c0_154 = arith.constant 0 : index
    %452 = vector.load %arg6[%c18_153, %c0_154] : memref<49x128xbf16, #tpu.memory_space<vmem>>, vector<1x128xbf16>
    %453 = vector.shape_cast %452 : vector<1x128xbf16> to vector<128xbf16>
    %454 = vector.shape_cast %453 : vector<128xbf16> to vector<1x1x128xbf16>
    %455 = vector.broadcast %454 : vector<1x1x128xbf16> to vector<16x16x128xbf16>
    %456 = arith.mulf %451, %455 : vector<16x16x128xbf16>
    %457 = arith.addf %450, %456 : vector<16x16x128xbf16>
    %458 = vector.extract_strided_slice %436 {offsets = [9, 0, 0], sizes = [16, 16, 128], strides = [1, 1, 1]} : vector<34x16x128xbf16> to vector<16x16x128xbf16>
    %c25_155 = arith.constant 25 : index
    %c0_156 = arith.constant 0 : index
    %459 = vector.load %arg6[%c25_155, %c0_156] : memref<49x128xbf16, #tpu.memory_space<vmem>>, vector<1x128xbf16>
    %460 = vector.shape_cast %459 : vector<1x128xbf16> to vector<128xbf16>
    %461 = vector.shape_cast %460 : vector<128xbf16> to vector<1x1x128xbf16>
    %462 = vector.broadcast %461 : vector<1x1x128xbf16> to vector<16x16x128xbf16>
    %463 = arith.mulf %458, %462 : vector<16x16x128xbf16>
    %464 = arith.addf %457, %463 : vector<16x16x128xbf16>
    %465 = vector.extract_strided_slice %436 {offsets = [12, 0, 0], sizes = [16, 16, 128], strides = [1, 1, 1]} : vector<34x16x128xbf16> to vector<16x16x128xbf16>
    %c32_157 = arith.constant 32 : index
    %c0_158 = arith.constant 0 : index
    %466 = vector.load %arg6[%c32_157, %c0_158] : memref<49x128xbf16, #tpu.memory_space<vmem>>, vector<1x128xbf16>
    %467 = vector.shape_cast %466 : vector<1x128xbf16> to vector<128xbf16>
    %468 = vector.shape_cast %467 : vector<128xbf16> to vector<1x1x128xbf16>
    %469 = vector.broadcast %468 : vector<1x1x128xbf16> to vector<16x16x128xbf16>
    %470 = arith.mulf %465, %469 : vector<16x16x128xbf16>
    %471 = arith.addf %464, %470 : vector<16x16x128xbf16>
    %472 = vector.extract_strided_slice %436 {offsets = [15, 0, 0], sizes = [16, 16, 128], strides = [1, 1, 1]} : vector<34x16x128xbf16> to vector<16x16x128xbf16>
    %c39 = arith.constant 39 : index
    %c0_159 = arith.constant 0 : index
    %473 = vector.load %arg6[%c39, %c0_159] : memref<49x128xbf16, #tpu.memory_space<vmem>>, vector<1x128xbf16>
    %474 = vector.shape_cast %473 : vector<1x128xbf16> to vector<128xbf16>
    %475 = vector.shape_cast %474 : vector<128xbf16> to vector<1x1x128xbf16>
    %476 = vector.broadcast %475 : vector<1x1x128xbf16> to vector<16x16x128xbf16>
    %477 = arith.mulf %472, %476 : vector<16x16x128xbf16>
    %478 = arith.addf %471, %477 : vector<16x16x128xbf16>
    %479 = vector.extract_strided_slice %436 {offsets = [18, 0, 0], sizes = [16, 16, 128], strides = [1, 1, 1]} : vector<34x16x128xbf16> to vector<16x16x128xbf16>
    %c46 = arith.constant 46 : index
    %c0_160 = arith.constant 0 : index
    %480 = vector.load %arg6[%c46, %c0_160] : memref<49x128xbf16, #tpu.memory_space<vmem>>, vector<1x128xbf16>
    %481 = vector.shape_cast %480 : vector<1x128xbf16> to vector<128xbf16>
    %482 = vector.shape_cast %481 : vector<128xbf16> to vector<1x1x128xbf16>
    %483 = vector.broadcast %482 : vector<1x1x128xbf16> to vector<16x16x128xbf16>
    %484 = arith.mulf %479, %483 : vector<16x16x128xbf16>
    %485 = arith.addf %478, %484 : vector<16x16x128xbf16>
    %c0_161 = arith.constant 0 : index
    %c22_162 = arith.constant 22 : index
    %c0_163 = arith.constant 0 : index
    %486 = vector.load %arg14[%c0_161, %c22_162, %c0_163] : memref<34x48x128xf32, #tpu.memory_space<vmem>>, vector<34x16x128xf32>
    %487 = arith.truncf %486 : vector<34x16x128xf32> to vector<34x16x128xbf16>
    %488 = vector.extract_strided_slice %487 {offsets = [0, 0, 0], sizes = [16, 16, 128], strides = [1, 1, 1]} : vector<34x16x128xbf16> to vector<16x16x128xbf16>
    %c5_164 = arith.constant 5 : index
    %c0_165 = arith.constant 0 : index
    %489 = vector.load %arg6[%c5_164, %c0_165] : memref<49x128xbf16, #tpu.memory_space<vmem>>, vector<1x128xbf16>
    %490 = vector.shape_cast %489 : vector<1x128xbf16> to vector<128xbf16>
    %491 = vector.shape_cast %490 : vector<128xbf16> to vector<1x1x128xbf16>
    %492 = vector.broadcast %491 : vector<1x1x128xbf16> to vector<16x16x128xbf16>
    %493 = arith.mulf %488, %492 : vector<16x16x128xbf16>
    %494 = arith.addf %485, %493 : vector<16x16x128xbf16>
    %495 = vector.extract_strided_slice %487 {offsets = [3, 0, 0], sizes = [16, 16, 128], strides = [1, 1, 1]} : vector<34x16x128xbf16> to vector<16x16x128xbf16>
    %c12_166 = arith.constant 12 : index
    %c0_167 = arith.constant 0 : index
    %496 = vector.load %arg6[%c12_166, %c0_167] : memref<49x128xbf16, #tpu.memory_space<vmem>>, vector<1x128xbf16>
    %497 = vector.shape_cast %496 : vector<1x128xbf16> to vector<128xbf16>
    %498 = vector.shape_cast %497 : vector<128xbf16> to vector<1x1x128xbf16>
    %499 = vector.broadcast %498 : vector<1x1x128xbf16> to vector<16x16x128xbf16>
    %500 = arith.mulf %495, %499 : vector<16x16x128xbf16>
    %501 = arith.addf %494, %500 : vector<16x16x128xbf16>
    %502 = vector.extract_strided_slice %487 {offsets = [6, 0, 0], sizes = [16, 16, 128], strides = [1, 1, 1]} : vector<34x16x128xbf16> to vector<16x16x128xbf16>
    %c19_168 = arith.constant 19 : index
    %c0_169 = arith.constant 0 : index
    %503 = vector.load %arg6[%c19_168, %c0_169] : memref<49x128xbf16, #tpu.memory_space<vmem>>, vector<1x128xbf16>
    %504 = vector.shape_cast %503 : vector<1x128xbf16> to vector<128xbf16>
    %505 = vector.shape_cast %504 : vector<128xbf16> to vector<1x1x128xbf16>
    %506 = vector.broadcast %505 : vector<1x1x128xbf16> to vector<16x16x128xbf16>
    %507 = arith.mulf %502, %506 : vector<16x16x128xbf16>
    %508 = arith.addf %501, %507 : vector<16x16x128xbf16>
    %509 = vector.extract_strided_slice %487 {offsets = [9, 0, 0], sizes = [16, 16, 128], strides = [1, 1, 1]} : vector<34x16x128xbf16> to vector<16x16x128xbf16>
    %c26 = arith.constant 26 : index
    %c0_170 = arith.constant 0 : index
    %510 = vector.load %arg6[%c26, %c0_170] : memref<49x128xbf16, #tpu.memory_space<vmem>>, vector<1x128xbf16>
    %511 = vector.shape_cast %510 : vector<1x128xbf16> to vector<128xbf16>
    %512 = vector.shape_cast %511 : vector<128xbf16> to vector<1x1x128xbf16>
    %513 = vector.broadcast %512 : vector<1x1x128xbf16> to vector<16x16x128xbf16>
    %514 = arith.mulf %509, %513 : vector<16x16x128xbf16>
    %515 = arith.addf %508, %514 : vector<16x16x128xbf16>
    %516 = vector.extract_strided_slice %487 {offsets = [12, 0, 0], sizes = [16, 16, 128], strides = [1, 1, 1]} : vector<34x16x128xbf16> to vector<16x16x128xbf16>
    %c33 = arith.constant 33 : index
    %c0_171 = arith.constant 0 : index
    %517 = vector.load %arg6[%c33, %c0_171] : memref<49x128xbf16, #tpu.memory_space<vmem>>, vector<1x128xbf16>
    %518 = vector.shape_cast %517 : vector<1x128xbf16> to vector<128xbf16>
    %519 = vector.shape_cast %518 : vector<128xbf16> to vector<1x1x128xbf16>
    %520 = vector.broadcast %519 : vector<1x1x128xbf16> to vector<16x16x128xbf16>
    %521 = arith.mulf %516, %520 : vector<16x16x128xbf16>
    %522 = arith.addf %515, %521 : vector<16x16x128xbf16>
    %523 = vector.extract_strided_slice %487 {offsets = [15, 0, 0], sizes = [16, 16, 128], strides = [1, 1, 1]} : vector<34x16x128xbf16> to vector<16x16x128xbf16>
    %c40 = arith.constant 40 : index
    %c0_172 = arith.constant 0 : index
    %524 = vector.load %arg6[%c40, %c0_172] : memref<49x128xbf16, #tpu.memory_space<vmem>>, vector<1x128xbf16>
    %525 = vector.shape_cast %524 : vector<1x128xbf16> to vector<128xbf16>
    %526 = vector.shape_cast %525 : vector<128xbf16> to vector<1x1x128xbf16>
    %527 = vector.broadcast %526 : vector<1x1x128xbf16> to vector<16x16x128xbf16>
    %528 = arith.mulf %523, %527 : vector<16x16x128xbf16>
    %529 = arith.addf %522, %528 : vector<16x16x128xbf16>
    %530 = vector.extract_strided_slice %487 {offsets = [18, 0, 0], sizes = [16, 16, 128], strides = [1, 1, 1]} : vector<34x16x128xbf16> to vector<16x16x128xbf16>
    %c47 = arith.constant 47 : index
    %c0_173 = arith.constant 0 : index
    %531 = vector.load %arg6[%c47, %c0_173] : memref<49x128xbf16, #tpu.memory_space<vmem>>, vector<1x128xbf16>
    %532 = vector.shape_cast %531 : vector<1x128xbf16> to vector<128xbf16>
    %533 = vector.shape_cast %532 : vector<128xbf16> to vector<1x1x128xbf16>
    %534 = vector.broadcast %533 : vector<1x1x128xbf16> to vector<16x16x128xbf16>
    %535 = arith.mulf %530, %534 : vector<16x16x128xbf16>
    %536 = arith.addf %529, %535 : vector<16x16x128xbf16>
    %c0_174 = arith.constant 0 : index
    %c25_175 = arith.constant 25 : index
    %c0_176 = arith.constant 0 : index
    %537 = vector.load %arg14[%c0_174, %c25_175, %c0_176] : memref<34x48x128xf32, #tpu.memory_space<vmem>>, vector<34x16x128xf32>
    %538 = arith.truncf %537 : vector<34x16x128xf32> to vector<34x16x128xbf16>
    %539 = vector.extract_strided_slice %538 {offsets = [0, 0, 0], sizes = [16, 16, 128], strides = [1, 1, 1]} : vector<34x16x128xbf16> to vector<16x16x128xbf16>
    %c6_177 = arith.constant 6 : index
    %c0_178 = arith.constant 0 : index
    %540 = vector.load %arg6[%c6_177, %c0_178] : memref<49x128xbf16, #tpu.memory_space<vmem>>, vector<1x128xbf16>
    %541 = vector.shape_cast %540 : vector<1x128xbf16> to vector<128xbf16>
    %542 = vector.shape_cast %541 : vector<128xbf16> to vector<1x1x128xbf16>
    %543 = vector.broadcast %542 : vector<1x1x128xbf16> to vector<16x16x128xbf16>
    %544 = arith.mulf %539, %543 : vector<16x16x128xbf16>
    %545 = arith.addf %536, %544 : vector<16x16x128xbf16>
    %546 = vector.extract_strided_slice %538 {offsets = [3, 0, 0], sizes = [16, 16, 128], strides = [1, 1, 1]} : vector<34x16x128xbf16> to vector<16x16x128xbf16>
    %c13_179 = arith.constant 13 : index
    %c0_180 = arith.constant 0 : index
    %547 = vector.load %arg6[%c13_179, %c0_180] : memref<49x128xbf16, #tpu.memory_space<vmem>>, vector<1x128xbf16>
    %548 = vector.shape_cast %547 : vector<1x128xbf16> to vector<128xbf16>
    %549 = vector.shape_cast %548 : vector<128xbf16> to vector<1x1x128xbf16>
    %550 = vector.broadcast %549 : vector<1x1x128xbf16> to vector<16x16x128xbf16>
    %551 = arith.mulf %546, %550 : vector<16x16x128xbf16>
    %552 = arith.addf %545, %551 : vector<16x16x128xbf16>
    %553 = vector.extract_strided_slice %538 {offsets = [6, 0, 0], sizes = [16, 16, 128], strides = [1, 1, 1]} : vector<34x16x128xbf16> to vector<16x16x128xbf16>
    %c20_181 = arith.constant 20 : index
    %c0_182 = arith.constant 0 : index
    %554 = vector.load %arg6[%c20_181, %c0_182] : memref<49x128xbf16, #tpu.memory_space<vmem>>, vector<1x128xbf16>
    %555 = vector.shape_cast %554 : vector<1x128xbf16> to vector<128xbf16>
    %556 = vector.shape_cast %555 : vector<128xbf16> to vector<1x1x128xbf16>
    %557 = vector.broadcast %556 : vector<1x1x128xbf16> to vector<16x16x128xbf16>
    %558 = arith.mulf %553, %557 : vector<16x16x128xbf16>
    %559 = arith.addf %552, %558 : vector<16x16x128xbf16>
    %560 = vector.extract_strided_slice %538 {offsets = [9, 0, 0], sizes = [16, 16, 128], strides = [1, 1, 1]} : vector<34x16x128xbf16> to vector<16x16x128xbf16>
    %c27 = arith.constant 27 : index
    %c0_183 = arith.constant 0 : index
    %561 = vector.load %arg6[%c27, %c0_183] : memref<49x128xbf16, #tpu.memory_space<vmem>>, vector<1x128xbf16>
    %562 = vector.shape_cast %561 : vector<1x128xbf16> to vector<128xbf16>
    %563 = vector.shape_cast %562 : vector<128xbf16> to vector<1x1x128xbf16>
    %564 = vector.broadcast %563 : vector<1x1x128xbf16> to vector<16x16x128xbf16>
    %565 = arith.mulf %560, %564 : vector<16x16x128xbf16>
    %566 = arith.addf %559, %565 : vector<16x16x128xbf16>
    %567 = vector.extract_strided_slice %538 {offsets = [12, 0, 0], sizes = [16, 16, 128], strides = [1, 1, 1]} : vector<34x16x128xbf16> to vector<16x16x128xbf16>
    %c34 = arith.constant 34 : index
    %c0_184 = arith.constant 0 : index
    %568 = vector.load %arg6[%c34, %c0_184] : memref<49x128xbf16, #tpu.memory_space<vmem>>, vector<1x128xbf16>
    %569 = vector.shape_cast %568 : vector<1x128xbf16> to vector<128xbf16>
    %570 = vector.shape_cast %569 : vector<128xbf16> to vector<1x1x128xbf16>
    %571 = vector.broadcast %570 : vector<1x1x128xbf16> to vector<16x16x128xbf16>
    %572 = arith.mulf %567, %571 : vector<16x16x128xbf16>
    %573 = arith.addf %566, %572 : vector<16x16x128xbf16>
    %574 = vector.extract_strided_slice %538 {offsets = [15, 0, 0], sizes = [16, 16, 128], strides = [1, 1, 1]} : vector<34x16x128xbf16> to vector<16x16x128xbf16>
    %c41 = arith.constant 41 : index
    %c0_185 = arith.constant 0 : index
    %575 = vector.load %arg6[%c41, %c0_185] : memref<49x128xbf16, #tpu.memory_space<vmem>>, vector<1x128xbf16>
    %576 = vector.shape_cast %575 : vector<1x128xbf16> to vector<128xbf16>
    %577 = vector.shape_cast %576 : vector<128xbf16> to vector<1x1x128xbf16>
    %578 = vector.broadcast %577 : vector<1x1x128xbf16> to vector<16x16x128xbf16>
    %579 = arith.mulf %574, %578 : vector<16x16x128xbf16>
    %580 = arith.addf %573, %579 : vector<16x16x128xbf16>
    %581 = vector.extract_strided_slice %538 {offsets = [18, 0, 0], sizes = [16, 16, 128], strides = [1, 1, 1]} : vector<34x16x128xbf16> to vector<16x16x128xbf16>
    %c48 = arith.constant 48 : index
    %c0_186 = arith.constant 0 : index
    %582 = vector.load %arg6[%c48, %c0_186] : memref<49x128xbf16, #tpu.memory_space<vmem>>, vector<1x128xbf16>
    %583 = vector.shape_cast %582 : vector<1x128xbf16> to vector<128xbf16>
    %584 = vector.shape_cast %583 : vector<128xbf16> to vector<1x1x128xbf16>
    %585 = vector.broadcast %584 : vector<1x1x128xbf16> to vector<16x16x128xbf16>
    %586 = arith.mulf %581, %585 : vector<16x16x128xbf16>
    %587 = arith.addf %580, %586 : vector<16x16x128xbf16>
    %588 = vector.shape_cast %587 : vector<16x16x128xbf16> to vector<256x128xbf16>
    %c0_187 = arith.constant 0 : index
    %c0_188 = arith.constant 0 : index
    %589 = vector.load %arg8[%c0_187, %c0_188] : memref<128x256xbf16, #tpu.memory_space<vmem>>, vector<128x256xbf16>
    %cst_189 = arith.constant dense<0.000000e+00> : vector<256x256xf32>
    %590 = tpu.matmul %588, %589, %cst_189 {dimension_numbers = #tpu.dot_dimension_numbers<[1], [0], [0], [1], [0, 0, 1, 1], [], []>} : vector<256x128xbf16>, vector<128x256xbf16>, vector<256x256xf32> -> vector<256x256xf32>
    %c0_190 = arith.constant 0 : index
    %c0_191 = arith.constant 0 : index
    %591 = vector.load %arg9[%c0_190, %c0_191] : memref<1x256xf32, #tpu.memory_space<vmem>>, vector<1x256xf32>
    %592 = vector.broadcast %591 : vector<1x256xf32> to vector<256x256xf32>
    %593 = arith.addf %590, %592 : vector<256x256xf32>
    %594 = vector.extract_strided_slice %593 {offsets = [0, 0], sizes = [256, 128], strides = [1, 1]} : vector<256x256xf32> to vector<256x128xf32>
    %595 = vector.extract_strided_slice %593 {offsets = [0, 128], sizes = [256, 128], strides = [1, 1]} : vector<256x256xf32> to vector<256x128xf32>
    %596 = arith.negf %595 : vector<256x128xf32>
    %597 = math.exp %596 : vector<256x128xf32>
    %cst_192 = arith.constant 1.000000e+00 : f32
    %598 = vector.broadcast %cst_192 : f32 to vector<256x128xf32>
    %599 = arith.addf %598, %597 : vector<256x128xf32>
    %600 = arith.divf %598, %599 : vector<256x128xf32>
    %601 = arith.mulf %600, %594 : vector<256x128xf32>
    %602 = arith.truncf %601 : vector<256x128xf32> to vector<256x128xbf16>
    %c0_193 = arith.constant 0 : index
    %c0_194 = arith.constant 0 : index
    %603 = vector.load %arg10[%c0_193, %c0_194] : memref<128x128xbf16, #tpu.memory_space<vmem>>, vector<128x128xbf16>
    %cst_195 = arith.constant dense<0.000000e+00> : vector<256x128xf32>
    %604 = tpu.matmul %602, %603, %cst_195 {dimension_numbers = #tpu.dot_dimension_numbers<[1], [0], [0], [1], [0, 0, 1, 1], [], []>} : vector<256x128xbf16>, vector<128x128xbf16>, vector<256x128xf32> -> vector<256x128xf32>
    %c0_196 = arith.constant 0 : index
    %c0_197 = arith.constant 0 : index
    %605 = vector.load %arg11[%c0_196, %c0_197] : memref<1x128xf32, #tpu.memory_space<vmem>>, vector<1x128xf32>
    %606 = vector.broadcast %605 : vector<1x128xf32> to vector<256x128xf32>
    %607 = arith.addf %604, %606 : vector<256x128xf32>
    %608 = arith.addf %607, %16 : vector<256x128xf32>
    %609 = vector.shape_cast %608 : vector<256x128xf32> to vector<16x16x128xf32>
    %c0_198 = arith.constant 0 : index
    %c0_199 = arith.constant 0 : index
    %c0_200 = arith.constant 0 : index
    %c0_201 = arith.constant 0 : index
    %610 = vector.load %arg12[%c0_198, %c0_199, %c0_200, %c0_201] : memref<1x16x16x128xf32, #tpu.memory_space<vmem>>, vector<1x16x16x128xf32>
    %611 = vector.shape_cast %610 : vector<1x16x16x128xf32> to vector<16x16x128xf32>
    %612 = vector.shape_cast %609 : vector<16x16x128xf32> to vector<1x16x16x128xf32>
    tpu.vector_store %arg12[%c0_198, %c0_199, %c0_200, %c0_201], %612 {strides = array<i32>} : memref<1x16x16x128xf32, #tpu.memory_space<vmem>>, vector<1x16x16x128xf32>,
    return
  }
  func.func @transform_0(%arg0: i32) -> (i32, i32, i32, i32) {
    %c0_i32 = arith.constant 0 : i32
    %c0_i32_0 = arith.constant 0 : i32
    %c0_i32_1 = arith.constant 0 : i32
    %c0_i32_2 = arith.constant 0 : i32
    return %arg0, %c0_i32, %c0_i32_0, %c0_i32_1 : i32, i32, i32, i32
  }
  func.func @transform_1(%arg0: i32) -> (i32, i32) {
    %c0_i32 = arith.constant 0 : i32
    %c0_i32_0 = arith.constant 0 : i32
    %c0_i32_1 = arith.constant 0 : i32
    return %c0_i32, %c0_i32_0 : i32, i32
  }
  func.func @transform_2(%arg0: i32) -> (i32, i32) {
    %c0_i32 = arith.constant 0 : i32
    %c0_i32_0 = arith.constant 0 : i32
    %c0_i32_1 = arith.constant 0 : i32
    return %c0_i32, %c0_i32_0 : i32, i32
  }
  func.func @transform_3(%arg0: i32) -> (i32, i32) {
    %c0_i32 = arith.constant 0 : i32
    %c0_i32_0 = arith.constant 0 : i32
    %c0_i32_1 = arith.constant 0 : i32
    return %c0_i32, %c0_i32_0 : i32, i32
  }
  func.func @transform_4(%arg0: i32) -> (i32, i32) {
    %c0_i32 = arith.constant 0 : i32
    %c0_i32_0 = arith.constant 0 : i32
    %c0_i32_1 = arith.constant 0 : i32
    return %c0_i32, %c0_i32_0 : i32, i32
  }
  func.func @transform_5(%arg0: i32) -> (i32, i32) {
    %c0_i32 = arith.constant 0 : i32
    %c0_i32_0 = arith.constant 0 : i32
    %c0_i32_1 = arith.constant 0 : i32
    return %c0_i32, %c0_i32_0 : i32, i32
  }
  func.func @transform_6(%arg0: i32) -> (i32, i32) {
    %c0_i32 = arith.constant 0 : i32
    %c0_i32_0 = arith.constant 0 : i32
    %c0_i32_1 = arith.constant 0 : i32
    return %c0_i32, %c0_i32_0 : i32, i32
  }
  func.func @transform_7(%arg0: i32) -> (i32, i32) {
    %c0_i32 = arith.constant 0 : i32
    %c0_i32_0 = arith.constant 0 : i32
    %c0_i32_1 = arith.constant 0 : i32
    return %c0_i32, %c0_i32_0 : i32, i32
  }
  func.func @transform_8(%arg0: i32) -> (i32, i32) {
    %c0_i32 = arith.constant 0 : i32
    %c0_i32_0 = arith.constant 0 : i32
    %c0_i32_1 = arith.constant 0 : i32
    return %c0_i32, %c0_i32_0 : i32, i32
  }
  func.func @transform_9(%arg0: i32) -> (i32, i32) {
    %c0_i32 = arith.constant 0 : i32
    %c0_i32_0 = arith.constant 0 : i32
    %c0_i32_1 = arith.constant 0 : i32
    return %c0_i32, %c0_i32_0 : i32, i32
  }
  func.func @transform_10(%arg0: i32) -> (i32, i32) {
    %c0_i32 = arith.constant 0 : i32
    %c0_i32_0 = arith.constant 0 : i32
    %c0_i32_1 = arith.constant 0 : i32
    return %c0_i32, %c0_i32_0 : i32, i32
  }
  func.func @transform_11(%arg0: i32) -> (i32, i32, i32, i32) {
    %c0_i32 = arith.constant 0 : i32
    %c0_i32_0 = arith.constant 0 : i32
    %c0_i32_1 = arith.constant 0 : i32
    %c0_i32_2 = arith.constant 0 : i32
    return %arg0, %c0_i32, %c0_i32_0, %c0_i32_1 : i32, i32, i32, i32
  }
}

</mosaic_0001>

<llo_original>
// kernel: tpu_custom_call.1
$region0: #{tpu_custom_call.1}
  #allocation0 [shape = 'u32[]', space=smem, size = 0x4, offset = 0x4, fixed_abs, tag = 'smem constant byte address 0x4 - core index']
  #allocation1 [shape = 'u32[144,128]{1,0:T(1,128)}', space=vmem, size = 0x12000, scoped, tag = 'internal scratch']
  %s0 = inlined_call_operand.hbm [shape: f32[2,16,128], index: 0, kind: input, shape index: {}]
  %s1 = inlined_call_operand.hbm [shape: f32[2,16,128], index: 1, kind: output, shape index: {}]
  %s2 = sld [smem:[#allocation0]]
  $region18: #{tpu_custom_call.1} parent=0
    _
  %s4 = ssub.s32 1, %s2
  %s5 = scalar_select 0, %s4, %s2
  $region1: #{tpu_custom_call.1} parent=0
    #allocation2 [shape = 'u8[16384]{0}', space=vmem, size = 0x4000, scoped, tag = 'input window, operand 0, single buffered']
    #allocation3 [shape = 's32[1]{0}', space=sflag, size = 0x4, scoped, tag = 'scoped memory for tpu_custom_call.1']
    #allocation4 [shape = 's32[1]{0}', space=sflag, size = 0x4, scoped, tag = 'scoped memory for tpu_custom_call.1']
    #allocation5 [shape = 'u8[16384]{0}', space=vmem, size = 0x4000, scoped, tag = 'output window, operand 0, single buffered']
    %6 = vsyncpa [#allocation3], 0
    %7 = vsyncpa [#allocation4], 0
    // Predicated region
    $region2: #{tpu_custom_call.1} parent=1 // pred_check
      _
    $region3: #{tpu_custom_call.1} parent=1 // pred_check_branch
      %9 = sbr.rel (0) target = $region5
    $region4: #{tpu_custom_call.1} parent=1 // pred_region
      %s11 = ssub.s32 512, 512
      %12 = vsyncadd [#allocation3], %s11
      %s13 = sshll.u32 [#allocation2], 4
      %s14 = int_to_ptr.vmem [resolvable:$true] %s13
      %19 = dma.hbm_to_vmem [thread:$0]  %s0, 512, %s14, [#allocation3], 128, 128, 8
    $region5: #{tpu_custom_call.1} parent=1 // pred_fallthru
      _
    // Predicated region
    $region6: #{tpu_custom_call.1} parent=1 // pred_check
      _
    $region7: #{tpu_custom_call.1} parent=1 // pred_check_branch
      %21 = sbr.rel (0) target = $region9
    $region8: #{tpu_custom_call.1} parent=1 // pred_region
      %22 = dma.done [#allocation3], 512
    $region9: #{tpu_custom_call.1} parent=1 // pred_fallthru
      _
    %v23 = vld [vmem:[#allocation2] sm:$0xff]
    %v24 = vld [vmem:[#allocation2 + $0x8] sm:$0xff]
    %v25 = vld [vmem:[#allocation2 + $0x10] sm:$0xff]
    %v26 = vld [vmem:[#allocation2 + $0x18] sm:$0xff]
    %v27 = vrot.slane %v23, 3
    %v28 = vrot.slane %v25, 3
    %v29 = vrot.slane %v24, 3
    %v30 = vrot.slane %v26, 3
    %v31 = vlaneseq
    %v32 = vshrl.u32 %v31, 7
    %vm33 = vcmp.lt.s32.totalorder %v32, 5
    %v34 = vsel %vm33, %v27, %v29
    %v35 = vsel %vm33, %v28, %v30
    %v36 = vsel %vm33, %v29, %v27
    %v37 = vsel %vm33, %v30, %v28
    %38 = vst [vmem:[#allocation5] sm:$0xff] %v36
    %39 = vst [vmem:[#allocation5 + $0x8] sm:$0xff] %v34
    %40 = vst [vmem:[#allocation5 + $0x10] sm:$0xff] %v37
    %41 = vst [vmem:[#allocation5 + $0x18] sm:$0xff] %v35
    // Predicated region
    $region10: #{tpu_custom_call.1} parent=1 // pred_check
      _
    $region11: #{tpu_custom_call.1} parent=1 // pred_check_branch
      %43 = sbr.rel (0) target = $region13
    $region12: #{tpu_custom_call.1} parent=1 // pred_region
      %s45 = ssub.s32 512, 512
      %46 = vsyncadd [#allocation4], %s45
      %s47 = sshll.u32 [#allocation5], 4
      %s48 = int_to_ptr.vmem [resolvable:$true] %s47
      %53 = dma.vmem_to_hbm [thread:$0]  %s48, 512, %s1, [#allocation4], 128, 128, 8
    $region13: #{tpu_custom_call.1} parent=1 // pred_fallthru
      _
    // Predicated region
    $region14: #{tpu_custom_call.1} parent=1 // pred_check
      _
    $region15: #{tpu_custom_call.1} parent=1 // pred_check_branch
      %55 = sbr.rel (0) target = $region17
    $region16: #{tpu_custom_call.1} parent=1 // pred_region
      %56 = dma.done [#allocation4], 512
    $region17: #{tpu_custom_call.1} parent=1 // pred_fallthru
      _
    %57 = vsyncpa [#allocation3], 1
    %58 = vsyncpa [#allocation4], 1

// kernel: _forward_impl.1
$region0: #{_forward_impl.1}
  #allocation0 [shape = 'u32[]', space=smem, size = 0x4, offset = 0x4, fixed_abs, tag = 'smem constant byte address 0x4 - core index']
  #allocation1 [shape = 'u32[144,128]{1,0:T(1,128)}', space=vmem, size = 0x12000, scoped, tag = 'internal scratch']
  #allocation2 [shape = 'f32[20,32,128]{2,1,0:T(8,128)}', space=vmem, size = 0x50000, scoped, tag = 'scratch operand']
  #allocation3 [shape = 'f32[34,48,128]{2,1,0:T(8,128)}', space=vmem, size = 0xcc000, scoped, tag = 'scratch operand']
  %s0 = inlined_call_operand.vmem [shape: f32[2,16,16,128], index: 0, kind: input, shape index: {}]
  %s1 = inlined_call_operand.vmem [shape: bf16[128,128], index: 1, kind: input, shape index: {}]
  %s2 = inlined_call_operand.vmem [shape: f32[1,128], index: 2, kind: input, shape index: {}]
  %s3 = inlined_call_operand.vmem [shape: bf16[25,128], index: 3, kind: input, shape index: {}]
  %s4 = inlined_call_operand.vmem [shape: bf16[1,128], index: 4, kind: input, shape index: {}]
  %s5 = inlined_call_operand.vmem [shape: bf16[49,128], index: 5, kind: input, shape index: {}]
  %s6 = inlined_call_operand.vmem [shape: bf16[1,128], index: 6, kind: input, shape index: {}]
  %s7 = inlined_call_operand.vmem [shape: bf16[128,256], index: 7, kind: input, shape index: {}]
  %s8 = inlined_call_operand.vmem [shape: f32[1,256], index: 8, kind: input, shape index: {}]
  %s9 = inlined_call_operand.vmem [shape: bf16[128,128], index: 9, kind: input, shape index: {}]
  %s10 = inlined_call_operand.vmem [shape: f32[1,128], index: 10, kind: input, shape index: {}]
  %s11 = inlined_call_operand.vmem [shape: f32[2,16,16,128], index: 11, kind: output, shape index: {}]
  %s12 = sld [smem:[#allocation0]]
  $region77: #{_forward_impl.1} parent=0
    _
  %s14 = ssub.s32 1, %s12
  %s15 = scalar_select 0, %s14, %s12
  loop: start=0, step=1, limit=4
  $region2: #{_forward_impl.1} parent=0 // loop_pre_header
    _
  $region3: #{_forward_impl.1} parent=0 // loop_header
    %s17 = sphi 0, %s21
    %p18 = scmp.ge.s32.totalorder %s17, 4
    %s27 = sphi 0, %s29
    %s30 = sphi 0, %s27
    %s31 = sphi 0, %s30
    %s47 = sphi 0, %s31
    %s51 = sphi 0, %s51
    %s53 = sphi 0, %s51
    %s54 = sphi 0, %s53
    %s68 = sphi 0, %s54
    %s72 = sphi 0, %s72
    %s74 = sphi 0, %s72
    %s75 = sphi 0, %s74
    %s89 = sphi 0, %s75
    %s93 = sphi 0, %s93
    %s95 = sphi 0, %s93
    %s96 = sphi 0, %s95
    %s110 = sphi 0, %s96
    %s114 = sphi 0, %s114
    %s116 = sphi 0, %s114
    %s117 = sphi 0, %s116
    %s131 = sphi 0, %s117
    %s135 = sphi 0, %s135
    %s137 = sphi 0, %s135
    %s138 = sphi 0, %s137
    %s152 = sphi 0, %s138
    %s156 = sphi 0, %s156
    %s158 = sphi 0, %s156
    %s159 = sphi 0, %s158
    %s173 = sphi 0, %s159
    %s177 = sphi 0, %s177
    %s179 = sphi 0, %s177
    %s180 = sphi 0, %s179
    %s194 = sphi 0, %s180
    %s198 = sphi 0, %s198
    %s200 = sphi 0, %s198
    %s201 = sphi 0, %s200
    %s215 = sphi 0, %s201
    %s219 = sphi 0, %s219
    %s221 = sphi 0, %s219
    %s222 = sphi 0, %s221
    %s236 = sphi 0, %s222
    %s240 = sphi 0, %s240
    %s242 = sphi 0, %s240
    %s243 = sphi 0, %s242
    %s257 = sphi 0, %s243
    %s263 = sphi 0, %s265
    %s266 = sphi 0, %s263
    %s267 = sphi 0, %s266
    %s283 = sphi 0, %s267
  $region4: #{_forward_impl.1} parent=0 // loop_header_branch
    %20 = sbr.rel (%p18) target = $region8
  $region5: #{_forward_impl.1} parent=0 // loop_body
    %s22 = ssub.s32 %s17, 1
    %s23 = ssub.s32 %s17, 2
    %s24 = sadd.s32 %s17, 1
    %s25 = ssub.s32 %s17, %s24
    %p26 = scmp.eq.s32.totalorder %s25, 0
    %s28 = sadd.s32 %s27, 1
    %s29 = scalar_select %p26, %s27, %s28
    %p32 = pneg %p26
    %p33 = scmp.eq.s32.totalorder %s17, 1
    %p34 = por %p32, %p33
    %p35 = scmp.ne.s32.totalorder %s27, %s30
    %p36 = scmp.eq.s32.totalorder %s17, 0
    %p37 = por %p35, %p36
    %p38 = scmp.ne.s32.totalorder %s27, %s30
    %p39 = scmp.eq.s32.totalorder %s22, 1
    %p40 = por %p38, %p39
    %p41 = scmp.ne.s32.totalorder %s30, %s31
    %p42 = scmp.eq.s32.totalorder %s22, 0
    %p43 = por %p41, %p42
    %p44 = scmp.ne.s32.totalorder %s30, %s31
    %p45 = scmp.eq.s32.totalorder %s23, 1
    %p46 = por %p44, %p45
    %p48 = scmp.ne.s32.totalorder %s31, %s47
    %p49 = scmp.eq.s32.totalorder %s23, 0
    %p50 = por %p48, %p49
    %s52 = sadd.s32 %s51, 1
    %p55 = scmp.eq.s32.totalorder %s17, 1
    %p56 = scmp.ne.s32.totalorder %s51, %s53
    %p57 = scmp.eq.s32.totalorder %s17, 0
    %p58 = por %p56, %p57
    %p59 = scmp.ne.s32.totalorder %s51, %s53
    %p60 = scmp.eq.s32.totalorder %s22, 1
    %p61 = por %p59, %p60
    %p62 = scmp.ne.s32.totalorder %s53, %s54
    %p63 = scmp.eq.s32.totalorder %s22, 0
    %p64 = por %p62, %p63
    %p65 = scmp.ne.s32.totalorder %s53, %s54
    %p66 = scmp.eq.s32.totalorder %s23, 1
    %p67 = por %p65, %p66
    %p69 = scmp.ne.s32.totalorder %s54, %s68
    %p70 = scmp.eq.s32.totalorder %s23, 0
    %p71 = por %p69, %p70
    %s73 = sadd.s32 %s72, 1
    %p76 = scmp.eq.s32.totalorder %s17, 1
    %p77 = scmp.ne.s32.totalorder %s72, %s74
    %p78 = scmp.eq.s32.totalorder %s17, 0
    %p79 = por %p77, %p78
    %p80 = scmp.ne.s32.totalorder %s72, %s74
    %p81 = scmp.eq.s32.totalorder %s22, 1
    %p82 = por %p80, %p81
    %p83 = scmp.ne.s32.totalorder %s74, %s75
    %p84 = scmp.eq.s32.totalorder %s22, 0
    %p85 = por %p83, %p84
    %p86 = scmp.ne.s32.totalorder %s74, %s75
    %p87 = scmp.eq.s32.totalorder %s23, 1
    %p88 = por %p86, %p87
    %p90 = scmp.ne.s32.totalorder %s75, %s89
    %p91 = scmp.eq.s32.totalorder %s23, 0
    %p92 = por %p90, %p91
    %s94 = sadd.s32 %s93, 1
    %p97 = scmp.eq.s32.totalorder %s17, 1
    %p98 = scmp.ne.s32.totalorder %s93, %s95
    %p99 = scmp.eq.s32.totalorder %s17, 0
    %p100 = por %p98, %p99
    %p101 = scmp.ne.s32.totalorder %s93, %s95
    %p102 = scmp.eq.s32.totalorder %s22, 1
    %p103 = por %p101, %p102
    %p104 = scmp.ne.s32.totalorder %s95, %s96
    %p105 = scmp.eq.s32.totalorder %s22, 0
    %p106 = por %p104, %p105
    %p107 = scmp.ne.s32.totalorder %s95, %s96
    %p108 = scmp.eq.s32.totalorder %s23, 1
    %p109 = por %p107, %p108
    %p111 = scmp.ne.s32.totalorder %s96, %s110
    %p112 = scmp.eq.s32.totalorder %s23, 0
    %p113 = por %p111, %p112
    %s115 = sadd.s32 %s114, 1
    %p118 = scmp.eq.s32.totalorder %s17, 1
    %p119 = scmp.ne.s32.totalorder %s114, %s116
    %p120 = scmp.eq.s32.totalorder %s17, 0
    %p121 = por %p119, %p120
    %p122 = scmp.ne.s32.totalorder %s114, %s116
    %p123 = scmp.eq.s32.totalorder %s22, 1
    %p124 = por %p122, %p123
    %p125 = scmp.ne.s32.totalorder %s116, %s117
    %p126 = scmp.eq.s32.totalorder %s22, 0
    %p127 = por %p125, %p126
    %p128 = scmp.ne.s32.totalorder %s116, %s117
    %p129 = scmp.eq.s32.totalorder %s23, 1
    %p130 = por %p128, %p129
    %p132 = scmp.ne.s32.totalorder %s117, %s131
    %p133 = scmp.eq.s32.totalorder %s23, 0
    %p134 = por %p132, %p133
    %s136 = sadd.s32 %s135, 1
    %p139 = scmp.eq.s32.totalorder %s17, 1
    %p140 = scmp.ne.s32.totalorder %s135, %s137
    %p141 = scmp.eq.s32.totalorder %s17, 0
    %p142 = por %p140, %p141
    %p143 = scmp.ne.s32.totalorder %s135, %s137
    %p144 = scmp.eq.s32.totalorder %s22, 1
    %p145 = por %p143, %p144
    %p146 = scmp.ne.s32.totalorder %s137, %s138
    %p147 = scmp.eq.s32.totalorder %s22, 0
    %p148 = por %p146, %p147
    %p149 = scmp.ne.s32.totalorder %s137, %s138
    %p150 = scmp.eq.s32.totalorder %s23, 1
    %p151 = por %p149, %p150
    %p153 = scmp.ne.s32.totalorder %s138, %s152
    %p154 = scmp.eq.s32.totalorder %s23, 0
    %p155 = por %p153, %p154
    %s157 = sadd.s32 %s156, 1
    %p160 = scmp.eq.s32.totalorder %s17, 1
    %p161 = scmp.ne.s32.totalorder %s156, %s158
    %p162 = scmp.eq.s32.totalorder %s17, 0
    %p163 = por %p161, %p162
    %p164 = scmp.ne.s32.totalorder %s156, %s158
    %p165 = scmp.eq.s32.totalorder %s22, 1
    %p166 = por %p164, %p165
    %p167 = scmp.ne.s32.totalorder %s158, %s159
    %p168 = scmp.eq.s32.totalorder %s22, 0
    %p169 = por %p167, %p168
    %p170 = scmp.ne.s32.totalorder %s158, %s159
    %p171 = scmp.eq.s32.totalorder %s23, 1
    %p172 = por %p170, %p171
    %p174 = scmp.ne.s32.totalorder %s159, %s173
    %p175 = scmp.eq.s32.totalorder %s23, 0
    %p176 = por %p174, %p175
    %s178 = sadd.s32 %s177, 1
    %p181 = scmp.eq.s32.totalorder %s17, 1
    %p182 = scmp.ne.s32.totalorder %s177, %s179
    %p183 = scmp.eq.s32.totalorder %s17, 0
    %p184 = por %p182, %p183
    %p185 = scmp.ne.s32.totalorder %s177, %s179
    %p186 = scmp.eq.s32.totalorder %s22, 1
    %p187 = por %p185, %p186
    %p188 = scmp.ne.s32.totalorder %s179, %s180
    %p189 = scmp.eq.s32.totalorder %s22, 0
    %p190 = por %p188, %p189
    %p191 = scmp.ne.s32.totalorder %s179, %s180
    %p192 = scmp.eq.s32.totalorder %s23, 1
    %p193 = por %p191, %p192
    %p195 = scmp.ne.s32.totalorder %s180, %s194
    %p196 = scmp.eq.s32.totalorder %s23, 0
    %p197 = por %p195, %p196
    %s199 = sadd.s32 %s198, 1
    %p202 = scmp.eq.s32.totalorder %s17, 1
    %p203 = scmp.ne.s32.totalorder %s198, %s200
    %p204 = scmp.eq.s32.totalorder %s17, 0
    %p205 = por %p203, %p204
    %p206 = scmp.ne.s32.totalorder %s198, %s200
    %p207 = scmp.eq.s32.totalorder %s22, 1
    %p208 = por %p206, %p207
    %p209 = scmp.ne.s32.totalorder %s200, %s201
    %p210 = scmp.eq.s32.totalorder %s22, 0
    %p211 = por %p209, %p210
    %p212 = scmp.ne.s32.totalorder %s200, %s201
    %p213 = scmp.eq.s32.totalorder %s23, 1
    %p214 = por %p212, %p213
    %p216 = scmp.ne.s32.totalorder %s201, %s215
    %p217 = scmp.eq.s32.totalorder %s23, 0
    %p218 = por %p216, %p217
    %s220 = sadd.s32 %s219, 1
    %p223 = scmp.eq.s32.totalorder %s17, 1
    %p224 = scmp.ne.s32.totalorder %s219, %s221
    %p225 = scmp.eq.s32.totalorder %s17, 0
    %p226 = por %p224, %p225
    %p227 = scmp.ne.s32.totalorder %s219, %s221
    %p228 = scmp.eq.s32.totalorder %s22, 1
    %p229 = por %p227, %p228
    %p230 = scmp.ne.s32.totalorder %s221, %s222
    %p231 = scmp.eq.s32.totalorder %s22, 0
    %p232 = por %p230, %p231
    %p233 = scmp.ne.s32.totalorder %s221, %s222
    %p234 = scmp.eq.s32.totalorder %s23, 1
    %p235 = por %p233, %p234
    %p237 = scmp.ne.s32.totalorder %s222, %s236
    %p238 = scmp.eq.s32.totalorder %s23, 0
    %p239 = por %p237, %p238
    %s241 = sadd.s32 %s240, 1
    %p244 = scmp.eq.s32.totalorder %s17, 1
    %p245 = scmp.ne.s32.totalorder %s240, %s242
    %p246 = scmp.eq.s32.totalorder %s17, 0
    %p247 = por %p245, %p246
    %p248 = scmp.ne.s32.totalorder %s240, %s242
    %p249 = scmp.eq.s32.totalorder %s22, 1
    %p250 = por %p248, %p249
    %p251 = scmp.ne.s32.totalorder %s242, %s243
    %p252 = scmp.eq.s32.totalorder %s22, 0
    %p253 = por %p251, %p252
    %p254 = scmp.ne.s32.totalorder %s242, %s243
    %p255 = scmp.eq.s32.totalorder %s23, 1
    %p256 = por %p254, %p255
    %p258 = scmp.ne.s32.totalorder %s243, %s257
    %p259 = scmp.eq.s32.totalorder %s23, 0
    %p260 = por %p258, %p259
    %s261 = ssub.s32 %s17, %s24
    %p262 = scmp.eq.s32.totalorder %s261, 0
    %s264 = sadd.s32 %s263, 1
    %s265 = scalar_select %p262, %s263, %s264
    %p268 = pneg %p262
    %p269 = scmp.eq.s32.totalorder %s17, 1
    %p270 = por %p268, %p269
    %p271 = scmp.ne.s32.totalorder %s263, %s266
    %p272 = scmp.eq.s32.totalorder %s17, 0
    %p273 = por %p271, %p272
    %p274 = scmp.ne.s32.totalorder %s263, %s266
    %p275 = scmp.eq.s32.totalorder %s22, 1
    %p276 = por %p274, %p275
    %p277 = scmp.ne.s32.totalorder %s266, %s267
    %p278 = scmp.eq.s32.totalorder %s22, 0
    %p279 = por %p277, %p278
    %p280 = scmp.ne.s32.totalorder %s266, %s267
    %p281 = scmp.eq.s32.totalorder %s23, 1
    %p282 = por %p280, %p281
    %p284 = scmp.ne.s32.totalorder %s267, %s283
    %p285 = scmp.eq.s32.totalorder %s23, 0
    %p286 = por %p284, %p285
    %p287 = scmp.le.s32.totalorder 1, %s17
    %p288 = scmp.lt.s32.totalorder %s17, 3
    %p289 = pnand %p287, %p288
    %p290 = pneg %p289
    // Predicated region
    $region9: #{_forward_impl.1} parent=5 // pred_check
      _
    $region10: #{_forward_impl.1} parent=5 // pred_check_branch
      %292 = sbr.rel (%p289) target = $region12
    $region11: #{_forward_impl.1} parent=5 // pred_region
      %s293 = ssub.s32 %s17, 1
      // Predicated region
      $region13: #{_forward_impl.1} parent=11 // pred_check
        %p294 = pneg %p64
      $region14: #{_forward_impl.1} parent=11 // pred_check_branch
        %296 = sbr.rel (%p294) target = $region16
      $region15: #{_forward_impl.1} parent=11 // pred_region
        _
      $region16: #{_forward_impl.1} parent=11 // pred_fallthru
        _
      // Predicated region
      $region17: #{_forward_impl.1} parent=11 // pred_check
        %p297 = pneg %p85
      $region18: #{_forward_impl.1} parent=11 // pred_check_branch
        %299 = sbr.rel (%p297) target = $region20
      $region19: #{_forward_impl.1} parent=11 // pred_region
        _
      $region20: #{_forward_impl.1} parent=11 // pred_fallthru
        _
      // Predicated region
      $region21: #{_forward_impl.1} parent=11 // pred_check
        %p300 = pneg %p106
      $region22: #{_forward_impl.1} parent=11 // pred_check_branch
        %302 = sbr.rel (%p300) target = $region24
      $region23: #{_forward_impl.1} parent=11 // pred_region
        _
      $region24: #{_forward_impl.1} parent=11 // pred_fallthru
        _
      // Predicated region
      $region25: #{_forward_impl.1} parent=11 // pred_check
        %p303 = pneg %p127
      $region26: #{_forward_impl.1} parent=11 // pred_check_branch
        %305 = sbr.rel (%p303) target = $region28
      $region27: #{_forward_impl.1} parent=11 // pred_region
        _
      $region28: #{_forward_impl.1} parent=11 // pred_fallthru
        _
      // Predicated region
      $region29: #{_forward_impl.1} parent=11 // pred_check
        %p306 = pneg %p148
      $region30: #{_forward_impl.1} parent=11 // pred_check_branch
        %308 = sbr.rel (%p306) target = $region32
      $region31: #{_forward_impl.1} parent=11 // pred_region
        _
      $region32: #{_forward_impl.1} parent=11 // pred_fallthru
        _
      // Predicated region
      $region33: #{_forward_impl.1} parent=11 // pred_check
        %p309 = pneg %p169
      $region34: #{_forward_impl.1} parent=11 // pred_check_branch
        %311 = sbr.rel (%p309) target = $region36
      $region35: #{_forward_impl.1} parent=11 // pred_region
        _
      $region36: #{_forward_impl.1} parent=11 // pred_fallthru
        _
      // Predicated region
      $region37: #{_forward_impl.1} parent=11 // pred_check
        %p312 = pneg %p190
      $region38: #{_forward_impl.1} parent=11 // pred_check_branch
        %314 = sbr.rel (%p312) target = $region40
      $region39: #{_forward_impl.1} parent=11 // pred_region
        _
      $region40: #{_forward_impl.1} parent=11 // pred_fallthru
        _
      // Predicated region
      $region41: #{_forward_impl.1} parent=11 // pred_check
        %p315 = pneg %p211
      $region42: #{_forward_impl.1} parent=11 // pred_check_branch
        %317 = sbr.rel (%p315) target = $region44
      $region43: #{_forward_impl.1} parent=11 // pred_region
        _
      $region44: #{_forward_impl.1} parent=11 // pred_fallthru
        _
      // Predicated region
      $region45: #{_forward_impl.1} parent=11 // pred_check
        %p318 = pneg %p232
      $region46: #{_forward_impl.1} parent=11 // pred_check_branch
        %320 = sbr.rel (%p318) target = $region48
      $region47: #{_forward_impl.1} parent=11 // pred_region
        _
      $region48: #{_forward_impl.1} parent=11 // pred_fallthru
        _
      // Predicated region
      $region49: #{_forward_impl.1} parent=11 // pred_check
        %p321 = pneg %p253
      $region50: #{_forward_impl.1} parent=11 // pred_check_branch
        %323 = sbr.rel (%p321) target = $region52
      $region51: #{_forward_impl.1} parent=11 // pred_region
        _
      $region52: #{_forward_impl.1} parent=11 // pred_fallthru
        _
    $region12: #{_forward_impl.1} parent=5 // pred_fallthru
      _
    %p324 = scmp.lt.s32.totalorder %s17, 2
    // Predicated region
    $region53: #{_forward_impl.1} parent=5 // pred_check
      %p325 = pneg %p324
    $region54: #{_forward_impl.1} parent=5 // pred_check_branch
      %327 = sbr.rel (%p325) target = $region56
    $region55: #{_forward_impl.1} parent=5 // pred_region
      // Predicated region
      $region57: #{_forward_impl.1} parent=55 // pred_check
        %p328 = pneg %p37
      $region58: #{_forward_impl.1} parent=55 // pred_check_branch
        %330 = sbr.rel (%p328) target = $region60
      $region59: #{_forward_impl.1} parent=55 // pred_region
        %p331 = scmp.lt.s32.totalorder %s17, 1
        %s332 = scalar_select %p331, %s17, 1
        %s333 = smul.addr %s332, 32
        %s334 = smul.addr %s333, 8
        %s335 = scalar_lea.vmem %s0, %s334
      $region60: #{_forward_impl.1} parent=55 // pred_fallthru
        _
    $region56: #{_forward_impl.1} parent=5 // pred_fallthru
      _
    %p336 = scmp.le.s32.totalorder 1, %s17
    %p337 = scmp.lt.s32.totalorder %s17, 3
    %p338 = pnand %p336, %p337
    %p339 = pneg %p338
    // Predicated region
    $region61: #{_forward_impl.1} parent=5 // pred_check
      _
    $region62: #{_forward_impl.1} parent=5 // pred_check_branch
      %341 = sbr.rel (%p338) target = $region64
    $region63: #{_forward_impl.1} parent=5 // pred_region
      %s342 = ssub.s32 %s17, 1
      %p343 = scmp.lt.s32.totalorder %s22, 1
      %s344 = scalar_select %p343, %s22, 1
      %s345 = smul.addr %s344, 32
      %s346 = smul.addr %s345, 8
      %s347 = scalar_lea.vmem %s0, %s346
      %p348 = pneg %p43
      %p349 = pneg %p40
      %p350 = pneg %p64
      %p351 = pneg %p61
      %p352 = pneg %p85
      %p353 = pneg %p82
      %p354 = pneg %p106
      %p355 = pneg %p103
      %p356 = pneg %p127
      %p357 = pneg %p124
      %p358 = pneg %p148
      %p359 = pneg %p145
      %p360 = pneg %p169
      %p361 = pneg %p166
      %p362 = pneg %p190
      %p363 = pneg %p187
      %p364 = pneg %p211
      %p365 = pneg %p208
      %p366 = pneg %p232
      %p367 = pneg %p229
      %p368 = pneg %p253
      %p369 = pneg %p250
      %p370 = pneg %p279
      %p371 = pneg %p276
      %p372 = scmp.lt.s32.totalorder %s22, 1
      %s373 = scalar_select %p372, %s22, 1
      %s374 = smul.addr %s373, 32
      %s375 = smul.addr %s374, 8
      %s376 = scalar_lea.vmem %s11, %s375
      %p377 = scmp.lt.s32.totalorder %s22, 1
      %s378 = scalar_select %p377, %s22, 1
      %s379 = smul.addr %s378, 32
      %s380 = smul.addr %s379, 8
      %s381 = scalar_lea.vmem %s0, %s380
      %p382 = scmp.lt.s32.totalorder %s22, 1
      %s383 = scalar_select %p382, %s22, 1
      %s384 = smul.addr %s383, 32
      %s385 = smul.addr %s384, 8
      %s386 = scalar_lea.vmem %s11, %s385
      %388 = vst [vmem:[#allocation2] sm:$0xff] 0.0
      %389 = vst [vmem:[#allocation2 + $0x8] sm:$0xff] 0.0
      %390 = vst [vmem:[#allocation2 + $0x10] sm:$0xff] 0.0
      %391 = vst [vmem:[#allocation2 + $0x18] sm:$0xff] 0.0
      %392 = vst [vmem:[#allocation2 + $0x20] sm:$0xff] 0.0
      %393 = vst [vmem:[#allocation2 + $0x28] sm:$0xff] 0.0
      %394 = vst [vmem:[#allocation2 + $0x30] sm:$0xff] 0.0
      %395 = vst [vmem:[#allocation2 + $0x38] sm:$0xff] 0.0
      %s396 = scalar_lea.vmem [#allocation2], 576
      %397 = vst [vmem:[%s396] sm:$0xff] 0.0
      %398 = vst [vmem:[%s396 + $0x8] sm:$0xff] 0.0
      %399 = vst [vmem:[%s396 + $0x10] sm:$0xff] 0.0
      %400 = vst [vmem:[%s396 + $0x18] sm:$0xff] 0.0
      %401 = vst [vmem:[%s396 + $0x20] sm:$0xff] 0.0
      %402 = vst [vmem:[%s396 + $0x28] sm:$0xff] 0.0
      %403 = vst [vmem:[%s396 + $0x30] sm:$0xff] 0.0
      %404 = vst [vmem:[%s396 + $0x38] sm:$0xff] 0.0
      %405 = vst [vmem:[#allocation2] sm:$0xff] 0.0
      %406 = vst [vmem:[#allocation2 + $0x20] sm:$0xff] 0.0
      %407 = vst [vmem:[#allocation2 + $0x40] sm:$0xff] 0.0
      %408 = vst [vmem:[#allocation2 + $0x60] sm:$0xff] 0.0
      %409 = vst [vmem:[#allocation2 + $0x80] sm:$0xff] 0.0
      %410 = vst [vmem:[#allocation2 + $0xa0] sm:$0xff] 0.0
      %411 = vst [vmem:[#allocation2 + $0xc0] sm:$0xff] 0.0
      %412 = vst [vmem:[#allocation2 + $0xe0] sm:$0xff] 0.0
      %413 = vst [vmem:[#allocation2 + $0x100] sm:$0xff] 0.0
      %414 = vst [vmem:[#allocation2 + $0x120] sm:$0xff] 0.0
      %415 = vst [vmem:[#allocation2 + $0x140] sm:$0xff] 0.0
      %416 = vst [vmem:[#allocation2 + $0x160] sm:$0xff] 0.0
      %417 = vst [vmem:[#allocation2 + $0x180] sm:$0xff] 0.0
      %418 = vst [vmem:[#allocation2 + $0x1a0] sm:$0xff] 0.0
      %419 = vst [vmem:[#allocation2 + $0x1c0] sm:$0xff] 0.0
      %420 = vst [vmem:[#allocation2 + $0x1e0] sm:$0xff] 0.0
      %421 = vst [vmem:[#allocation2 + $0x200] sm:$0xff] 0.0
      %422 = vst [vmem:[#allocation2 + $0x220] sm:$0xff] 0.0
      %423 = vst [vmem:[#allocation2 + $0x240] sm:$0xff] 0.0
      %424 = vst [vmem:[#allocation2 + $0x260] sm:$0xff] 0.0
      %425 = vst [vmem:[#allocation2 + $0x18] sm:$0xff] 0.0
      %426 = vst [vmem:[#allocation2 + $0x38] sm:$0xff] 0.0
      %427 = vst [vmem:[#allocation2 + $0x58] sm:$0xff] 0.0
      %428 = vst [vmem:[#allocation2 + $0x78] sm:$0xff] 0.0
      %429 = vst [vmem:[#allocation2 + $0x98] sm:$0xff] 0.0
      %430 = vst [vmem:[#allocation2 + $0xb8] sm:$0xff] 0.0
      %431 = vst [vmem:[#allocation2 + $0xd8] sm:$0xff] 0.0
      %432 = vst [vmem:[#allocation2 + $0xf8] sm:$0xff] 0.0
      %433 = vst [vmem:[#allocation2 + $0x118] sm:$0xff] 0.0
      %434 = vst [vmem:[#allocation2 + $0x138] sm:$0xff] 0.0
      %435 = vst [vmem:[#allocation2 + $0x158] sm:$0xff] 0.0
      %436 = vst [vmem:[#allocation2 + $0x178] sm:$0xff] 0.0
      %437 = vst [vmem:[#allocation2 + $0x198] sm:$0xff] 0.0
      %438 = vst [vmem:[#allocation2 + $0x1b8] sm:$0xff] 0.0
      %439 = vst [vmem:[#allocation2 + $0x1d8] sm:$0xff] 0.0
      %440 = vst [vmem:[#allocation2 + $0x1f8] sm:$0xff] 0.0
      %441 = vst [vmem:[#allocation2 + $0x218] sm:$0xff] 0.0
      %442 = vst [vmem:[#allocation2 + $0x238] sm:$0xff] 0.0
      %443 = vst [vmem:[#allocation2 + $0x258] sm:$0xff] 0.0
      %444 = vst [vmem:[#allocation2 + $0x278] sm:$0xff] 0.0
      %445 = vst [vmem:[#allocation3] sm:$0xff] 0.0
      %446 = vst [vmem:[#allocation3 + $0x8] sm:$0xff] 0.0
      %447 = vst [vmem:[#allocation3 + $0x10] sm:$0xff] 0.0
      %448 = vst [vmem:[#allocation3 + $0x18] sm:$0xff] 0.0
      %449 = vst [vmem:[#allocation3 + $0x20] sm:$0xff] 0.0
      %450 = vst [vmem:[#allocation3 + $0x28] sm:$0xff] 0.0
      %451 = vst [vmem:[#allocation3 + $0x30] sm:$0xff] 0.0
      %452 = vst [vmem:[#allocation3 + $0x38] sm:$0xff] 0.0
      %453 = vst [vmem:[#allocation3 + $0x40] sm:$0xff] 0.0
      %454 = vst [vmem:[#allocation3 + $0x48] sm:$0xff] 0.0
      %455 = vst [vmem:[#allocation3 + $0x50] sm:$0xff] 0.0
      %456 = vst [vmem:[#allocation3 + $0x58] sm:$0xff] 0.0
      %457 = vst [vmem:[#allocation3 + $0x60] sm:$0xff] 0.0
      %458 = vst [vmem:[#allocation3 + $0x68] sm:$0xff] 0.0
      %459 = vst [vmem:[#allocation3 + $0x70] sm:$0xff] 0.0
      %460 = vst [vmem:[#allocation3 + $0x78] sm:$0xff] 0.0
      %461 = vst [vmem:[#allocation3 + $0x80] sm:$0xff] 0.0
      %462 = vst [vmem:[#allocation3 + $0x88] sm:$0xff] 0.0
      %463 = vst [vmem:[#allocation3 + $0x90] sm:$0xff] 0.0
      %464 = vst [vmem:[#allocation3 + $0x98] sm:$0xff] 0.0
      %465 = vst [vmem:[#allocation3 + $0xa0] sm:$0xff] 0.0
      %466 = vst [vmem:[#allocation3 + $0xa8] sm:$0xff] 0.0
      %467 = vst [vmem:[#allocation3 + $0xb0] sm:$0xff] 0.0
      %468 = vst [vmem:[#allocation3 + $0xb8] sm:$0xff] 0.0
      %469 = vst [vmem:[#allocation3 + $0xc0] sm:$0xff] 0.0
      %470 = vst [vmem:[#allocation3 + $0xc8] sm:$0xff] 0.0
      %471 = vst [vmem:[#allocation3 + $0xd0] sm:$0xff] 0.0
      %472 = vst [vmem:[#allocation3 + $0xd8] sm:$0xff] 0.0
      %473 = vst [vmem:[#allocation3 + $0xe0] sm:$0xff] 0.0
      %474 = vst [vmem:[#allocation3 + $0xe8] sm:$0xff] 0.0
      %475 = vst [vmem:[#allocation3 + $0xf0] sm:$0xff] 0.0
      %476 = vst [vmem:[#allocation3 + $0xf8] sm:$0xff] 0.0
      %477 = vst [vmem:[#allocation3 + $0x100] sm:$0xff] 0.0
      %478 = vst [vmem:[#allocation3 + $0x108] sm:$0xff] 0.0
      %479 = vst [vmem:[#allocation3 + $0x110] sm:$0xff] 0.0
      %480 = vst [vmem:[#allocation3 + $0x118] sm:$0xff] 0.0
      %481 = vst [vmem:[#allocation3 + $0x120] sm:$0xff] 0.0
      %482 = vst [vmem:[#allocation3 + $0x128] sm:$0xff] 0.0
      %483 = vst [vmem:[#allocation3 + $0x130] sm:$0xff] 0.0
      %484 = vst [vmem:[#allocation3 + $0x138] sm:$0xff] 0.0
      %485 = vst [vmem:[#allocation3 + $0x140] sm:$0xff] 0.0
      %486 = vst [vmem:[#allocation3 + $0x148] sm:$0xff] 0.0
      %487 = vst [vmem:[#allocation3 + $0x150] sm:$0xff] 0.0
      %488 = vst [vmem:[#allocation3 + $0x158] sm:$0xff] 0.0
      %489 = vst [vmem:[#allocation3 + $0x160] sm:$0xff] 0.0
      %490 = vst [vmem:[#allocation3 + $0x168] sm:$0xff] 0.0
      %491 = vst [vmem:[#allocation3 + $0x170] sm:$0xff] 0.0
      %492 = vst [vmem:[#allocation3 + $0x178] sm:$0xff] 0.0
      %493 = vst [vmem:[#allocation3 + $0x180] sm:$0xff] 0.0
      %494 = vst [vmem:[#allocation3 + $0x188] sm:$0xff] 0.0
      %495 = vst [vmem:[#allocation3 + $0x190] sm:$0xff] 0.0
      %496 = vst [vmem:[#allocation3 + $0x198] sm:$0xff] 0.0
      %497 = vst [vmem:[#allocation3 + $0x1a0] sm:$0xff] 0.0
      %498 = vst [vmem:[#allocation3 + $0x1a8] sm:$0xff] 0.0
      %s499 = scalar_lea.vmem [#allocation3], 1200
      %500 = vst [vmem:[%s499] sm:$0xff] 0.0
      %501 = vst [vmem:[%s499 + $0x8] sm:$0xff] 0.0
      %502 = vst [vmem:[%s499 + $0x10] sm:$0xff] 0.0
      %503 = vst [vmem:[%s499 + $0x18] sm:$0xff] 0.0
      %504 = vst [vmem:[%s499 + $0x20] sm:$0xff] 0.0
      %505 = vst [vmem:[%s499 + $0x28] sm:$0xff] 0.0
      %506 = vst [vmem:[%s499 + $0x30] sm:$0xff] 0.0
      %507 = vst [vmem:[%s499 + $0x38] sm:$0xff] 0.0
      %508 = vst [vmem:[%s499 + $0x40] sm:$0xff] 0.0
      %509 = vst [vmem:[%s499 + $0x48] sm:$0xff] 0.0
      %510 = vst [vmem:[%s499 + $0x50] sm:$0xff] 0.0
      %511 = vst [vmem:[%s499 + $0x58] sm:$0xff] 0.0
      %512 = vst [vmem:[%s499 + $0x60] sm:$0xff] 0.0
      %513 = vst [vmem:[%s499 + $0x68] sm:$0xff] 0.0
      %514 = vst [vmem:[%s499 + $0x70] sm:$0xff] 0.0
      %515 = vst [vmem:[%s499 + $0x78] sm:$0xff] 0.0
      %516 = vst [vmem:[%s499 + $0x80] sm:$0xff] 0.0
      %517 = vst [vmem:[%s499 + $0x88] sm:$0xff] 0.0
      %518 = vst [vmem:[%s499 + $0x90] sm:$0xff] 0.0
      %519 = vst [vmem:[%s499 + $0x98] sm:$0xff] 0.0
      %520 = vst [vmem:[%s499 + $0xa0] sm:$0xff] 0.0
      %521 = vst [vmem:[%s499 + $0xa8] sm:$0xff] 0.0
      %522 = vst [vmem:[%s499 + $0xb0] sm:$0xff] 0.0
      %523 = vst [vmem:[%s499 + $0xb8] sm:$0xff] 0.0
      %524 = vst [vmem:[%s499 + $0xc0] sm:$0xff] 0.0
      %525 = vst [vmem:[%s499 + $0xc8] sm:$0xff] 0.0
      %526 = vst [vmem:[%s499 + $0xd0] sm:$0xff] 0.0
      %527 = vst [vmem:[%s499 + $0xd8] sm:$0xff] 0.0
      %528 = vst [vmem:[%s499 + $0xe0] sm:$0xff] 0.0
      %529 = vst [vmem:[%s499 + $0xe8] sm:$0xff] 0.0
      %530 = vst [vmem:[%s499 + $0xf0] sm:$0xff] 0.0
      %531 = vst [vmem:[%s499 + $0xf8] sm:$0xff] 0.0
      %532 = vst [vmem:[%s499 + $0x100] sm:$0xff] 0.0
      %533 = vst [vmem:[%s499 + $0x108] sm:$0xff] 0.0
      %534 = vst [vmem:[%s499 + $0x110] sm:$0xff] 0.0
      %535 = vst [vmem:[%s499 + $0x118] sm:$0xff] 0.0
      %536 = vst [vmem:[%s499 + $0x120] sm:$0xff] 0.0
      %537 = vst [vmem:[%s499 + $0x128] sm:$0xff] 0.0
      %538 = vst [vmem:[%s499 + $0x130] sm:$0xff] 0.0
      %539 = vst [vmem:[%s499 + $0x138] sm:$0xff] 0.0
      %540 = vst [vmem:[%s499 + $0x140] sm:$0xff] 0.0
      %541 = vst [vmem:[%s499 + $0x148] sm:$0xff] 0.0
      %542 = vst [vmem:[%s499 + $0x150] sm:$0xff] 0.0
      %543 = vst [vmem:[%s499 + $0x158] sm:$0xff] 0.0
      %544 = vst [vmem:[%s499 + $0x160] sm:$0xff] 0.0
      %545 = vst [vmem:[%s499 + $0x168] sm:$0xff] 0.0
      %546 = vst [vmem:[%s499 + $0x170] sm:$0xff] 0.0
      %547 = vst [vmem:[%s499 + $0x178] sm:$0xff] 0.0
      %548 = vst [vmem:[%s499 + $0x180] sm:$0xff] 0.0
      %549 = vst [vmem:[%s499 + $0x188] sm:$0xff] 0.0
      %550 = vst [vmem:[%s499 + $0x190] sm:$0xff] 0.0
      %551 = vst [vmem:[%s499 + $0x198] sm:$0xff] 0.0
      %552 = vst [vmem:[%s499 + $0x1a0] sm:$0xff] 0.0
      %553 = vst [vmem:[%s499 + $0x1a8] sm:$0xff] 0.0
      %554 = vst [vmem:[#allocation3] sm:$0xff] 0.0
      %555 = vst [vmem:[#allocation3 + $0x8] sm:$0xff] 0.0
      %556 = vst [vmem:[#allocation3 + $0x30] sm:$0xff] 0.0
      %557 = vst [vmem:[#allocation3 + $0x38] sm:$0xff] 0.0
      %558 = vst [vmem:[#allocation3 + $0x60] sm:$0xff] 0.0
      %559 = vst [vmem:[#allocation3 + $0x68] sm:$0xff] 0.0
      %560 = vst [vmem:[#allocation3 + $0x90] sm:$0xff] 0.0
      %561 = vst [vmem:[#allocation3 + $0x98] sm:$0xff] 0.0
      %562 = vst [vmem:[#allocation3 + $0xc0] sm:$0xff] 0.0
      %563 = vst [vmem:[#allocation3 + $0xc8] sm:$0xff] 0.0
      %564 = vst [vmem:[#allocation3 + $0xf0] sm:$0xff] 0.0
      %565 = vst [vmem:[#allocation3 + $0xf8] sm:$0xff] 0.0
      %566 = vst [vmem:[#allocation3 + $0x120] sm:$0xff] 0.0
      %567 = vst [vmem:[#allocation3 + $0x128] sm:$0xff] 0.0
      %568 = vst [vmem:[#allocation3 + $0x150] sm:$0xff] 0.0
      %569 = vst [vmem:[#allocation3 + $0x158] sm:$0xff] 0.0
      %570 = vst [vmem:[#allocation3 + $0x180] sm:$0xff] 0.0
      %571 = vst [vmem:[#allocation3 + $0x188] sm:$0xff] 0.0
      %572 = vst [vmem:[#allocation3 + $0x1b0] sm:$0xff] 0.0
      %573 = vst [vmem:[#allocation3 + $0x1b8] sm:$0xff] 0.0
      %574 = vst [vmem:[#allocation3 + $0x1e0] sm:$0xff] 0.0
      %575 = vst [vmem:[#allocation3 + $0x1e8] sm:$0xff] 0.0
      %576 = vst [vmem:[#allocation3 + $0x210] sm:$0xff] 0.0
      %577 = vst [vmem:[#allocation3 + $0x218] sm:$0xff] 0.0
      %578 = vst [vmem:[#allocation3 + $0x240] sm:$0xff] 0.0
      %579 = vst [vmem:[#allocation3 + $0x248] sm:$0xff] 0.0
      %580 = vst [vmem:[#allocation3 + $0x270] sm:$0xff] 0.0
      %581 = vst [vmem:[#allocation3 + $0x278] sm:$0xff] 0.0
      %582 = vst [vmem:[#allocation3 + $0x2a0] sm:$0xff] 0.0
      %583 = vst [vmem:[#allocation3 + $0x2a8] sm:$0xff] 0.0
      %584 = vst [vmem:[#allocation3 + $0x2d0] sm:$0xff] 0.0
      %585 = vst [vmem:[#allocation3 + $0x2d8] sm:$0xff] 0.0
      %586 = vst [vmem:[#allocation3 + $0x300] sm:$0xff] 0.0
      %587 = vst [vmem:[#allocation3 + $0x308] sm:$0xff] 0.0
      %588 = vst [vmem:[#allocation3 + $0x330] sm:$0xff] 0.0
      %589 = vst [vmem:[#allocation3 + $0x338] sm:$0xff] 0.0
      %590 = vst [vmem:[#allocation3 + $0x360] sm:$0xff] 0.0
      %591 = vst [vmem:[#allocation3 + $0x368] sm:$0xff] 0.0
      %592 = vst [vmem:[#allocation3 + $0x390] sm:$0xff] 0.0
      %593 = vst [vmem:[#allocation3 + $0x398] sm:$0xff] 0.0
      %594 = vst [vmem:[#allocation3 + $0x3c0] sm:$0xff] 0.0
      %595 = vst [vmem:[#allocation3 + $0x3c8] sm:$0xff] 0.0
      %596 = vst [vmem:[#allocation3 + $0x3f0] sm:$0xff] 0.0
      %597 = vst [vmem:[#allocation3 + $0x3f8] sm:$0xff] 0.0
      %598 = vst [vmem:[#allocation3 + $0x420] sm:$0xff] 0.0
      %599 = vst [vmem:[#allocation3 + $0x428] sm:$0xff] 0.0
      %600 = vst [vmem:[#allocation3 + $0x450] sm:$0xff] 0.0
      %601 = vst [vmem:[#allocation3 + $0x458] sm:$0xff] 0.0
      %602 = vst [vmem:[#allocation3 + $0x480] sm:$0xff] 0.0
      %603 = vst [vmem:[#allocation3 + $0x488] sm:$0xff] 0.0
      %604 = vst [vmem:[#allocation3 + $0x4b0] sm:$0xff] 0.0
      %605 = vst [vmem:[#allocation3 + $0x4b8] sm:$0xff] 0.0
      %606 = vst [vmem:[#allocation3 + $0x4e0] sm:$0xff] 0.0
      %607 = vst [vmem:[#allocation3 + $0x4e8] sm:$0xff] 0.0
      %608 = vst [vmem:[#allocation3 + $0x510] sm:$0xff] 0.0
      %609 = vst [vmem:[#allocation3 + $0x518] sm:$0xff] 0.0
      %610 = vst [vmem:[#allocation3 + $0x540] sm:$0xff] 0.0
      %611 = vst [vmem:[#allocation3 + $0x548] sm:$0xff] 0.0
      %612 = vst [vmem:[#allocation3 + $0x570] sm:$0xff] 0.0
      %613 = vst [vmem:[#allocation3 + $0x578] sm:$0xff] 0.0
      %614 = vst [vmem:[#allocation3 + $0x5a0] sm:$0xff] 0.0
      %615 = vst [vmem:[#allocation3 + $0x5a8] sm:$0xff] 0.0
      %616 = vst [vmem:[#allocation3 + $0x5d0] sm:$0xff] 0.0
      %617 = vst [vmem:[#allocation3 + $0x5d8] sm:$0xff] 0.0
      %618 = vst [vmem:[#allocation3 + $0x600] sm:$0xff] 0.0
      %619 = vst [vmem:[#allocation3 + $0x608] sm:$0xff] 0.0
      %620 = vst [vmem:[#allocation3 + $0x630] sm:$0xff] 0.0
      %621 = vst [vmem:[#allocation3 + $0x638] sm:$0xff] 0.0
      %622 = vst [vmem:[#allocation3 + $0x20] sm:$0xff] 0.0
      %623 = vst [vmem:[#allocation3 + $0x28] sm:$0xff] 0.0
      %624 = vst [vmem:[#allocation3 + $0x50] sm:$0xff] 0.0
      %625 = vst [vmem:[#allocation3 + $0x58] sm:$0xff] 0.0
      %626 = vst [vmem:[#allocation3 + $0x80] sm:$0xff] 0.0
      %627 = vst [vmem:[#allocation3 + $0x88] sm:$0xff] 0.0
      %628 = vst [vmem:[#allocation3 + $0xb0] sm:$0xff] 0.0
      %629 = vst [vmem:[#allocation3 + $0xb8] sm:$0xff] 0.0
      %630 = vst [vmem:[#allocation3 + $0xe0] sm:$0xff] 0.0
      %631 = vst [vmem:[#allocation3 + $0xe8] sm:$0xff] 0.0
      %632 = vst [vmem:[#allocation3 + $0x110] sm:$0xff] 0.0
      %633 = vst [vmem:[#allocation3 + $0x118] sm:$0xff] 0.0
      %634 = vst [vmem:[#allocation3 + $0x140] sm:$0xff] 0.0
      %635 = vst [vmem:[#allocation3 + $0x148] sm:$0xff] 0.0
      %636 = vst [vmem:[#allocation3 + $0x170] sm:$0xff] 0.0
      %637 = vst [vmem:[#allocation3 + $0x178] sm:$0xff] 0.0
      %638 = vst [vmem:[#allocation3 + $0x1a0] sm:$0xff] 0.0
      %639 = vst [vmem:[#allocation3 + $0x1a8] sm:$0xff] 0.0
      %640 = vst [vmem:[#allocation3 + $0x1d0] sm:$0xff] 0.0
      %641 = vst [vmem:[#allocation3 + $0x1d8] sm:$0xff] 0.0
      %642 = vst [vmem:[#allocation3 + $0x200] sm:$0xff] 0.0
      %643 = vst [vmem:[#allocation3 + $0x208] sm:$0xff] 0.0
      %644 = vst [vmem:[#allocation3 + $0x230] sm:$0xff] 0.0
      %645 = vst [vmem:[#allocation3 + $0x238] sm:$0xff] 0.0
      %646 = vst [vmem:[#allocation3 + $0x260] sm:$0xff] 0.0
      %647 = vst [vmem:[#allocation3 + $0x268] sm:$0xff] 0.0
      %648 = vst [vmem:[#allocation3 + $0x290] sm:$0xff] 0.0
      %649 = vst [vmem:[#allocation3 + $0x298] sm:$0xff] 0.0
      %650 = vst [vmem:[#allocation3 + $0x2c0] sm:$0xff] 0.0
      %651 = vst [vmem:[#allocation3 + $0x2c8] sm:$0xff] 0.0
      %652 = vst [vmem:[#allocation3 + $0x2f0] sm:$0xff] 0.0
      %653 = vst [vmem:[#allocation3 + $0x2f8] sm:$0xff] 0.0
      %654 = vst [vmem:[#allocation3 + $0x320] sm:$0xff] 0.0
      %655 = vst [vmem:[#allocation3 + $0x328] sm:$0xff] 0.0
      %656 = vst [vmem:[#allocation3 + $0x350] sm:$0xff] 0.0
      %657 = vst [vmem:[#allocation3 + $0x358] sm:$0xff] 0.0
      %658 = vst [vmem:[#allocation3 + $0x380] sm:$0xff] 0.0
      %659 = vst [vmem:[#allocation3 + $0x388] sm:$0xff] 0.0
      %660 = vst [vmem:[#allocation3 + $0x3b0] sm:$0xff] 0.0
      %661 = vst [vmem:[#allocation3 + $0x3b8] sm:$0xff] 0.0
      %662 = vst [vmem:[#allocation3 + $0x3e0] sm:$0xff] 0.0
      %663 = vst [vmem:[#allocation3 + $0x3e8] sm:$0xff] 0.0
      %664 = vst [vmem:[#allocation3 + $0x410] sm:$0xff] 0.0
      %665 = vst [vmem:[#allocation3 + $0x418] sm:$0xff] 0.0
      %666 = vst [vmem:[#allocation3 + $0x440] sm:$0xff] 0.0
      %667 = vst [vmem:[#allocation3 + $0x448] sm:$0xff] 0.0
      %668 = vst [vmem:[#allocation3 + $0x470] sm:$0xff] 0.0
      %669 = vst [vmem:[#allocation3 + $0x478] sm:$0xff] 0.0
      %670 = vst [vmem:[#allocation3 + $0x4a0] sm:$0xff] 0.0
      %671 = vst [vmem:[#allocation3 + $0x4a8] sm:$0xff] 0.0
      %672 = vst [vmem:[#allocation3 + $0x4d0] sm:$0xff] 0.0
      %673 = vst [vmem:[#allocation3 + $0x4d8] sm:$0xff] 0.0
      %674 = vst [vmem:[#allocation3 + $0x500] sm:$0xff] 0.0
      %675 = vst [vmem:[#allocation3 + $0x508] sm:$0xff] 0.0
      %676 = vst [vmem:[#allocation3 + $0x530] sm:$0xff] 0.0
      %677 = vst [vmem:[#allocation3 + $0x538] sm:$0xff] 0.0
      %678 = vst [vmem:[#allocation3 + $0x560] sm:$0xff] 0.0
      %679 = vst [vmem:[#allocation3 + $0x568] sm:$0xff] 0.0
      %680 = vst [vmem:[#allocation3 + $0x590] sm:$0xff] 0.0
      %681 = vst [vmem:[#allocation3 + $0x598] sm:$0xff] 0.0
      %682 = vst [vmem:[#allocation3 + $0x5c0] sm:$0xff] 0.0
      %683 = vst [vmem:[#allocation3 + $0x5c8] sm:$0xff] 0.0
      %684 = vst [vmem:[#allocation3 + $0x5f0] sm:$0xff] 0.0
      %685 = vst [vmem:[#allocation3 + $0x5f8] sm:$0xff] 0.0
      %686 = vst [vmem:[#allocation3 + $0x620] sm:$0xff] 0.0
      %687 = vst [vmem:[#allocation3 + $0x628] sm:$0xff] 0.0
      %688 = vst [vmem:[#allocation3 + $0x650] sm:$0xff] 0.0
      %689 = vst [vmem:[#allocation3 + $0x658] sm:$0xff] 0.0
      %v690 = vld [vmem:[%s381] sm:$0xff]
      %v691 = vld [vmem:[%s381 + $0x8] sm:$0xff]
      %v692 = vld [vmem:[%s381 + $0x10] sm:$0xff]
      %v693 = vld [vmem:[%s381 + $0x18] sm:$0xff]
      %v694 = vld [vmem:[%s381 + $0x20] sm:$0xff]
      %v695 = vld [vmem:[%s381 + $0x28] sm:$0xff]
      %v696 = vld [vmem:[%s381 + $0x30] sm:$0xff]
      %v697 = vld [vmem:[%s381 + $0x38] sm:$0xff]
      %v698 = vld [vmem:[%s381 + $0x40] sm:$0xff]
      %v699 = vld [vmem:[%s381 + $0x48] sm:$0xff]
      %v700 = vld [vmem:[%s381 + $0x50] sm:$0xff]
      %v701 = vld [vmem:[%s381 + $0x58] sm:$0xff]
      %v702 = vld [vmem:[%s381 + $0x60] sm:$0xff]
      %v703 = vld [vmem:[%s381 + $0x68] sm:$0xff]
      %v704 = vld [vmem:[%s381 + $0x70] sm:$0xff]
      %v705 = vld [vmem:[%s381 + $0x78] sm:$0xff]
      %v706 = vld [vmem:[%s381 + $0x80] sm:$0xff]
      %v707 = vld [vmem:[%s381 + $0x88] sm:$0xff]
      %v708 = vld [vmem:[%s381 + $0x90] sm:$0xff]
      %v709 = vld [vmem:[%s381 + $0x98] sm:$0xff]
      %v710 = vld [vmem:[%s381 + $0xa0] sm:$0xff]
      %v711 = vld [vmem:[%s381 + $0xa8] sm:$0xff]
      %v712 = vld [vmem:[%s381 + $0xb0] sm:$0xff]
      %v713 = vld [vmem:[%s381 + $0xb8] sm:$0xff]
      %v714 = vld [vmem:[%s381 + $0xc0] sm:$0xff]
      %v715 = vld [vmem:[%s381 + $0xc8] sm:$0xff]
      %v716 = vld [vmem:[%s381 + $0xd0] sm:$0xff]
      %v717 = vld [vmem:[%s381 + $0xd8] sm:$0xff]
      %v718 = vld [vmem:[%s381 + $0xe0] sm:$0xff]
      %v719 = vld [vmem:[%s381 + $0xe8] sm:$0xff]
      %v720 = vld [vmem:[%s381 + $0xf0] sm:$0xff]
      %v721 = vld [vmem:[%s381 + $0xf8] sm:$0xff]
      %v722 = vpack.c.bf16 %v691, %v690
      %v723 = vpack.c.bf16 %v693, %v692
      %v724 = vpack.c.bf16 %v695, %v694
      %v725 = vpack.c.bf16 %v697, %v696
      %v726 = vpack.c.bf16 %v699, %v698
      %v727 = vpack.c.bf16 %v701, %v700
      %v728 = vpack.c.bf16 %v703, %v702
      %v729 = vpack.c.bf16 %v705, %v704
      %v730 = vpack.c.bf16 %v707, %v706
      %v731 = vpack.c.bf16 %v709, %v708
      %v732 = vpack.c.bf16 %v711, %v710
      %v733 = vpack.c.bf16 %v713, %v712
      %v734 = vpack.c.bf16 %v715, %v714
      %v735 = vpack.c.bf16 %v717, %v716
      %v736 = vpack.c.bf16 %v719, %v718
      %v737 = vpack.c.bf16 %v721, %v720
      %v738 = vld [vmem:[%s1] sm:$0xf]
      %v739 = vld [vmem:[%s1 + $0x4] sm:$0xf]
      %v740 = vld [vmem:[%s1 + $0x8] sm:$0xf]
      %v741 = vld [vmem:[%s1 + $0xc] sm:$0xf]
      %v742 = vld [vmem:[%s1 + $0x10] sm:$0xf]
      %v743 = vld [vmem:[%s1 + $0x14] sm:$0xf]
      %v744 = vld [vmem:[%s1 + $0x18] sm:$0xf]
      %v745 = vld [vmem:[%s1 + $0x1c] sm:$0xf]
      %v746 = vld [vmem:[%s1 + $0x20] sm:$0xf]
      %v747 = vld [vmem:[%s1 + $0x24] sm:$0xf]
      %v748 = vld [vmem:[%s1 + $0x28] sm:$0xf]
      %v749 = vld [vmem:[%s1 + $0x2c] sm:$0xf]
      %v750 = vld [vmem:[%s1 + $0x30] sm:$0xf]
      %v751 = vld [vmem:[%s1 + $0x34] sm:$0xf]
      %v752 = vld [vmem:[%s1 + $0x38] sm:$0xf]
      %v753 = vld [vmem:[%s1 + $0x3c] sm:$0xf]
      %v754 = vld [vmem:[%s2] sm:$0x1]
      %v756 = vlaneseq
      %v757 = vshrl.u32 %v756, 7
      %v758 = vsub.s32 0, %v757
      %v759 = vrot.slane %v754, %v758
      %v777 = vunpack.c.l.b16 %v738
      %v778 = vunpack.c.l.b16 %v739
      %v779 = vunpack.c.l.b16 %v740
      %v780 = vunpack.c.l.b16 %v741
      %v781 = vunpack.c.l.b16 %v742
      %v782 = vunpack.c.l.b16 %v743
      %v783 = vunpack.c.l.b16 %v744
      %v784 = vunpack.c.l.b16 %v745
      %v785 = vunpack.c.l.b16 %v746
      %v786 = vunpack.c.l.b16 %v747
      %v787 = vunpack.c.l.b16 %v748
      %v788 = vunpack.c.l.b16 %v749
      %v789 = vunpack.c.l.b16 %v750
      %v790 = vunpack.c.l.b16 %v751
      %v791 = vunpack.c.l.b16 %v752
      %v792 = vunpack.c.l.b16 %v753
      %v793 = vpack.c.b16 %v778, %v777
      %v794 = vpack.c.b16 %v780, %v779
      %v795 = vpack.c.b16 %v782, %v781
      %v796 = vpack.c.b16 %v784, %v783
      %v797 = vpack.c.b16 %v786, %v785
      %v798 = vpack.c.b16 %v788, %v787
      %v799 = vpack.c.b16 %v790, %v789
      %v800 = vpack.c.b16 %v792, %v791
      %809 = vmatprep.subr.bf16.mxu0 0
      %810 = vmatpush1.bf16.msra.mxu0 %v793
      %811 = vmatprep.subr.bf16.mxu0 0
      %812 = vmatpush1.bf16.msra.mxu0 %v794
      %813 = vmatprep.subr.bf16.mxu0 0
      %814 = vmatpush1.bf16.msra.mxu0 %v795
      %815 = vmatprep.subr.bf16.mxu0 0
      %816 = vmatpush1.bf16.msra.mxu0 %v796
      %817 = vmatprep.subr.bf16.mxu0 0
      %818 = vmatpush1.bf16.msra.mxu0 %v797
      %819 = vmatprep.subr.bf16.mxu0 0
      %820 = vmatpush1.bf16.msra.mxu0 %v798
      %821 = vmatprep.subr.bf16.mxu0 0
      %822 = vmatpush1.bf16.msra.mxu0 %v799
      %823 = vmatprep.subr.bf16.mxu0 0
      %824 = vmatpush1.bf16.msra.mxu0 %v800
      %825 = vmatprep.subr.bf16.mxu0 0
      %826 = vmatpush1.bf16.msra.mxu0 0
      %827 = vmatprep.subr.bf16.mxu0 0
      %828 = vmatpush1.bf16.msra.mxu0 0
      %829 = vmatprep.subr.bf16.mxu0 0
      %830 = vmatpush1.bf16.msra.mxu0 0
      %831 = vmatprep.subr.bf16.mxu0 0
      %832 = vmatpush1.bf16.msra.mxu0 0
      %833 = vmatprep.subr.bf16.mxu0 0
      %834 = vmatpush1.bf16.msra.mxu0 0
      %835 = vmatprep.subr.bf16.mxu0 0
      %836 = vmatpush1.bf16.msra.mxu0 0
      %837 = vmatprep.subr.bf16.mxu0 0
      %838 = vmatpush1.bf16.msra.mxu0 0
      %839 = vmatprep.subr.bf16.mxu0 0
      %840 = vmatpush1.bf16.msra.mxu0 0
      %841 = vmatprep.mubr.bf16.mxu0 0
      %842 = vmatmul.mubr.bf16.gmra.mrb[0].mxu0 %v722
      %v843 = vpop.f32.mrb[0].mxu0
      %v844 = vadd.f32 %v759, %v843
      %v845 = vpop.f32.mrb[0].mxu0
      %v846 = vpop.f32.mrb[0].mxu0
      %v847 = vadd.f32 %v759, %v846
      %v848 = vpop.f32.mrb[0].mxu0
      %849 = vmatprep.mubr.bf16.mxu0 0
      %850 = vmatmul.mubr.bf16.gmra.mrb[0].mxu0 %v723
      %v851 = vpop.f32.mrb[0].mxu0
      %v852 = vadd.f32 %v759, %v851
      %v853 = vpop.f32.mrb[0].mxu0
      %v854 = vpop.f32.mrb[0].mxu0
      %v855 = vadd.f32 %v759, %v854
      %v856 = vpop.f32.mrb[0].mxu0
      %857 = vmatprep.mubr.bf16.mxu0 0
      %858 = vmatmul.mubr.bf16.gmra.mrb[0].mxu0 %v724
      %v859 = vpop.f32.mrb[0].mxu0
      %v860 = vadd.f32 %v759, %v859
      %v861 = vpop.f32.mrb[0].mxu0
      %v862 = vpop.f32.mrb[0].mxu0
      %v863 = vadd.f32 %v759, %v862
      %v864 = vpop.f32.mrb[0].mxu0
      %865 = vmatprep.mubr.bf16.mxu0 0
      %866 = vmatmul.mubr.bf16.gmra.mrb[0].mxu0 %v725
      %v867 = vpop.f32.mrb[0].mxu0
      %v868 = vadd.f32 %v759, %v867
      %v869 = vpop.f32.mrb[0].mxu0
      %v870 = vpop.f32.mrb[0].mxu0
      %v871 = vadd.f32 %v759, %v870
      %v872 = vpop.f32.mrb[0].mxu0
      %873 = vmatprep.mubr.bf16.mxu0 0
      %874 = vmatmul.mubr.bf16.gmra.mrb[0].mxu0 %v726
      %v875 = vpop.f32.mrb[0].mxu0
      %v876 = vadd.f32 %v759, %v875
      %v877 = vpop.f32.mrb[0].mxu0
      %v878 = vpop.f32.mrb[0].mxu0
      %v879 = vadd.f32 %v759, %v878
      %v880 = vpop.f32.mrb[0].mxu0
      %881 = vmatprep.mubr.bf16.mxu0 0
      %882 = vmatmul.mubr.bf16.gmra.mrb[0].mxu0 %v727
      %v883 = vpop.f32.mrb[0].mxu0
      %v884 = vadd.f32 %v759, %v883
      %v885 = vpop.f32.mrb[0].mxu0
      %v886 = vpop.f32.mrb[0].mxu0
      %v887 = vadd.f32 %v759, %v886
      %v888 = vpop.f32.mrb[0].mxu0
      %889 = vmatprep.mubr.bf16.mxu0 0
      %890 = vmatmul.mubr.bf16.gmra.mrb[0].mxu0 %v728
      %v891 = vpop.f32.mrb[0].mxu0
      %v892 = vadd.f32 %v759, %v891
      %v893 = vpop.f32.mrb[0].mxu0
      %v894 = vpop.f32.mrb[0].mxu0
      %v895 = vadd.f32 %v759, %v894
      %v896 = vpop.f32.mrb[0].mxu0
      %897 = vmatprep.mubr.bf16.mxu0 0
      %898 = vmatmul.mubr.bf16.gmra.mrb[0].mxu0 %v729
      %v899 = vpop.f32.mrb[0].mxu0
      %v900 = vadd.f32 %v759, %v899
      %v901 = vpop.f32.mrb[0].mxu0
      %v902 = vpop.f32.mrb[0].mxu0
      %v903 = vadd.f32 %v759, %v902
      %v904 = vpop.f32.mrb[0].mxu0
      %905 = vmatprep.mubr.bf16.mxu0 0
      %906 = vmatmul.mubr.bf16.gmra.mrb[0].mxu0 %v730
      %v907 = vpop.f32.mrb[0].mxu0
      %v908 = vadd.f32 %v759, %v907
      %v909 = vpop.f32.mrb[0].mxu0
      %v910 = vpop.f32.mrb[0].mxu0
      %v911 = vadd.f32 %v759, %v910
      %v912 = vpop.f32.mrb[0].mxu0
      %913 = vmatprep.mubr.bf16.mxu0 0
      %914 = vmatmul.mubr.bf16.gmra.mrb[0].mxu0 %v731
      %v915 = vpop.f32.mrb[0].mxu0
      %v916 = vadd.f32 %v759, %v915
      %v917 = vpop.f32.mrb[0].mxu0
      %v918 = vpop.f32.mrb[0].mxu0
      %v919 = vadd.f32 %v759, %v918
      %v920 = vpop.f32.mrb[0].mxu0
      %921 = vmatprep.mubr.bf16.mxu0 0
      %922 = vmatmul.mubr.bf16.gmra.mrb[0].mxu0 %v732
      %v923 = vpop.f32.mrb[0].mxu0
      %v924 = vadd.f32 %v759, %v923
      %v925 = vpop.f32.mrb[0].mxu0
      %v926 = vpop.f32.mrb[0].mxu0
      %v927 = vadd.f32 %v759, %v926
      %v928 = vpop.f32.mrb[0].mxu0
      %929 = vmatprep.mubr.bf16.mxu0 0
      %930 = vmatmul.mubr.bf16.gmra.mrb[0].mxu0 %v733
      %v931 = vpop.f32.mrb[0].mxu0
      %v932 = vadd.f32 %v759, %v931
      %v933 = vpop.f32.mrb[0].mxu0
      %v934 = vpop.f32.mrb[0].mxu0
      %v935 = vadd.f32 %v759, %v934
      %v936 = vpop.f32.mrb[0].mxu0
      %937 = vmatprep.mubr.bf16.mxu0 0
      %938 = vmatmul.mubr.bf16.gmra.mrb[0].mxu0 %v734
      %v939 = vpop.f32.mrb[0].mxu0
      %v940 = vadd.f32 %v759, %v939
      %v941 = vpop.f32.mrb[0].mxu0
      %v942 = vpop.f32.mrb[0].mxu0
      %v943 = vadd.f32 %v759, %v942
      %v944 = vpop.f32.mrb[0].mxu0
      %945 = vmatprep.mubr.bf16.mxu0 0
      %946 = vmatmul.mubr.bf16.gmra.mrb[0].mxu0 %v735
      %v947 = vpop.f32.mrb[0].mxu0
      %v948 = vadd.f32 %v759, %v947
      %v949 = vpop.f32.mrb[0].mxu0
      %v950 = vpop.f32.mrb[0].mxu0
      %v951 = vadd.f32 %v759, %v950
      %v952 = vpop.f32.mrb[0].mxu0
      %953 = vmatprep.mubr.bf16.mxu0 0
      %954 = vmatmul.mubr.bf16.gmra.mrb[0].mxu0 %v736
      %v955 = vpop.f32.mrb[0].mxu0
      %v956 = vadd.f32 %v759, %v955
      %v957 = vpop.f32.mrb[0].mxu0
      %v958 = vpop.f32.mrb[0].mxu0
      %v959 = vadd.f32 %v759, %v958
      %v960 = vpop.f32.mrb[0].mxu0
      %961 = vmatprep.mubr.bf16.mxu0 0
      %962 = vmatmul.mubr.bf16.gmra.mrb[0].mxu0 %v737
      %v963 = vpop.f32.mrb[0].mxu0
      %v964 = vadd.f32 %v759, %v963
      %v965 = vpop.f32.mrb[0].mxu0
      %v966 = vpop.f32.mrb[0].mxu0
      %v967 = vadd.f32 %v759, %v966
      %v968 = vpop.f32.mrb[0].mxu0
      %969 = vdwg.mxu0
      %v970 = vmul.f32 %v844, 0.5
      %v971 = vmul.f32 %v847, 0.5
      %v972 = vmul.f32 %v852, 0.5
      %v973 = vmul.f32 %v855, 0.5
      %v974 = vmul.f32 %v860, 0.5
      %v975 = vmul.f32 %v863, 0.5
      %v976 = vmul.f32 %v868, 0.5
      %v977 = vmul.f32 %v871, 0.5
      %v978 = vmul.f32 %v876, 0.5
      %v979 = vmul.f32 %v879, 0.5
      %v980 = vmul.f32 %v884, 0.5
      %v981 = vmul.f32 %v887, 0.5
      %v982 = vmul.f32 %v892, 0.5
      %v983 = vmul.f32 %v895, 0.5
      %v984 = vmul.f32 %v900, 0.5
      %v985 = vmul.f32 %v903, 0.5
      %v986 = vmul.f32 %v908, 0.5
      %v987 = vmul.f32 %v911, 0.5
      %v988 = vmul.f32 %v916, 0.5
      %v989 = vmul.f32 %v919, 0.5
      %v990 = vmul.f32 %v924, 0.5
      %v991 = vmul.f32 %v927, 0.5
      %v992 = vmul.f32 %v932, 0.5
      %v993 = vmul.f32 %v935, 0.5
      %v994 = vmul.f32 %v940, 0.5
      %v995 = vmul.f32 %v943, 0.5
      %v996 = vmul.f32 %v948, 0.5
      %v997 = vmul.f32 %v951, 0.5
      %v998 = vmul.f32 %v956, 0.5
      %v999 = vmul.f32 %v959, 0.5
      %v1000 = vmul.f32 %v964, 0.5
      %v1001 = vmul.f32 %v967, 0.5
      %v1002 = vmul.f32 %v844, 0.044715
      %v1003 = vmul.f32 %v847, 0.044715
      %v1004 = vmul.f32 %v852, 0.044715
      %v1005 = vmul.f32 %v855, 0.044715
      %v1006 = vmul.f32 %v860, 0.044715
      %v1007 = vmul.f32 %v863, 0.044715
      %v1008 = vmul.f32 %v868, 0.044715
      %v1009 = vmul.f32 %v871, 0.044715
      %v1010 = vmul.f32 %v876, 0.044715
      %v1011 = vmul.f32 %v879, 0.044715
      %v1012 = vmul.f32 %v884, 0.044715
      %v1013 = vmul.f32 %v887, 0.044715
      %v1014 = vmul.f32 %v892, 0.044715
      %v1015 = vmul.f32 %v895, 0.044715
      %v1016 = vmul.f32 %v900, 0.044715
      %v1017 = vmul.f32 %v903, 0.044715
      %v1018 = vmul.f32 %v908, 0.044715
      %v1019 = vmul.f32 %v911, 0.044715
      %v1020 = vmul.f32 %v916, 0.044715
      %v1021 = vmul.f32 %v919, 0.044715
      %v1022 = vmul.f32 %v924, 0.044715
      %v1023 = vmul.f32 %v927, 0.044715
      %v1024 = vmul.f32 %v932, 0.044715
      %v1025 = vmul.f32 %v935, 0.044715
      %v1026 = vmul.f32 %v940, 0.044715
      %v1027 = vmul.f32 %v943, 0.044715
      %v1028 = vmul.f32 %v948, 0.044715
      %v1029 = vmul.f32 %v951, 0.044715
      %v1030 = vmul.f32 %v956, 0.044715
      %v1031 = vmul.f32 %v959, 0.044715
      %v1032 = vmul.f32 %v964, 0.044715
      %v1033 = vmul.f32 %v967, 0.044715
      %v1034 = vmul.f32 %v1002, %v844
      %v1035 = vmul.f32 %v1003, %v847
      %v1036 = vmul.f32 %v1004, %v852
      %v1037 = vmul.f32 %v1005, %v855
      %v1038 = vmul.f32 %v1006, %v860
      %v1039 = vmul.f32 %v1007, %v863
      %v1040 = vmul.f32 %v1008, %v868
      %v1041 = vmul.f32 %v1009, %v871
      %v1042 = vmul.f32 %v1010, %v876
      %v1043 = vmul.f32 %v1011, %v879
      %v1044 = vmul.f32 %v1012, %v884
      %v1045 = vmul.f32 %v1013, %v887
      %v1046 = vmul.f32 %v1014, %v892
      %v1047 = vmul.f32 %v1015, %v895
      %v1048 = vmul.f32 %v1016, %v900
      %v1049 = vmul.f32 %v1017, %v903
      %v1050 = vmul.f32 %v1018, %v908
      %v1051 = vmul.f32 %v1019, %v911
      %v1052 = vmul.f32 %v1020, %v916
      %v1053 = vmul.f32 %v1021, %v919
      %v1054 = vmul.f32 %v1022, %v924
      %v1055 = vmul.f32 %v1023, %v927
      %v1056 = vmul.f32 %v1024, %v932
      %v1057 = vmul.f32 %v1025, %v935
      %v1058 = vmul.f32 %v1026, %v940
      %v1059 = vmul.f32 %v1027, %v943
      %v1060 = vmul.f32 %v1028, %v948
      %v1061 = vmul.f32 %v1029, %v951
      %v1062 = vmul.f32 %v1030, %v956
      %v1063 = vmul.f32 %v1031, %v959
      %v1064 = vmul.f32 %v1032, %v964
      %v1065 = vmul.f32 %v1033, %v967
      %v1066 = vmul.f32 %v1034, %v844
      %v1067 = vmul.f32 %v1035, %v847
      %v1068 = vmul.f32 %v1036, %v852
      %v1069 = vmul.f32 %v1037, %v855
      %v1070 = vmul.f32 %v1038, %v860
      %v1071 = vmul.f32 %v1039, %v863
      %v1072 = vmul.f32 %v1040, %v868
      %v1073 = vmul.f32 %v1041, %v871
      %v1074 = vmul.f32 %v1042, %v876
      %v1075 = vmul.f32 %v1043, %v879
      %v1076 = vmul.f32 %v1044, %v884
      %v1077 = vmul.f32 %v1045, %v887
      %v1078 = vmul.f32 %v1046, %v892
      %v1079 = vmul.f32 %v1047, %v895
      %v1080 = vmul.f32 %v1048, %v900
      %v1081 = vmul.f32 %v1049, %v903
      %v1082 = vmul.f32 %v1050, %v908
      %v1083 = vmul.f32 %v1051, %v911
      %v1084 = vmul.f32 %v1052, %v916
      %v1085 = vmul.f32 %v1053, %v919
      %v1086 = vmul.f32 %v1054, %v924
      %v1087 = vmul.f32 %v1055, %v927
      %v1088 = vmul.f32 %v1056, %v932
      %v1089 = vmul.f32 %v1057, %v935
      %v1090 = vmul.f32 %v1058, %v940
      %v1091 = vmul.f32 %v1059, %v943
      %v1092 = vmul.f32 %v1060, %v948
      %v1093 = vmul.f32 %v1061, %v951
      %v1094 = vmul.f32 %v1062, %v956
      %v1095 = vmul.f32 %v1063, %v959
      %v1096 = vmul.f32 %v1064, %v964
      %v1097 = vmul.f32 %v1065, %v967
      %v1098 = vadd.f32 %v844, %v1066
      %v1099 = vadd.f32 %v847, %v1067
      %v1100 = vadd.f32 %v852, %v1068
      %v1101 = vadd.f32 %v855, %v1069
      %v1102 = vadd.f32 %v860, %v1070
      %v1103 = vadd.f32 %v863, %v1071
      %v1104 = vadd.f32 %v868, %v1072
      %v1105 = vadd.f32 %v871, %v1073
      %v1106 = vadd.f32 %v876, %v1074
      %v1107 = vadd.f32 %v879, %v1075
      %v1108 = vadd.f32 %v884, %v1076
      %v1109 = vadd.f32 %v887, %v1077
      %v1110 = vadd.f32 %v892, %v1078
      %v1111 = vadd.f32 %v895, %v1079
      %v1112 = vadd.f32 %v900, %v1080
      %v1113 = vadd.f32 %v903, %v1081
      %v1114 = vadd.f32 %v908, %v1082
      %v1115 = vadd.f32 %v911, %v1083
      %v1116 = vadd.f32 %v916, %v1084
      %v1117 = vadd.f32 %v919, %v1085
      %v1118 = vadd.f32 %v924, %v1086
      %v1119 = vadd.f32 %v927, %v1087
      %v1120 = vadd.f32 %v932, %v1088
      %v1121 = vadd.f32 %v935, %v1089
      %v1122 = vadd.f32 %v940, %v1090
      %v1123 = vadd.f32 %v943, %v1091
      %v1124 = vadd.f32 %v948, %v1092
      %v1125 = vadd.f32 %v951, %v1093
      %v1126 = vadd.f32 %v956, %v1094
      %v1127 = vadd.f32 %v959, %v1095
      %v1128 = vadd.f32 %v964, %v1096
      %v1129 = vadd.f32 %v967, %v1097
      %v1130 = vmul.f32 %v1098, 0.7978846
      %v1131 = vmul.f32 %v1099, 0.7978846
      %v1132 = vmul.f32 %v1100, 0.7978846
      %v1133 = vmul.f32 %v1101, 0.7978846
      %v1134 = vmul.f32 %v1102, 0.7978846
      %v1135 = vmul.f32 %v1103, 0.7978846
      %v1136 = vmul.f32 %v1104, 0.7978846
      %v1137 = vmul.f32 %v1105, 0.7978846
      %v1138 = vmul.f32 %v1106, 0.7978846
      %v1139 = vmul.f32 %v1107, 0.7978846
      %v1140 = vmul.f32 %v1108, 0.7978846
      %v1141 = vmul.f32 %v1109, 0.7978846
      %v1142 = vmul.f32 %v1110, 0.7978846
      %v1143 = vmul.f32 %v1111, 0.7978846
      %v1144 = vmul.f32 %v1112, 0.7978846
      %v1145 = vmul.f32 %v1113, 0.7978846
      %v1146 = vmul.f32 %v1114, 0.7978846
      %v1147 = vmul.f32 %v1115, 0.7978846
      %v1148 = vmul.f32 %v1116, 0.7978846
      %v1149 = vmul.f32 %v1117, 0.7978846
      %v1150 = vmul.f32 %v1118, 0.7978846
      %v1151 = vmul.f32 %v1119, 0.7978846
      %v1152 = vmul.f32 %v1120, 0.7978846
      %v1153 = vmul.f32 %v1121, 0.7978846
      %v1154 = vmul.f32 %v1122, 0.7978846
      %v1155 = vmul.f32 %v1123, 0.7978846
      %v1156 = vmul.f32 %v1124, 0.7978846
      %v1157 = vmul.f32 %v1125, 0.7978846
      %v1158 = vmul.f32 %v1126, 0.7978846
      %v1159 = vmul.f32 %v1127, 0.7978846
      %v1160 = vmul.f32 %v1128, 0.7978846
      %v1161 = vmul.f32 %v1129, 0.7978846
      %v1162 = vtanh.pop %v1130
      %v1163 = vtanh.pop %v1131
      %v1164 = vtanh.pop %v1132
      %v1165 = vtanh.pop %v1133
      %v1166 = vtanh.pop %v1134
      %v1167 = vtanh.pop %v1135
      %v1168 = vtanh.pop %v1136
      %v1169 = vtanh.pop %v1137
      %v1170 = vtanh.pop %v1138
      %v1171 = vtanh.pop %v1139
      %v1172 = vtanh.pop %v1140
      %v1173 = vtanh.pop %v1141
      %v1174 = vtanh.pop %v1142
      %v1175 = vtanh.pop %v1143
      %v1176 = vtanh.pop %v1144
      %v1177 = vtanh.pop %v1145
      %v1178 = vtanh.pop %v1146
      %v1179 = vtanh.pop %v1147
      %v1180 = vtanh.pop %v1148
      %v1181 = vtanh.pop %v1149
      %v1182 = vtanh.pop %v1150
      %v1183 = vtanh.pop %v1151
      %v1184 = vtanh.pop %v1152
      %v1185 = vtanh.pop %v1153
      %v1186 = vtanh.pop %v1154
      %v1187 = vtanh.pop %v1155
      %v1188 = vtanh.pop %v1156
      %v1189 = vtanh.pop %v1157
      %v1190 = vtanh.pop %v1158
      %v1191 = vtanh.pop %v1159
      %v1192 = vtanh.pop %v1160
      %v1193 = vtanh.pop %v1161
      %v1194 = vadd.f32 %v1162, 1.0
      %v1195 = vadd.f32 %v1163, 1.0
      %v1196 = vadd.f32 %v1164, 1.0
      %v1197 = vadd.f32 %v1165, 1.0
      %v1198 = vadd.f32 %v1166, 1.0
      %v1199 = vadd.f32 %v1167, 1.0
      %v1200 = vadd.f32 %v1168, 1.0
      %v1201 = vadd.f32 %v1169, 1.0
      %v1202 = vadd.f32 %v1170, 1.0
      %v1203 = vadd.f32 %v1171, 1.0
      %v1204 = vadd.f32 %v1172, 1.0
      %v1205 = vadd.f32 %v1173, 1.0
      %v1206 = vadd.f32 %v1174, 1.0
      %v1207 = vadd.f32 %v1175, 1.0
      %v1208 = vadd.f32 %v1176, 1.0
      %v1209 = vadd.f32 %v1177, 1.0
      %v1210 = vadd.f32 %v1178, 1.0
      %v1211 = vadd.f32 %v1179, 1.0
      %v1212 = vadd.f32 %v1180, 1.0
      %v1213 = vadd.f32 %v1181, 1.0
      %v1214 = vadd.f32 %v1182, 1.0
      %v1215 = vadd.f32 %v1183, 1.0
      %v1216 = vadd.f32 %v1184, 1.0
      %v1217 = vadd.f32 %v1185, 1.0
      %v1218 = vadd.f32 %v1186, 1.0
      %v1219 = vadd.f32 %v1187, 1.0
      %v1220 = vadd.f32 %v1188, 1.0
      %v1221 = vadd.f32 %v1189, 1.0
      %v1222 = vadd.f32 %v1190, 1.0
      %v1223 = vadd.f32 %v1191, 1.0
      %v1224 = vadd.f32 %v1192, 1.0
      %v1225 = vadd.f32 %v1193, 1.0
      %v1226 = vmul.f32 %v970, %v1194
      %v1227 = vmul.f32 %v971, %v1195
      %v1228 = vmul.f32 %v972, %v1196
      %v1229 = vmul.f32 %v973, %v1197
      %v1230 = vmul.f32 %v974, %v1198
      %v1231 = vmul.f32 %v975, %v1199
      %v1232 = vmul.f32 %v976, %v1200
      %v1233 = vmul.f32 %v977, %v1201
      %v1234 = vmul.f32 %v978, %v1202
      %v1235 = vmul.f32 %v979, %v1203
      %v1236 = vmul.f32 %v980, %v1204
      %v1237 = vmul.f32 %v981, %v1205
      %v1238 = vmul.f32 %v982, %v1206
      %v1239 = vmul.f32 %v983, %v1207
      %v1240 = vmul.f32 %v984, %v1208
      %v1241 = vmul.f32 %v985, %v1209
      %v1242 = vmul.f32 %v986, %v1210
      %v1243 = vmul.f32 %v987, %v1211
      %v1244 = vmul.f32 %v988, %v1212
      %v1245 = vmul.f32 %v989, %v1213
      %v1246 = vmul.f32 %v990, %v1214
      %v1247 = vmul.f32 %v991, %v1215
      %v1248 = vmul.f32 %v992, %v1216
      %v1249 = vmul.f32 %v993, %v1217
      %v1250 = vmul.f32 %v994, %v1218
      %v1251 = vmul.f32 %v995, %v1219
      %v1252 = vmul.f32 %v996, %v1220
      %v1253 = vmul.f32 %v997, %v1221
      %v1254 = vmul.f32 %v998, %v1222
      %v1255 = vmul.f32 %v999, %v1223
      %v1256 = vmul.f32 %v1000, %v1224
      %v1257 = vmul.f32 %v1001, %v1225
      %s1258 = scalar_lea.vmem [#allocation2], 64
      %1259 = vst [vmem:[%s1258 + $0x8] sm:$0xff] %v1226
      %1260 = vst [vmem:[%s1258 + $0x10] sm:$0xff] %v1227
      %1261 = vst [vmem:[%s1258 + $0x28] sm:$0xff] %v1228
      %1262 = vst [vmem:[%s1258 + $0x30] sm:$0xff] %v1229
      %1263 = vst [vmem:[%s1258 + $0x48] sm:$0xff] %v1230
      %1264 = vst [vmem:[%s1258 + $0x50] sm:$0xff] %v1231
      %1265 = vst [vmem:[%s1258 + $0x68] sm:$0xff] %v1232
      %1266 = vst [vmem:[%s1258 + $0x70] sm:$0xff] %v1233
      %1267 = vst [vmem:[%s1258 + $0x88] sm:$0xff] %v1234
      %1268 = vst [vmem:[%s1258 + $0x90] sm:$0xff] %v1235
      %1269 = vst [vmem:[%s1258 + $0xa8] sm:$0xff] %v1236
      %1270 = vst [vmem:[%s1258 + $0xb0] sm:$0xff] %v1237
      %1271 = vst [vmem:[%s1258 + $0xc8] sm:$0xff] %v1238
      %1272 = vst [vmem:[%s1258 + $0xd0] sm:$0xff] %v1239
      %1273 = vst [vmem:[%s1258 + $0xe8] sm:$0xff] %v1240
      %1274 = vst [vmem:[%s1258 + $0xf0] sm:$0xff] %v1241
      %1275 = vst [vmem:[%s1258 + $0x108] sm:$0xff] %v1242
      %1276 = vst [vmem:[%s1258 + $0x110] sm:$0xff] %v1243
      %1277 = vst [vmem:[%s1258 + $0x128] sm:$0xff] %v1244
      %1278 = vst [vmem:[%s1258 + $0x130] sm:$0xff] %v1245
      %1279 = vst [vmem:[%s1258 + $0x148] sm:$0xff] %v1246
      %1280 = vst [vmem:[%s1258 + $0x150] sm:$0xff] %v1247
      %1281 = vst [vmem:[%s1258 + $0x168] sm:$0xff] %v1248
      %1282 = vst [vmem:[%s1258 + $0x170] sm:$0xff] %v1249
      %1283 = vst [vmem:[%s1258 + $0x188] sm:$0xff] %v1250
      %1284 = vst [vmem:[%s1258 + $0x190] sm:$0xff] %v1251
      %1285 = vst [vmem:[%s1258 + $0x1a8] sm:$0xff] %v1252
      %1286 = vst [vmem:[%s1258 + $0x1b0] sm:$0xff] %v1253
      %1287 = vst [vmem:[%s1258 + $0x1c8] sm:$0xff] %v1254
      %1288 = vst [vmem:[%s1258 + $0x1d0] sm:$0xff] %v1255
      %1289 = vst [vmem:[%s1258 + $0x1e8] sm:$0xff] %v1256
      %1290 = vst [vmem:[%s1258 + $0x1f0] sm:$0xff] %v1257
      %v1291 = vld [vmem:[%s4] sm:$0x1]
      %v1293 = vpack.i.b16 %v1291, %v1291
      %v1295 = vlaneseq
      %v1296 = vshrl.u32 %v1295, 7
      %v1297 = vsub.s32 0, %v1296
      %v1298 = vrot.slane %v1293, %v1297
      %v1299 = vld [vmem:[#allocation2 + $0x6] sm:$0xff]
      %v1300 = vld [vmem:[#allocation2 + $0xe] sm:$0xff]
      %v1301 = vld [vmem:[#allocation2 + $0x26] sm:$0xff]
      %v1302 = vld [vmem:[#allocation2 + $0x2e] sm:$0xff]
      %v1303 = vld [vmem:[#allocation2 + $0x46] sm:$0xff]
      %v1304 = vld [vmem:[#allocation2 + $0x4e] sm:$0xff]
      %v1305 = vld [vmem:[#allocation2 + $0x66] sm:$0xff]
      %v1306 = vld [vmem:[#allocation2 + $0x6e] sm:$0xff]
      %v1307 = vld [vmem:[#allocation2 + $0x86] sm:$0xff]
      %v1308 = vld [vmem:[#allocation2 + $0x8e] sm:$0xff]
      %v1309 = vld [vmem:[#allocation2 + $0xa6] sm:$0xff]
      %v1310 = vld [vmem:[#allocation2 + $0xae] sm:$0xff]
      %v1311 = vld [vmem:[#allocation2 + $0xc6] sm:$0xff]
      %v1312 = vld [vmem:[#allocation2 + $0xce] sm:$0xff]
      %v1313 = vld [vmem:[#allocation2 + $0xe6] sm:$0xff]
      %v1314 = vld [vmem:[#allocation2 + $0xee] sm:$0xff]
      %v1315 = vld [vmem:[#allocation2 + $0x106] sm:$0xff]
      %v1316 = vld [vmem:[#allocation2 + $0x10e] sm:$0xff]
      %v1317 = vld [vmem:[#allocation2 + $0x126] sm:$0xff]
      %v1318 = vld [vmem:[#allocation2 + $0x12e] sm:$0xff]
      %v1319 = vld [vmem:[#allocation2 + $0x146] sm:$0xff]
      %v1320 = vld [vmem:[#allocation2 + $0x14e] sm:$0xff]
      %v1321 = vld [vmem:[#allocation2 + $0x166] sm:$0xff]
      %v1322 = vld [vmem:[#allocation2 + $0x16e] sm:$0xff]
      %v1323 = vld [vmem:[#allocation2 + $0x186] sm:$0xff]
      %v1324 = vld [vmem:[#allocation2 + $0x18e] sm:$0xff]
      %v1325 = vld [vmem:[#allocation2 + $0x1a6] sm:$0xff]
      %v1326 = vld [vmem:[#allocation2 + $0x1ae] sm:$0xff]
      %v1327 = vld [vmem:[#allocation2 + $0x1c6] sm:$0xff]
      %v1328 = vld [vmem:[#allocation2 + $0x1ce] sm:$0xff]
      %v1329 = vld [vmem:[#allocation2 + $0x1e6] sm:$0xff]
      %v1330 = vld [vmem:[#allocation2 + $0x1ee] sm:$0xff]
      %v1331 = vld [vmem:[#allocation2 + $0x206] sm:$0xff]
      %v1332 = vld [vmem:[#allocation2 + $0x20e] sm:$0xff]
      %v1333 = vld [vmem:[#allocation2 + $0x226] sm:$0xff]
      %v1334 = vld [vmem:[#allocation2 + $0x22e] sm:$0xff]
      %v1335 = vld [vmem:[#allocation2 + $0x246] sm:$0xff]
      %v1336 = vld [vmem:[#allocation2 + $0x24e] sm:$0xff]
      %v1337 = vld [vmem:[#allocation2 + $0x266] sm:$0xff]
      %v1338 = vld [vmem:[#allocation2 + $0x26e] sm:$0xff]
      %v1339 = vpack.c.bf16 %v1300, %v1299
      %v1340 = vpack.c.bf16 %v1302, %v1301
      %v1341 = vpack.c.bf16 %v1304, %v1303
      %v1342 = vpack.c.bf16 %v1306, %v1305
      %v1343 = vpack.c.bf16 %v1308, %v1307
      %v1344 = vpack.c.bf16 %v1310, %v1309
      %v1345 = vpack.c.bf16 %v1312, %v1311
      %v1346 = vpack.c.bf16 %v1314, %v1313
      %v1347 = vpack.c.bf16 %v1316, %v1315
      %v1348 = vpack.c.bf16 %v1318, %v1317
      %v1349 = vpack.c.bf16 %v1320, %v1319
      %v1350 = vpack.c.bf16 %v1322, %v1321
      %v1351 = vpack.c.bf16 %v1324, %v1323
      %v1352 = vpack.c.bf16 %v1326, %v1325
      %v1353 = vpack.c.bf16 %v1328, %v1327
      %v1354 = vpack.c.bf16 %v1330, %v1329
      %v1355 = vpack.c.bf16 %v1332, %v1331
      %v1356 = vpack.c.bf16 %v1334, %v1333
      %v1357 = vpack.c.bf16 %v1336, %v1335
      %v1358 = vpack.c.bf16 %v1338, %v1337
      %v1359 = vld [vmem:[%s3] sm:$0x1]
      %v1361 = vpack.i.b16 %v1359, %v1359
      %v1363 = vlaneseq
      %v1364 = vshrl.u32 %v1363, 7
      %v1365 = vsub.s32 0, %v1364
      %v1366 = vrot.slane %v1361, %v1365
      %v1367 = vmul.bf16 %v1339, %v1366
      %v1368 = vmul.bf16 %v1340, %v1366
      %v1369 = vmul.bf16 %v1341, %v1366
      %v1370 = vmul.bf16 %v1342, %v1366
      %v1371 = vmul.bf16 %v1343, %v1366
      %v1372 = vmul.bf16 %v1344, %v1366
      %v1373 = vmul.bf16 %v1345, %v1366
      %v1374 = vmul.bf16 %v1346, %v1366
      %v1375 = vmul.bf16 %v1347, %v1366
      %v1376 = vmul.bf16 %v1348, %v1366
      %v1377 = vmul.bf16 %v1349, %v1366
      %v1378 = vmul.bf16 %v1350, %v1366
      %v1379 = vmul.bf16 %v1351, %v1366
      %v1380 = vmul.bf16 %v1352, %v1366
      %v1381 = vmul.bf16 %v1353, %v1366
      %v1382 = vmul.bf16 %v1354, %v1366
      %v1383 = vadd.bf16 %v1298, %v1367
      %v1384 = vadd.bf16 %v1298, %v1368
      %v1385 = vadd.bf16 %v1298, %v1369
      %v1386 = vadd.bf16 %v1298, %v1370
      %v1387 = vadd.bf16 %v1298, %v1371
      %v1388 = vadd.bf16 %v1298, %v1372
      %v1389 = vadd.bf16 %v1298, %v1373
      %v1390 = vadd.bf16 %v1298, %v1374
      %v1391 = vadd.bf16 %v1298, %v1375
      %v1392 = vadd.bf16 %v1298, %v1376
      %v1393 = vadd.bf16 %v1298, %v1377
      %v1394 = vadd.bf16 %v1298, %v1378
      %v1395 = vadd.bf16 %v1298, %v1379
      %v1396 = vadd.bf16 %v1298, %v1380
      %v1397 = vadd.bf16 %v1298, %v1381
      %v1398 = vadd.bf16 %v1298, %v1382
      %v1399 = vld [vmem:[%s3] sm:$0x4]
      %v1401 = vshrl.u32 %v1399, 16
      %v1402 = vpack.i.b16 %v1401, %v1401
      %v1404 = vlaneseq
      %v1405 = vshrl.u32 %v1404, 7
      %v1406 = vsub.s32 2, %v1405
      %v1407 = vrot.slane %v1402, %v1406
      %v1408 = vmul.bf16 %v1340, %v1407
      %v1409 = vmul.bf16 %v1341, %v1407
      %v1410 = vmul.bf16 %v1342, %v1407
      %v1411 = vmul.bf16 %v1343, %v1407
      %v1412 = vmul.bf16 %v1344, %v1407
      %v1413 = vmul.bf16 %v1345, %v1407
      %v1414 = vmul.bf16 %v1346, %v1407
      %v1415 = vmul.bf16 %v1347, %v1407
      %v1416 = vmul.bf16 %v1348, %v1407
      %v1417 = vmul.bf16 %v1349, %v1407
      %v1418 = vmul.bf16 %v1350, %v1407
      %v1419 = vmul.bf16 %v1351, %v1407
      %v1420 = vmul.bf16 %v1352, %v1407
      %v1421 = vmul.bf16 %v1353, %v1407
      %v1422 = vmul.bf16 %v1354, %v1407
      %v1423 = vmul.bf16 %v1355, %v1407
      %v1424 = vadd.bf16 %v1383, %v1408
      %v1425 = vadd.bf16 %v1384, %v1409
      %v1426 = vadd.bf16 %v1385, %v1410
      %v1427 = vadd.bf16 %v1386, %v1411
      %v1428 = vadd.bf16 %v1387, %v1412
      %v1429 = vadd.bf16 %v1388, %v1413
      %v1430 = vadd.bf16 %v1389, %v1414
      %v1431 = vadd.bf16 %v1390, %v1415
      %v1432 = vadd.bf16 %v1391, %v1416
      %v1433 = vadd.bf16 %v1392, %v1417
      %v1434 = vadd.bf16 %v1393, %v1418
      %v1435 = vadd.bf16 %v1394, %v1419
      %v1436 = vadd.bf16 %v1395, %v1420
      %v1437 = vadd.bf16 %v1396, %v1421
      %v1438 = vadd.bf16 %v1397, %v1422
      %v1439 = vadd.bf16 %v1398, %v1423
      %v1440 = vld [vmem:[%s3 + $0x4] sm:$0x2]
      %v1442 = vpack.i.b16 %v1440, %v1440
      %v1444 = vlaneseq
      %v1445 = vshrl.u32 %v1444, 7
      %v1446 = vsub.s32 1, %v1445
      %v1447 = vrot.slane %v1442, %v1446
      %v1448 = vmul.bf16 %v1341, %v1447
      %v1449 = vmul.bf16 %v1342, %v1447
      %v1450 = vmul.bf16 %v1343, %v1447
      %v1451 = vmul.bf16 %v1344, %v1447
      %v1452 = vmul.bf16 %v1345, %v1447
      %v1453 = vmul.bf16 %v1346, %v1447
      %v1454 = vmul.bf16 %v1347, %v1447
      %v1455 = vmul.bf16 %v1348, %v1447
      %v1456 = vmul.bf16 %v1349, %v1447
      %v1457 = vmul.bf16 %v1350, %v1447
      %v1458 = vmul.bf16 %v1351, %v1447
      %v1459 = vmul.bf16 %v1352, %v1447
      %v1460 = vmul.bf16 %v1353, %v1447
      %v1461 = vmul.bf16 %v1354, %v1447
      %v1462 = vmul.bf16 %v1355, %v1447
      %v1463 = vmul.bf16 %v1356, %v1447
      %v1464 = vadd.bf16 %v1424, %v1448
      %v1465 = vadd.bf16 %v1425, %v1449
      %v1466 = vadd.bf16 %v1426, %v1450
      %v1467 = vadd.bf16 %v1427, %v1451
      %v1468 = vadd.bf16 %v1428, %v1452
      %v1469 = vadd.bf16 %v1429, %v1453
      %v1470 = vadd.bf16 %v1430, %v1454
      %v1471 = vadd.bf16 %v1431, %v1455
      %v1472 = vadd.bf16 %v1432, %v1456
      %v1473 = vadd.bf16 %v1433, %v1457
      %v1474 = vadd.bf16 %v1434, %v1458
      %v1475 = vadd.bf16 %v1435, %v1459
      %v1476 = vadd.bf16 %v1436, %v1460
      %v1477 = vadd.bf16 %v1437, %v1461
      %v1478 = vadd.bf16 %v1438, %v1462
      %v1479 = vadd.bf16 %v1439, %v1463
      %v1480 = vld [vmem:[%s3 + $0x4] sm:$0x8]
      %v1482 = vshrl.u32 %v1480, 16
      %v1483 = vpack.i.b16 %v1482, %v1482
      %v1485 = vlaneseq
      %v1486 = vshrl.u32 %v1485, 7
      %v1487 = vsub.s32 3, %v1486
      %v1488 = vrot.slane %v1483, %v1487
      %v1489 = vmul.bf16 %v1342, %v1488
      %v1490 = vmul.bf16 %v1343, %v1488
      %v1491 = vmul.bf16 %v1344, %v1488
      %v1492 = vmul.bf16 %v1345, %v1488
      %v1493 = vmul.bf16 %v1346, %v1488
      %v1494 = vmul.bf16 %v1347, %v1488
      %v1495 = vmul.bf16 %v1348, %v1488
      %v1496 = vmul.bf16 %v1349, %v1488
      %v1497 = vmul.bf16 %v1350, %v1488
      %v1498 = vmul.bf16 %v1351, %v1488
      %v1499 = vmul.bf16 %v1352, %v1488
      %v1500 = vmul.bf16 %v1353, %v1488
      %v1501 = vmul.bf16 %v1354, %v1488
      %v1502 = vmul.bf16 %v1355, %v1488
      %v1503 = vmul.bf16 %v1356, %v1488
      %v1504 = vmul.bf16 %v1357, %v1488
      %v1505 = vadd.bf16 %v1464, %v1489
      %v1506 = vadd.bf16 %v1465, %v1490
      %v1507 = vadd.bf16 %v1466, %v1491
      %v1508 = vadd.bf16 %v1467, %v1492
      %v1509 = vadd.bf16 %v1468, %v1493
      %v1510 = vadd.bf16 %v1469, %v1494
      %v1511 = vadd.bf16 %v1470, %v1495
      %v1512 = vadd.bf16 %v1471, %v1496
      %v1513 = vadd.bf16 %v1472, %v1497
      %v1514 = vadd.bf16 %v1473, %v1498
      %v1515 = vadd.bf16 %v1474, %v1499
      %v1516 = vadd.bf16 %v1475, %v1500
      %v1517 = vadd.bf16 %v1476, %v1501
      %v1518 = vadd.bf16 %v1477, %v1502
      %v1519 = vadd.bf16 %v1478, %v1503
      %v1520 = vadd.bf16 %v1479, %v1504
      %v1521 = vld [vmem:[%s3 + $0x8] sm:$0x4]
      %v1523 = vpack.i.b16 %v1521, %v1521
      %v1525 = vlaneseq
      %v1526 = vshrl.u32 %v1525, 7
      %v1527 = vsub.s32 2, %v1526
      %v1528 = vrot.slane %v1523, %v1527
      %v1529 = vmul.bf16 %v1343, %v1528
      %v1530 = vmul.bf16 %v1344, %v1528
      %v1531 = vmul.bf16 %v1345, %v1528
      %v1532 = vmul.bf16 %v1346, %v1528
      %v1533 = vmul.bf16 %v1347, %v1528
      %v1534 = vmul.bf16 %v1348, %v1528
      %v1535 = vmul.bf16 %v1349, %v1528
      %v1536 = vmul.bf16 %v1350, %v1528
      %v1537 = vmul.bf16 %v1351, %v1528
      %v1538 = vmul.bf16 %v1352, %v1528
      %v1539 = vmul.bf16 %v1353, %v1528
      %v1540 = vmul.bf16 %v1354, %v1528
      %v1541 = vmul.bf16 %v1355, %v1528
      %v1542 = vmul.bf16 %v1356, %v1528
      %v1543 = vmul.bf16 %v1357, %v1528
      %v1544 = vmul.bf16 %v1358, %v1528
      %v1545 = vadd.bf16 %v1505, %v1529
      %v1546 = vadd.bf16 %v1506, %v1530
      %v1547 = vadd.bf16 %v1507, %v1531
      %v1548 = vadd.bf16 %v1508, %v1532
      %v1549 = vadd.bf16 %v1509, %v1533
      %v1550 = vadd.bf16 %v1510, %v1534
      %v1551 = vadd.bf16 %v1511, %v1535
      %v1552 = vadd.bf16 %v1512, %v1536
      %v1553 = vadd.bf16 %v1513, %v1537
      %v1554 = vadd.bf16 %v1514, %v1538
      %v1555 = vadd.bf16 %v1515, %v1539
      %v1556 = vadd.bf16 %v1516, %v1540
      %v1557 = vadd.bf16 %v1517, %v1541
      %v1558 = vadd.bf16 %v1518, %v1542
      %v1559 = vadd.bf16 %v1519, %v1543
      %v1560 = vadd.bf16 %v1520, %v1544
      %v1561 = vld [vmem:[#allocation2 + $0x7] sm:$0xff]
      %v1562 = vld [vmem:[#allocation2 + $0xf] sm:$0xff]
      %v1563 = vld [vmem:[#allocation2 + $0x27] sm:$0xff]
      %v1564 = vld [vmem:[#allocation2 + $0x2f] sm:$0xff]
      %v1565 = vld [vmem:[#allocation2 + $0x47] sm:$0xff]
      %v1566 = vld [vmem:[#allocation2 + $0x4f] sm:$0xff]
      %v1567 = vld [vmem:[#allocation2 + $0x67] sm:$0xff]
      %v1568 = vld [vmem:[#allocation2 + $0x6f] sm:$0xff]
      %v1569 = vld [vmem:[#allocation2 + $0x87] sm:$0xff]
      %v1570 = vld [vmem:[#allocation2 + $0x8f] sm:$0xff]
      %v1571 = vld [vmem:[#allocation2 + $0xa7] sm:$0xff]
      %v1572 = vld [vmem:[#allocation2 + $0xaf] sm:$0xff]
      %v1573 = vld [vmem:[#allocation2 + $0xc7] sm:$0xff]
      %v1574 = vld [vmem:[#allocation2 + $0xcf] sm:$0xff]
      %v1575 = vld [vmem:[#allocation2 + $0xe7] sm:$0xff]
      %v1576 = vld [vmem:[#allocation2 + $0xef] sm:$0xff]
      %v1577 = vld [vmem:[#allocation2 + $0x107] sm:$0xff]
      %v1578 = vld [vmem:[#allocation2 + $0x10f] sm:$0xff]
      %v1579 = vld [vmem:[#allocation2 + $0x127] sm:$0xff]
      %v1580 = vld [vmem:[#allocation2 + $0x12f] sm:$0xff]
      %v1581 = vld [vmem:[#allocation2 + $0x147] sm:$0xff]
      %v1582 = vld [vmem:[#allocation2 + $0x14f] sm:$0xff]
      %v1583 = vld [vmem:[#allocation2 + $0x167] sm:$0xff]
      %v1584 = vld [vmem:[#allocation2 + $0x16f] sm:$0xff]
      %v1585 = vld [vmem:[#allocation2 + $0x187] sm:$0xff]
      %v1586 = vld [vmem:[#allocation2 + $0x18f] sm:$0xff]
      %v1587 = vld [vmem:[#allocation2 + $0x1a7] sm:$0xff]
      %v1588 = vld [vmem:[#allocation2 + $0x1af] sm:$0xff]
      %v1589 = vld [vmem:[#allocation2 + $0x1c7] sm:$0xff]
      %v1590 = vld [vmem:[#allocation2 + $0x1cf] sm:$0xff]
      %v1591 = vld [vmem:[#allocation2 + $0x1e7] sm:$0xff]
      %v1592 = vld [vmem:[#allocation2 + $0x1ef] sm:$0xff]
      %v1593 = vld [vmem:[#allocation2 + $0x207] sm:$0xff]
      %v1594 = vld [vmem:[#allocation2 + $0x20f] sm:$0xff]
      %v1595 = vld [vmem:[#allocation2 + $0x227] sm:$0xff]
      %v1596 = vld [vmem:[#allocation2 + $0x22f] sm:$0xff]
      %v1597 = vld [vmem:[#allocation2 + $0x247] sm:$0xff]
      %v1598 = vld [vmem:[#allocation2 + $0x24f] sm:$0xff]
      %v1599 = vld [vmem:[#allocation2 + $0x267] sm:$0xff]
      %v1600 = vld [vmem:[#allocation2 + $0x26f] sm:$0xff]
      %v1601 = vpack.c.bf16 %v1562, %v1561
      %v1602 = vpack.c.bf16 %v1564, %v1563
      %v1603 = vpack.c.bf16 %v1566, %v1565
      %v1604 = vpack.c.bf16 %v1568, %v1567
      %v1605 = vpack.c.bf16 %v1570, %v1569
      %v1606 = vpack.c.bf16 %v1572, %v1571
      %v1607 = vpack.c.bf16 %v1574, %v1573
      %v1608 = vpack.c.bf16 %v1576, %v1575
      %v1609 = vpack.c.bf16 %v1578, %v1577
      %v1610 = vpack.c.bf16 %v1580, %v1579
      %v1611 = vpack.c.bf16 %v1582, %v1581
      %v1612 = vpack.c.bf16 %v1584, %v1583
      %v1613 = vpack.c.bf16 %v1586, %v1585
      %v1614 = vpack.c.bf16 %v1588, %v1587
      %v1615 = vpack.c.bf16 %v1590, %v1589
      %v1616 = vpack.c.bf16 %v1592, %v1591
      %v1617 = vpack.c.bf16 %v1594, %v1593
      %v1618 = vpack.c.bf16 %v1596, %v1595
      %v1619 = vpack.c.bf16 %v1598, %v1597
      %v1620 = vpack.c.bf16 %v1600, %v1599
      %v1621 = vshrl.u32 %v1359, 16
      %v1622 = vpack.i.b16 %v1621, %v1621
      %v1624 = vlaneseq
      %v1625 = vshrl.u32 %v1624, 7
      %v1626 = vsub.s32 0, %v1625
      %v1627 = vrot.slane %v1622, %v1626
      %v1628 = vmul.bf16 %v1601, %v1627
      %v1629 = vmul.bf16 %v1602, %v1627
      %v1630 = vmul.bf16 %v1603, %v1627
      %v1631 = vmul.bf16 %v1604, %v1627
      %v1632 = vmul.bf16 %v1605, %v1627
      %v1633 = vmul.bf16 %v1606, %v1627
      %v1634 = vmul.bf16 %v1607, %v1627
      %v1635 = vmul.bf16 %v1608, %v1627
      %v1636 = vmul.bf16 %v1609, %v1627
      %v1637 = vmul.bf16 %v1610, %v1627
      %v1638 = vmul.bf16 %v1611, %v1627
      %v1639 = vmul.bf16 %v1612, %v1627
      %v1640 = vmul.bf16 %v1613, %v1627
      %v1641 = vmul.bf16 %v1614, %v1627
      %v1642 = vmul.bf16 %v1615, %v1627
      %v1643 = vmul.bf16 %v1616, %v1627
      %v1644 = vadd.bf16 %v1545, %v1628
      %v1645 = vadd.bf16 %v1546, %v1629
      %v1646 = vadd.bf16 %v1547, %v1630
      %v1647 = vadd.bf16 %v1548, %v1631
      %v1648 = vadd.bf16 %v1549, %v1632
      %v1649 = vadd.bf16 %v1550, %v1633
      %v1650 = vadd.bf16 %v1551, %v1634
      %v1651 = vadd.bf16 %v1552, %v1635
      %v1652 = vadd.bf16 %v1553, %v1636
      %v1653 = vadd.bf16 %v1554, %v1637
      %v1654 = vadd.bf16 %v1555, %v1638
      %v1655 = vadd.bf16 %v1556, %v1639
      %v1656 = vadd.bf16 %v1557, %v1640
      %v1657 = vadd.bf16 %v1558, %v1641
      %v1658 = vadd.bf16 %v1559, %v1642
      %v1659 = vadd.bf16 %v1560, %v1643
      %v1660 = vld [vmem:[%s3] sm:$0x8]
      %v1662 = vpack.i.b16 %v1660, %v1660
      %v1664 = vlaneseq
      %v1665 = vshrl.u32 %v1664, 7
      %v1666 = vsub.s32 3, %v1665
      %v1667 = vrot.slane %v1662, %v1666
      %v1668 = vmul.bf16 %v1602, %v1667
      %v1669 = vmul.bf16 %v1603, %v1667
      %v1670 = vmul.bf16 %v1604, %v1667
      %v1671 = vmul.bf16 %v1605, %v1667
      %v1672 = vmul.bf16 %v1606, %v1667
      %v1673 = vmul.bf16 %v1607, %v1667
      %v1674 = vmul.bf16 %v1608, %v1667
      %v1675 = vmul.bf16 %v1609, %v1667
      %v1676 = vmul.bf16 %v1610, %v1667
      %v1677 = vmul.bf16 %v1611, %v1667
      %v1678 = vmul.bf16 %v1612, %v1667
      %v1679 = vmul.bf16 %v1613, %v1667
      %v1680 = vmul.bf16 %v1614, %v1667
      %v1681 = vmul.bf16 %v1615, %v1667
      %v1682 = vmul.bf16 %v1616, %v1667
      %v1683 = vmul.bf16 %v1617, %v1667
      %v1684 = vadd.bf16 %v1644, %v1668
      %v1685 = vadd.bf16 %v1645, %v1669
      %v1686 = vadd.bf16 %v1646, %v1670
      %v1687 = vadd.bf16 %v1647, %v1671
      %v1688 = vadd.bf16 %v1648, %v1672
      %v1689 = vadd.bf16 %v1649, %v1673
      %v1690 = vadd.bf16 %v1650, %v1674
      %v1691 = vadd.bf16 %v1651, %v1675
      %v1692 = vadd.bf16 %v1652, %v1676
      %v1693 = vadd.bf16 %v1653, %v1677
      %v1694 = vadd.bf16 %v1654, %v1678
      %v1695 = vadd.bf16 %v1655, %v1679
      %v1696 = vadd.bf16 %v1656, %v1680
      %v1697 = vadd.bf16 %v1657, %v1681
      %v1698 = vadd.bf16 %v1658, %v1682
      %v1699 = vadd.bf16 %v1659, %v1683
      %v1700 = vshrl.u32 %v1440, 16
      %v1701 = vpack.i.b16 %v1700, %v1700
      %v1703 = vlaneseq
      %v1704 = vshrl.u32 %v1703, 7
      %v1705 = vsub.s32 1, %v1704
      %v1706 = vrot.slane %v1701, %v1705
      %v1707 = vmul.bf16 %v1603, %v1706
      %v1708 = vmul.bf16 %v1604, %v1706
      %v1709 = vmul.bf16 %v1605, %v1706
      %v1710 = vmul.bf16 %v1606, %v1706
      %v1711 = vmul.bf16 %v1607, %v1706
      %v1712 = vmul.bf16 %v1608, %v1706
      %v1713 = vmul.bf16 %v1609, %v1706
      %v1714 = vmul.bf16 %v1610, %v1706
      %v1715 = vmul.bf16 %v1611, %v1706
      %v1716 = vmul.bf16 %v1612, %v1706
      %v1717 = vmul.bf16 %v1613, %v1706
      %v1718 = vmul.bf16 %v1614, %v1706
      %v1719 = vmul.bf16 %v1615, %v1706
      %v1720 = vmul.bf16 %v1616, %v1706
      %v1721 = vmul.bf16 %v1617, %v1706
      %v1722 = vmul.bf16 %v1618, %v1706
      %v1723 = vadd.bf16 %v1684, %v1707
      %v1724 = vadd.bf16 %v1685, %v1708
      %v1725 = vadd.bf16 %v1686, %v1709
      %v1726 = vadd.bf16 %v1687, %v1710
      %v1727 = vadd.bf16 %v1688, %v1711
      %v1728 = vadd.bf16 %v1689, %v1712
      %v1729 = vadd.bf16 %v1690, %v1713
      %v1730 = vadd.bf16 %v1691, %v1714
      %v1731 = vadd.bf16 %v1692, %v1715
      %v1732 = vadd.bf16 %v1693, %v1716
      %v1733 = vadd.bf16 %v1694, %v1717
      %v1734 = vadd.bf16 %v1695, %v1718
      %v1735 = vadd.bf16 %v1696, %v1719
      %v1736 = vadd.bf16 %v1697, %v1720
      %v1737 = vadd.bf16 %v1698, %v1721
      %v1738 = vadd.bf16 %v1699, %v1722
      %v1739 = vld [vmem:[%s3 + $0x8] sm:$0x1]
      %v1741 = vpack.i.b16 %v1739, %v1739
      %v1743 = vlaneseq
      %v1744 = vshrl.u32 %v1743, 7
      %v1745 = vsub.s32 0, %v1744
      %v1746 = vrot.slane %v1741, %v1745
      %v1747 = vmul.bf16 %v1604, %v1746
      %v1748 = vmul.bf16 %v1605, %v1746
      %v1749 = vmul.bf16 %v1606, %v1746
      %v1750 = vmul.bf16 %v1607, %v1746
      %v1751 = vmul.bf16 %v1608, %v1746
      %v1752 = vmul.bf16 %v1609, %v1746
      %v1753 = vmul.bf16 %v1610, %v1746
      %v1754 = vmul.bf16 %v1611, %v1746
      %v1755 = vmul.bf16 %v1612, %v1746
      %v1756 = vmul.bf16 %v1613, %v1746
      %v1757 = vmul.bf16 %v1614, %v1746
      %v1758 = vmul.bf16 %v1615, %v1746
      %v1759 = vmul.bf16 %v1616, %v1746
      %v1760 = vmul.bf16 %v1617, %v1746
      %v1761 = vmul.bf16 %v1618, %v1746
      %v1762 = vmul.bf16 %v1619, %v1746
      %v1763 = vadd.bf16 %v1723, %v1747
      %v1764 = vadd.bf16 %v1724, %v1748
      %v1765 = vadd.bf16 %v1725, %v1749
      %v1766 = vadd.bf16 %v1726, %v1750
      %v1767 = vadd.bf16 %v1727, %v1751
      %v1768 = vadd.bf16 %v1728, %v1752
      %v1769 = vadd.bf16 %v1729, %v1753
      %v1770 = vadd.bf16 %v1730, %v1754
      %v1771 = vadd.bf16 %v1731, %v1755
      %v1772 = vadd.bf16 %v1732, %v1756
      %v1773 = vadd.bf16 %v1733, %v1757
      %v1774 = vadd.bf16 %v1734, %v1758
      %v1775 = vadd.bf16 %v1735, %v1759
      %v1776 = vadd.bf16 %v1736, %v1760
      %v1777 = vadd.bf16 %v1737, %v1761
      %v1778 = vadd.bf16 %v1738, %v1762
      %v1779 = vshrl.u32 %v1521, 16
      %v1780 = vpack.i.b16 %v1779, %v1779
      %v1782 = vlaneseq
      %v1783 = vshrl.u32 %v1782, 7
      %v1784 = vsub.s32 2, %v1783
      %v1785 = vrot.slane %v1780, %v1784
      %v1786 = vmul.bf16 %v1605, %v1785
      %v1787 = vmul.bf16 %v1606, %v1785
      %v1788 = vmul.bf16 %v1607, %v1785
      %v1789 = vmul.bf16 %v1608, %v1785
      %v1790 = vmul.bf16 %v1609, %v1785
      %v1791 = vmul.bf16 %v1610, %v1785
      %v1792 = vmul.bf16 %v1611, %v1785
      %v1793 = vmul.bf16 %v1612, %v1785
      %v1794 = vmul.bf16 %v1613, %v1785
      %v1795 = vmul.bf16 %v1614, %v1785
      %v1796 = vmul.bf16 %v1615, %v1785
      %v1797 = vmul.bf16 %v1616, %v1785
      %v1798 = vmul.bf16 %v1617, %v1785
      %v1799 = vmul.bf16 %v1618, %v1785
      %v1800 = vmul.bf16 %v1619, %v1785
      %v1801 = vmul.bf16 %v1620, %v1785
      %v1802 = vadd.bf16 %v1763, %v1786
      %v1803 = vadd.bf16 %v1764, %v1787
      %v1804 = vadd.bf16 %v1765, %v1788
      %v1805 = vadd.bf16 %v1766, %v1789
      %v1806 = vadd.bf16 %v1767, %v1790
      %v1807 = vadd.bf16 %v1768, %v1791
      %v1808 = vadd.bf16 %v1769, %v1792
      %v1809 = vadd.bf16 %v1770, %v1793
      %v1810 = vadd.bf16 %v1771, %v1794
      %v1811 = vadd.bf16 %v1772, %v1795
      %v1812 = vadd.bf16 %v1773, %v1796
      %v1813 = vadd.bf16 %v1774, %v1797
      %v1814 = vadd.bf16 %v1775, %v1798
      %v1815 = vadd.bf16 %v1776, %v1799
      %v1816 = vadd.bf16 %v1777, %v1800
      %v1817 = vadd.bf16 %v1778, %v1801
      %v1818 = vld [vmem:[#allocation2 + $0x8] sm:$0xff]
      %v1819 = vld [vmem:[#allocation2 + $0x10] sm:$0xff]
      %v1820 = vld [vmem:[#allocation2 + $0x28] sm:$0xff]
      %v1821 = vld [vmem:[#allocation2 + $0x30] sm:$0xff]
      %v1822 = vld [vmem:[#allocation2 + $0x48] sm:$0xff]
      %v1823 = vld [vmem:[#allocation2 + $0x50] sm:$0xff]
      %v1824 = vld [vmem:[#allocation2 + $0x68] sm:$0xff]
      %v1825 = vld [vmem:[#allocation2 + $0x70] sm:$0xff]
      %v1826 = vld [vmem:[#allocation2 + $0x88] sm:$0xff]
      %v1827 = vld [vmem:[#allocation2 + $0x90] sm:$0xff]
      %v1828 = vld [vmem:[#allocation2 + $0xa8] sm:$0xff]
      %v1829 = vld [vmem:[#allocation2 + $0xb0] sm:$0xff]
      %v1830 = vld [vmem:[#allocation2 + $0xc8] sm:$0xff]
      %v1831 = vld [vmem:[#allocation2 + $0xd0] sm:$0xff]
      %v1832 = vld [vmem:[#allocation2 + $0xe8] sm:$0xff]
      %v1833 = vld [vmem:[#allocation2 + $0xf0] sm:$0xff]
      %v1834 = vld [vmem:[#allocation2 + $0x108] sm:$0xff]
      %v1835 = vld [vmem:[#allocation2 + $0x110] sm:$0xff]
      %v1836 = vld [vmem:[#allocation2 + $0x128] sm:$0xff]
      %v1837 = vld [vmem:[#allocation2 + $0x130] sm:$0xff]
      %v1838 = vld [vmem:[#allocation2 + $0x148] sm:$0xff]
      %v1839 = vld [vmem:[#allocation2 + $0x150] sm:$0xff]
      %v1840 = vld [vmem:[#allocation2 + $0x168] sm:$0xff]
      %v1841 = vld [vmem:[#allocation2 + $0x170] sm:$0xff]
      %v1842 = vld [vmem:[#allocation2 + $0x188] sm:$0xff]
      %v1843 = vld [vmem:[#allocation2 + $0x190] sm:$0xff]
      %v1844 = vld [vmem:[#allocation2 + $0x1a8] sm:$0xff]
      %v1845 = vld [vmem:[#allocation2 + $0x1b0] sm:$0xff]
      %v1846 = vld [vmem:[#allocation2 + $0x1c8] sm:$0xff]
      %v1847 = vld [vmem:[#allocation2 + $0x1d0] sm:$0xff]
      %v1848 = vld [vmem:[#allocation2 + $0x1e8] sm:$0xff]
      %v1849 = vld [vmem:[#allocation2 + $0x1f0] sm:$0xff]
      %v1850 = vld [vmem:[#allocation2 + $0x208] sm:$0xff]
      %v1851 = vld [vmem:[#allocation2 + $0x210] sm:$0xff]
      %v1852 = vld [vmem:[#allocation2 + $0x228] sm:$0xff]
      %v1853 = vld [vmem:[#allocation2 + $0x230] sm:$0xff]
      %v1854 = vld [vmem:[#allocation2 + $0x248] sm:$0xff]
      %v1855 = vld [vmem:[#allocation2 + $0x250] sm:$0xff]
      %v1856 = vld [vmem:[#allocation2 + $0x268] sm:$0xff]
      %v1857 = vld [vmem:[#allocation2 + $0x270] sm:$0xff]
      %v1858 = vpack.c.bf16 %v1819, %v1818
      %v1859 = vpack.c.bf16 %v1821, %v1820
      %v1860 = vpack.c.bf16 %v1823, %v1822
      %v1861 = vpack.c.bf16 %v1825, %v1824
      %v1862 = vpack.c.bf16 %v1827, %v1826
      %v1863 = vpack.c.bf16 %v1829, %v1828
      %v1864 = vpack.c.bf16 %v1831, %v1830
      %v1865 = vpack.c.bf16 %v1833, %v1832
      %v1866 = vpack.c.bf16 %v1835, %v1834
      %v1867 = vpack.c.bf16 %v1837, %v1836
      %v1868 = vpack.c.bf16 %v1839, %v1838
      %v1869 = vpack.c.bf16 %v1841, %v1840
      %v1870 = vpack.c.bf16 %v1843, %v1842
      %v1871 = vpack.c.bf16 %v1845, %v1844
      %v1872 = vpack.c.bf16 %v1847, %v1846
      %v1873 = vpack.c.bf16 %v1849, %v1848
      %v1874 = vpack.c.bf16 %v1851, %v1850
      %v1875 = vpack.c.bf16 %v1853, %v1852
      %v1876 = vpack.c.bf16 %v1855, %v1854
      %v1877 = vpack.c.bf16 %v1857, %v1856
      %v1878 = vld [vmem:[%s3] sm:$0x2]
      %v1880 = vpack.i.b16 %v1878, %v1878
      %v1882 = vlaneseq
      %v1883 = vshrl.u32 %v1882, 7
      %v1884 = vsub.s32 1, %v1883
      %v1885 = vrot.slane %v1880, %v1884
      %v1886 = vmul.bf16 %v1858, %v1885
      %v1887 = vmul.bf16 %v1859, %v1885
      %v1888 = vmul.bf16 %v1860, %v1885
      %v1889 = vmul.bf16 %v1861, %v1885
      %v1890 = vmul.bf16 %v1862, %v1885
      %v1891 = vmul.bf16 %v1863, %v1885
      %v1892 = vmul.bf16 %v1864, %v1885
      %v1893 = vmul.bf16 %v1865, %v1885
      %v1894 = vmul.bf16 %v1866, %v1885
      %v1895 = vmul.bf16 %v1867, %v1885
      %v1896 = vmul.bf16 %v1868, %v1885
      %v1897 = vmul.bf16 %v1869, %v1885
      %v1898 = vmul.bf16 %v1870, %v1885
      %v1899 = vmul.bf16 %v1871, %v1885
      %v1900 = vmul.bf16 %v1872, %v1885
      %v1901 = vmul.bf16 %v1873, %v1885
      %v1902 = vadd.bf16 %v1802, %v1886
      %v1903 = vadd.bf16 %v1803, %v1887
      %v1904 = vadd.bf16 %v1804, %v1888
      %v1905 = vadd.bf16 %v1805, %v1889
      %v1906 = vadd.bf16 %v1806, %v1890
      %v1907 = vadd.bf16 %v1807, %v1891
      %v1908 = vadd.bf16 %v1808, %v1892
      %v1909 = vadd.bf16 %v1809, %v1893
      %v1910 = vadd.bf16 %v1810, %v1894
      %v1911 = vadd.bf16 %v1811, %v1895
      %v1912 = vadd.bf16 %v1812, %v1896
      %v1913 = vadd.bf16 %v1813, %v1897
      %v1914 = vadd.bf16 %v1814, %v1898
      %v1915 = vadd.bf16 %v1815, %v1899
      %v1916 = vadd.bf16 %v1816, %v1900
      %v1917 = vadd.bf16 %v1817, %v1901
      %v1918 = vshrl.u32 %v1660, 16
      %v1919 = vpack.i.b16 %v1918, %v1918
      %v1921 = vlaneseq
      %v1922 = vshrl.u32 %v1921, 7
      %v1923 = vsub.s32 3, %v1922
      %v1924 = vrot.slane %v1919, %v1923
      %v1925 = vmul.bf16 %v1859, %v1924
      %v1926 = vmul.bf16 %v1860, %v1924
      %v1927 = vmul.bf16 %v1861, %v1924
      %v1928 = vmul.bf16 %v1862, %v1924
      %v1929 = vmul.bf16 %v1863, %v1924
      %v1930 = vmul.bf16 %v1864, %v1924
      %v1931 = vmul.bf16 %v1865, %v1924
      %v1932 = vmul.bf16 %v1866, %v1924
      %v1933 = vmul.bf16 %v1867, %v1924
      %v1934 = vmul.bf16 %v1868, %v1924
      %v1935 = vmul.bf16 %v1869, %v1924
      %v1936 = vmul.bf16 %v1870, %v1924
      %v1937 = vmul.bf16 %v1871, %v1924
      %v1938 = vmul.bf16 %v1872, %v1924
      %v1939 = vmul.bf16 %v1873, %v1924
      %v1940 = vmul.bf16 %v1874, %v1924
      %v1941 = vadd.bf16 %v1902, %v1925
      %v1942 = vadd.bf16 %v1903, %v1926
      %v1943 = vadd.bf16 %v1904, %v1927
      %v1944 = vadd.bf16 %v1905, %v1928
      %v1945 = vadd.bf16 %v1906, %v1929
      %v1946 = vadd.bf16 %v1907, %v1930
      %v1947 = vadd.bf16 %v1908, %v1931
      %v1948 = vadd.bf16 %v1909, %v1932
      %v1949 = vadd.bf16 %v1910, %v1933
      %v1950 = vadd.bf16 %v1911, %v1934
      %v1951 = vadd.bf16 %v1912, %v1935
      %v1952 = vadd.bf16 %v1913, %v1936
      %v1953 = vadd.bf16 %v1914, %v1937
      %v1954 = vadd.bf16 %v1915, %v1938
      %v1955 = vadd.bf16 %v1916, %v1939
      %v1956 = vadd.bf16 %v1917, %v1940
      %v1957 = vld [vmem:[%s3 + $0x4] sm:$0x4]
      %v1959 = vpack.i.b16 %v1957, %v1957
      %v1961 = vlaneseq
      %v1962 = vshrl.u32 %v1961, 7
      %v1963 = vsub.s32 2, %v1962
      %v1964 = vrot.slane %v1959, %v1963
      %v1965 = vmul.bf16 %v1860, %v1964
      %v1966 = vmul.bf16 %v1861, %v1964
      %v1967 = vmul.bf16 %v1862, %v1964
      %v1968 = vmul.bf16 %v1863, %v1964
      %v1969 = vmul.bf16 %v1864, %v1964
      %v1970 = vmul.bf16 %v1865, %v1964
      %v1971 = vmul.bf16 %v1866, %v1964
      %v1972 = vmul.bf16 %v1867, %v1964
      %v1973 = vmul.bf16 %v1868, %v1964
      %v1974 = vmul.bf16 %v1869, %v1964
      %v1975 = vmul.bf16 %v1870, %v1964
      %v1976 = vmul.bf16 %v1871, %v1964
      %v1977 = vmul.bf16 %v1872, %v1964
      %v1978 = vmul.bf16 %v1873, %v1964
      %v1979 = vmul.bf16 %v1874, %v1964
      %v1980 = vmul.bf16 %v1875, %v1964
      %v1981 = vadd.bf16 %v1941, %v1965
      %v1982 = vadd.bf16 %v1942, %v1966
      %v1983 = vadd.bf16 %v1943, %v1967
      %v1984 = vadd.bf16 %v1944, %v1968
      %v1985 = vadd.bf16 %v1945, %v1969
      %v1986 = vadd.bf16 %v1946, %v1970
      %v1987 = vadd.bf16 %v1947, %v1971
      %v1988 = vadd.bf16 %v1948, %v1972
      %v1989 = vadd.bf16 %v1949, %v1973
      %v1990 = vadd.bf16 %v1950, %v1974
      %v1991 = vadd.bf16 %v1951, %v1975
      %v1992 = vadd.bf16 %v1952, %v1976
      %v1993 = vadd.bf16 %v1953, %v1977
      %v1994 = vadd.bf16 %v1954, %v1978
      %v1995 = vadd.bf16 %v1955, %v1979
      %v1996 = vadd.bf16 %v1956, %v1980
      %v1997 = vshrl.u32 %v1739, 16
      %v1998 = vpack.i.b16 %v1997, %v1997
      %v2000 = vlaneseq
      %v2001 = vshrl.u32 %v2000, 7
      %v2002 = vsub.s32 0, %v2001
      %v2003 = vrot.slane %v1998, %v2002
      %v2004 = vmul.bf16 %v1861, %v2003
      %v2005 = vmul.bf16 %v1862, %v2003
      %v2006 = vmul.bf16 %v1863, %v2003
      %v2007 = vmul.bf16 %v1864, %v2003
      %v2008 = vmul.bf16 %v1865, %v2003
      %v2009 = vmul.bf16 %v1866, %v2003
      %v2010 = vmul.bf16 %v1867, %v2003
      %v2011 = vmul.bf16 %v1868, %v2003
      %v2012 = vmul.bf16 %v1869, %v2003
      %v2013 = vmul.bf16 %v1870, %v2003
      %v2014 = vmul.bf16 %v1871, %v2003
      %v2015 = vmul.bf16 %v1872, %v2003
      %v2016 = vmul.bf16 %v1873, %v2003
      %v2017 = vmul.bf16 %v1874, %v2003
      %v2018 = vmul.bf16 %v1875, %v2003
      %v2019 = vmul.bf16 %v1876, %v2003
      %v2020 = vadd.bf16 %v1981, %v2004
      %v2021 = vadd.bf16 %v1982, %v2005
      %v2022 = vadd.bf16 %v1983, %v2006
      %v2023 = vadd.bf16 %v1984, %v2007
      %v2024 = vadd.bf16 %v1985, %v2008
      %v2025 = vadd.bf16 %v1986, %v2009
      %v2026 = vadd.bf16 %v1987, %v2010
      %v2027 = vadd.bf16 %v1988, %v2011
      %v2028 = vadd.bf16 %v1989, %v2012
      %v2029 = vadd.bf16 %v1990, %v2013
      %v2030 = vadd.bf16 %v1991, %v2014
      %v2031 = vadd.bf16 %v1992, %v2015
      %v2032 = vadd.bf16 %v1993, %v2016
      %v2033 = vadd.bf16 %v1994, %v2017
      %v2034 = vadd.bf16 %v1995, %v2018
      %v2035 = vadd.bf16 %v1996, %v2019
      %v2036 = vld [vmem:[%s3 + $0x8] sm:$0x8]
      %v2038 = vpack.i.b16 %v2036, %v2036
      %v2040 = vlaneseq
      %v2041 = vshrl.u32 %v2040, 7
      %v2042 = vsub.s32 3, %v2041
      %v2043 = vrot.slane %v2038, %v2042
      %v2044 = vmul.bf16 %v1862, %v2043
      %v2045 = vmul.bf16 %v1863, %v2043
      %v2046 = vmul.bf16 %v1864, %v2043
      %v2047 = vmul.bf16 %v1865, %v2043
      %v2048 = vmul.bf16 %v1866, %v2043
      %v2049 = vmul.bf16 %v1867, %v2043
      %v2050 = vmul.bf16 %v1868, %v2043
      %v2051 = vmul.bf16 %v1869, %v2043
      %v2052 = vmul.bf16 %v1870, %v2043
      %v2053 = vmul.bf16 %v1871, %v2043
      %v2054 = vmul.bf16 %v1872, %v2043
      %v2055 = vmul.bf16 %v1873, %v2043
      %v2056 = vmul.bf16 %v1874, %v2043
      %v2057 = vmul.bf16 %v1875, %v2043
      %v2058 = vmul.bf16 %v1876, %v2043
      %v2059 = vmul.bf16 %v1877, %v2043
      %v2060 = vadd.bf16 %v2020, %v2044
      %v2061 = vadd.bf16 %v2021, %v2045
      %v2062 = vadd.bf16 %v2022, %v2046
      %v2063 = vadd.bf16 %v2023, %v2047
      %v2064 = vadd.bf16 %v2024, %v2048
      %v2065 = vadd.bf16 %v2025, %v2049
      %v2066 = vadd.bf16 %v2026, %v2050
      %v2067 = vadd.bf16 %v2027, %v2051
      %v2068 = vadd.bf16 %v2028, %v2052
      %v2069 = vadd.bf16 %v2029, %v2053
      %v2070 = vadd.bf16 %v2030, %v2054
      %v2071 = vadd.bf16 %v2031, %v2055
      %v2072 = vadd.bf16 %v2032, %v2056
      %v2073 = vadd.bf16 %v2033, %v2057
      %v2074 = vadd.bf16 %v2034, %v2058
      %v2075 = vadd.bf16 %v2035, %v2059
      %v2076 = vld [vmem:[#allocation2 + $0x9] sm:$0xff]
      %v2077 = vld [vmem:[#allocation2 + $0x11] sm:$0xff]
      %v2078 = vld [vmem:[#allocation2 + $0x29] sm:$0xff]
      %v2079 = vld [vmem:[#allocation2 + $0x31] sm:$0xff]
      %v2080 = vld [vmem:[#allocation2 + $0x49] sm:$0xff]
      %v2081 = vld [vmem:[#allocation2 + $0x51] sm:$0xff]
      %v2082 = vld [vmem:[#allocation2 + $0x69] sm:$0xff]
      %v2083 = vld [vmem:[#allocation2 + $0x71] sm:$0xff]
      %v2084 = vld [vmem:[#allocation2 + $0x89] sm:$0xff]
      %v2085 = vld [vmem:[#allocation2 + $0x91] sm:$0xff]
      %v2086 = vld [vmem:[#allocation2 + $0xa9] sm:$0xff]
      %v2087 = vld [vmem:[#allocation2 + $0xb1] sm:$0xff]
      %v2088 = vld [vmem:[#allocation2 + $0xc9] sm:$0xff]
      %v2089 = vld [vmem:[#allocation2 + $0xd1] sm:$0xff]
      %v2090 = vld [vmem:[#allocation2 + $0xe9] sm:$0xff]
      %v2091 = vld [vmem:[#allocation2 + $0xf1] sm:$0xff]
      %v2092 = vld [vmem:[#allocation2 + $0x109] sm:$0xff]
      %v2093 = vld [vmem:[#allocation2 + $0x111] sm:$0xff]
      %v2094 = vld [vmem:[#allocation2 + $0x129] sm:$0xff]
      %v2095 = vld [vmem:[#allocation2 + $0x131] sm:$0xff]
      %v2096 = vld [vmem:[#allocation2 + $0x149] sm:$0xff]
      %v2097 = vld [vmem:[#allocation2 + $0x151] sm:$0xff]
      %v2098 = vld [vmem:[#allocation2 + $0x169] sm:$0xff]
      %v2099 = vld [vmem:[#allocation2 + $0x171] sm:$0xff]
      %v2100 = vld [vmem:[#allocation2 + $0x189] sm:$0xff]
      %v2101 = vld [vmem:[#allocation2 + $0x191] sm:$0xff]
      %v2102 = vld [vmem:[#allocation2 + $0x1a9] sm:$0xff]
      %v2103 = vld [vmem:[#allocation2 + $0x1b1] sm:$0xff]
      %v2104 = vld [vmem:[#allocation2 + $0x1c9] sm:$0xff]
      %v2105 = vld [vmem:[#allocation2 + $0x1d1] sm:$0xff]
      %v2106 = vld [vmem:[#allocation2 + $0x1e9] sm:$0xff]
      %v2107 = vld [vmem:[#allocation2 + $0x1f1] sm:$0xff]
      %v2108 = vld [vmem:[#allocation2 + $0x209] sm:$0xff]
      %v2109 = vld [vmem:[#allocation2 + $0x211] sm:$0xff]
      %v2110 = vld [vmem:[#allocation2 + $0x229] sm:$0xff]
      %v2111 = vld [vmem:[#allocation2 + $0x231] sm:$0xff]
      %v2112 = vld [vmem:[#allocation2 + $0x249] sm:$0xff]
      %v2113 = vld [vmem:[#allocation2 + $0x251] sm:$0xff]
      %v2114 = vld [vmem:[#allocation2 + $0x269] sm:$0xff]
      %v2115 = vld [vmem:[#allocation2 + $0x271] sm:$0xff]
      %v2116 = vpack.c.bf16 %v2077, %v2076
      %v2117 = vpack.c.bf16 %v2079, %v2078
      %v2118 = vpack.c.bf16 %v2081, %v2080
      %v2119 = vpack.c.bf16 %v2083, %v2082
      %v2120 = vpack.c.bf16 %v2085, %v2084
      %v2121 = vpack.c.bf16 %v2087, %v2086
      %v2122 = vpack.c.bf16 %v2089, %v2088
      %v2123 = vpack.c.bf16 %v2091, %v2090
      %v2124 = vpack.c.bf16 %v2093, %v2092
      %v2125 = vpack.c.bf16 %v2095, %v2094
      %v2126 = vpack.c.bf16 %v2097, %v2096
      %v2127 = vpack.c.bf16 %v2099, %v2098
      %v2128 = vpack.c.bf16 %v2101, %v2100
      %v2129 = vpack.c.bf16 %v2103, %v2102
      %v2130 = vpack.c.bf16 %v2105, %v2104
      %v2131 = vpack.c.bf16 %v2107, %v2106
      %v2132 = vpack.c.bf16 %v2109, %v2108
      %v2133 = vpack.c.bf16 %v2111, %v2110
      %v2134 = vpack.c.bf16 %v2113, %v2112
      %v2135 = vpack.c.bf16 %v2115, %v2114
      %v2136 = vshrl.u32 %v1878, 16
      %v2137 = vpack.i.b16 %v2136, %v2136
      %v2139 = vlaneseq
      %v2140 = vshrl.u32 %v2139, 7
      %v2141 = vsub.s32 1, %v2140
      %v2142 = vrot.slane %v2137, %v2141
      %v2143 = vmul.bf16 %v2116, %v2142
      %v2144 = vmul.bf16 %v2117, %v2142
      %v2145 = vmul.bf16 %v2118, %v2142
      %v2146 = vmul.bf16 %v2119, %v2142
      %v2147 = vmul.bf16 %v2120, %v2142
      %v2148 = vmul.bf16 %v2121, %v2142
      %v2149 = vmul.bf16 %v2122, %v2142
      %v2150 = vmul.bf16 %v2123, %v2142
      %v2151 = vmul.bf16 %v2124, %v2142
      %v2152 = vmul.bf16 %v2125, %v2142
      %v2153 = vmul.bf16 %v2126, %v2142
      %v2154 = vmul.bf16 %v2127, %v2142
      %v2155 = vmul.bf16 %v2128, %v2142
      %v2156 = vmul.bf16 %v2129, %v2142
      %v2157 = vmul.bf16 %v2130, %v2142
      %v2158 = vmul.bf16 %v2131, %v2142
      %v2159 = vadd.bf16 %v2060, %v2143
      %v2160 = vadd.bf16 %v2061, %v2144
      %v2161 = vadd.bf16 %v2062, %v2145
      %v2162 = vadd.bf16 %v2063, %v2146
      %v2163 = vadd.bf16 %v2064, %v2147
      %v2164 = vadd.bf16 %v2065, %v2148
      %v2165 = vadd.bf16 %v2066, %v2149
      %v2166 = vadd.bf16 %v2067, %v2150
      %v2167 = vadd.bf16 %v2068, %v2151
      %v2168 = vadd.bf16 %v2069, %v2152
      %v2169 = vadd.bf16 %v2070, %v2153
      %v2170 = vadd.bf16 %v2071, %v2154
      %v2171 = vadd.bf16 %v2072, %v2155
      %v2172 = vadd.bf16 %v2073, %v2156
      %v2173 = vadd.bf16 %v2074, %v2157
      %v2174 = vadd.bf16 %v2075, %v2158
      %v2175 = vld [vmem:[%s3 + $0x4] sm:$0x1]
      %v2177 = vpack.i.b16 %v2175, %v2175
      %v2179 = vlaneseq
      %v2180 = vshrl.u32 %v2179, 7
      %v2181 = vsub.s32 0, %v2180
      %v2182 = vrot.slane %v2177, %v2181
      %v2183 = vmul.bf16 %v2117, %v2182
      %v2184 = vmul.bf16 %v2118, %v2182
      %v2185 = vmul.bf16 %v2119, %v2182
      %v2186 = vmul.bf16 %v2120, %v2182
      %v2187 = vmul.bf16 %v2121, %v2182
      %v2188 = vmul.bf16 %v2122, %v2182
      %v2189 = vmul.bf16 %v2123, %v2182
      %v2190 = vmul.bf16 %v2124, %v2182
      %v2191 = vmul.bf16 %v2125, %v2182
      %v2192 = vmul.bf16 %v2126, %v2182
      %v2193 = vmul.bf16 %v2127, %v2182
      %v2194 = vmul.bf16 %v2128, %v2182
      %v2195 = vmul.bf16 %v2129, %v2182
      %v2196 = vmul.bf16 %v2130, %v2182
      %v2197 = vmul.bf16 %v2131, %v2182
      %v2198 = vmul.bf16 %v2132, %v2182
      %v2199 = vadd.bf16 %v2159, %v2183
      %v2200 = vadd.bf16 %v2160, %v2184
      %v2201 = vadd.bf16 %v2161, %v2185
      %v2202 = vadd.bf16 %v2162, %v2186
      %v2203 = vadd.bf16 %v2163, %v2187
      %v2204 = vadd.bf16 %v2164, %v2188
      %v2205 = vadd.bf16 %v2165, %v2189
      %v2206 = vadd.bf16 %v2166, %v2190
      %v2207 = vadd.bf16 %v2167, %v2191
      %v2208 = vadd.bf16 %v2168, %v2192
      %v2209 = vadd.bf16 %v2169, %v2193
      %v2210 = vadd.bf16 %v2170, %v2194
      %v2211 = vadd.bf16 %v2171, %v2195
      %v2212 = vadd.bf16 %v2172, %v2196
      %v2213 = vadd.bf16 %v2173, %v2197
      %v2214 = vadd.bf16 %v2174, %v2198
      %v2215 = vshrl.u32 %v1957, 16
      %v2216 = vpack.i.b16 %v2215, %v2215
      %v2218 = vlaneseq
      %v2219 = vshrl.u32 %v2218, 7
      %v2220 = vsub.s32 2, %v2219
      %v2221 = vrot.slane %v2216, %v2220
      %v2222 = vmul.bf16 %v2118, %v2221
      %v2223 = vmul.bf16 %v2119, %v2221
      %v2224 = vmul.bf16 %v2120, %v2221
      %v2225 = vmul.bf16 %v2121, %v2221
      %v2226 = vmul.bf16 %v2122, %v2221
      %v2227 = vmul.bf16 %v2123, %v2221
      %v2228 = vmul.bf16 %v2124, %v2221
      %v2229 = vmul.bf16 %v2125, %v2221
      %v2230 = vmul.bf16 %v2126, %v2221
      %v2231 = vmul.bf16 %v2127, %v2221
      %v2232 = vmul.bf16 %v2128, %v2221
      %v2233 = vmul.bf16 %v2129, %v2221
      %v2234 = vmul.bf16 %v2130, %v2221
      %v2235 = vmul.bf16 %v2131, %v2221
      %v2236 = vmul.bf16 %v2132, %v2221
      %v2237 = vmul.bf16 %v2133, %v2221
      %v2238 = vadd.bf16 %v2199, %v2222
      %v2239 = vadd.bf16 %v2200, %v2223
      %v2240 = vadd.bf16 %v2201, %v2224
      %v2241 = vadd.bf16 %v2202, %v2225
      %v2242 = vadd.bf16 %v2203, %v2226
      %v2243 = vadd.bf16 %v2204, %v2227
      %v2244 = vadd.bf16 %v2205, %v2228
      %v2245 = vadd.bf16 %v2206, %v2229
      %v2246 = vadd.bf16 %v2207, %v2230
      %v2247 = vadd.bf16 %v2208, %v2231
      %v2248 = vadd.bf16 %v2209, %v2232
      %v2249 = vadd.bf16 %v2210, %v2233
      %v2250 = vadd.bf16 %v2211, %v2234
      %v2251 = vadd.bf16 %v2212, %v2235
      %v2252 = vadd.bf16 %v2213, %v2236
      %v2253 = vadd.bf16 %v2214, %v2237
      %v2254 = vld [vmem:[%s3 + $0x8] sm:$0x2]
      %v2256 = vpack.i.b16 %v2254, %v2254
      %v2258 = vlaneseq
      %v2259 = vshrl.u32 %v2258, 7
      %v2260 = vsub.s32 1, %v2259
      %v2261 = vrot.slane %v2256, %v2260
      %v2262 = vmul.bf16 %v2119, %v2261
      %v2263 = vmul.bf16 %v2120, %v2261
      %v2264 = vmul.bf16 %v2121, %v2261
      %v2265 = vmul.bf16 %v2122, %v2261
      %v2266 = vmul.bf16 %v2123, %v2261
      %v2267 = vmul.bf16 %v2124, %v2261
      %v2268 = vmul.bf16 %v2125, %v2261
      %v2269 = vmul.bf16 %v2126, %v2261
      %v2270 = vmul.bf16 %v2127, %v2261
      %v2271 = vmul.bf16 %v2128, %v2261
      %v2272 = vmul.bf16 %v2129, %v2261
      %v2273 = vmul.bf16 %v2130, %v2261
      %v2274 = vmul.bf16 %v2131, %v2261
      %v2275 = vmul.bf16 %v2132, %v2261
      %v2276 = vmul.bf16 %v2133, %v2261
      %v2277 = vmul.bf16 %v2134, %v2261
      %v2278 = vadd.bf16 %v2238, %v2262
      %v2279 = vadd.bf16 %v2239, %v2263
      %v2280 = vadd.bf16 %v2240, %v2264
      %v2281 = vadd.bf16 %v2241, %v2265
      %v2282 = vadd.bf16 %v2242, %v2266
      %v2283 = vadd.bf16 %v2243, %v2267
      %v2284 = vadd.bf16 %v2244, %v2268
      %v2285 = vadd.bf16 %v2245, %v2269
      %v2286 = vadd.bf16 %v2246, %v2270
      %v2287 = vadd.bf16 %v2247, %v2271
      %v2288 = vadd.bf16 %v2248, %v2272
      %v2289 = vadd.bf16 %v2249, %v2273
      %v2290 = vadd.bf16 %v2250, %v2274
      %v2291 = vadd.bf16 %v2251, %v2275
      %v2292 = vadd.bf16 %v2252, %v2276
      %v2293 = vadd.bf16 %v2253, %v2277
      %v2294 = vshrl.u32 %v2036, 16
      %v2295 = vpack.i.b16 %v2294, %v2294
      %v2297 = vlaneseq
      %v2298 = vshrl.u32 %v2297, 7
      %v2299 = vsub.s32 3, %v2298
      %v2300 = vrot.slane %v2295, %v2299
      %v2301 = vmul.bf16 %v2120, %v2300
      %v2302 = vmul.bf16 %v2121, %v2300
      %v2303 = vmul.bf16 %v2122, %v2300
      %v2304 = vmul.bf16 %v2123, %v2300
      %v2305 = vmul.bf16 %v2124, %v2300
      %v2306 = vmul.bf16 %v2125, %v2300
      %v2307 = vmul.bf16 %v2126, %v2300
      %v2308 = vmul.bf16 %v2127, %v2300
      %v2309 = vmul.bf16 %v2128, %v2300
      %v2310 = vmul.bf16 %v2129, %v2300
      %v2311 = vmul.bf16 %v2130, %v2300
      %v2312 = vmul.bf16 %v2131, %v2300
      %v2313 = vmul.bf16 %v2132, %v2300
      %v2314 = vmul.bf16 %v2133, %v2300
      %v2315 = vmul.bf16 %v2134, %v2300
      %v2316 = vmul.bf16 %v2135, %v2300
      %v2317 = vadd.bf16 %v2278, %v2301
      %v2318 = vadd.bf16 %v2279, %v2302
      %v2319 = vadd.bf16 %v2280, %v2303
      %v2320 = vadd.bf16 %v2281, %v2304
      %v2321 = vadd.bf16 %v2282, %v2305
      %v2322 = vadd.bf16 %v2283, %v2306
      %v2323 = vadd.bf16 %v2284, %v2307
      %v2324 = vadd.bf16 %v2285, %v2308
      %v2325 = vadd.bf16 %v2286, %v2309
      %v2326 = vadd.bf16 %v2287, %v2310
      %v2327 = vadd.bf16 %v2288, %v2311
      %v2328 = vadd.bf16 %v2289, %v2312
      %v2329 = vadd.bf16 %v2290, %v2313
      %v2330 = vadd.bf16 %v2291, %v2314
      %v2331 = vadd.bf16 %v2292, %v2315
      %v2332 = vadd.bf16 %v2293, %v2316
      %v2333 = vld [vmem:[#allocation2 + $0xa] sm:$0xff]
      %v2334 = vld [vmem:[#allocation2 + $0x12] sm:$0xff]
      %v2335 = vld [vmem:[#allocation2 + $0x2a] sm:$0xff]
      %v2336 = vld [vmem:[#allocation2 + $0x32] sm:$0xff]
      %v2337 = vld [vmem:[#allocation2 + $0x4a] sm:$0xff]
      %v2338 = vld [vmem:[#allocation2 + $0x52] sm:$0xff]
      %v2339 = vld [vmem:[#allocation2 + $0x6a] sm:$0xff]
      %v2340 = vld [vmem:[#allocation2 + $0x72] sm:$0xff]
      %v2341 = vld [vmem:[#allocation2 + $0x8a] sm:$0xff]
      %v2342 = vld [vmem:[#allocation2 + $0x92] sm:$0xff]
      %v2343 = vld [vmem:[#allocation2 + $0xaa] sm:$0xff]
      %v2344 = vld [vmem:[#allocation2 + $0xb2] sm:$0xff]
      %v2345 = vld [vmem:[#allocation2 + $0xca] sm:$0xff]
      %v2346 = vld [vmem:[#allocation2 + $0xd2] sm:$0xff]
      %v2347 = vld [vmem:[#allocation2 + $0xea] sm:$0xff]
      %v2348 = vld [vmem:[#allocation2 + $0xf2] sm:$0xff]
      %v2349 = vld [vmem:[#allocation2 + $0x10a] sm:$0xff]
      %v2350 = vld [vmem:[#allocation2 + $0x112] sm:$0xff]
      %v2351 = vld [vmem:[#allocation2 + $0x12a] sm:$0xff]
      %v2352 = vld [vmem:[#allocation2 + $0x132] sm:$0xff]
      %v2353 = vld [vmem:[#allocation2 + $0x14a] sm:$0xff]
      %v2354 = vld [vmem:[#allocation2 + $0x152] sm:$0xff]
      %v2355 = vld [vmem:[#allocation2 + $0x16a] sm:$0xff]
      %v2356 = vld [vmem:[#allocation2 + $0x172] sm:$0xff]
      %v2357 = vld [vmem:[#allocation2 + $0x18a] sm:$0xff]
      %v2358 = vld [vmem:[#allocation2 + $0x192] sm:$0xff]
      %v2359 = vld [vmem:[#allocation2 + $0x1aa] sm:$0xff]
      %v2360 = vld [vmem:[#allocation2 + $0x1b2] sm:$0xff]
      %v2361 = vld [vmem:[#allocation2 + $0x1ca] sm:$0xff]
      %v2362 = vld [vmem:[#allocation2 + $0x1d2] sm:$0xff]
      %v2363 = vld [vmem:[#allocation2 + $0x1ea] sm:$0xff]
      %v2364 = vld [vmem:[#allocation2 + $0x1f2] sm:$0xff]
      %v2365 = vld [vmem:[#allocation2 + $0x20a] sm:$0xff]
      %v2366 = vld [vmem:[#allocation2 + $0x212] sm:$0xff]
      %v2367 = vld [vmem:[#allocation2 + $0x22a] sm:$0xff]
      %v2368 = vld [vmem:[#allocation2 + $0x232] sm:$0xff]
      %v2369 = vld [vmem:[#allocation2 + $0x24a] sm:$0xff]
      %v2370 = vld [vmem:[#allocation2 + $0x252] sm:$0xff]
      %v2371 = vld [vmem:[#allocation2 + $0x26a] sm:$0xff]
      %v2372 = vld [vmem:[#allocation2 + $0x272] sm:$0xff]
      %v2373 = vpack.c.bf16 %v2334, %v2333
      %v2374 = vpack.c.bf16 %v2336, %v2335
      %v2375 = vpack.c.bf16 %v2338, %v2337
      %v2376 = vpack.c.bf16 %v2340, %v2339
      %v2377 = vpack.c.bf16 %v2342, %v2341
      %v2378 = vpack.c.bf16 %v2344, %v2343
      %v2379 = vpack.c.bf16 %v2346, %v2345
      %v2380 = vpack.c.bf16 %v2348, %v2347
      %v2381 = vpack.c.bf16 %v2350, %v2349
      %v2382 = vpack.c.bf16 %v2352, %v2351
      %v2383 = vpack.c.bf16 %v2354, %v2353
      %v2384 = vpack.c.bf16 %v2356, %v2355
      %v2385 = vpack.c.bf16 %v2358, %v2357
      %v2386 = vpack.c.bf16 %v2360, %v2359
      %v2387 = vpack.c.bf16 %v2362, %v2361
      %v2388 = vpack.c.bf16 %v2364, %v2363
      %v2389 = vpack.c.bf16 %v2366, %v2365
      %v2390 = vpack.c.bf16 %v2368, %v2367
      %v2391 = vpack.c.bf16 %v2370, %v2369
      %v2392 = vpack.c.bf16 %v2372, %v2371
      %v2393 = vpack.i.b16 %v1399, %v1399
      %v2395 = vlaneseq
      %v2396 = vshrl.u32 %v2395, 7
      %v2397 = vsub.s32 2, %v2396
      %v2398 = vrot.slane %v2393, %v2397
      %v2399 = vmul.bf16 %v2373, %v2398
      %v2400 = vmul.bf16 %v2374, %v2398
      %v2401 = vmul.bf16 %v2375, %v2398
      %v2402 = vmul.bf16 %v2376, %v2398
      %v2403 = vmul.bf16 %v2377, %v2398
      %v2404 = vmul.bf16 %v2378, %v2398
      %v2405 = vmul.bf16 %v2379, %v2398
      %v2406 = vmul.bf16 %v2380, %v2398
      %v2407 = vmul.bf16 %v2381, %v2398
      %v2408 = vmul.bf16 %v2382, %v2398
      %v2409 = vmul.bf16 %v2383, %v2398
      %v2410 = vmul.bf16 %v2384, %v2398
      %v2411 = vmul.bf16 %v2385, %v2398
      %v2412 = vmul.bf16 %v2386, %v2398
      %v2413 = vmul.bf16 %v2387, %v2398
      %v2414 = vmul.bf16 %v2388, %v2398
      %v2415 = vadd.bf16 %v2317, %v2399
      %v2416 = vadd.bf16 %v2318, %v2400
      %v2417 = vadd.bf16 %v2319, %v2401
      %v2418 = vadd.bf16 %v2320, %v2402
      %v2419 = vadd.bf16 %v2321, %v2403
      %v2420 = vadd.bf16 %v2322, %v2404
      %v2421 = vadd.bf16 %v2323, %v2405
      %v2422 = vadd.bf16 %v2324, %v2406
      %v2423 = vadd.bf16 %v2325, %v2407
      %v2424 = vadd.bf16 %v2326, %v2408
      %v2425 = vadd.bf16 %v2327, %v2409
      %v2426 = vadd.bf16 %v2328, %v2410
      %v2427 = vadd.bf16 %v2329, %v2411
      %v2428 = vadd.bf16 %v2330, %v2412
      %v2429 = vadd.bf16 %v2331, %v2413
      %v2430 = vadd.bf16 %v2332, %v2414
      %v2431 = vshrl.u32 %v2175, 16
      %v2432 = vpack.i.b16 %v2431, %v2431
      %v2434 = vlaneseq
      %v2435 = vshrl.u32 %v2434, 7
      %v2436 = vsub.s32 0, %v2435
      %v2437 = vrot.slane %v2432, %v2436
      %v2438 = vmul.bf16 %v2374, %v2437
      %v2439 = vmul.bf16 %v2375, %v2437
      %v2440 = vmul.bf16 %v2376, %v2437
      %v2441 = vmul.bf16 %v2377, %v2437
      %v2442 = vmul.bf16 %v2378, %v2437
      %v2443 = vmul.bf16 %v2379, %v2437
      %v2444 = vmul.bf16 %v2380, %v2437
      %v2445 = vmul.bf16 %v2381, %v2437
      %v2446 = vmul.bf16 %v2382, %v2437
      %v2447 = vmul.bf16 %v2383, %v2437
      %v2448 = vmul.bf16 %v2384, %v2437
      %v2449 = vmul.bf16 %v2385, %v2437
      %v2450 = vmul.bf16 %v2386, %v2437
      %v2451 = vmul.bf16 %v2387, %v2437
      %v2452 = vmul.bf16 %v2388, %v2437
      %v2453 = vmul.bf16 %v2389, %v2437
      %v2454 = vadd.bf16 %v2415, %v2438
      %v2455 = vadd.bf16 %v2416, %v2439
      %v2456 = vadd.bf16 %v2417, %v2440
      %v2457 = vadd.bf16 %v2418, %v2441
      %v2458 = vadd.bf16 %v2419, %v2442
      %v2459 = vadd.bf16 %v2420, %v2443
      %v2460 = vadd.bf16 %v2421, %v2444
      %v2461 = vadd.bf16 %v2422, %v2445
      %v2462 = vadd.bf16 %v2423, %v2446
      %v2463 = vadd.bf16 %v2424, %v2447
      %v2464 = vadd.bf16 %v2425, %v2448
      %v2465 = vadd.bf16 %v2426, %v2449
      %v2466 = vadd.bf16 %v2427, %v2450
      %v2467 = vadd.bf16 %v2428, %v2451
      %v2468 = vadd.bf16 %v2429, %v2452
      %v2469 = vadd.bf16 %v2430, %v2453
      %v2470 = vpack.i.b16 %v1480, %v1480
      %v2472 = vlaneseq
      %v2473 = vshrl.u32 %v2472, 7
      %v2474 = vsub.s32 3, %v2473
      %v2475 = vrot.slane %v2470, %v2474
      %v2476 = vmul.bf16 %v2375, %v2475
      %v2477 = vmul.bf16 %v2376, %v2475
      %v2478 = vmul.bf16 %v2377, %v2475
      %v2479 = vmul.bf16 %v2378, %v2475
      %v2480 = vmul.bf16 %v2379, %v2475
      %v2481 = vmul.bf16 %v2380, %v2475
      %v2482 = vmul.bf16 %v2381, %v2475
      %v2483 = vmul.bf16 %v2382, %v2475
      %v2484 = vmul.bf16 %v2383, %v2475
      %v2485 = vmul.bf16 %v2384, %v2475
      %v2486 = vmul.bf16 %v2385, %v2475
      %v2487 = vmul.bf16 %v2386, %v2475
      %v2488 = vmul.bf16 %v2387, %v2475
      %v2489 = vmul.bf16 %v2388, %v2475
      %v2490 = vmul.bf16 %v2389, %v2475
      %v2491 = vmul.bf16 %v2390, %v2475
      %v2492 = vadd.bf16 %v2454, %v2476
      %v2493 = vadd.bf16 %v2455, %v2477
      %v2494 = vadd.bf16 %v2456, %v2478
      %v2495 = vadd.bf16 %v2457, %v2479
      %v2496 = vadd.bf16 %v2458, %v2480
      %v2497 = vadd.bf16 %v2459, %v2481
      %v2498 = vadd.bf16 %v2460, %v2482
      %v2499 = vadd.bf16 %v2461, %v2483
      %v2500 = vadd.bf16 %v2462, %v2484
      %v2501 = vadd.bf16 %v2463, %v2485
      %v2502 = vadd.bf16 %v2464, %v2486
      %v2503 = vadd.bf16 %v2465, %v2487
      %v2504 = vadd.bf16 %v2466, %v2488
      %v2505 = vadd.bf16 %v2467, %v2489
      %v2506 = vadd.bf16 %v2468, %v2490
      %v2507 = vadd.bf16 %v2469, %v2491
      %v2508 = vshrl.u32 %v2254, 16
      %v2509 = vpack.i.b16 %v2508, %v2508
      %v2511 = vlaneseq
      %v2512 = vshrl.u32 %v2511, 7
      %v2513 = vsub.s32 1, %v2512
      %v2514 = vrot.slane %v2509, %v2513
      %v2515 = vmul.bf16 %v2376, %v2514
      %v2516 = vmul.bf16 %v2377, %v2514
      %v2517 = vmul.bf16 %v2378, %v2514
      %v2518 = vmul.bf16 %v2379, %v2514
      %v2519 = vmul.bf16 %v2380, %v2514
      %v2520 = vmul.bf16 %v2381, %v2514
      %v2521 = vmul.bf16 %v2382, %v2514
      %v2522 = vmul.bf16 %v2383, %v2514
      %v2523 = vmul.bf16 %v2384, %v2514
      %v2524 = vmul.bf16 %v2385, %v2514
      %v2525 = vmul.bf16 %v2386, %v2514
      %v2526 = vmul.bf16 %v2387, %v2514
      %v2527 = vmul.bf16 %v2388, %v2514
      %v2528 = vmul.bf16 %v2389, %v2514
      %v2529 = vmul.bf16 %v2390, %v2514
      %v2530 = vmul.bf16 %v2391, %v2514
      %v2531 = vadd.bf16 %v2492, %v2515
      %v2532 = vadd.bf16 %v2493, %v2516
      %v2533 = vadd.bf16 %v2494, %v2517
      %v2534 = vadd.bf16 %v2495, %v2518
      %v2535 = vadd.bf16 %v2496, %v2519
      %v2536 = vadd.bf16 %v2497, %v2520
      %v2537 = vadd.bf16 %v2498, %v2521
      %v2538 = vadd.bf16 %v2499, %v2522
      %v2539 = vadd.bf16 %v2500, %v2523
      %v2540 = vadd.bf16 %v2501, %v2524
      %v2541 = vadd.bf16 %v2502, %v2525
      %v2542 = vadd.bf16 %v2503, %v2526
      %v2543 = vadd.bf16 %v2504, %v2527
      %v2544 = vadd.bf16 %v2505, %v2528
      %v2545 = vadd.bf16 %v2506, %v2529
      %v2546 = vadd.bf16 %v2507, %v2530
      %v2547 = vld [vmem:[%s3 + $0xc] sm:$0x1]
      %v2549 = vpack.i.b16 %v2547, %v2547
      %v2551 = vlaneseq
      %v2552 = vshrl.u32 %v2551, 7
      %v2553 = vsub.s32 0, %v2552
      %v2554 = vrot.slane %v2549, %v2553
      %v2555 = vmul.bf16 %v2377, %v2554
      %v2556 = vmul.bf16 %v2378, %v2554
      %v2557 = vmul.bf16 %v2379, %v2554
      %v2558 = vmul.bf16 %v2380, %v2554
      %v2559 = vmul.bf16 %v2381, %v2554
      %v2560 = vmul.bf16 %v2382, %v2554
      %v2561 = vmul.bf16 %v2383, %v2554
      %v2562 = vmul.bf16 %v2384, %v2554
      %v2563 = vmul.bf16 %v2385, %v2554
      %v2564 = vmul.bf16 %v2386, %v2554
      %v2565 = vmul.bf16 %v2387, %v2554
      %v2566 = vmul.bf16 %v2388, %v2554
      %v2567 = vmul.bf16 %v2389, %v2554
      %v2568 = vmul.bf16 %v2390, %v2554
      %v2569 = vmul.bf16 %v2391, %v2554
      %v2570 = vmul.bf16 %v2392, %v2554
      %v2571 = vadd.bf16 %v2531, %v2555
      %v2572 = vadd.bf16 %v2532, %v2556
      %v2573 = vadd.bf16 %v2533, %v2557
      %v2574 = vadd.bf16 %v2534, %v2558
      %v2575 = vadd.bf16 %v2535, %v2559
      %v2576 = vadd.bf16 %v2536, %v2560
      %v2577 = vadd.bf16 %v2537, %v2561
      %v2578 = vadd.bf16 %v2538, %v2562
      %v2579 = vadd.bf16 %v2539, %v2563
      %v2580 = vadd.bf16 %v2540, %v2564
      %v2581 = vadd.bf16 %v2541, %v2565
      %v2582 = vadd.bf16 %v2542, %v2566
      %v2583 = vadd.bf16 %v2543, %v2567
      %v2584 = vadd.bf16 %v2544, %v2568
      %v2585 = vadd.bf16 %v2545, %v2569
      %v2586 = vadd.bf16 %v2546, %v2570
      %v2587 = vunpack.c.l.bf16 %v2571
      %v2588 = vunpack.c.h.bf16 %v2571
      %v2589 = vunpack.c.l.bf16 %v2572
      %v2590 = vunpack.c.h.bf16 %v2572
      %v2591 = vunpack.c.l.bf16 %v2573
      %v2592 = vunpack.c.h.bf16 %v2573
      %v2593 = vunpack.c.l.bf16 %v2574
      %v2594 = vunpack.c.h.bf16 %v2574
      %v2595 = vunpack.c.l.bf16 %v2575
      %v2596 = vunpack.c.h.bf16 %v2575
      %v2597 = vunpack.c.l.bf16 %v2576
      %v2598 = vunpack.c.h.bf16 %v2576
      %v2599 = vunpack.c.l.bf16 %v2577
      %v2600 = vunpack.c.h.bf16 %v2577
      %v2601 = vunpack.c.l.bf16 %v2578
      %v2602 = vunpack.c.h.bf16 %v2578
      %v2603 = vunpack.c.l.bf16 %v2579
      %v2604 = vunpack.c.h.bf16 %v2579
      %v2605 = vunpack.c.l.bf16 %v2580
      %v2606 = vunpack.c.h.bf16 %v2580
      %v2607 = vunpack.c.l.bf16 %v2581
      %v2608 = vunpack.c.h.bf16 %v2581
      %v2609 = vunpack.c.l.bf16 %v2582
      %v2610 = vunpack.c.h.bf16 %v2582
      %v2611 = vunpack.c.l.bf16 %v2583
      %v2612 = vunpack.c.h.bf16 %v2583
      %v2613 = vunpack.c.l.bf16 %v2584
      %v2614 = vunpack.c.h.bf16 %v2584
      %v2615 = vunpack.c.l.bf16 %v2585
      %v2616 = vunpack.c.h.bf16 %v2585
      %v2617 = vunpack.c.l.bf16 %v2586
      %v2618 = vunpack.c.h.bf16 %v2586
      %s2619 = scalar_lea.vmem [#allocation3], 432
      %2620 = vst [vmem:[%s2619 + $0x10] sm:$0xff] %v2587
      %2621 = vst [vmem:[%s2619 + $0x18] sm:$0xff] %v2588
      %2622 = vst [vmem:[%s2619 + $0x40] sm:$0xff] %v2589
      %2623 = vst [vmem:[%s2619 + $0x48] sm:$0xff] %v2590
      %2624 = vst [vmem:[%s2619 + $0x70] sm:$0xff] %v2591
      %2625 = vst [vmem:[%s2619 + $0x78] sm:$0xff] %v2592
      %2626 = vst [vmem:[%s2619 + $0xa0] sm:$0xff] %v2593
      %2627 = vst [vmem:[%s2619 + $0xa8] sm:$0xff] %v2594
      %2628 = vst [vmem:[%s2619 + $0xd0] sm:$0xff] %v2595
      %2629 = vst [vmem:[%s2619 + $0xd8] sm:$0xff] %v2596
      %2630 = vst [vmem:[%s2619 + $0x100] sm:$0xff] %v2597
      %2631 = vst [vmem:[%s2619 + $0x108] sm:$0xff] %v2598
      %2632 = vst [vmem:[%s2619 + $0x130] sm:$0xff] %v2599
      %2633 = vst [vmem:[%s2619 + $0x138] sm:$0xff] %v2600
      %2634 = vst [vmem:[%s2619 + $0x160] sm:$0xff] %v2601
      %2635 = vst [vmem:[%s2619 + $0x168] sm:$0xff] %v2602
      %2636 = vst [vmem:[%s2619 + $0x190] sm:$0xff] %v2603
      %2637 = vst [vmem:[%s2619 + $0x198] sm:$0xff] %v2604
      %2638 = vst [vmem:[%s2619 + $0x1c0] sm:$0xff] %v2605
      %2639 = vst [vmem:[%s2619 + $0x1c8] sm:$0xff] %v2606
      %2640 = vst [vmem:[%s2619 + $0x1f0] sm:$0xff] %v2607
      %2641 = vst [vmem:[%s2619 + $0x1f8] sm:$0xff] %v2608
      %2642 = vst [vmem:[%s2619 + $0x220] sm:$0xff] %v2609
      %2643 = vst [vmem:[%s2619 + $0x228] sm:$0xff] %v2610
      %2644 = vst [vmem:[%s2619 + $0x250] sm:$0xff] %v2611
      %2645 = vst [vmem:[%s2619 + $0x258] sm:$0xff] %v2612
      %2646 = vst [vmem:[%s2619 + $0x280] sm:$0xff] %v2613
      %2647 = vst [vmem:[%s2619 + $0x288] sm:$0xff] %v2614
      %2648 = vst [vmem:[%s2619 + $0x2b0] sm:$0xff] %v2615
      %2649 = vst [vmem:[%s2619 + $0x2b8] sm:$0xff] %v2616
      %2650 = vst [vmem:[%s2619 + $0x2e0] sm:$0xff] %v2617
      %2651 = vst [vmem:[%s2619 + $0x2e8] sm:$0xff] %v2618
      %v2652 = vld [vmem:[%s6] sm:$0x1]
      %v2654 = vpack.i.b16 %v2652, %v2652
      %v2656 = vlaneseq
      %v2657 = vshrl.u32 %v2656, 7
      %v2658 = vsub.s32 0, %v2657
      %v2659 = vrot.slane %v2654, %v2658
      %v2660 = vld [vmem:[#allocation3 + $0x7] sm:$0xff]
      %v2661 = vld [vmem:[#allocation3 + $0xf] sm:$0xff]
      %v2662 = vld [vmem:[#allocation3 + $0x37] sm:$0xff]
      %v2663 = vld [vmem:[#allocation3 + $0x3f] sm:$0xff]
      %v2664 = vld [vmem:[#allocation3 + $0x67] sm:$0xff]
      %v2665 = vld [vmem:[#allocation3 + $0x6f] sm:$0xff]
      %v2666 = vld [vmem:[#allocation3 + $0x97] sm:$0xff]
      %v2667 = vld [vmem:[#allocation3 + $0x9f] sm:$0xff]
      %v2668 = vld [vmem:[#allocation3 + $0xc7] sm:$0xff]
      %v2669 = vld [vmem:[#allocation3 + $0xcf] sm:$0xff]
      %v2670 = vld [vmem:[#allocation3 + $0xf7] sm:$0xff]
      %v2671 = vld [vmem:[#allocation3 + $0xff] sm:$0xff]
      %v2672 = vld [vmem:[#allocation3 + $0x127] sm:$0xff]
      %v2673 = vld [vmem:[#allocation3 + $0x12f] sm:$0xff]
      %v2674 = vld [vmem:[#allocation3 + $0x157] sm:$0xff]
      %v2675 = vld [vmem:[#allocation3 + $0x15f] sm:$0xff]
      %v2676 = vld [vmem:[#allocation3 + $0x187] sm:$0xff]
      %v2677 = vld [vmem:[#allocation3 + $0x18f] sm:$0xff]
      %v2678 = vld [vmem:[#allocation3 + $0x1b7] sm:$0xff]
      %v2679 = vld [vmem:[#allocation3 + $0x1bf] sm:$0xff]
      %v2680 = vld [vmem:[#allocation3 + $0x1e7] sm:$0xff]
      %v2681 = vld [vmem:[#allocation3 + $0x1ef] sm:$0xff]
      %v2682 = vld [vmem:[#allocation3 + $0x217] sm:$0xff]
      %v2683 = vld [vmem:[#allocation3 + $0x21f] sm:$0xff]
      %v2684 = vld [vmem:[#allocation3 + $0x247] sm:$0xff]
      %v2685 = vld [vmem:[#allocation3 + $0x24f] sm:$0xff]
      %v2686 = vld [vmem:[#allocation3 + $0x277] sm:$0xff]
      %v2687 = vld [vmem:[#allocation3 + $0x27f] sm:$0xff]
      %v2688 = vld [vmem:[#allocation3 + $0x2a7] sm:$0xff]
      %v2689 = vld [vmem:[#allocation3 + $0x2af] sm:$0xff]
      %v2690 = vld [vmem:[#allocation3 + $0x2d7] sm:$0xff]
      %v2691 = vld [vmem:[#allocation3 + $0x2df] sm:$0xff]
      %v2692 = vld [vmem:[#allocation3 + $0x307] sm:$0xff]
      %v2693 = vld [vmem:[#allocation3 + $0x30f] sm:$0xff]
      %v2694 = vld [vmem:[#allocation3 + $0x337] sm:$0xff]
      %v2695 = vld [vmem:[#allocation3 + $0x33f] sm:$0xff]
      %v2696 = vld [vmem:[#allocation3 + $0x367] sm:$0xff]
      %v2697 = vld [vmem:[#allocation3 + $0x36f] sm:$0xff]
      %v2698 = vld [vmem:[#allocation3 + $0x397] sm:$0xff]
      %v2699 = vld [vmem:[#allocation3 + $0x39f] sm:$0xff]
      %v2700 = vld [vmem:[#allocation3 + $0x3c7] sm:$0xff]
      %v2701 = vld [vmem:[#allocation3 + $0x3cf] sm:$0xff]
      %v2702 = vld [vmem:[#allocation3 + $0x3f7] sm:$0xff]
      %v2703 = vld [vmem:[#allocation3 + $0x3ff] sm:$0xff]
      %v2704 = vld [vmem:[#allocation3 + $0x427] sm:$0xff]
      %v2705 = vld [vmem:[#allocation3 + $0x42f] sm:$0xff]
      %v2706 = vld [vmem:[#allocation3 + $0x457] sm:$0xff]
      %v2707 = vld [vmem:[#allocation3 + $0x45f] sm:$0xff]
      %v2708 = vld [vmem:[#allocation3 + $0x487] sm:$0xff]
      %v2709 = vld [vmem:[#allocation3 + $0x48f] sm:$0xff]
      %v2710 = vld [vmem:[#allocation3 + $0x4b7] sm:$0xff]
      %v2711 = vld [vmem:[#allocation3 + $0x4bf] sm:$0xff]
      %v2712 = vld [vmem:[#allocation3 + $0x4e7] sm:$0xff]
      %v2713 = vld [vmem:[#allocation3 + $0x4ef] sm:$0xff]
      %v2714 = vld [vmem:[#allocation3 + $0x517] sm:$0xff]
      %v2715 = vld [vmem:[#allocation3 + $0x51f] sm:$0xff]
      %v2716 = vld [vmem:[#allocation3 + $0x547] sm:$0xff]
      %v2717 = vld [vmem:[#allocation3 + $0x54f] sm:$0xff]
      %v2718 = vld [vmem:[#allocation3 + $0x577] sm:$0xff]
      %v2719 = vld [vmem:[#allocation3 + $0x57f] sm:$0xff]
      %v2720 = vld [vmem:[#allocation3 + $0x5a7] sm:$0xff]
      %v2721 = vld [vmem:[#allocation3 + $0x5af] sm:$0xff]
      %v2722 = vld [vmem:[#allocation3 + $0x5d7] sm:$0xff]
      %v2723 = vld [vmem:[#allocation3 + $0x5df] sm:$0xff]
      %v2724 = vld [vmem:[#allocation3 + $0x607] sm:$0xff]
      %v2725 = vld [vmem:[#allocation3 + $0x60f] sm:$0xff]
      %v2726 = vld [vmem:[#allocation3 + $0x637] sm:$0xff]
      %v2727 = vld [vmem:[#allocation3 + $0x63f] sm:$0xff]
      %v2728 = vpack.c.bf16 %v2661, %v2660
      %v2729 = vpack.c.bf16 %v2663, %v2662
      %v2730 = vpack.c.bf16 %v2665, %v2664
      %v2731 = vpack.c.bf16 %v2667, %v2666
      %v2732 = vpack.c.bf16 %v2669, %v2668
      %v2733 = vpack.c.bf16 %v2671, %v2670
      %v2734 = vpack.c.bf16 %v2673, %v2672
      %v2735 = vpack.c.bf16 %v2675, %v2674
      %v2736 = vpack.c.bf16 %v2677, %v2676
      %v2737 = vpack.c.bf16 %v2679, %v2678
      %v2738 = vpack.c.bf16 %v2681, %v2680
      %v2739 = vpack.c.bf16 %v2683, %v2682
      %v2740 = vpack.c.bf16 %v2685, %v2684
      %v2741 = vpack.c.bf16 %v2687, %v2686
      %v2742 = vpack.c.bf16 %v2689, %v2688
      %v2743 = vpack.c.bf16 %v2691, %v2690
      %v2744 = vpack.c.bf16 %v2693, %v2692
      %v2745 = vpack.c.bf16 %v2695, %v2694
      %v2746 = vpack.c.bf16 %v2697, %v2696
      %v2747 = vpack.c.bf16 %v2699, %v2698
      %v2748 = vpack.c.bf16 %v2701, %v2700
      %v2749 = vpack.c.bf16 %v2703, %v2702
      %v2750 = vpack.c.bf16 %v2705, %v2704
      %v2751 = vpack.c.bf16 %v2707, %v2706
      %v2752 = vpack.c.bf16 %v2709, %v2708
      %v2753 = vpack.c.bf16 %v2711, %v2710
      %v2754 = vpack.c.bf16 %v2713, %v2712
      %v2755 = vpack.c.bf16 %v2715, %v2714
      %v2756 = vpack.c.bf16 %v2717, %v2716
      %v2757 = vpack.c.bf16 %v2719, %v2718
      %v2758 = vpack.c.bf16 %v2721, %v2720
      %v2759 = vpack.c.bf16 %v2723, %v2722
      %v2760 = vpack.c.bf16 %v2725, %v2724
      %v2761 = vpack.c.bf16 %v2727, %v2726
      %v2762 = vld [vmem:[%s5] sm:$0x1]
      %v2764 = vpack.i.b16 %v2762, %v2762
      %v2766 = vlaneseq
      %v2767 = vshrl.u32 %v2766, 7
      %v2768 = vsub.s32 0, %v2767
      %v2769 = vrot.slane %v2764, %v2768
      %v2770 = vmul.bf16 %v2728, %v2769
      %v2771 = vmul.bf16 %v2729, %v2769
      %v2772 = vmul.bf16 %v2730, %v2769
      %v2773 = vmul.bf16 %v2731, %v2769
      %v2774 = vmul.bf16 %v2732, %v2769
      %v2775 = vmul.bf16 %v2733, %v2769
      %v2776 = vmul.bf16 %v2734, %v2769
      %v2777 = vmul.bf16 %v2735, %v2769
      %v2778 = vmul.bf16 %v2736, %v2769
      %v2779 = vmul.bf16 %v2737, %v2769
      %v2780 = vmul.bf16 %v2738, %v2769
      %v2781 = vmul.bf16 %v2739, %v2769
      %v2782 = vmul.bf16 %v2740, %v2769
      %v2783 = vmul.bf16 %v2741, %v2769
      %v2784 = vmul.bf16 %v2742, %v2769
      %v2785 = vmul.bf16 %v2743, %v2769
      %v2786 = vadd.bf16 %v2659, %v2770
      %v2787 = vadd.bf16 %v2659, %v2771
      %v2788 = vadd.bf16 %v2659, %v2772
      %v2789 = vadd.bf16 %v2659, %v2773
      %v2790 = vadd.bf16 %v2659, %v2774
      %v2791 = vadd.bf16 %v2659, %v2775
      %v2792 = vadd.bf16 %v2659, %v2776
      %v2793 = vadd.bf16 %v2659, %v2777
      %v2794 = vadd.bf16 %v2659, %v2778
      %v2795 = vadd.bf16 %v2659, %v2779
      %v2796 = vadd.bf16 %v2659, %v2780
      %v2797 = vadd.bf16 %v2659, %v2781
      %v2798 = vadd.bf16 %v2659, %v2782
      %v2799 = vadd.bf16 %v2659, %v2783
      %v2800 = vadd.bf16 %v2659, %v2784
      %v2801 = vadd.bf16 %v2659, %v2785
      %v2802 = vld [vmem:[%s5] sm:$0x8]
      %v2804 = vshrl.u32 %v2802, 16
      %v2805 = vpack.i.b16 %v2804, %v2804
      %v2807 = vlaneseq
      %v2808 = vshrl.u32 %v2807, 7
      %v2809 = vsub.s32 3, %v2808
      %v2810 = vrot.slane %v2805, %v2809
      %v2811 = vmul.bf16 %v2731, %v2810
      %v2812 = vmul.bf16 %v2732, %v2810
      %v2813 = vmul.bf16 %v2733, %v2810
      %v2814 = vmul.bf16 %v2734, %v2810
      %v2815 = vmul.bf16 %v2735, %v2810
      %v2816 = vmul.bf16 %v2736, %v2810
      %v2817 = vmul.bf16 %v2737, %v2810
      %v2818 = vmul.bf16 %v2738, %v2810
      %v2819 = vmul.bf16 %v2739, %v2810
      %v2820 = vmul.bf16 %v2740, %v2810
      %v2821 = vmul.bf16 %v2741, %v2810
      %v2822 = vmul.bf16 %v2742, %v2810
      %v2823 = vmul.bf16 %v2743, %v2810
      %v2824 = vmul.bf16 %v2744, %v2810
      %v2825 = vmul.bf16 %v2745, %v2810
      %v2826 = vmul.bf16 %v2746, %v2810
      %v2827 = vadd.bf16 %v2786, %v2811
      %v2828 = vadd.bf16 %v2787, %v2812
      %v2829 = vadd.bf16 %v2788, %v2813
      %v2830 = vadd.bf16 %v2789, %v2814
      %v2831 = vadd.bf16 %v2790, %v2815
      %v2832 = vadd.bf16 %v2791, %v2816
      %v2833 = vadd.bf16 %v2792, %v2817
      %v2834 = vadd.bf16 %v2793, %v2818
      %v2835 = vadd.bf16 %v2794, %v2819
      %v2836 = vadd.bf16 %v2795, %v2820
      %v2837 = vadd.bf16 %v2796, %v2821
      %v2838 = vadd.bf16 %v2797, %v2822
      %v2839 = vadd.bf16 %v2798, %v2823
      %v2840 = vadd.bf16 %v2799, %v2824
      %v2841 = vadd.bf16 %v2800, %v2825
      %v2842 = vadd.bf16 %v2801, %v2826
      %v2843 = vld [vmem:[%s5 + $0x4] sm:$0x8]
      %v2845 = vpack.i.b16 %v2843, %v2843
      %v2847 = vlaneseq
      %v2848 = vshrl.u32 %v2847, 7
      %v2849 = vsub.s32 3, %v2848
      %v2850 = vrot.slane %v2845, %v2849
      %v2851 = vmul.bf16 %v2734, %v2850
      %v2852 = vmul.bf16 %v2735, %v2850
      %v2853 = vmul.bf16 %v2736, %v2850
      %v2854 = vmul.bf16 %v2737, %v2850
      %v2855 = vmul.bf16 %v2738, %v2850
      %v2856 = vmul.bf16 %v2739, %v2850
      %v2857 = vmul.bf16 %v2740, %v2850
      %v2858 = vmul.bf16 %v2741, %v2850
      %v2859 = vmul.bf16 %v2742, %v2850
      %v2860 = vmul.bf16 %v2743, %v2850
      %v2861 = vmul.bf16 %v2744, %v2850
      %v2862 = vmul.bf16 %v2745, %v2850
      %v2863 = vmul.bf16 %v2746, %v2850
      %v2864 = vmul.bf16 %v2747, %v2850
      %v2865 = vmul.bf16 %v2748, %v2850
      %v2866 = vmul.bf16 %v2749, %v2850
      %v2867 = vadd.bf16 %v2827, %v2851
      %v2868 = vadd.bf16 %v2828, %v2852
      %v2869 = vadd.bf16 %v2829, %v2853
      %v2870 = vadd.bf16 %v2830, %v2854
      %v2871 = vadd.bf16 %v2831, %v2855
      %v2872 = vadd.bf16 %v2832, %v2856
      %v2873 = vadd.bf16 %v2833, %v2857
      %v2874 = vadd.bf16 %v2834, %v2858
      %v2875 = vadd.bf16 %v2835, %v2859
      %v2876 = vadd.bf16 %v2836, %v2860
      %v2877 = vadd.bf16 %v2837, %v2861
      %v2878 = vadd.bf16 %v2838, %v2862
      %v2879 = vadd.bf16 %v2839, %v2863
      %v2880 = vadd.bf16 %v2840, %v2864
      %v2881 = vadd.bf16 %v2841, %v2865
      %v2882 = vadd.bf16 %v2842, %v2866
      %v2883 = vld [vmem:[%s5 + $0x8] sm:$0x4]
      %v2885 = vshrl.u32 %v2883, 16
      %v2886 = vpack.i.b16 %v2885, %v2885
      %v2888 = vlaneseq
      %v2889 = vshrl.u32 %v2888, 7
      %v2890 = vsub.s32 2, %v2889
      %v2891 = vrot.slane %v2886, %v2890
      %v2892 = vmul.bf16 %v2737, %v2891
      %v2893 = vmul.bf16 %v2738, %v2891
      %v2894 = vmul.bf16 %v2739, %v2891
      %v2895 = vmul.bf16 %v2740, %v2891
      %v2896 = vmul.bf16 %v2741, %v2891
      %v2897 = vmul.bf16 %v2742, %v2891
      %v2898 = vmul.bf16 %v2743, %v2891
      %v2899 = vmul.bf16 %v2744, %v2891
      %v2900 = vmul.bf16 %v2745, %v2891
      %v2901 = vmul.bf16 %v2746, %v2891
      %v2902 = vmul.bf16 %v2747, %v2891
      %v2903 = vmul.bf16 %v2748, %v2891
      %v2904 = vmul.bf16 %v2749, %v2891
      %v2905 = vmul.bf16 %v2750, %v2891
      %v2906 = vmul.bf16 %v2751, %v2891
      %v2907 = vmul.bf16 %v2752, %v2891
      %v2908 = vadd.bf16 %v2867, %v2892
      %v2909 = vadd.bf16 %v2868, %v2893
      %v2910 = vadd.bf16 %v2869, %v2894
      %v2911 = vadd.bf16 %v2870, %v2895
      %v2912 = vadd.bf16 %v2871, %v2896
      %v2913 = vadd.bf16 %v2872, %v2897
      %v2914 = vadd.bf16 %v2873, %v2898
      %v2915 = vadd.bf16 %v2874, %v2899
      %v2916 = vadd.bf16 %v2875, %v2900
      %v2917 = vadd.bf16 %v2876, %v2901
      %v2918 = vadd.bf16 %v2877, %v2902
      %v2919 = vadd.bf16 %v2878, %v2903
      %v2920 = vadd.bf16 %v2879, %v2904
      %v2921 = vadd.bf16 %v2880, %v2905
      %v2922 = vadd.bf16 %v2881, %v2906
      %v2923 = vadd.bf16 %v2882, %v2907
      %v2924 = vld [vmem:[%s5 + $0xc] sm:$0x4]
      %v2926 = vpack.i.b16 %v2924, %v2924
      %v2928 = vlaneseq
      %v2929 = vshrl.u32 %v2928, 7
      %v2930 = vsub.s32 2, %v2929
      %v2931 = vrot.slane %v2926, %v2930
      %v2932 = vmul.bf16 %v2740, %v2931
      %v2933 = vmul.bf16 %v2741, %v2931
      %v2934 = vmul.bf16 %v2742, %v2931
      %v2935 = vmul.bf16 %v2743, %v2931
      %v2936 = vmul.bf16 %v2744, %v2931
      %v2937 = vmul.bf16 %v2745, %v2931
      %v2938 = vmul.bf16 %v2746, %v2931
      %v2939 = vmul.bf16 %v2747, %v2931
      %v2940 = vmul.bf16 %v2748, %v2931
      %v2941 = vmul.bf16 %v2749, %v2931
      %v2942 = vmul.bf16 %v2750, %v2931
      %v2943 = vmul.bf16 %v2751, %v2931
      %v2944 = vmul.bf16 %v2752, %v2931
      %v2945 = vmul.bf16 %v2753, %v2931
      %v2946 = vmul.bf16 %v2754, %v2931
      %v2947 = vmul.bf16 %v2755, %v2931
      %v2948 = vadd.bf16 %v2908, %v2932
      %v2949 = vadd.bf16 %v2909, %v2933
      %v2950 = vadd.bf16 %v2910, %v2934
      %v2951 = vadd.bf16 %v2911, %v2935
      %v2952 = vadd.bf16 %v2912, %v2936
      %v2953 = vadd.bf16 %v2913, %v2937
      %v2954 = vadd.bf16 %v2914, %v2938
      %v2955 = vadd.bf16 %v2915, %v2939
      %v2956 = vadd.bf16 %v2916, %v2940
      %v2957 = vadd.bf16 %v2917, %v2941
      %v2958 = vadd.bf16 %v2918, %v2942
      %v2959 = vadd.bf16 %v2919, %v2943
      %v2960 = vadd.bf16 %v2920, %v2944
      %v2961 = vadd.bf16 %v2921, %v2945
      %v2962 = vadd.bf16 %v2922, %v2946
      %v2963 = vadd.bf16 %v2923, %v2947
      %v2964 = vld [vmem:[%s5 + $0x10] sm:$0x2]
      %v2966 = vshrl.u32 %v2964, 16
      %v2967 = vpack.i.b16 %v2966, %v2966
      %v2969 = vlaneseq
      %v2970 = vshrl.u32 %v2969, 7
      %v2971 = vsub.s32 1, %v2970
      %v2972 = vrot.slane %v2967, %v2971
      %v2973 = vmul.bf16 %v2743, %v2972
      %v2974 = vmul.bf16 %v2744, %v2972
      %v2975 = vmul.bf16 %v2745, %v2972
      %v2976 = vmul.bf16 %v2746, %v2972
      %v2977 = vmul.bf16 %v2747, %v2972
      %v2978 = vmul.bf16 %v2748, %v2972
      %v2979 = vmul.bf16 %v2749, %v2972
      %v2980 = vmul.bf16 %v2750, %v2972
      %v2981 = vmul.bf16 %v2751, %v2972
      %v2982 = vmul.bf16 %v2752, %v2972
      %v2983 = vmul.bf16 %v2753, %v2972
      %v2984 = vmul.bf16 %v2754, %v2972
      %v2985 = vmul.bf16 %v2755, %v2972
      %v2986 = vmul.bf16 %v2756, %v2972
      %v2987 = vmul.bf16 %v2757, %v2972
      %v2988 = vmul.bf16 %v2758, %v2972
      %v2989 = vadd.bf16 %v2948, %v2973
      %v2990 = vadd.bf16 %v2949, %v2974
      %v2991 = vadd.bf16 %v2950, %v2975
      %v2992 = vadd.bf16 %v2951, %v2976
      %v2993 = vadd.bf16 %v2952, %v2977
      %v2994 = vadd.bf16 %v2953, %v2978
      %v2995 = vadd.bf16 %v2954, %v2979
      %v2996 = vadd.bf16 %v2955, %v2980
      %v2997 = vadd.bf16 %v2956, %v2981
      %v2998 = vadd.bf16 %v2957, %v2982
      %v2999 = vadd.bf16 %v2958, %v2983
      %v3000 = vadd.bf16 %v2959, %v2984
      %v3001 = vadd.bf16 %v2960, %v2985
      %v3002 = vadd.bf16 %v2961, %v2986
      %v3003 = vadd.bf16 %v2962, %v2987
      %v3004 = vadd.bf16 %v2963, %v2988
      %v3005 = vld [vmem:[%s5 + $0x14] sm:$0x2]
      %v3007 = vpack.i.b16 %v3005, %v3005
      %v3009 = vlaneseq
      %v3010 = vshrl.u32 %v3009, 7
      %v3011 = vsub.s32 1, %v3010
      %v3012 = vrot.slane %v3007, %v3011
      %v3013 = vmul.bf16 %v2746, %v3012
      %v3014 = vmul.bf16 %v2747, %v3012
      %v3015 = vmul.bf16 %v2748, %v3012
      %v3016 = vmul.bf16 %v2749, %v3012
      %v3017 = vmul.bf16 %v2750, %v3012
      %v3018 = vmul.bf16 %v2751, %v3012
      %v3019 = vmul.bf16 %v2752, %v3012
      %v3020 = vmul.bf16 %v2753, %v3012
      %v3021 = vmul.bf16 %v2754, %v3012
      %v3022 = vmul.bf16 %v2755, %v3012
      %v3023 = vmul.bf16 %v2756, %v3012
      %v3024 = vmul.bf16 %v2757, %v3012
      %v3025 = vmul.bf16 %v2758, %v3012
      %v3026 = vmul.bf16 %v2759, %v3012
      %v3027 = vmul.bf16 %v2760, %v3012
      %v3028 = vmul.bf16 %v2761, %v3012
      %v3029 = vadd.bf16 %v2989, %v3013
      %v3030 = vadd.bf16 %v2990, %v3014
      %v3031 = vadd.bf16 %v2991, %v3015
      %v3032 = vadd.bf16 %v2992, %v3016
      %v3033 = vadd.bf16 %v2993, %v3017
      %v3034 = vadd.bf16 %v2994, %v3018
      %v3035 = vadd.bf16 %v2995, %v3019
      %v3036 = vadd.bf16 %v2996, %v3020
      %v3037 = vadd.bf16 %v2997, %v3021
      %v3038 = vadd.bf16 %v2998, %v3022
      %v3039 = vadd.bf16 %v2999, %v3023
      %v3040 = vadd.bf16 %v3000, %v3024
      %v3041 = vadd.bf16 %v3001, %v3025
      %v3042 = vadd.bf16 %v3002, %v3026
      %v3043 = vadd.bf16 %v3003, %v3027
      %v3044 = vadd.bf16 %v3004, %v3028
      %v3045 = vld [vmem:[#allocation3 + $0xa] sm:$0xff]
      %v3046 = vld [vmem:[#allocation3 + $0x12] sm:$0xff]
      %v3047 = vld [vmem:[#allocation3 + $0x3a] sm:$0xff]
      %v3048 = vld [vmem:[#allocation3 + $0x42] sm:$0xff]
      %v3049 = vld [vmem:[#allocation3 + $0x6a] sm:$0xff]
      %v3050 = vld [vmem:[#allocation3 + $0x72] sm:$0xff]
      %v3051 = vld [vmem:[#allocation3 + $0x9a] sm:$0xff]
      %v3052 = vld [vmem:[#allocation3 + $0xa2] sm:$0xff]
      %v3053 = vld [vmem:[#allocation3 + $0xca] sm:$0xff]
      %v3054 = vld [vmem:[#allocation3 + $0xd2] sm:$0xff]
      %v3055 = vld [vmem:[#allocation3 + $0xfa] sm:$0xff]
      %v3056 = vld [vmem:[#allocation3 + $0x102] sm:$0xff]
      %v3057 = vld [vmem:[#allocation3 + $0x12a] sm:$0xff]
      %v3058 = vld [vmem:[#allocation3 + $0x132] sm:$0xff]
      %v3059 = vld [vmem:[#allocation3 + $0x15a] sm:$0xff]
      %v3060 = vld [vmem:[#allocation3 + $0x162] sm:$0xff]
      %v3061 = vld [vmem:[#allocation3 + $0x18a] sm:$0xff]
      %v3062 = vld [vmem:[#allocation3 + $0x192] sm:$0xff]
      %v3063 = vld [vmem:[#allocation3 + $0x1ba] sm:$0xff]
      %v3064 = vld [vmem:[#allocation3 + $0x1c2] sm:$0xff]
      %v3065 = vld [vmem:[#allocation3 + $0x1ea] sm:$0xff]
      %v3066 = vld [vmem:[#allocation3 + $0x1f2] sm:$0xff]
      %v3067 = vld [vmem:[#allocation3 + $0x21a] sm:$0xff]
      %v3068 = vld [vmem:[#allocation3 + $0x222] sm:$0xff]
      %v3069 = vld [vmem:[#allocation3 + $0x24a] sm:$0xff]
      %v3070 = vld [vmem:[#allocation3 + $0x252] sm:$0xff]
      %v3071 = vld [vmem:[#allocation3 + $0x27a] sm:$0xff]
      %v3072 = vld [vmem:[#allocation3 + $0x282] sm:$0xff]
      %v3073 = vld [vmem:[#allocation3 + $0x2aa] sm:$0xff]
      %v3074 = vld [vmem:[#allocation3 + $0x2b2] sm:$0xff]
      %v3075 = vld [vmem:[#allocation3 + $0x2da] sm:$0xff]
      %v3076 = vld [vmem:[#allocation3 + $0x2e2] sm:$0xff]
      %v3077 = vld [vmem:[#allocation3 + $0x30a] sm:$0xff]
      %v3078 = vld [vmem:[#allocation3 + $0x312] sm:$0xff]
      %v3079 = vld [vmem:[#allocation3 + $0x33a] sm:$0xff]
      %v3080 = vld [vmem:[#allocation3 + $0x342] sm:$0xff]
      %v3081 = vld [vmem:[#allocation3 + $0x36a] sm:$0xff]
      %v3082 = vld [vmem:[#allocation3 + $0x372] sm:$0xff]
      %v3083 = vld [vmem:[#allocation3 + $0x39a] sm:$0xff]
      %v3084 = vld [vmem:[#allocation3 + $0x3a2] sm:$0xff]
      %v3085 = vld [vmem:[#allocation3 + $0x3ca] sm:$0xff]
      %v3086 = vld [vmem:[#allocation3 + $0x3d2] sm:$0xff]
      %v3087 = vld [vmem:[#allocation3 + $0x3fa] sm:$0xff]
      %v3088 = vld [vmem:[#allocation3 + $0x402] sm:$0xff]
      %v3089 = vld [vmem:[#allocation3 + $0x42a] sm:$0xff]
      %v3090 = vld [vmem:[#allocation3 + $0x432] sm:$0xff]
      %v3091 = vld [vmem:[#allocation3 + $0x45a] sm:$0xff]
      %v3092 = vld [vmem:[#allocation3 + $0x462] sm:$0xff]
      %v3093 = vld [vmem:[#allocation3 + $0x48a] sm:$0xff]
      %v3094 = vld [vmem:[#allocation3 + $0x492] sm:$0xff]
      %v3095 = vld [vmem:[#allocation3 + $0x4ba] sm:$0xff]
      %v3096 = vld [vmem:[#allocation3 + $0x4c2] sm:$0xff]
      %v3097 = vld [vmem:[#allocation3 + $0x4ea] sm:$0xff]
      %v3098 = vld [vmem:[#allocation3 + $0x4f2] sm:$0xff]
      %v3099 = vld [vmem:[#allocation3 + $0x51a] sm:$0xff]
      %v3100 = vld [vmem:[#allocation3 + $0x522] sm:$0xff]
      %v3101 = vld [vmem:[#allocation3 + $0x54a] sm:$0xff]
      %v3102 = vld [vmem:[#allocation3 + $0x552] sm:$0xff]
      %v3103 = vld [vmem:[#allocation3 + $0x57a] sm:$0xff]
      %v3104 = vld [vmem:[#allocation3 + $0x582] sm:$0xff]
      %v3105 = vld [vmem:[#allocation3 + $0x5aa] sm:$0xff]
      %v3106 = vld [vmem:[#allocation3 + $0x5b2] sm:$0xff]
      %v3107 = vld [vmem:[#allocation3 + $0x5da] sm:$0xff]
      %v3108 = vld [vmem:[#allocation3 + $0x5e2] sm:$0xff]
      %v3109 = vld [vmem:[#allocation3 + $0x60a] sm:$0xff]
      %v3110 = vld [vmem:[#allocation3 + $0x612] sm:$0xff]
      %v3111 = vld [vmem:[#allocation3 + $0x63a] sm:$0xff]
      %v3112 = vld [vmem:[#allocation3 + $0x642] sm:$0xff]
      %v3113 = vpack.c.bf16 %v3046, %v3045
      %v3114 = vpack.c.bf16 %v3048, %v3047
      %v3115 = vpack.c.bf16 %v3050, %v3049
      %v3116 = vpack.c.bf16 %v3052, %v3051
      %v3117 = vpack.c.bf16 %v3054, %v3053
      %v3118 = vpack.c.bf16 %v3056, %v3055
      %v3119 = vpack.c.bf16 %v3058, %v3057
      %v3120 = vpack.c.bf16 %v3060, %v3059
      %v3121 = vpack.c.bf16 %v3062, %v3061
      %v3122 = vpack.c.bf16 %v3064, %v3063
      %v3123 = vpack.c.bf16 %v3066, %v3065
      %v3124 = vpack.c.bf16 %v3068, %v3067
      %v3125 = vpack.c.bf16 %v3070, %v3069
      %v3126 = vpack.c.bf16 %v3072, %v3071
      %v3127 = vpack.c.bf16 %v3074, %v3073
      %v3128 = vpack.c.bf16 %v3076, %v3075
      %v3129 = vpack.c.bf16 %v3078, %v3077
      %v3130 = vpack.c.bf16 %v3080, %v3079
      %v3131 = vpack.c.bf16 %v3082, %v3081
      %v3132 = vpack.c.bf16 %v3084, %v3083
      %v3133 = vpack.c.bf16 %v3086, %v3085
      %v3134 = vpack.c.bf16 %v3088, %v3087
      %v3135 = vpack.c.bf16 %v3090, %v3089
      %v3136 = vpack.c.bf16 %v3092, %v3091
      %v3137 = vpack.c.bf16 %v3094, %v3093
      %v3138 = vpack.c.bf16 %v3096, %v3095
      %v3139 = vpack.c.bf16 %v3098, %v3097
      %v3140 = vpack.c.bf16 %v3100, %v3099
      %v3141 = vpack.c.bf16 %v3102, %v3101
      %v3142 = vpack.c.bf16 %v3104, %v3103
      %v3143 = vpack.c.bf16 %v3106, %v3105
      %v3144 = vpack.c.bf16 %v3108, %v3107
      %v3145 = vpack.c.bf16 %v3110, %v3109
      %v3146 = vpack.c.bf16 %v3112, %v3111
      %v3147 = vshrl.u32 %v2762, 16
      %v3148 = vpack.i.b16 %v3147, %v3147
      %v3150 = vlaneseq
      %v3151 = vshrl.u32 %v3150, 7
      %v3152 = vsub.s32 0, %v3151
      %v3153 = vrot.slane %v3148, %v3152
      %v3154 = vmul.bf16 %v3113, %v3153
      %v3155 = vmul.bf16 %v3114, %v3153
      %v3156 = vmul.bf16 %v3115, %v3153
      %v3157 = vmul.bf16 %v3116, %v3153
      %v3158 = vmul.bf16 %v3117, %v3153
      %v3159 = vmul.bf16 %v3118, %v3153
      %v3160 = vmul.bf16 %v3119, %v3153
      %v3161 = vmul.bf16 %v3120, %v3153
      %v3162 = vmul.bf16 %v3121, %v3153
      %v3163 = vmul.bf16 %v3122, %v3153
      %v3164 = vmul.bf16 %v3123, %v3153
      %v3165 = vmul.bf16 %v3124, %v3153
      %v3166 = vmul.bf16 %v3125, %v3153
      %v3167 = vmul.bf16 %v3126, %v3153
      %v3168 = vmul.bf16 %v3127, %v3153
      %v3169 = vmul.bf16 %v3128, %v3153
      %v3170 = vadd.bf16 %v3029, %v3154
      %v3171 = vadd.bf16 %v3030, %v3155
      %v3172 = vadd.bf16 %v3031, %v3156
      %v3173 = vadd.bf16 %v3032, %v3157
      %v3174 = vadd.bf16 %v3033, %v3158
      %v3175 = vadd.bf16 %v3034, %v3159
      %v3176 = vadd.bf16 %v3035, %v3160
      %v3177 = vadd.bf16 %v3036, %v3161
      %v3178 = vadd.bf16 %v3037, %v3162
      %v3179 = vadd.bf16 %v3038, %v3163
      %v3180 = vadd.bf16 %v3039, %v3164
      %v3181 = vadd.bf16 %v3040, %v3165
      %v3182 = vadd.bf16 %v3041, %v3166
      %v3183 = vadd.bf16 %v3042, %v3167
      %v3184 = vadd.bf16 %v3043, %v3168
      %v3185 = vadd.bf16 %v3044, %v3169
      %v3186 = vld [vmem:[%s5 + $0x4] sm:$0x1]
      %v3188 = vpack.i.b16 %v3186, %v3186
      %v3190 = vlaneseq
      %v3191 = vshrl.u32 %v3190, 7
      %v3192 = vsub.s32 0, %v3191
      %v3193 = vrot.slane %v3188, %v3192
      %v3194 = vmul.bf16 %v3116, %v3193
      %v3195 = vmul.bf16 %v3117, %v3193
      %v3196 = vmul.bf16 %v3118, %v3193
      %v3197 = vmul.bf16 %v3119, %v3193
      %v3198 = vmul.bf16 %v3120, %v3193
      %v3199 = vmul.bf16 %v3121, %v3193
      %v3200 = vmul.bf16 %v3122, %v3193
      %v3201 = vmul.bf16 %v3123, %v3193
      %v3202 = vmul.bf16 %v3124, %v3193
      %v3203 = vmul.bf16 %v3125, %v3193
      %v3204 = vmul.bf16 %v3126, %v3193
      %v3205 = vmul.bf16 %v3127, %v3193
      %v3206 = vmul.bf16 %v3128, %v3193
      %v3207 = vmul.bf16 %v3129, %v3193
      %v3208 = vmul.bf16 %v3130, %v3193
      %v3209 = vmul.bf16 %v3131, %v3193
      %v3210 = vadd.bf16 %v3170, %v3194
      %v3211 = vadd.bf16 %v3171, %v3195
      %v3212 = vadd.bf16 %v3172, %v3196
      %v3213 = vadd.bf16 %v3173, %v3197
      %v3214 = vadd.bf16 %v3174, %v3198
      %v3215 = vadd.bf16 %v3175, %v3199
      %v3216 = vadd.bf16 %v3176, %v3200
      %v3217 = vadd.bf16 %v3177, %v3201
      %v3218 = vadd.bf16 %v3178, %v3202
      %v3219 = vadd.bf16 %v3179, %v3203
      %v3220 = vadd.bf16 %v3180, %v3204
      %v3221 = vadd.bf16 %v3181, %v3205
      %v3222 = vadd.bf16 %v3182, %v3206
      %v3223 = vadd.bf16 %v3183, %v3207
      %v3224 = vadd.bf16 %v3184, %v3208
      %v3225 = vadd.bf16 %v3185, %v3209
      %v3226 = vshrl.u32 %v2843, 16
      %v3227 = vpack.i.b16 %v3226, %v3226
      %v3229 = vlaneseq
      %v3230 = vshrl.u32 %v3229, 7
      %v3231 = vsub.s32 3, %v3230
      %v3232 = vrot.slane %v3227, %v3231
      %v3233 = vmul.bf16 %v3119, %v3232
      %v3234 = vmul.bf16 %v3120, %v3232
      %v3235 = vmul.bf16 %v3121, %v3232
      %v3236 = vmul.bf16 %v3122, %v3232
      %v3237 = vmul.bf16 %v3123, %v3232
      %v3238 = vmul.bf16 %v3124, %v3232
      %v3239 = vmul.bf16 %v3125, %v3232
      %v3240 = vmul.bf16 %v3126, %v3232
      %v3241 = vmul.bf16 %v3127, %v3232
      %v3242 = vmul.bf16 %v3128, %v3232
      %v3243 = vmul.bf16 %v3129, %v3232
      %v3244 = vmul.bf16 %v3130, %v3232
      %v3245 = vmul.bf16 %v3131, %v3232
      %v3246 = vmul.bf16 %v3132, %v3232
      %v3247 = vmul.bf16 %v3133, %v3232
      %v3248 = vmul.bf16 %v3134, %v3232
      %v3249 = vadd.bf16 %v3210, %v3233
      %v3250 = vadd.bf16 %v3211, %v3234
      %v3251 = vadd.bf16 %v3212, %v3235
      %v3252 = vadd.bf16 %v3213, %v3236
      %v3253 = vadd.bf16 %v3214, %v3237
      %v3254 = vadd.bf16 %v3215, %v3238
      %v3255 = vadd.bf16 %v3216, %v3239
      %v3256 = vadd.bf16 %v3217, %v3240
      %v3257 = vadd.bf16 %v3218, %v3241
      %v3258 = vadd.bf16 %v3219, %v3242
      %v3259 = vadd.bf16 %v3220, %v3243
      %v3260 = vadd.bf16 %v3221, %v3244
      %v3261 = vadd.bf16 %v3222, %v3245
      %v3262 = vadd.bf16 %v3223, %v3246
      %v3263 = vadd.bf16 %v3224, %v3247
      %v3264 = vadd.bf16 %v3225, %v3248
      %v3265 = vld [vmem:[%s5 + $0x8] sm:$0x8]
      %v3267 = vpack.i.b16 %v3265, %v3265
      %v3269 = vlaneseq
      %v3270 = vshrl.u32 %v3269, 7
      %v3271 = vsub.s32 3, %v3270
      %v3272 = vrot.slane %v3267, %v3271
      %v3273 = vmul.bf16 %v3122, %v3272
      %v3274 = vmul.bf16 %v3123, %v3272
      %v3275 = vmul.bf16 %v3124, %v3272
      %v3276 = vmul.bf16 %v3125, %v3272
      %v3277 = vmul.bf16 %v3126, %v3272
      %v3278 = vmul.bf16 %v3127, %v3272
      %v3279 = vmul.bf16 %v3128, %v3272
      %v3280 = vmul.bf16 %v3129, %v3272
      %v3281 = vmul.bf16 %v3130, %v3272
      %v3282 = vmul.bf16 %v3131, %v3272
      %v3283 = vmul.bf16 %v3132, %v3272
      %v3284 = vmul.bf16 %v3133, %v3272
      %v3285 = vmul.bf16 %v3134, %v3272
      %v3286 = vmul.bf16 %v3135, %v3272
      %v3287 = vmul.bf16 %v3136, %v3272
      %v3288 = vmul.bf16 %v3137, %v3272
      %v3289 = vadd.bf16 %v3249, %v3273
      %v3290 = vadd.bf16 %v3250, %v3274
      %v3291 = vadd.bf16 %v3251, %v3275
      %v3292 = vadd.bf16 %v3252, %v3276
      %v3293 = vadd.bf16 %v3253, %v3277
      %v3294 = vadd.bf16 %v3254, %v3278
      %v3295 = vadd.bf16 %v3255, %v3279
      %v3296 = vadd.bf16 %v3256, %v3280
      %v3297 = vadd.bf16 %v3257, %v3281
      %v3298 = vadd.bf16 %v3258, %v3282
      %v3299 = vadd.bf16 %v3259, %v3283
      %v3300 = vadd.bf16 %v3260, %v3284
      %v3301 = vadd.bf16 %v3261, %v3285
      %v3302 = vadd.bf16 %v3262, %v3286
      %v3303 = vadd.bf16 %v3263, %v3287
      %v3304 = vadd.bf16 %v3264, %v3288
      %v3305 = vshrl.u32 %v2924, 16
      %v3306 = vpack.i.b16 %v3305, %v3305
      %v3308 = vlaneseq
      %v3309 = vshrl.u32 %v3308, 7
      %v3310 = vsub.s32 2, %v3309
      %v3311 = vrot.slane %v3306, %v3310
      %v3312 = vmul.bf16 %v3125, %v3311
      %v3313 = vmul.bf16 %v3126, %v3311
      %v3314 = vmul.bf16 %v3127, %v3311
      %v3315 = vmul.bf16 %v3128, %v3311
      %v3316 = vmul.bf16 %v3129, %v3311
      %v3317 = vmul.bf16 %v3130, %v3311
      %v3318 = vmul.bf16 %v3131, %v3311
      %v3319 = vmul.bf16 %v3132, %v3311
      %v3320 = vmul.bf16 %v3133, %v3311
      %v3321 = vmul.bf16 %v3134, %v3311
      %v3322 = vmul.bf16 %v3135, %v3311
      %v3323 = vmul.bf16 %v3136, %v3311
      %v3324 = vmul.bf16 %v3137, %v3311
      %v3325 = vmul.bf16 %v3138, %v3311
      %v3326 = vmul.bf16 %v3139, %v3311
      %v3327 = vmul.bf16 %v3140, %v3311
      %v3328 = vadd.bf16 %v3289, %v3312
      %v3329 = vadd.bf16 %v3290, %v3313
      %v3330 = vadd.bf16 %v3291, %v3314
      %v3331 = vadd.bf16 %v3292, %v3315
      %v3332 = vadd.bf16 %v3293, %v3316
      %v3333 = vadd.bf16 %v3294, %v3317
      %v3334 = vadd.bf16 %v3295, %v3318
      %v3335 = vadd.bf16 %v3296, %v3319
      %v3336 = vadd.bf16 %v3297, %v3320
      %v3337 = vadd.bf16 %v3298, %v3321
      %v3338 = vadd.bf16 %v3299, %v3322
      %v3339 = vadd.bf16 %v3300, %v3323
      %v3340 = vadd.bf16 %v3301, %v3324
      %v3341 = vadd.bf16 %v3302, %v3325
      %v3342 = vadd.bf16 %v3303, %v3326
      %v3343 = vadd.bf16 %v3304, %v3327
      %v3344 = vld [vmem:[%s5 + $0x10] sm:$0x4]
      %v3346 = vpack.i.b16 %v3344, %v3344
      %v3348 = vlaneseq
      %v3349 = vshrl.u32 %v3348, 7
      %v3350 = vsub.s32 2, %v3349
      %v3351 = vrot.slane %v3346, %v3350
      %v3352 = vmul.bf16 %v3128, %v3351
      %v3353 = vmul.bf16 %v3129, %v3351
      %v3354 = vmul.bf16 %v3130, %v3351
      %v3355 = vmul.bf16 %v3131, %v3351
      %v3356 = vmul.bf16 %v3132, %v3351
      %v3357 = vmul.bf16 %v3133, %v3351
      %v3358 = vmul.bf16 %v3134, %v3351
      %v3359 = vmul.bf16 %v3135, %v3351
      %v3360 = vmul.bf16 %v3136, %v3351
      %v3361 = vmul.bf16 %v3137, %v3351
      %v3362 = vmul.bf16 %v3138, %v3351
      %v3363 = vmul.bf16 %v3139, %v3351
      %v3364 = vmul.bf16 %v3140, %v3351
      %v3365 = vmul.bf16 %v3141, %v3351
      %v3366 = vmul.bf16 %v3142, %v3351
      %v3367 = vmul.bf16 %v3143, %v3351
      %v3368 = vadd.bf16 %v3328, %v3352
      %v3369 = vadd.bf16 %v3329, %v3353
      %v3370 = vadd.bf16 %v3330, %v3354
      %v3371 = vadd.bf16 %v3331, %v3355
      %v3372 = vadd.bf16 %v3332, %v3356
      %v3373 = vadd.bf16 %v3333, %v3357
      %v3374 = vadd.bf16 %v3334, %v3358
      %v3375 = vadd.bf16 %v3335, %v3359
      %v3376 = vadd.bf16 %v3336, %v3360
      %v3377 = vadd.bf16 %v3337, %v3361
      %v3378 = vadd.bf16 %v3338, %v3362
      %v3379 = vadd.bf16 %v3339, %v3363
      %v3380 = vadd.bf16 %v3340, %v3364
      %v3381 = vadd.bf16 %v3341, %v3365
      %v3382 = vadd.bf16 %v3342, %v3366
      %v3383 = vadd.bf16 %v3343, %v3367
      %v3384 = vshrl.u32 %v3005, 16
      %v3385 = vpack.i.b16 %v3384, %v3384
      %v3387 = vlaneseq
      %v3388 = vshrl.u32 %v3387, 7
      %v3389 = vsub.s32 1, %v3388
      %v3390 = vrot.slane %v3385, %v3389
      %v3391 = vmul.bf16 %v3131, %v3390
      %v3392 = vmul.bf16 %v3132, %v3390
      %v3393 = vmul.bf16 %v3133, %v3390
      %v3394 = vmul.bf16 %v3134, %v3390
      %v3395 = vmul.bf16 %v3135, %v3390
      %v3396 = vmul.bf16 %v3136, %v3390
      %v3397 = vmul.bf16 %v3137, %v3390
      %v3398 = vmul.bf16 %v3138, %v3390
      %v3399 = vmul.bf16 %v3139, %v3390
      %v3400 = vmul.bf16 %v3140, %v3390
      %v3401 = vmul.bf16 %v3141, %v3390
      %v3402 = vmul.bf16 %v3142, %v3390
      %v3403 = vmul.bf16 %v3143, %v3390
      %v3404 = vmul.bf16 %v3144, %v3390
      %v3405 = vmul.bf16 %v3145, %v3390
      %v3406 = vmul.bf16 %v3146, %v3390
      %v3407 = vadd.bf16 %v3368, %v3391
      %v3408 = vadd.bf16 %v3369, %v3392
      %v3409 = vadd.bf16 %v3370, %v3393
      %v3410 = vadd.bf16 %v3371, %v3394
      %v3411 = vadd.bf16 %v3372, %v3395
      %v3412 = vadd.bf16 %v3373, %v3396
      %v3413 = vadd.bf16 %v3374, %v3397
      %v3414 = vadd.bf16 %v3375, %v3398
      %v3415 = vadd.bf16 %v3376, %v3399
      %v3416 = vadd.bf16 %v3377, %v3400
      %v3417 = vadd.bf16 %v3378, %v3401
      %v3418 = vadd.bf16 %v3379, %v3402
      %v3419 = vadd.bf16 %v3380, %v3403
      %v3420 = vadd.bf16 %v3381, %v3404
      %v3421 = vadd.bf16 %v3382, %v3405
      %v3422 = vadd.bf16 %v3383, %v3406
      %v3423 = vld [vmem:[#allocation3 + $0xd] sm:$0xff]
      %v3424 = vld [vmem:[#allocation3 + $0x15] sm:$0xff]
      %v3425 = vld [vmem:[#allocation3 + $0x3d] sm:$0xff]
      %v3426 = vld [vmem:[#allocation3 + $0x45] sm:$0xff]
      %v3427 = vld [vmem:[#allocation3 + $0x6d] sm:$0xff]
      %v3428 = vld [vmem:[#allocation3 + $0x75] sm:$0xff]
      %v3429 = vld [vmem:[#allocation3 + $0x9d] sm:$0xff]
      %v3430 = vld [vmem:[#allocation3 + $0xa5] sm:$0xff]
      %v3431 = vld [vmem:[#allocation3 + $0xcd] sm:$0xff]
      %v3432 = vld [vmem:[#allocation3 + $0xd5] sm:$0xff]
      %v3433 = vld [vmem:[#allocation3 + $0xfd] sm:$0xff]
      %v3434 = vld [vmem:[#allocation3 + $0x105] sm:$0xff]
      %v3435 = vld [vmem:[#allocation3 + $0x12d] sm:$0xff]
      %v3436 = vld [vmem:[#allocation3 + $0x135] sm:$0xff]
      %v3437 = vld [vmem:[#allocation3 + $0x15d] sm:$0xff]
      %v3438 = vld [vmem:[#allocation3 + $0x165] sm:$0xff]
      %v3439 = vld [vmem:[#allocation3 + $0x18d] sm:$0xff]
      %v3440 = vld [vmem:[#allocation3 + $0x195] sm:$0xff]
      %v3441 = vld [vmem:[#allocation3 + $0x1bd] sm:$0xff]
      %v3442 = vld [vmem:[#allocation3 + $0x1c5] sm:$0xff]
      %v3443 = vld [vmem:[#allocation3 + $0x1ed] sm:$0xff]
      %v3444 = vld [vmem:[#allocation3 + $0x1f5] sm:$0xff]
      %v3445 = vld [vmem:[#allocation3 + $0x21d] sm:$0xff]
      %v3446 = vld [vmem:[#allocation3 + $0x225] sm:$0xff]
      %v3447 = vld [vmem:[#allocation3 + $0x24d] sm:$0xff]
      %v3448 = vld [vmem:[#allocation3 + $0x255] sm:$0xff]
      %v3449 = vld [vmem:[#allocation3 + $0x27d] sm:$0xff]
      %v3450 = vld [vmem:[#allocation3 + $0x285] sm:$0xff]
      %v3451 = vld [vmem:[#allocation3 + $0x2ad] sm:$0xff]
      %v3452 = vld [vmem:[#allocation3 + $0x2b5] sm:$0xff]
      %v3453 = vld [vmem:[#allocation3 + $0x2dd] sm:$0xff]
      %v3454 = vld [vmem:[#allocation3 + $0x2e5] sm:$0xff]
      %v3455 = vld [vmem:[#allocation3 + $0x30d] sm:$0xff]
      %v3456 = vld [vmem:[#allocation3 + $0x315] sm:$0xff]
      %v3457 = vld [vmem:[#allocation3 + $0x33d] sm:$0xff]
      %v3458 = vld [vmem:[#allocation3 + $0x345] sm:$0xff]
      %v3459 = vld [vmem:[#allocation3 + $0x36d] sm:$0xff]
      %v3460 = vld [vmem:[#allocation3 + $0x375] sm:$0xff]
      %v3461 = vld [vmem:[#allocation3 + $0x39d] sm:$0xff]
      %v3462 = vld [vmem:[#allocation3 + $0x3a5] sm:$0xff]
      %v3463 = vld [vmem:[#allocation3 + $0x3cd] sm:$0xff]
      %v3464 = vld [vmem:[#allocation3 + $0x3d5] sm:$0xff]
      %v3465 = vld [vmem:[#allocation3 + $0x3fd] sm:$0xff]
      %v3466 = vld [vmem:[#allocation3 + $0x405] sm:$0xff]
      %v3467 = vld [vmem:[#allocation3 + $0x42d] sm:$0xff]
      %v3468 = vld [vmem:[#allocation3 + $0x435] sm:$0xff]
      %v3469 = vld [vmem:[#allocation3 + $0x45d] sm:$0xff]
      %v3470 = vld [vmem:[#allocation3 + $0x465] sm:$0xff]
      %v3471 = vld [vmem:[#allocation3 + $0x48d] sm:$0xff]
      %v3472 = vld [vmem:[#allocation3 + $0x495] sm:$0xff]
      %v3473 = vld [vmem:[#allocation3 + $0x4bd] sm:$0xff]
      %v3474 = vld [vmem:[#allocation3 + $0x4c5] sm:$0xff]
      %v3475 = vld [vmem:[#allocation3 + $0x4ed] sm:$0xff]
      %v3476 = vld [vmem:[#allocation3 + $0x4f5] sm:$0xff]
      %v3477 = vld [vmem:[#allocation3 + $0x51d] sm:$0xff]
      %v3478 = vld [vmem:[#allocation3 + $0x525] sm:$0xff]
      %v3479 = vld [vmem:[#allocation3 + $0x54d] sm:$0xff]
      %v3480 = vld [vmem:[#allocation3 + $0x555] sm:$0xff]
      %v3481 = vld [vmem:[#allocation3 + $0x57d] sm:$0xff]
      %v3482 = vld [vmem:[#allocation3 + $0x585] sm:$0xff]
      %v3483 = vld [vmem:[#allocation3 + $0x5ad] sm:$0xff]
      %v3484 = vld [vmem:[#allocation3 + $0x5b5] sm:$0xff]
      %v3485 = vld [vmem:[#allocation3 + $0x5dd] sm:$0xff]
      %v3486 = vld [vmem:[#allocation3 + $0x5e5] sm:$0xff]
      %v3487 = vld [vmem:[#allocation3 + $0x60d] sm:$0xff]
      %v3488 = vld [vmem:[#allocation3 + $0x615] sm:$0xff]
      %v3489 = vld [vmem:[#allocation3 + $0x63d] sm:$0xff]
      %v3490 = vld [vmem:[#allocation3 + $0x645] sm:$0xff]
      %v3491 = vpack.c.bf16 %v3424, %v3423
      %v3492 = vpack.c.bf16 %v3426, %v3425
      %v3493 = vpack.c.bf16 %v3428, %v3427
      %v3494 = vpack.c.bf16 %v3430, %v3429
      %v3495 = vpack.c.bf16 %v3432, %v3431
      %v3496 = vpack.c.bf16 %v3434, %v3433
      %v3497 = vpack.c.bf16 %v3436, %v3435
      %v3498 = vpack.c.bf16 %v3438, %v3437
      %v3499 = vpack.c.bf16 %v3440, %v3439
      %v3500 = vpack.c.bf16 %v3442, %v3441
      %v3501 = vpack.c.bf16 %v3444, %v3443
      %v3502 = vpack.c.bf16 %v3446, %v3445
      %v3503 = vpack.c.bf16 %v3448, %v3447
      %v3504 = vpack.c.bf16 %v3450, %v3449
      %v3505 = vpack.c.bf16 %v3452, %v3451
      %v3506 = vpack.c.bf16 %v3454, %v3453
      %v3507 = vpack.c.bf16 %v3456, %v3455
      %v3508 = vpack.c.bf16 %v3458, %v3457
      %v3509 = vpack.c.bf16 %v3460, %v3459
      %v3510 = vpack.c.bf16 %v3462, %v3461
      %v3511 = vpack.c.bf16 %v3464, %v3463
      %v3512 = vpack.c.bf16 %v3466, %v3465
      %v3513 = vpack.c.bf16 %v3468, %v3467
      %v3514 = vpack.c.bf16 %v3470, %v3469
      %v3515 = vpack.c.bf16 %v3472, %v3471
      %v3516 = vpack.c.bf16 %v3474, %v3473
      %v3517 = vpack.c.bf16 %v3476, %v3475
      %v3518 = vpack.c.bf16 %v3478, %v3477
      %v3519 = vpack.c.bf16 %v3480, %v3479
      %v3520 = vpack.c.bf16 %v3482, %v3481
      %v3521 = vpack.c.bf16 %v3484, %v3483
      %v3522 = vpack.c.bf16 %v3486, %v3485
      %v3523 = vpack.c.bf16 %v3488, %v3487
      %v3524 = vpack.c.bf16 %v3490, %v3489
      %v3525 = vld [vmem:[%s5] sm:$0x2]
      %v3527 = vpack.i.b16 %v3525, %v3525
      %v3529 = vlaneseq
      %v3530 = vshrl.u32 %v3529, 7
      %v3531 = vsub.s32 1, %v3530
      %v3532 = vrot.slane %v3527, %v3531
      %v3533 = vmul.bf16 %v3491, %v3532
      %v3534 = vmul.bf16 %v3492, %v3532
      %v3535 = vmul.bf16 %v3493, %v3532
      %v3536 = vmul.bf16 %v3494, %v3532
      %v3537 = vmul.bf16 %v3495, %v3532
      %v3538 = vmul.bf16 %v3496, %v3532
      %v3539 = vmul.bf16 %v3497, %v3532
      %v3540 = vmul.bf16 %v3498, %v3532
      %v3541 = vmul.bf16 %v3499, %v3532
      %v3542 = vmul.bf16 %v3500, %v3532
      %v3543 = vmul.bf16 %v3501, %v3532
      %v3544 = vmul.bf16 %v3502, %v3532
      %v3545 = vmul.bf16 %v3503, %v3532
      %v3546 = vmul.bf16 %v3504, %v3532
      %v3547 = vmul.bf16 %v3505, %v3532
      %v3548 = vmul.bf16 %v3506, %v3532
      %v3549 = vadd.bf16 %v3407, %v3533
      %v3550 = vadd.bf16 %v3408, %v3534
      %v3551 = vadd.bf16 %v3409, %v3535
      %v3552 = vadd.bf16 %v3410, %v3536
      %v3553 = vadd.bf16 %v3411, %v3537
      %v3554 = vadd.bf16 %v3412, %v3538
      %v3555 = vadd.bf16 %v3413, %v3539
      %v3556 = vadd.bf16 %v3414, %v3540
      %v3557 = vadd.bf16 %v3415, %v3541
      %v3558 = vadd.bf16 %v3416, %v3542
      %v3559 = vadd.bf16 %v3417, %v3543
      %v3560 = vadd.bf16 %v3418, %v3544
      %v3561 = vadd.bf16 %v3419, %v3545
      %v3562 = vadd.bf16 %v3420, %v3546
      %v3563 = vadd.bf16 %v3421, %v3547
      %v3564 = vadd.bf16 %v3422, %v3548
      %v3565 = vshrl.u32 %v3186, 16
      %v3566 = vpack.i.b16 %v3565, %v3565
      %v3568 = vlaneseq
      %v3569 = vshrl.u32 %v3568, 7
      %v3570 = vsub.s32 0, %v3569
      %v3571 = vrot.slane %v3566, %v3570
      %v3572 = vmul.bf16 %v3494, %v3571
      %v3573 = vmul.bf16 %v3495, %v3571
      %v3574 = vmul.bf16 %v3496, %v3571
      %v3575 = vmul.bf16 %v3497, %v3571
      %v3576 = vmul.bf16 %v3498, %v3571
      %v3577 = vmul.bf16 %v3499, %v3571
      %v3578 = vmul.bf16 %v3500, %v3571
      %v3579 = vmul.bf16 %v3501, %v3571
      %v3580 = vmul.bf16 %v3502, %v3571
      %v3581 = vmul.bf16 %v3503, %v3571
      %v3582 = vmul.bf16 %v3504, %v3571
      %v3583 = vmul.bf16 %v3505, %v3571
      %v3584 = vmul.bf16 %v3506, %v3571
      %v3585 = vmul.bf16 %v3507, %v3571
      %v3586 = vmul.bf16 %v3508, %v3571
      %v3587 = vmul.bf16 %v3509, %v3571
      %v3588 = vadd.bf16 %v3549, %v3572
      %v3589 = vadd.bf16 %v3550, %v3573
      %v3590 = vadd.bf16 %v3551, %v3574
      %v3591 = vadd.bf16 %v3552, %v3575
      %v3592 = vadd.bf16 %v3553, %v3576
      %v3593 = vadd.bf16 %v3554, %v3577
      %v3594 = vadd.bf16 %v3555, %v3578
      %v3595 = vadd.bf16 %v3556, %v3579
      %v3596 = vadd.bf16 %v3557, %v3580
      %v3597 = vadd.bf16 %v3558, %v3581
      %v3598 = vadd.bf16 %v3559, %v3582
      %v3599 = vadd.bf16 %v3560, %v3583
      %v3600 = vadd.bf16 %v3561, %v3584
      %v3601 = vadd.bf16 %v3562, %v3585
      %v3602 = vadd.bf16 %v3563, %v3586
      %v3603 = vadd.bf16 %v3564, %v3587
      %v3604 = vld [vmem:[%s5 + $0x8] sm:$0x1]
      %v3606 = vpack.i.b16 %v3604, %v3604
      %v3608 = vlaneseq
      %v3609 = vshrl.u32 %v3608, 7
      %v3610 = vsub.s32 0, %v3609
      %v3611 = vrot.slane %v3606, %v3610
      %v3612 = vmul.bf16 %v3497, %v3611
      %v3613 = vmul.bf16 %v3498, %v3611
      %v3614 = vmul.bf16 %v3499, %v3611
      %v3615 = vmul.bf16 %v3500, %v3611
      %v3616 = vmul.bf16 %v3501, %v3611
      %v3617 = vmul.bf16 %v3502, %v3611
      %v3618 = vmul.bf16 %v3503, %v3611
      %v3619 = vmul.bf16 %v3504, %v3611
      %v3620 = vmul.bf16 %v3505, %v3611
      %v3621 = vmul.bf16 %v3506, %v3611
      %v3622 = vmul.bf16 %v3507, %v3611
      %v3623 = vmul.bf16 %v3508, %v3611
      %v3624 = vmul.bf16 %v3509, %v3611
      %v3625 = vmul.bf16 %v3510, %v3611
      %v3626 = vmul.bf16 %v3511, %v3611
      %v3627 = vmul.bf16 %v3512, %v3611
      %v3628 = vadd.bf16 %v3588, %v3612
      %v3629 = vadd.bf16 %v3589, %v3613
      %v3630 = vadd.bf16 %v3590, %v3614
      %v3631 = vadd.bf16 %v3591, %v3615
      %v3632 = vadd.bf16 %v3592, %v3616
      %v3633 = vadd.bf16 %v3593, %v3617
      %v3634 = vadd.bf16 %v3594, %v3618
      %v3635 = vadd.bf16 %v3595, %v3619
      %v3636 = vadd.bf16 %v3596, %v3620
      %v3637 = vadd.bf16 %v3597, %v3621
      %v3638 = vadd.bf16 %v3598, %v3622
      %v3639 = vadd.bf16 %v3599, %v3623
      %v3640 = vadd.bf16 %v3600, %v3624
      %v3641 = vadd.bf16 %v3601, %v3625
      %v3642 = vadd.bf16 %v3602, %v3626
      %v3643 = vadd.bf16 %v3603, %v3627
      %v3644 = vshrl.u32 %v3265, 16
      %v3645 = vpack.i.b16 %v3644, %v3644
      %v3647 = vlaneseq
      %v3648 = vshrl.u32 %v3647, 7
      %v3649 = vsub.s32 3, %v3648
      %v3650 = vrot.slane %v3645, %v3649
      %v3651 = vmul.bf16 %v3500, %v3650
      %v3652 = vmul.bf16 %v3501, %v3650
      %v3653 = vmul.bf16 %v3502, %v3650
      %v3654 = vmul.bf16 %v3503, %v3650
      %v3655 = vmul.bf16 %v3504, %v3650
      %v3656 = vmul.bf16 %v3505, %v3650
      %v3657 = vmul.bf16 %v3506, %v3650
      %v3658 = vmul.bf16 %v3507, %v3650
      %v3659 = vmul.bf16 %v3508, %v3650
      %v3660 = vmul.bf16 %v3509, %v3650
      %v3661 = vmul.bf16 %v3510, %v3650
      %v3662 = vmul.bf16 %v3511, %v3650
      %v3663 = vmul.bf16 %v3512, %v3650
      %v3664 = vmul.bf16 %v3513, %v3650
      %v3665 = vmul.bf16 %v3514, %v3650
      %v3666 = vmul.bf16 %v3515, %v3650
      %v3667 = vadd.bf16 %v3628, %v3651
      %v3668 = vadd.bf16 %v3629, %v3652
      %v3669 = vadd.bf16 %v3630, %v3653
      %v3670 = vadd.bf16 %v3631, %v3654
      %v3671 = vadd.bf16 %v3632, %v3655
      %v3672 = vadd.bf16 %v3633, %v3656
      %v3673 = vadd.bf16 %v3634, %v3657
      %v3674 = vadd.bf16 %v3635, %v3658
      %v3675 = vadd.bf16 %v3636, %v3659
      %v3676 = vadd.bf16 %v3637, %v3660
      %v3677 = vadd.bf16 %v3638, %v3661
      %v3678 = vadd.bf16 %v3639, %v3662
      %v3679 = vadd.bf16 %v3640, %v3663
      %v3680 = vadd.bf16 %v3641, %v3664
      %v3681 = vadd.bf16 %v3642, %v3665
      %v3682 = vadd.bf16 %v3643, %v3666
      %v3683 = vld [vmem:[%s5 + $0xc] sm:$0x8]
      %v3685 = vpack.i.b16 %v3683, %v3683
      %v3687 = vlaneseq
      %v3688 = vshrl.u32 %v3687, 7
      %v3689 = vsub.s32 3, %v3688
      %v3690 = vrot.slane %v3685, %v3689
      %v3691 = vmul.bf16 %v3503, %v3690
      %v3692 = vmul.bf16 %v3504, %v3690
      %v3693 = vmul.bf16 %v3505, %v3690
      %v3694 = vmul.bf16 %v3506, %v3690
      %v3695 = vmul.bf16 %v3507, %v3690
      %v3696 = vmul.bf16 %v3508, %v3690
      %v3697 = vmul.bf16 %v3509, %v3690
      %v3698 = vmul.bf16 %v3510, %v3690
      %v3699 = vmul.bf16 %v3511, %v3690
      %v3700 = vmul.bf16 %v3512, %v3690
      %v3701 = vmul.bf16 %v3513, %v3690
      %v3702 = vmul.bf16 %v3514, %v3690
      %v3703 = vmul.bf16 %v3515, %v3690
      %v3704 = vmul.bf16 %v3516, %v3690
      %v3705 = vmul.bf16 %v3517, %v3690
      %v3706 = vmul.bf16 %v3518, %v3690
      %v3707 = vadd.bf16 %v3667, %v3691
      %v3708 = vadd.bf16 %v3668, %v3692
      %v3709 = vadd.bf16 %v3669, %v3693
      %v3710 = vadd.bf16 %v3670, %v3694
      %v3711 = vadd.bf16 %v3671, %v3695
      %v3712 = vadd.bf16 %v3672, %v3696
      %v3713 = vadd.bf16 %v3673, %v3697
      %v3714 = vadd.bf16 %v3674, %v3698
      %v3715 = vadd.bf16 %v3675, %v3699
      %v3716 = vadd.bf16 %v3676, %v3700
      %v3717 = vadd.bf16 %v3677, %v3701
      %v3718 = vadd.bf16 %v3678, %v3702
      %v3719 = vadd.bf16 %v3679, %v3703
      %v3720 = vadd.bf16 %v3680, %v3704
      %v3721 = vadd.bf16 %v3681, %v3705
      %v3722 = vadd.bf16 %v3682, %v3706
      %v3723 = vshrl.u32 %v3344, 16
      %v3724 = vpack.i.b16 %v3723, %v3723
      %v3726 = vlaneseq
      %v3727 = vshrl.u32 %v3726, 7
      %v3728 = vsub.s32 2, %v3727
      %v3729 = vrot.slane %v3724, %v3728
      %v3730 = vmul.bf16 %v3506, %v3729
      %v3731 = vmul.bf16 %v3507, %v3729
      %v3732 = vmul.bf16 %v3508, %v3729
      %v3733 = vmul.bf16 %v3509, %v3729
      %v3734 = vmul.bf16 %v3510, %v3729
      %v3735 = vmul.bf16 %v3511, %v3729
      %v3736 = vmul.bf16 %v3512, %v3729
      %v3737 = vmul.bf16 %v3513, %v3729
      %v3738 = vmul.bf16 %v3514, %v3729
      %v3739 = vmul.bf16 %v3515, %v3729
      %v3740 = vmul.bf16 %v3516, %v3729
      %v3741 = vmul.bf16 %v3517, %v3729
      %v3742 = vmul.bf16 %v3518, %v3729
      %v3743 = vmul.bf16 %v3519, %v3729
      %v3744 = vmul.bf16 %v3520, %v3729
      %v3745 = vmul.bf16 %v3521, %v3729
      %v3746 = vadd.bf16 %v3707, %v3730
      %v3747 = vadd.bf16 %v3708, %v3731
      %v3748 = vadd.bf16 %v3709, %v3732
      %v3749 = vadd.bf16 %v3710, %v3733
      %v3750 = vadd.bf16 %v3711, %v3734
      %v3751 = vadd.bf16 %v3712, %v3735
      %v3752 = vadd.bf16 %v3713, %v3736
      %v3753 = vadd.bf16 %v3714, %v3737
      %v3754 = vadd.bf16 %v3715, %v3738
      %v3755 = vadd.bf16 %v3716, %v3739
      %v3756 = vadd.bf16 %v3717, %v3740
      %v3757 = vadd.bf16 %v3718, %v3741
      %v3758 = vadd.bf16 %v3719, %v3742
      %v3759 = vadd.bf16 %v3720, %v3743
      %v3760 = vadd.bf16 %v3721, %v3744
      %v3761 = vadd.bf16 %v3722, %v3745
      %v3762 = vld [vmem:[%s5 + $0x14] sm:$0x4]
      %v3764 = vpack.i.b16 %v3762, %v3762
      %v3766 = vlaneseq
      %v3767 = vshrl.u32 %v3766, 7
      %v3768 = vsub.s32 2, %v3767
      %v3769 = vrot.slane %v3764, %v3768
      %v3770 = vmul.bf16 %v3509, %v3769
      %v3771 = vmul.bf16 %v3510, %v3769
      %v3772 = vmul.bf16 %v3511, %v3769
      %v3773 = vmul.bf16 %v3512, %v3769
      %v3774 = vmul.bf16 %v3513, %v3769
      %v3775 = vmul.bf16 %v3514, %v3769
      %v3776 = vmul.bf16 %v3515, %v3769
      %v3777 = vmul.bf16 %v3516, %v3769
      %v3778 = vmul.bf16 %v3517, %v3769
      %v3779 = vmul.bf16 %v3518, %v3769
      %v3780 = vmul.bf16 %v3519, %v3769
      %v3781 = vmul.bf16 %v3520, %v3769
      %v3782 = vmul.bf16 %v3521, %v3769
      %v3783 = vmul.bf16 %v3522, %v3769
      %v3784 = vmul.bf16 %v3523, %v3769
      %v3785 = vmul.bf16 %v3524, %v3769
      %v3786 = vadd.bf16 %v3746, %v3770
      %v3787 = vadd.bf16 %v3747, %v3771
      %v3788 = vadd.bf16 %v3748, %v3772
      %v3789 = vadd.bf16 %v3749, %v3773
      %v3790 = vadd.bf16 %v3750, %v3774
      %v3791 = vadd.bf16 %v3751, %v3775
      %v3792 = vadd.bf16 %v3752, %v3776
      %v3793 = vadd.bf16 %v3753, %v3777
      %v3794 = vadd.bf16 %v3754, %v3778
      %v3795 = vadd.bf16 %v3755, %v3779
      %v3796 = vadd.bf16 %v3756, %v3780
      %v3797 = vadd.bf16 %v3757, %v3781
      %v3798 = vadd.bf16 %v3758, %v3782
      %v3799 = vadd.bf16 %v3759, %v3783
      %v3800 = vadd.bf16 %v3760, %v3784
      %v3801 = vadd.bf16 %v3761, %v3785
      %v3802 = vld [vmem:[#allocation3 + $0x10] sm:$0xff]
      %v3803 = vld [vmem:[#allocation3 + $0x18] sm:$0xff]
      %v3804 = vld [vmem:[#allocation3 + $0x40] sm:$0xff]
      %v3805 = vld [vmem:[#allocation3 + $0x48] sm:$0xff]
      %v3806 = vld [vmem:[#allocation3 + $0x70] sm:$0xff]
      %v3807 = vld [vmem:[#allocation3 + $0x78] sm:$0xff]
      %v3808 = vld [vmem:[#allocation3 + $0xa0] sm:$0xff]
      %v3809 = vld [vmem:[#allocation3 + $0xa8] sm:$0xff]
      %v3810 = vld [vmem:[#allocation3 + $0xd0] sm:$0xff]
      %v3811 = vld [vmem:[#allocation3 + $0xd8] sm:$0xff]
      %v3812 = vld [vmem:[#allocation3 + $0x100] sm:$0xff]
      %v3813 = vld [vmem:[#allocation3 + $0x108] sm:$0xff]
      %v3814 = vld [vmem:[#allocation3 + $0x130] sm:$0xff]
      %v3815 = vld [vmem:[#allocation3 + $0x138] sm:$0xff]
      %v3816 = vld [vmem:[#allocation3 + $0x160] sm:$0xff]
      %v3817 = vld [vmem:[#allocation3 + $0x168] sm:$0xff]
      %v3818 = vld [vmem:[#allocation3 + $0x190] sm:$0xff]
      %v3819 = vld [vmem:[#allocation3 + $0x198] sm:$0xff]
      %v3820 = vld [vmem:[#allocation3 + $0x1c0] sm:$0xff]
      %v3821 = vld [vmem:[#allocation3 + $0x1c8] sm:$0xff]
      %v3822 = vld [vmem:[#allocation3 + $0x1f0] sm:$0xff]
      %v3823 = vld [vmem:[#allocation3 + $0x1f8] sm:$0xff]
      %v3824 = vld [vmem:[#allocation3 + $0x220] sm:$0xff]
      %v3825 = vld [vmem:[#allocation3 + $0x228] sm:$0xff]
      %v3826 = vld [vmem:[#allocation3 + $0x250] sm:$0xff]
      %v3827 = vld [vmem:[#allocation3 + $0x258] sm:$0xff]
      %v3828 = vld [vmem:[#allocation3 + $0x280] sm:$0xff]
      %v3829 = vld [vmem:[#allocation3 + $0x288] sm:$0xff]
      %v3830 = vld [vmem:[#allocation3 + $0x2b0] sm:$0xff]
      %v3831 = vld [vmem:[#allocation3 + $0x2b8] sm:$0xff]
      %v3832 = vld [vmem:[#allocation3 + $0x2e0] sm:$0xff]
      %v3833 = vld [vmem:[#allocation3 + $0x2e8] sm:$0xff]
      %v3834 = vld [vmem:[#allocation3 + $0x310] sm:$0xff]
      %v3835 = vld [vmem:[#allocation3 + $0x318] sm:$0xff]
      %v3836 = vld [vmem:[#allocation3 + $0x340] sm:$0xff]
      %v3837 = vld [vmem:[#allocation3 + $0x348] sm:$0xff]
      %v3838 = vld [vmem:[#allocation3 + $0x370] sm:$0xff]
      %v3839 = vld [vmem:[#allocation3 + $0x378] sm:$0xff]
      %v3840 = vld [vmem:[#allocation3 + $0x3a0] sm:$0xff]
      %v3841 = vld [vmem:[#allocation3 + $0x3a8] sm:$0xff]
      %v3842 = vld [vmem:[#allocation3 + $0x3d0] sm:$0xff]
      %v3843 = vld [vmem:[#allocation3 + $0x3d8] sm:$0xff]
      %v3844 = vld [vmem:[#allocation3 + $0x400] sm:$0xff]
      %v3845 = vld [vmem:[#allocation3 + $0x408] sm:$0xff]
      %v3846 = vld [vmem:[#allocation3 + $0x430] sm:$0xff]
      %v3847 = vld [vmem:[#allocation3 + $0x438] sm:$0xff]
      %v3848 = vld [vmem:[#allocation3 + $0x460] sm:$0xff]
      %v3849 = vld [vmem:[#allocation3 + $0x468] sm:$0xff]
      %v3850 = vld [vmem:[#allocation3 + $0x490] sm:$0xff]
      %v3851 = vld [vmem:[#allocation3 + $0x498] sm:$0xff]
      %v3852 = vld [vmem:[#allocation3 + $0x4c0] sm:$0xff]
      %v3853 = vld [vmem:[#allocation3 + $0x4c8] sm:$0xff]
      %v3854 = vld [vmem:[#allocation3 + $0x4f0] sm:$0xff]
      %v3855 = vld [vmem:[#allocation3 + $0x4f8] sm:$0xff]
      %v3856 = vld [vmem:[#allocation3 + $0x520] sm:$0xff]
      %v3857 = vld [vmem:[#allocation3 + $0x528] sm:$0xff]
      %v3858 = vld [vmem:[#allocation3 + $0x550] sm:$0xff]
      %v3859 = vld [vmem:[#allocation3 + $0x558] sm:$0xff]
      %v3860 = vld [vmem:[#allocation3 + $0x580] sm:$0xff]
      %v3861 = vld [vmem:[#allocation3 + $0x588] sm:$0xff]
      %v3862 = vld [vmem:[#allocation3 + $0x5b0] sm:$0xff]
      %v3863 = vld [vmem:[#allocation3 + $0x5b8] sm:$0xff]
      %v3864 = vld [vmem:[#allocation3 + $0x5e0] sm:$0xff]
      %v3865 = vld [vmem:[#allocation3 + $0x5e8] sm:$0xff]
      %v3866 = vld [vmem:[#allocation3 + $0x610] sm:$0xff]
      %v3867 = vld [vmem:[#allocation3 + $0x618] sm:$0xff]
      %v3868 = vld [vmem:[#allocation3 + $0x640] sm:$0xff]
      %v3869 = vld [vmem:[#allocation3 + $0x648] sm:$0xff]
      %v3870 = vpack.c.bf16 %v3803, %v3802
      %v3871 = vpack.c.bf16 %v3805, %v3804
      %v3872 = vpack.c.bf16 %v3807, %v3806
      %v3873 = vpack.c.bf16 %v3809, %v3808
      %v3874 = vpack.c.bf16 %v3811, %v3810
      %v3875 = vpack.c.bf16 %v3813, %v3812
      %v3876 = vpack.c.bf16 %v3815, %v3814
      %v3877 = vpack.c.bf16 %v3817, %v3816
      %v3878 = vpack.c.bf16 %v3819, %v3818
      %v3879 = vpack.c.bf16 %v3821, %v3820
      %v3880 = vpack.c.bf16 %v3823, %v3822
      %v3881 = vpack.c.bf16 %v3825, %v3824
      %v3882 = vpack.c.bf16 %v3827, %v3826
      %v3883 = vpack.c.bf16 %v3829, %v3828
      %v3884 = vpack.c.bf16 %v3831, %v3830
      %v3885 = vpack.c.bf16 %v3833, %v3832
      %v3886 = vpack.c.bf16 %v3835, %v3834
      %v3887 = vpack.c.bf16 %v3837, %v3836
      %v3888 = vpack.c.bf16 %v3839, %v3838
      %v3889 = vpack.c.bf16 %v3841, %v3840
      %v3890 = vpack.c.bf16 %v3843, %v3842
      %v3891 = vpack.c.bf16 %v3845, %v3844
      %v3892 = vpack.c.bf16 %v3847, %v3846
      %v3893 = vpack.c.bf16 %v3849, %v3848
      %v3894 = vpack.c.bf16 %v3851, %v3850
      %v3895 = vpack.c.bf16 %v3853, %v3852
      %v3896 = vpack.c.bf16 %v3855, %v3854
      %v3897 = vpack.c.bf16 %v3857, %v3856
      %v3898 = vpack.c.bf16 %v3859, %v3858
      %v3899 = vpack.c.bf16 %v3861, %v3860
      %v3900 = vpack.c.bf16 %v3863, %v3862
      %v3901 = vpack.c.bf16 %v3865, %v3864
      %v3902 = vpack.c.bf16 %v3867, %v3866
      %v3903 = vpack.c.bf16 %v3869, %v3868
      %v3904 = vshrl.u32 %v3525, 16
      %v3905 = vpack.i.b16 %v3904, %v3904
      %v3907 = vlaneseq
      %v3908 = vshrl.u32 %v3907, 7
      %v3909 = vsub.s32 1, %v3908
      %v3910 = vrot.slane %v3905, %v3909
      %v3911 = vmul.bf16 %v3870, %v3910
      %v3912 = vmul.bf16 %v3871, %v3910
      %v3913 = vmul.bf16 %v3872, %v3910
      %v3914 = vmul.bf16 %v3873, %v3910
      %v3915 = vmul.bf16 %v3874, %v3910
      %v3916 = vmul.bf16 %v3875, %v3910
      %v3917 = vmul.bf16 %v3876, %v3910
      %v3918 = vmul.bf16 %v3877, %v3910
      %v3919 = vmul.bf16 %v3878, %v3910
      %v3920 = vmul.bf16 %v3879, %v3910
      %v3921 = vmul.bf16 %v3880, %v3910
      %v3922 = vmul.bf16 %v3881, %v3910
      %v3923 = vmul.bf16 %v3882, %v3910
      %v3924 = vmul.bf16 %v3883, %v3910
      %v3925 = vmul.bf16 %v3884, %v3910
      %v3926 = vmul.bf16 %v3885, %v3910
      %v3927 = vadd.bf16 %v3786, %v3911
      %v3928 = vadd.bf16 %v3787, %v3912
      %v3929 = vadd.bf16 %v3788, %v3913
      %v3930 = vadd.bf16 %v3789, %v3914
      %v3931 = vadd.bf16 %v3790, %v3915
      %v3932 = vadd.bf16 %v3791, %v3916
      %v3933 = vadd.bf16 %v3792, %v3917
      %v3934 = vadd.bf16 %v3793, %v3918
      %v3935 = vadd.bf16 %v3794, %v3919
      %v3936 = vadd.bf16 %v3795, %v3920
      %v3937 = vadd.bf16 %v3796, %v3921
      %v3938 = vadd.bf16 %v3797, %v3922
      %v3939 = vadd.bf16 %v3798, %v3923
      %v3940 = vadd.bf16 %v3799, %v3924
      %v3941 = vadd.bf16 %v3800, %v3925
      %v3942 = vadd.bf16 %v3801, %v3926
      %v3943 = vld [vmem:[%s5 + $0x4] sm:$0x2]
      %v3945 = vpack.i.b16 %v3943, %v3943
      %v3947 = vlaneseq
      %v3948 = vshrl.u32 %v3947, 7
      %v3949 = vsub.s32 1, %v3948
      %v3950 = vrot.slane %v3945, %v3949
      %v3951 = vmul.bf16 %v3873, %v3950
      %v3952 = vmul.bf16 %v3874, %v3950
      %v3953 = vmul.bf16 %v3875, %v3950
      %v3954 = vmul.bf16 %v3876, %v3950
      %v3955 = vmul.bf16 %v3877, %v3950
      %v3956 = vmul.bf16 %v3878, %v3950
      %v3957 = vmul.bf16 %v3879, %v3950
      %v3958 = vmul.bf16 %v3880, %v3950
      %v3959 = vmul.bf16 %v3881, %v3950
      %v3960 = vmul.bf16 %v3882, %v3950
      %v3961 = vmul.bf16 %v3883, %v3950
      %v3962 = vmul.bf16 %v3884, %v3950
      %v3963 = vmul.bf16 %v3885, %v3950
      %v3964 = vmul.bf16 %v3886, %v3950
      %v3965 = vmul.bf16 %v3887, %v3950
      %v3966 = vmul.bf16 %v3888, %v3950
      %v3967 = vadd.bf16 %v3927, %v3951
      %v3968 = vadd.bf16 %v3928, %v3952
      %v3969 = vadd.bf16 %v3929, %v3953
      %v3970 = vadd.bf16 %v3930, %v3954
      %v3971 = vadd.bf16 %v3931, %v3955
      %v3972 = vadd.bf16 %v3932, %v3956
      %v3973 = vadd.bf16 %v3933, %v3957
      %v3974 = vadd.bf16 %v3934, %v3958
      %v3975 = vadd.bf16 %v3935, %v3959
      %v3976 = vadd.bf16 %v3936, %v3960
      %v3977 = vadd.bf16 %v3937, %v3961
      %v3978 = vadd.bf16 %v3938, %v3962
      %v3979 = vadd.bf16 %v3939, %v3963
      %v3980 = vadd.bf16 %v3940, %v3964
      %v3981 = vadd.bf16 %v3941, %v3965
      %v3982 = vadd.bf16 %v3942, %v3966
      %v3983 = vshrl.u32 %v3604, 16
      %v3984 = vpack.i.b16 %v3983, %v3983
      %v3986 = vlaneseq
      %v3987 = vshrl.u32 %v3986, 7
      %v3988 = vsub.s32 0, %v3987
      %v3989 = vrot.slane %v3984, %v3988
      %v3990 = vmul.bf16 %v3876, %v3989
      %v3991 = vmul.bf16 %v3877, %v3989
      %v3992 = vmul.bf16 %v3878, %v3989
      %v3993 = vmul.bf16 %v3879, %v3989
      %v3994 = vmul.bf16 %v3880, %v3989
      %v3995 = vmul.bf16 %v3881, %v3989
      %v3996 = vmul.bf16 %v3882, %v3989
      %v3997 = vmul.bf16 %v3883, %v3989
      %v3998 = vmul.bf16 %v3884, %v3989
      %v3999 = vmul.bf16 %v3885, %v3989
      %v4000 = vmul.bf16 %v3886, %v3989
      %v4001 = vmul.bf16 %v3887, %v3989
      %v4002 = vmul.bf16 %v3888, %v3989
      %v4003 = vmul.bf16 %v3889, %v3989
      %v4004 = vmul.bf16 %v3890, %v3989
      %v4005 = vmul.bf16 %v3891, %v3989
      %v4006 = vadd.bf16 %v3967, %v3990
      %v4007 = vadd.bf16 %v3968, %v3991
      %v4008 = vadd.bf16 %v3969, %v3992
      %v4009 = vadd.bf16 %v3970, %v3993
      %v4010 = vadd.bf16 %v3971, %v3994
      %v4011 = vadd.bf16 %v3972, %v3995
      %v4012 = vadd.bf16 %v3973, %v3996
      %v4013 = vadd.bf16 %v3974, %v3997
      %v4014 = vadd.bf16 %v3975, %v3998
      %v4015 = vadd.bf16 %v3976, %v3999
      %v4016 = vadd.bf16 %v3977, %v4000
      %v4017 = vadd.bf16 %v3978, %v4001
      %v4018 = vadd.bf16 %v3979, %v4002
      %v4019 = vadd.bf16 %v3980, %v4003
      %v4020 = vadd.bf16 %v3981, %v4004
      %v4021 = vadd.bf16 %v3982, %v4005
      %v4022 = vld [vmem:[%s5 + $0xc] sm:$0x1]
      %v4024 = vpack.i.b16 %v4022, %v4022
      %v4026 = vlaneseq
      %v4027 = vshrl.u32 %v4026, 7
      %v4028 = vsub.s32 0, %v4027
      %v4029 = vrot.slane %v4024, %v4028
      %v4030 = vmul.bf16 %v3879, %v4029
      %v4031 = vmul.bf16 %v3880, %v4029
      %v4032 = vmul.bf16 %v3881, %v4029
      %v4033 = vmul.bf16 %v3882, %v4029
      %v4034 = vmul.bf16 %v3883, %v4029
      %v4035 = vmul.bf16 %v3884, %v4029
      %v4036 = vmul.bf16 %v3885, %v4029
      %v4037 = vmul.bf16 %v3886, %v4029
      %v4038 = vmul.bf16 %v3887, %v4029
      %v4039 = vmul.bf16 %v3888, %v4029
      %v4040 = vmul.bf16 %v3889, %v4029
      %v4041 = vmul.bf16 %v3890, %v4029
      %v4042 = vmul.bf16 %v3891, %v4029
      %v4043 = vmul.bf16 %v3892, %v4029
      %v4044 = vmul.bf16 %v3893, %v4029
      %v4045 = vmul.bf16 %v3894, %v4029
      %v4046 = vadd.bf16 %v4006, %v4030
      %v4047 = vadd.bf16 %v4007, %v4031
      %v4048 = vadd.bf16 %v4008, %v4032
      %v4049 = vadd.bf16 %v4009, %v4033
      %v4050 = vadd.bf16 %v4010, %v4034
      %v4051 = vadd.bf16 %v4011, %v4035
      %v4052 = vadd.bf16 %v4012, %v4036
      %v4053 = vadd.bf16 %v4013, %v4037
      %v4054 = vadd.bf16 %v4014, %v4038
      %v4055 = vadd.bf16 %v4015, %v4039
      %v4056 = vadd.bf16 %v4016, %v4040
      %v4057 = vadd.bf16 %v4017, %v4041
      %v4058 = vadd.bf16 %v4018, %v4042
      %v4059 = vadd.bf16 %v4019, %v4043
      %v4060 = vadd.bf16 %v4020, %v4044
      %v4061 = vadd.bf16 %v4021, %v4045
      %v4062 = vshrl.u32 %v3683, 16
      %v4063 = vpack.i.b16 %v4062, %v4062
      %v4065 = vlaneseq
      %v4066 = vshrl.u32 %v4065, 7
      %v4067 = vsub.s32 3, %v4066
      %v4068 = vrot.slane %v4063, %v4067
      %v4069 = vmul.bf16 %v3882, %v4068
      %v4070 = vmul.bf16 %v3883, %v4068
      %v4071 = vmul.bf16 %v3884, %v4068
      %v4072 = vmul.bf16 %v3885, %v4068
      %v4073 = vmul.bf16 %v3886, %v4068
      %v4074 = vmul.bf16 %v3887, %v4068
      %v4075 = vmul.bf16 %v3888, %v4068
      %v4076 = vmul.bf16 %v3889, %v4068
      %v4077 = vmul.bf16 %v3890, %v4068
      %v4078 = vmul.bf16 %v3891, %v4068
      %v4079 = vmul.bf16 %v3892, %v4068
      %v4080 = vmul.bf16 %v3893, %v4068
      %v4081 = vmul.bf16 %v3894, %v4068
      %v4082 = vmul.bf16 %v3895, %v4068
      %v4083 = vmul.bf16 %v3896, %v4068
      %v4084 = vmul.bf16 %v3897, %v4068
      %v4085 = vadd.bf16 %v4046, %v4069
      %v4086 = vadd.bf16 %v4047, %v4070
      %v4087 = vadd.bf16 %v4048, %v4071
      %v4088 = vadd.bf16 %v4049, %v4072
      %v4089 = vadd.bf16 %v4050, %v4073
      %v4090 = vadd.bf16 %v4051, %v4074
      %v4091 = vadd.bf16 %v4052, %v4075
      %v4092 = vadd.bf16 %v4053, %v4076
      %v4093 = vadd.bf16 %v4054, %v4077
      %v4094 = vadd.bf16 %v4055, %v4078
      %v4095 = vadd.bf16 %v4056, %v4079
      %v4096 = vadd.bf16 %v4057, %v4080
      %v4097 = vadd.bf16 %v4058, %v4081
      %v4098 = vadd.bf16 %v4059, %v4082
      %v4099 = vadd.bf16 %v4060, %v4083
      %v4100 = vadd.bf16 %v4061, %v4084
      %v4101 = vld [vmem:[%s5 + $0x10] sm:$0x8]
      %v4103 = vpack.i.b16 %v4101, %v4101
      %v4105 = vlaneseq
      %v4106 = vshrl.u32 %v4105, 7
      %v4107 = vsub.s32 3, %v4106
      %v4108 = vrot.slane %v4103, %v4107
      %v4109 = vmul.bf16 %v3885, %v4108
      %v4110 = vmul.bf16 %v3886, %v4108
      %v4111 = vmul.bf16 %v3887, %v4108
      %v4112 = vmul.bf16 %v3888, %v4108
      %v4113 = vmul.bf16 %v3889, %v4108
      %v4114 = vmul.bf16 %v3890, %v4108
      %v4115 = vmul.bf16 %v3891, %v4108
      %v4116 = vmul.bf16 %v3892, %v4108
      %v4117 = vmul.bf16 %v3893, %v4108
      %v4118 = vmul.bf16 %v3894, %v4108
      %v4119 = vmul.bf16 %v3895, %v4108
      %v4120 = vmul.bf16 %v3896, %v4108
      %v4121 = vmul.bf16 %v3897, %v4108
      %v4122 = vmul.bf16 %v3898, %v4108
      %v4123 = vmul.bf16 %v3899, %v4108
      %v4124 = vmul.bf16 %v3900, %v4108
      %v4125 = vadd.bf16 %v4085, %v4109
      %v4126 = vadd.bf16 %v4086, %v4110
      %v4127 = vadd.bf16 %v4087, %v4111
      %v4128 = vadd.bf16 %v4088, %v4112
      %v4129 = vadd.bf16 %v4089, %v4113
      %v4130 = vadd.bf16 %v4090, %v4114
      %v4131 = vadd.bf16 %v4091, %v4115
      %v4132 = vadd.bf16 %v4092, %v4116
      %v4133 = vadd.bf16 %v4093, %v4117
      %v4134 = vadd.bf16 %v4094, %v4118
      %v4135 = vadd.bf16 %v4095, %v4119
      %v4136 = vadd.bf16 %v4096, %v4120
      %v4137 = vadd.bf16 %v4097, %v4121
      %v4138 = vadd.bf16 %v4098, %v4122
      %v4139 = vadd.bf16 %v4099, %v4123
      %v4140 = vadd.bf16 %v4100, %v4124
      %v4141 = vshrl.u32 %v3762, 16
      %v4142 = vpack.i.b16 %v4141, %v4141
      %v4144 = vlaneseq
      %v4145 = vshrl.u32 %v4144, 7
      %v4146 = vsub.s32 2, %v4145
      %v4147 = vrot.slane %v4142, %v4146
      %v4148 = vmul.bf16 %v3888, %v4147
      %v4149 = vmul.bf16 %v3889, %v4147
      %v4150 = vmul.bf16 %v3890, %v4147
      %v4151 = vmul.bf16 %v3891, %v4147
      %v4152 = vmul.bf16 %v3892, %v4147
      %v4153 = vmul.bf16 %v3893, %v4147
      %v4154 = vmul.bf16 %v3894, %v4147
      %v4155 = vmul.bf16 %v3895, %v4147
      %v4156 = vmul.bf16 %v3896, %v4147
      %v4157 = vmul.bf16 %v3897, %v4147
      %v4158 = vmul.bf16 %v3898, %v4147
      %v4159 = vmul.bf16 %v3899, %v4147
      %v4160 = vmul.bf16 %v3900, %v4147
      %v4161 = vmul.bf16 %v3901, %v4147
      %v4162 = vmul.bf16 %v3902, %v4147
      %v4163 = vmul.bf16 %v3903, %v4147
      %v4164 = vadd.bf16 %v4125, %v4148
      %v4165 = vadd.bf16 %v4126, %v4149
      %v4166 = vadd.bf16 %v4127, %v4150
      %v4167 = vadd.bf16 %v4128, %v4151
      %v4168 = vadd.bf16 %v4129, %v4152
      %v4169 = vadd.bf16 %v4130, %v4153
      %v4170 = vadd.bf16 %v4131, %v4154
      %v4171 = vadd.bf16 %v4132, %v4155
      %v4172 = vadd.bf16 %v4133, %v4156
      %v4173 = vadd.bf16 %v4134, %v4157
      %v4174 = vadd.bf16 %v4135, %v4158
      %v4175 = vadd.bf16 %v4136, %v4159
      %v4176 = vadd.bf16 %v4137, %v4160
      %v4177 = vadd.bf16 %v4138, %v4161
      %v4178 = vadd.bf16 %v4139, %v4162
      %v4179 = vadd.bf16 %v4140, %v4163
      %v4180 = vld [vmem:[#allocation3 + $0x13] sm:$0xff]
      %v4181 = vld [vmem:[#allocation3 + $0x1b] sm:$0xff]
      %v4182 = vld [vmem:[#allocation3 + $0x43] sm:$0xff]
      %v4183 = vld [vmem:[#allocation3 + $0x4b] sm:$0xff]
      %v4184 = vld [vmem:[#allocation3 + $0x73] sm:$0xff]
      %v4185 = vld [vmem:[#allocation3 + $0x7b] sm:$0xff]
      %v4186 = vld [vmem:[#allocation3 + $0xa3] sm:$0xff]
      %v4187 = vld [vmem:[#allocation3 + $0xab] sm:$0xff]
      %v4188 = vld [vmem:[#allocation3 + $0xd3] sm:$0xff]
      %v4189 = vld [vmem:[#allocation3 + $0xdb] sm:$0xff]
      %v4190 = vld [vmem:[#allocation3 + $0x103] sm:$0xff]
      %v4191 = vld [vmem:[#allocation3 + $0x10b] sm:$0xff]
      %v4192 = vld [vmem:[#allocation3 + $0x133] sm:$0xff]
      %v4193 = vld [vmem:[#allocation3 + $0x13b] sm:$0xff]
      %v4194 = vld [vmem:[#allocation3 + $0x163] sm:$0xff]
      %v4195 = vld [vmem:[#allocation3 + $0x16b] sm:$0xff]
      %v4196 = vld [vmem:[#allocation3 + $0x193] sm:$0xff]
      %v4197 = vld [vmem:[#allocation3 + $0x19b] sm:$0xff]
      %v4198 = vld [vmem:[#allocation3 + $0x1c3] sm:$0xff]
      %v4199 = vld [vmem:[#allocation3 + $0x1cb] sm:$0xff]
      %v4200 = vld [vmem:[#allocation3 + $0x1f3] sm:$0xff]
      %v4201 = vld [vmem:[#allocation3 + $0x1fb] sm:$0xff]
      %v4202 = vld [vmem:[#allocation3 + $0x223] sm:$0xff]
      %v4203 = vld [vmem:[#allocation3 + $0x22b] sm:$0xff]
      %v4204 = vld [vmem:[#allocation3 + $0x253] sm:$0xff]
      %v4205 = vld [vmem:[#allocation3 + $0x25b] sm:$0xff]
      %v4206 = vld [vmem:[#allocation3 + $0x283] sm:$0xff]
      %v4207 = vld [vmem:[#allocation3 + $0x28b] sm:$0xff]
      %v4208 = vld [vmem:[#allocation3 + $0x2b3] sm:$0xff]
      %v4209 = vld [vmem:[#allocation3 + $0x2bb] sm:$0xff]
      %v4210 = vld [vmem:[#allocation3 + $0x2e3] sm:$0xff]
      %v4211 = vld [vmem:[#allocation3 + $0x2eb] sm:$0xff]
      %v4212 = vld [vmem:[#allocation3 + $0x313] sm:$0xff]
      %v4213 = vld [vmem:[#allocation3 + $0x31b] sm:$0xff]
      %v4214 = vld [vmem:[#allocation3 + $0x343] sm:$0xff]
      %v4215 = vld [vmem:[#allocation3 + $0x34b] sm:$0xff]
      %v4216 = vld [vmem:[#allocation3 + $0x373] sm:$0xff]
      %v4217 = vld [vmem:[#allocation3 + $0x37b] sm:$0xff]
      %v4218 = vld [vmem:[#allocation3 + $0x3a3] sm:$0xff]
      %v4219 = vld [vmem:[#allocation3 + $0x3ab] sm:$0xff]
      %v4220 = vld [vmem:[#allocation3 + $0x3d3] sm:$0xff]
      %v4221 = vld [vmem:[#allocation3 + $0x3db] sm:$0xff]
      %v4222 = vld [vmem:[#allocation3 + $0x403] sm:$0xff]
      %v4223 = vld [vmem:[#allocation3 + $0x40b] sm:$0xff]
      %v4224 = vld [vmem:[#allocation3 + $0x433] sm:$0xff]
      %v4225 = vld [vmem:[#allocation3 + $0x43b] sm:$0xff]
      %v4226 = vld [vmem:[#allocation3 + $0x463] sm:$0xff]
      %v4227 = vld [vmem:[#allocation3 + $0x46b] sm:$0xff]
      %v4228 = vld [vmem:[#allocation3 + $0x493] sm:$0xff]
      %v4229 = vld [vmem:[#allocation3 + $0x49b] sm:$0xff]
      %v4230 = vld [vmem:[#allocation3 + $0x4c3] sm:$0xff]
      %v4231 = vld [vmem:[#allocation3 + $0x4cb] sm:$0xff]
      %v4232 = vld [vmem:[#allocation3 + $0x4f3] sm:$0xff]
      %v4233 = vld [vmem:[#allocation3 + $0x4fb] sm:$0xff]
      %v4234 = vld [vmem:[#allocation3 + $0x523] sm:$0xff]
      %v4235 = vld [vmem:[#allocation3 + $0x52b] sm:$0xff]
      %v4236 = vld [vmem:[#allocation3 + $0x553] sm:$0xff]
      %v4237 = vld [vmem:[#allocation3 + $0x55b] sm:$0xff]
      %v4238 = vld [vmem:[#allocation3 + $0x583] sm:$0xff]
      %v4239 = vld [vmem:[#allocation3 + $0x58b] sm:$0xff]
      %v4240 = vld [vmem:[#allocation3 + $0x5b3] sm:$0xff]
      %v4241 = vld [vmem:[#allocation3 + $0x5bb] sm:$0xff]
      %v4242 = vld [vmem:[#allocation3 + $0x5e3] sm:$0xff]
      %v4243 = vld [vmem:[#allocation3 + $0x5eb] sm:$0xff]
      %v4244 = vld [vmem:[#allocation3 + $0x613] sm:$0xff]
      %v4245 = vld [vmem:[#allocation3 + $0x61b] sm:$0xff]
      %v4246 = vld [vmem:[#allocation3 + $0x643] sm:$0xff]
      %v4247 = vld [vmem:[#allocation3 + $0x64b] sm:$0xff]
      %v4248 = vpack.c.bf16 %v4181, %v4180
      %v4249 = vpack.c.bf16 %v4183, %v4182
      %v4250 = vpack.c.bf16 %v4185, %v4184
      %v4251 = vpack.c.bf16 %v4187, %v4186
      %v4252 = vpack.c.bf16 %v4189, %v4188
      %v4253 = vpack.c.bf16 %v4191, %v4190
      %v4254 = vpack.c.bf16 %v4193, %v4192
      %v4255 = vpack.c.bf16 %v4195, %v4194
      %v4256 = vpack.c.bf16 %v4197, %v4196
      %v4257 = vpack.c.bf16 %v4199, %v4198
      %v4258 = vpack.c.bf16 %v4201, %v4200
      %v4259 = vpack.c.bf16 %v4203, %v4202
      %v4260 = vpack.c.bf16 %v4205, %v4204
      %v4261 = vpack.c.bf16 %v4207, %v4206
      %v4262 = vpack.c.bf16 %v4209, %v4208
      %v4263 = vpack.c.bf16 %v4211, %v4210
      %v4264 = vpack.c.bf16 %v4213, %v4212
      %v4265 = vpack.c.bf16 %v4215, %v4214
      %v4266 = vpack.c.bf16 %v4217, %v4216
      %v4267 = vpack.c.bf16 %v4219, %v4218
      %v4268 = vpack.c.bf16 %v4221, %v4220
      %v4269 = vpack.c.bf16 %v4223, %v4222
      %v4270 = vpack.c.bf16 %v4225, %v4224
      %v4271 = vpack.c.bf16 %v4227, %v4226
      %v4272 = vpack.c.bf16 %v4229, %v4228
      %v4273 = vpack.c.bf16 %v4231, %v4230
      %v4274 = vpack.c.bf16 %v4233, %v4232
      %v4275 = vpack.c.bf16 %v4235, %v4234
      %v4276 = vpack.c.bf16 %v4237, %v4236
      %v4277 = vpack.c.bf16 %v4239, %v4238
      %v4278 = vpack.c.bf16 %v4241, %v4240
      %v4279 = vpack.c.bf16 %v4243, %v4242
      %v4280 = vpack.c.bf16 %v4245, %v4244
      %v4281 = vpack.c.bf16 %v4247, %v4246
      %v4282 = vld [vmem:[%s5] sm:$0x4]
      %v4284 = vpack.i.b16 %v4282, %v4282
      %v4286 = vlaneseq
      %v4287 = vshrl.u32 %v4286, 7
      %v4288 = vsub.s32 2, %v4287
      %v4289 = vrot.slane %v4284, %v4288
      %v4290 = vmul.bf16 %v4248, %v4289
      %v4291 = vmul.bf16 %v4249, %v4289
      %v4292 = vmul.bf16 %v4250, %v4289
      %v4293 = vmul.bf16 %v4251, %v4289
      %v4294 = vmul.bf16 %v4252, %v4289
      %v4295 = vmul.bf16 %v4253, %v4289
      %v4296 = vmul.bf16 %v4254, %v4289
      %v4297 = vmul.bf16 %v4255, %v4289
      %v4298 = vmul.bf16 %v4256, %v4289
      %v4299 = vmul.bf16 %v4257, %v4289
      %v4300 = vmul.bf16 %v4258, %v4289
      %v4301 = vmul.bf16 %v4259, %v4289
      %v4302 = vmul.bf16 %v4260, %v4289
      %v4303 = vmul.bf16 %v4261, %v4289
      %v4304 = vmul.bf16 %v4262, %v4289
      %v4305 = vmul.bf16 %v4263, %v4289
      %v4306 = vadd.bf16 %v4164, %v4290
      %v4307 = vadd.bf16 %v4165, %v4291
      %v4308 = vadd.bf16 %v4166, %v4292
      %v4309 = vadd.bf16 %v4167, %v4293
      %v4310 = vadd.bf16 %v4168, %v4294
      %v4311 = vadd.bf16 %v4169, %v4295
      %v4312 = vadd.bf16 %v4170, %v4296
      %v4313 = vadd.bf16 %v4171, %v4297
      %v4314 = vadd.bf16 %v4172, %v4298
      %v4315 = vadd.bf16 %v4173, %v4299
      %v4316 = vadd.bf16 %v4174, %v4300
      %v4317 = vadd.bf16 %v4175, %v4301
      %v4318 = vadd.bf16 %v4176, %v4302
      %v4319 = vadd.bf16 %v4177, %v4303
      %v4320 = vadd.bf16 %v4178, %v4304
      %v4321 = vadd.bf16 %v4179, %v4305
      %v4322 = vshrl.u32 %v3943, 16
      %v4323 = vpack.i.b16 %v4322, %v4322
      %v4325 = vlaneseq
      %v4326 = vshrl.u32 %v4325, 7
      %v4327 = vsub.s32 1, %v4326
      %v4328 = vrot.slane %v4323, %v4327
      %v4329 = vmul.bf16 %v4251, %v4328
      %v4330 = vmul.bf16 %v4252, %v4328
      %v4331 = vmul.bf16 %v4253, %v4328
      %v4332 = vmul.bf16 %v4254, %v4328
      %v4333 = vmul.bf16 %v4255, %v4328
      %v4334 = vmul.bf16 %v4256, %v4328
      %v4335 = vmul.bf16 %v4257, %v4328
      %v4336 = vmul.bf16 %v4258, %v4328
      %v4337 = vmul.bf16 %v4259, %v4328
      %v4338 = vmul.bf16 %v4260, %v4328
      %v4339 = vmul.bf16 %v4261, %v4328
      %v4340 = vmul.bf16 %v4262, %v4328
      %v4341 = vmul.bf16 %v4263, %v4328
      %v4342 = vmul.bf16 %v4264, %v4328
      %v4343 = vmul.bf16 %v4265, %v4328
      %v4344 = vmul.bf16 %v4266, %v4328
      %v4345 = vadd.bf16 %v4306, %v4329
      %v4346 = vadd.bf16 %v4307, %v4330
      %v4347 = vadd.bf16 %v4308, %v4331
      %v4348 = vadd.bf16 %v4309, %v4332
      %v4349 = vadd.bf16 %v4310, %v4333
      %v4350 = vadd.bf16 %v4311, %v4334
      %v4351 = vadd.bf16 %v4312, %v4335
      %v4352 = vadd.bf16 %v4313, %v4336
      %v4353 = vadd.bf16 %v4314, %v4337
      %v4354 = vadd.bf16 %v4315, %v4338
      %v4355 = vadd.bf16 %v4316, %v4339
      %v4356 = vadd.bf16 %v4317, %v4340
      %v4357 = vadd.bf16 %v4318, %v4341
      %v4358 = vadd.bf16 %v4319, %v4342
      %v4359 = vadd.bf16 %v4320, %v4343
      %v4360 = vadd.bf16 %v4321, %v4344
      %v4361 = vld [vmem:[%s5 + $0x8] sm:$0x2]
      %v4363 = vpack.i.b16 %v4361, %v4361
      %v4365 = vlaneseq
      %v4366 = vshrl.u32 %v4365, 7
      %v4367 = vsub.s32 1, %v4366
      %v4368 = vrot.slane %v4363, %v4367
      %v4369 = vmul.bf16 %v4254, %v4368
      %v4370 = vmul.bf16 %v4255, %v4368
      %v4371 = vmul.bf16 %v4256, %v4368
      %v4372 = vmul.bf16 %v4257, %v4368
      %v4373 = vmul.bf16 %v4258, %v4368
      %v4374 = vmul.bf16 %v4259, %v4368
      %v4375 = vmul.bf16 %v4260, %v4368
      %v4376 = vmul.bf16 %v4261, %v4368
      %v4377 = vmul.bf16 %v4262, %v4368
      %v4378 = vmul.bf16 %v4263, %v4368
      %v4379 = vmul.bf16 %v4264, %v4368
      %v4380 = vmul.bf16 %v4265, %v4368
      %v4381 = vmul.bf16 %v4266, %v4368
      %v4382 = vmul.bf16 %v4267, %v4368
      %v4383 = vmul.bf16 %v4268, %v4368
      %v4384 = vmul.bf16 %v4269, %v4368
      %v4385 = vadd.bf16 %v4345, %v4369
      %v4386 = vadd.bf16 %v4346, %v4370
      %v4387 = vadd.bf16 %v4347, %v4371
      %v4388 = vadd.bf16 %v4348, %v4372
      %v4389 = vadd.bf16 %v4349, %v4373
      %v4390 = vadd.bf16 %v4350, %v4374
      %v4391 = vadd.bf16 %v4351, %v4375
      %v4392 = vadd.bf16 %v4352, %v4376
      %v4393 = vadd.bf16 %v4353, %v4377
      %v4394 = vadd.bf16 %v4354, %v4378
      %v4395 = vadd.bf16 %v4355, %v4379
      %v4396 = vadd.bf16 %v4356, %v4380
      %v4397 = vadd.bf16 %v4357, %v4381
      %v4398 = vadd.bf16 %v4358, %v4382
      %v4399 = vadd.bf16 %v4359, %v4383
      %v4400 = vadd.bf16 %v4360, %v4384
      %v4401 = vshrl.u32 %v4022, 16
      %v4402 = vpack.i.b16 %v4401, %v4401
      %v4404 = vlaneseq
      %v4405 = vshrl.u32 %v4404, 7
      %v4406 = vsub.s32 0, %v4405
      %v4407 = vrot.slane %v4402, %v4406
      %v4408 = vmul.bf16 %v4257, %v4407
      %v4409 = vmul.bf16 %v4258, %v4407
      %v4410 = vmul.bf16 %v4259, %v4407
      %v4411 = vmul.bf16 %v4260, %v4407
      %v4412 = vmul.bf16 %v4261, %v4407
      %v4413 = vmul.bf16 %v4262, %v4407
      %v4414 = vmul.bf16 %v4263, %v4407
      %v4415 = vmul.bf16 %v4264, %v4407
      %v4416 = vmul.bf16 %v4265, %v4407
      %v4417 = vmul.bf16 %v4266, %v4407
      %v4418 = vmul.bf16 %v4267, %v4407
      %v4419 = vmul.bf16 %v4268, %v4407
      %v4420 = vmul.bf16 %v4269, %v4407
      %v4421 = vmul.bf16 %v4270, %v4407
      %v4422 = vmul.bf16 %v4271, %v4407
      %v4423 = vmul.bf16 %v4272, %v4407
      %v4424 = vadd.bf16 %v4385, %v4408
      %v4425 = vadd.bf16 %v4386, %v4409
      %v4426 = vadd.bf16 %v4387, %v4410
      %v4427 = vadd.bf16 %v4388, %v4411
      %v4428 = vadd.bf16 %v4389, %v4412
      %v4429 = vadd.bf16 %v4390, %v4413
      %v4430 = vadd.bf16 %v4391, %v4414
      %v4431 = vadd.bf16 %v4392, %v4415
      %v4432 = vadd.bf16 %v4393, %v4416
      %v4433 = vadd.bf16 %v4394, %v4417
      %v4434 = vadd.bf16 %v4395, %v4418
      %v4435 = vadd.bf16 %v4396, %v4419
      %v4436 = vadd.bf16 %v4397, %v4420
      %v4437 = vadd.bf16 %v4398, %v4421
      %v4438 = vadd.bf16 %v4399, %v4422
      %v4439 = vadd.bf16 %v4400, %v4423
      %v4440 = vld [vmem:[%s5 + $0x10] sm:$0x1]
      %v4442 = vpack.i.b16 %v4440, %v4440
      %v4444 = vlaneseq
      %v4445 = vshrl.u32 %v4444, 7
      %v4446 = vsub.s32 0, %v4445
      %v4447 = vrot.slane %v4442, %v4446
      %v4448 = vmul.bf16 %v4260, %v4447
      %v4449 = vmul.bf16 %v4261, %v4447
      %v4450 = vmul.bf16 %v4262, %v4447
      %v4451 = vmul.bf16 %v4263, %v4447
      %v4452 = vmul.bf16 %v4264, %v4447
      %v4453 = vmul.bf16 %v4265, %v4447
      %v4454 = vmul.bf16 %v4266, %v4447
      %v4455 = vmul.bf16 %v4267, %v4447
      %v4456 = vmul.bf16 %v4268, %v4447
      %v4457 = vmul.bf16 %v4269, %v4447
      %v4458 = vmul.bf16 %v4270, %v4447
      %v4459 = vmul.bf16 %v4271, %v4447
      %v4460 = vmul.bf16 %v4272, %v4447
      %v4461 = vmul.bf16 %v4273, %v4447
      %v4462 = vmul.bf16 %v4274, %v4447
      %v4463 = vmul.bf16 %v4275, %v4447
      %v4464 = vadd.bf16 %v4424, %v4448
      %v4465 = vadd.bf16 %v4425, %v4449
      %v4466 = vadd.bf16 %v4426, %v4450
      %v4467 = vadd.bf16 %v4427, %v4451
      %v4468 = vadd.bf16 %v4428, %v4452
      %v4469 = vadd.bf16 %v4429, %v4453
      %v4470 = vadd.bf16 %v4430, %v4454
      %v4471 = vadd.bf16 %v4431, %v4455
      %v4472 = vadd.bf16 %v4432, %v4456
      %v4473 = vadd.bf16 %v4433, %v4457
      %v4474 = vadd.bf16 %v4434, %v4458
      %v4475 = vadd.bf16 %v4435, %v4459
      %v4476 = vadd.bf16 %v4436, %v4460
      %v4477 = vadd.bf16 %v4437, %v4461
      %v4478 = vadd.bf16 %v4438, %v4462
      %v4479 = vadd.bf16 %v4439, %v4463
      %v4480 = vshrl.u32 %v4101, 16
      %v4481 = vpack.i.b16 %v4480, %v4480
      %v4483 = vlaneseq
      %v4484 = vshrl.u32 %v4483, 7
      %v4485 = vsub.s32 3, %v4484
      %v4486 = vrot.slane %v4481, %v4485
      %v4487 = vmul.bf16 %v4263, %v4486
      %v4488 = vmul.bf16 %v4264, %v4486
      %v4489 = vmul.bf16 %v4265, %v4486
      %v4490 = vmul.bf16 %v4266, %v4486
      %v4491 = vmul.bf16 %v4267, %v4486
      %v4492 = vmul.bf16 %v4268, %v4486
      %v4493 = vmul.bf16 %v4269, %v4486
      %v4494 = vmul.bf16 %v4270, %v4486
      %v4495 = vmul.bf16 %v4271, %v4486
      %v4496 = vmul.bf16 %v4272, %v4486
      %v4497 = vmul.bf16 %v4273, %v4486
      %v4498 = vmul.bf16 %v4274, %v4486
      %v4499 = vmul.bf16 %v4275, %v4486
      %v4500 = vmul.bf16 %v4276, %v4486
      %v4501 = vmul.bf16 %v4277, %v4486
      %v4502 = vmul.bf16 %v4278, %v4486
      %v4503 = vadd.bf16 %v4464, %v4487
      %v4504 = vadd.bf16 %v4465, %v4488
      %v4505 = vadd.bf16 %v4466, %v4489
      %v4506 = vadd.bf16 %v4467, %v4490
      %v4507 = vadd.bf16 %v4468, %v4491
      %v4508 = vadd.bf16 %v4469, %v4492
      %v4509 = vadd.bf16 %v4470, %v4493
      %v4510 = vadd.bf16 %v4471, %v4494
      %v4511 = vadd.bf16 %v4472, %v4495
      %v4512 = vadd.bf16 %v4473, %v4496
      %v4513 = vadd.bf16 %v4474, %v4497
      %v4514 = vadd.bf16 %v4475, %v4498
      %v4515 = vadd.bf16 %v4476, %v4499
      %v4516 = vadd.bf16 %v4477, %v4500
      %v4517 = vadd.bf16 %v4478, %v4501
      %v4518 = vadd.bf16 %v4479, %v4502
      %v4519 = vld [vmem:[%s5 + $0x14] sm:$0x8]
      %v4521 = vpack.i.b16 %v4519, %v4519
      %v4523 = vlaneseq
      %v4524 = vshrl.u32 %v4523, 7
      %v4525 = vsub.s32 3, %v4524
      %v4526 = vrot.slane %v4521, %v4525
      %v4527 = vmul.bf16 %v4266, %v4526
      %v4528 = vmul.bf16 %v4267, %v4526
      %v4529 = vmul.bf16 %v4268, %v4526
      %v4530 = vmul.bf16 %v4269, %v4526
      %v4531 = vmul.bf16 %v4270, %v4526
      %v4532 = vmul.bf16 %v4271, %v4526
      %v4533 = vmul.bf16 %v4272, %v4526
      %v4534 = vmul.bf16 %v4273, %v4526
      %v4535 = vmul.bf16 %v4274, %v4526
      %v4536 = vmul.bf16 %v4275, %v4526
      %v4537 = vmul.bf16 %v4276, %v4526
      %v4538 = vmul.bf16 %v4277, %v4526
      %v4539 = vmul.bf16 %v4278, %v4526
      %v4540 = vmul.bf16 %v4279, %v4526
      %v4541 = vmul.bf16 %v4280, %v4526
      %v4542 = vmul.bf16 %v4281, %v4526
      %v4543 = vadd.bf16 %v4503, %v4527
      %v4544 = vadd.bf16 %v4504, %v4528
      %v4545 = vadd.bf16 %v4505, %v4529
      %v4546 = vadd.bf16 %v4506, %v4530
      %v4547 = vadd.bf16 %v4507, %v4531
      %v4548 = vadd.bf16 %v4508, %v4532
      %v4549 = vadd.bf16 %v4509, %v4533
      %v4550 = vadd.bf16 %v4510, %v4534
      %v4551 = vadd.bf16 %v4511, %v4535
      %v4552 = vadd.bf16 %v4512, %v4536
      %v4553 = vadd.bf16 %v4513, %v4537
      %v4554 = vadd.bf16 %v4514, %v4538
      %v4555 = vadd.bf16 %v4515, %v4539
      %v4556 = vadd.bf16 %v4516, %v4540
      %v4557 = vadd.bf16 %v4517, %v4541
      %v4558 = vadd.bf16 %v4518, %v4542
      %v4559 = vld [vmem:[#allocation3 + $0x16] sm:$0xff]
      %v4560 = vld [vmem:[#allocation3 + $0x1e] sm:$0xff]
      %v4561 = vld [vmem:[#allocation3 + $0x46] sm:$0xff]
      %v4562 = vld [vmem:[#allocation3 + $0x4e] sm:$0xff]
      %v4563 = vld [vmem:[#allocation3 + $0x76] sm:$0xff]
      %v4564 = vld [vmem:[#allocation3 + $0x7e] sm:$0xff]
      %v4565 = vld [vmem:[#allocation3 + $0xa6] sm:$0xff]
      %v4566 = vld [vmem:[#allocation3 + $0xae] sm:$0xff]
      %v4567 = vld [vmem:[#allocation3 + $0xd6] sm:$0xff]
      %v4568 = vld [vmem:[#allocation3 + $0xde] sm:$0xff]
      %v4569 = vld [vmem:[#allocation3 + $0x106] sm:$0xff]
      %v4570 = vld [vmem:[#allocation3 + $0x10e] sm:$0xff]
      %v4571 = vld [vmem:[#allocation3 + $0x136] sm:$0xff]
      %v4572 = vld [vmem:[#allocation3 + $0x13e] sm:$0xff]
      %v4573 = vld [vmem:[#allocation3 + $0x166] sm:$0xff]
      %v4574 = vld [vmem:[#allocation3 + $0x16e] sm:$0xff]
      %v4575 = vld [vmem:[#allocation3 + $0x196] sm:$0xff]
      %v4576 = vld [vmem:[#allocation3 + $0x19e] sm:$0xff]
      %v4577 = vld [vmem:[#allocation3 + $0x1c6] sm:$0xff]
      %v4578 = vld [vmem:[#allocation3 + $0x1ce] sm:$0xff]
      %v4579 = vld [vmem:[#allocation3 + $0x1f6] sm:$0xff]
      %v4580 = vld [vmem:[#allocation3 + $0x1fe] sm:$0xff]
      %v4581 = vld [vmem:[#allocation3 + $0x226] sm:$0xff]
      %v4582 = vld [vmem:[#allocation3 + $0x22e] sm:$0xff]
      %v4583 = vld [vmem:[#allocation3 + $0x256] sm:$0xff]
      %v4584 = vld [vmem:[#allocation3 + $0x25e] sm:$0xff]
      %v4585 = vld [vmem:[#allocation3 + $0x286] sm:$0xff]
      %v4586 = vld [vmem:[#allocation3 + $0x28e] sm:$0xff]
      %v4587 = vld [vmem:[#allocation3 + $0x2b6] sm:$0xff]
      %v4588 = vld [vmem:[#allocation3 + $0x2be] sm:$0xff]
      %v4589 = vld [vmem:[#allocation3 + $0x2e6] sm:$0xff]
      %v4590 = vld [vmem:[#allocation3 + $0x2ee] sm:$0xff]
      %v4591 = vld [vmem:[#allocation3 + $0x316] sm:$0xff]
      %v4592 = vld [vmem:[#allocation3 + $0x31e] sm:$0xff]
      %v4593 = vld [vmem:[#allocation3 + $0x346] sm:$0xff]
      %v4594 = vld [vmem:[#allocation3 + $0x34e] sm:$0xff]
      %v4595 = vld [vmem:[#allocation3 + $0x376] sm:$0xff]
      %v4596 = vld [vmem:[#allocation3 + $0x37e] sm:$0xff]
      %v4597 = vld [vmem:[#allocation3 + $0x3a6] sm:$0xff]
      %v4598 = vld [vmem:[#allocation3 + $0x3ae] sm:$0xff]
      %v4599 = vld [vmem:[#allocation3 + $0x3d6] sm:$0xff]
      %v4600 = vld [vmem:[#allocation3 + $0x3de] sm:$0xff]
      %v4601 = vld [vmem:[#allocation3 + $0x406] sm:$0xff]
      %v4602 = vld [vmem:[#allocation3 + $0x40e] sm:$0xff]
      %v4603 = vld [vmem:[#allocation3 + $0x436] sm:$0xff]
      %v4604 = vld [vmem:[#allocation3 + $0x43e] sm:$0xff]
      %v4605 = vld [vmem:[#allocation3 + $0x466] sm:$0xff]
      %v4606 = vld [vmem:[#allocation3 + $0x46e] sm:$0xff]
      %v4607 = vld [vmem:[#allocation3 + $0x496] sm:$0xff]
      %v4608 = vld [vmem:[#allocation3 + $0x49e] sm:$0xff]
      %v4609 = vld [vmem:[#allocation3 + $0x4c6] sm:$0xff]
      %v4610 = vld [vmem:[#allocation3 + $0x4ce] sm:$0xff]
      %v4611 = vld [vmem:[#allocation3 + $0x4f6] sm:$0xff]
      %v4612 = vld [vmem:[#allocation3 + $0x4fe] sm:$0xff]
      %v4613 = vld [vmem:[#allocation3 + $0x526] sm:$0xff]
      %v4614 = vld [vmem:[#allocation3 + $0x52e] sm:$0xff]
      %v4615 = vld [vmem:[#allocation3 + $0x556] sm:$0xff]
      %v4616 = vld [vmem:[#allocation3 + $0x55e] sm:$0xff]
      %v4617 = vld [vmem:[#allocation3 + $0x586] sm:$0xff]
      %v4618 = vld [vmem:[#allocation3 + $0x58e] sm:$0xff]
      %v4619 = vld [vmem:[#allocation3 + $0x5b6] sm:$0xff]
      %v4620 = vld [vmem:[#allocation3 + $0x5be] sm:$0xff]
      %v4621 = vld [vmem:[#allocation3 + $0x5e6] sm:$0xff]
      %v4622 = vld [vmem:[#allocation3 + $0x5ee] sm:$0xff]
      %v4623 = vld [vmem:[#allocation3 + $0x616] sm:$0xff]
      %v4624 = vld [vmem:[#allocation3 + $0x61e] sm:$0xff]
      %v4625 = vld [vmem:[#allocation3 + $0x646] sm:$0xff]
      %v4626 = vld [vmem:[#allocation3 + $0x64e] sm:$0xff]
      %v4627 = vpack.c.bf16 %v4560, %v4559
      %v4628 = vpack.c.bf16 %v4562, %v4561
      %v4629 = vpack.c.bf16 %v4564, %v4563
      %v4630 = vpack.c.bf16 %v4566, %v4565
      %v4631 = vpack.c.bf16 %v4568, %v4567
      %v4632 = vpack.c.bf16 %v4570, %v4569
      %v4633 = vpack.c.bf16 %v4572, %v4571
      %v4634 = vpack.c.bf16 %v4574, %v4573
      %v4635 = vpack.c.bf16 %v4576, %v4575
      %v4636 = vpack.c.bf16 %v4578, %v4577
      %v4637 = vpack.c.bf16 %v4580, %v4579
      %v4638 = vpack.c.bf16 %v4582, %v4581
      %v4639 = vpack.c.bf16 %v4584, %v4583
      %v4640 = vpack.c.bf16 %v4586, %v4585
      %v4641 = vpack.c.bf16 %v4588, %v4587
      %v4642 = vpack.c.bf16 %v4590, %v4589
      %v4643 = vpack.c.bf16 %v4592, %v4591
      %v4644 = vpack.c.bf16 %v4594, %v4593
      %v4645 = vpack.c.bf16 %v4596, %v4595
      %v4646 = vpack.c.bf16 %v4598, %v4597
      %v4647 = vpack.c.bf16 %v4600, %v4599
      %v4648 = vpack.c.bf16 %v4602, %v4601
      %v4649 = vpack.c.bf16 %v4604, %v4603
      %v4650 = vpack.c.bf16 %v4606, %v4605
      %v4651 = vpack.c.bf16 %v4608, %v4607
      %v4652 = vpack.c.bf16 %v4610, %v4609
      %v4653 = vpack.c.bf16 %v4612, %v4611
      %v4654 = vpack.c.bf16 %v4614, %v4613
      %v4655 = vpack.c.bf16 %v4616, %v4615
      %v4656 = vpack.c.bf16 %v4618, %v4617
      %v4657 = vpack.c.bf16 %v4620, %v4619
      %v4658 = vpack.c.bf16 %v4622, %v4621
      %v4659 = vpack.c.bf16 %v4624, %v4623
      %v4660 = vpack.c.bf16 %v4626, %v4625
      %v4661 = vshrl.u32 %v4282, 16
      %v4662 = vpack.i.b16 %v4661, %v4661
      %v4664 = vlaneseq
      %v4665 = vshrl.u32 %v4664, 7
      %v4666 = vsub.s32 2, %v4665
      %v4667 = vrot.slane %v4662, %v4666
      %v4668 = vmul.bf16 %v4627, %v4667
      %v4669 = vmul.bf16 %v4628, %v4667
      %v4670 = vmul.bf16 %v4629, %v4667
      %v4671 = vmul.bf16 %v4630, %v4667
      %v4672 = vmul.bf16 %v4631, %v4667
      %v4673 = vmul.bf16 %v4632, %v4667
      %v4674 = vmul.bf16 %v4633, %v4667
      %v4675 = vmul.bf16 %v4634, %v4667
      %v4676 = vmul.bf16 %v4635, %v4667
      %v4677 = vmul.bf16 %v4636, %v4667
      %v4678 = vmul.bf16 %v4637, %v4667
      %v4679 = vmul.bf16 %v4638, %v4667
      %v4680 = vmul.bf16 %v4639, %v4667
      %v4681 = vmul.bf16 %v4640, %v4667
      %v4682 = vmul.bf16 %v4641, %v4667
      %v4683 = vmul.bf16 %v4642, %v4667
      %v4684 = vadd.bf16 %v4543, %v4668
      %v4685 = vadd.bf16 %v4544, %v4669
      %v4686 = vadd.bf16 %v4545, %v4670
      %v4687 = vadd.bf16 %v4546, %v4671
      %v4688 = vadd.bf16 %v4547, %v4672
      %v4689 = vadd.bf16 %v4548, %v4673
      %v4690 = vadd.bf16 %v4549, %v4674
      %v4691 = vadd.bf16 %v4550, %v4675
      %v4692 = vadd.bf16 %v4551, %v4676
      %v4693 = vadd.bf16 %v4552, %v4677
      %v4694 = vadd.bf16 %v4553, %v4678
      %v4695 = vadd.bf16 %v4554, %v4679
      %v4696 = vadd.bf16 %v4555, %v4680
      %v4697 = vadd.bf16 %v4556, %v4681
      %v4698 = vadd.bf16 %v4557, %v4682
      %v4699 = vadd.bf16 %v4558, %v4683
      %v4700 = vld [vmem:[%s5 + $0x4] sm:$0x4]
      %v4702 = vpack.i.b16 %v4700, %v4700
      %v4704 = vlaneseq
      %v4705 = vshrl.u32 %v4704, 7
      %v4706 = vsub.s32 2, %v4705
      %v4707 = vrot.slane %v4702, %v4706
      %v4708 = vmul.bf16 %v4630, %v4707
      %v4709 = vmul.bf16 %v4631, %v4707
      %v4710 = vmul.bf16 %v4632, %v4707
      %v4711 = vmul.bf16 %v4633, %v4707
      %v4712 = vmul.bf16 %v4634, %v4707
      %v4713 = vmul.bf16 %v4635, %v4707
      %v4714 = vmul.bf16 %v4636, %v4707
      %v4715 = vmul.bf16 %v4637, %v4707
      %v4716 = vmul.bf16 %v4638, %v4707
      %v4717 = vmul.bf16 %v4639, %v4707
      %v4718 = vmul.bf16 %v4640, %v4707
      %v4719 = vmul.bf16 %v4641, %v4707
      %v4720 = vmul.bf16 %v4642, %v4707
      %v4721 = vmul.bf16 %v4643, %v4707
      %v4722 = vmul.bf16 %v4644, %v4707
      %v4723 = vmul.bf16 %v4645, %v4707
      %v4724 = vadd.bf16 %v4684, %v4708
      %v4725 = vadd.bf16 %v4685, %v4709
      %v4726 = vadd.bf16 %v4686, %v4710
      %v4727 = vadd.bf16 %v4687, %v4711
      %v4728 = vadd.bf16 %v4688, %v4712
      %v4729 = vadd.bf16 %v4689, %v4713
      %v4730 = vadd.bf16 %v4690, %v4714
      %v4731 = vadd.bf16 %v4691, %v4715
      %v4732 = vadd.bf16 %v4692, %v4716
      %v4733 = vadd.bf16 %v4693, %v4717
      %v4734 = vadd.bf16 %v4694, %v4718
      %v4735 = vadd.bf16 %v4695, %v4719
      %v4736 = vadd.bf16 %v4696, %v4720
      %v4737 = vadd.bf16 %v4697, %v4721
      %v4738 = vadd.bf16 %v4698, %v4722
      %v4739 = vadd.bf16 %v4699, %v4723
      %v4740 = vshrl.u32 %v4361, 16
      %v4741 = vpack.i.b16 %v4740, %v4740
      %v4743 = vlaneseq
      %v4744 = vshrl.u32 %v4743, 7
      %v4745 = vsub.s32 1, %v4744
      %v4746 = vrot.slane %v4741, %v4745
      %v4747 = vmul.bf16 %v4633, %v4746
      %v4748 = vmul.bf16 %v4634, %v4746
      %v4749 = vmul.bf16 %v4635, %v4746
      %v4750 = vmul.bf16 %v4636, %v4746
      %v4751 = vmul.bf16 %v4637, %v4746
      %v4752 = vmul.bf16 %v4638, %v4746
      %v4753 = vmul.bf16 %v4639, %v4746
      %v4754 = vmul.bf16 %v4640, %v4746
      %v4755 = vmul.bf16 %v4641, %v4746
      %v4756 = vmul.bf16 %v4642, %v4746
      %v4757 = vmul.bf16 %v4643, %v4746
      %v4758 = vmul.bf16 %v4644, %v4746
      %v4759 = vmul.bf16 %v4645, %v4746
      %v4760 = vmul.bf16 %v4646, %v4746
      %v4761 = vmul.bf16 %v4647, %v4746
      %v4762 = vmul.bf16 %v4648, %v4746
      %v4763 = vadd.bf16 %v4724, %v4747
      %v4764 = vadd.bf16 %v4725, %v4748
      %v4765 = vadd.bf16 %v4726, %v4749
      %v4766 = vadd.bf16 %v4727, %v4750
      %v4767 = vadd.bf16 %v4728, %v4751
      %v4768 = vadd.bf16 %v4729, %v4752
      %v4769 = vadd.bf16 %v4730, %v4753
      %v4770 = vadd.bf16 %v4731, %v4754
      %v4771 = vadd.bf16 %v4732, %v4755
      %v4772 = vadd.bf16 %v4733, %v4756
      %v4773 = vadd.bf16 %v4734, %v4757
      %v4774 = vadd.bf16 %v4735, %v4758
      %v4775 = vadd.bf16 %v4736, %v4759
      %v4776 = vadd.bf16 %v4737, %v4760
      %v4777 = vadd.bf16 %v4738, %v4761
      %v4778 = vadd.bf16 %v4739, %v4762
      %v4779 = vld [vmem:[%s5 + $0xc] sm:$0x2]
      %v4781 = vpack.i.b16 %v4779, %v4779
      %v4783 = vlaneseq
      %v4784 = vshrl.u32 %v4783, 7
      %v4785 = vsub.s32 1, %v4784
      %v4786 = vrot.slane %v4781, %v4785
      %v4787 = vmul.bf16 %v4636, %v4786
      %v4788 = vmul.bf16 %v4637, %v4786
      %v4789 = vmul.bf16 %v4638, %v4786
      %v4790 = vmul.bf16 %v4639, %v4786
      %v4791 = vmul.bf16 %v4640, %v4786
      %v4792 = vmul.bf16 %v4641, %v4786
      %v4793 = vmul.bf16 %v4642, %v4786
      %v4794 = vmul.bf16 %v4643, %v4786
      %v4795 = vmul.bf16 %v4644, %v4786
      %v4796 = vmul.bf16 %v4645, %v4786
      %v4797 = vmul.bf16 %v4646, %v4786
      %v4798 = vmul.bf16 %v4647, %v4786
      %v4799 = vmul.bf16 %v4648, %v4786
      %v4800 = vmul.bf16 %v4649, %v4786
      %v4801 = vmul.bf16 %v4650, %v4786
      %v4802 = vmul.bf16 %v4651, %v4786
      %v4803 = vadd.bf16 %v4763, %v4787
      %v4804 = vadd.bf16 %v4764, %v4788
      %v4805 = vadd.bf16 %v4765, %v4789
      %v4806 = vadd.bf16 %v4766, %v4790
      %v4807 = vadd.bf16 %v4767, %v4791
      %v4808 = vadd.bf16 %v4768, %v4792
      %v4809 = vadd.bf16 %v4769, %v4793
      %v4810 = vadd.bf16 %v4770, %v4794
      %v4811 = vadd.bf16 %v4771, %v4795
      %v4812 = vadd.bf16 %v4772, %v4796
      %v4813 = vadd.bf16 %v4773, %v4797
      %v4814 = vadd.bf16 %v4774, %v4798
      %v4815 = vadd.bf16 %v4775, %v4799
      %v4816 = vadd.bf16 %v4776, %v4800
      %v4817 = vadd.bf16 %v4777, %v4801
      %v4818 = vadd.bf16 %v4778, %v4802
      %v4819 = vshrl.u32 %v4440, 16
      %v4820 = vpack.i.b16 %v4819, %v4819
      %v4822 = vlaneseq
      %v4823 = vshrl.u32 %v4822, 7
      %v4824 = vsub.s32 0, %v4823
      %v4825 = vrot.slane %v4820, %v4824
      %v4826 = vmul.bf16 %v4639, %v4825
      %v4827 = vmul.bf16 %v4640, %v4825
      %v4828 = vmul.bf16 %v4641, %v4825
      %v4829 = vmul.bf16 %v4642, %v4825
      %v4830 = vmul.bf16 %v4643, %v4825
      %v4831 = vmul.bf16 %v4644, %v4825
      %v4832 = vmul.bf16 %v4645, %v4825
      %v4833 = vmul.bf16 %v4646, %v4825
      %v4834 = vmul.bf16 %v4647, %v4825
      %v4835 = vmul.bf16 %v4648, %v4825
      %v4836 = vmul.bf16 %v4649, %v4825
      %v4837 = vmul.bf16 %v4650, %v4825
      %v4838 = vmul.bf16 %v4651, %v4825
      %v4839 = vmul.bf16 %v4652, %v4825
      %v4840 = vmul.bf16 %v4653, %v4825
      %v4841 = vmul.bf16 %v4654, %v4825
      %v4842 = vadd.bf16 %v4803, %v4826
      %v4843 = vadd.bf16 %v4804, %v4827
      %v4844 = vadd.bf16 %v4805, %v4828
      %v4845 = vadd.bf16 %v4806, %v4829
      %v4846 = vadd.bf16 %v4807, %v4830
      %v4847 = vadd.bf16 %v4808, %v4831
      %v4848 = vadd.bf16 %v4809, %v4832
      %v4849 = vadd.bf16 %v4810, %v4833
      %v4850 = vadd.bf16 %v4811, %v4834
      %v4851 = vadd.bf16 %v4812, %v4835
      %v4852 = vadd.bf16 %v4813, %v4836
      %v4853 = vadd.bf16 %v4814, %v4837
      %v4854 = vadd.bf16 %v4815, %v4838
      %v4855 = vadd.bf16 %v4816, %v4839
      %v4856 = vadd.bf16 %v4817, %v4840
      %v4857 = vadd.bf16 %v4818, %v4841
      %v4858 = vld [vmem:[%s5 + $0x14] sm:$0x1]
      %v4860 = vpack.i.b16 %v4858, %v4858
      %v4862 = vlaneseq
      %v4863 = vshrl.u32 %v4862, 7
      %v4864 = vsub.s32 0, %v4863
      %v4865 = vrot.slane %v4860, %v4864
      %v4866 = vmul.bf16 %v4642, %v4865
      %v4867 = vmul.bf16 %v4643, %v4865
      %v4868 = vmul.bf16 %v4644, %v4865
      %v4869 = vmul.bf16 %v4645, %v4865
      %v4870 = vmul.bf16 %v4646, %v4865
      %v4871 = vmul.bf16 %v4647, %v4865
      %v4872 = vmul.bf16 %v4648, %v4865
      %v4873 = vmul.bf16 %v4649, %v4865
      %v4874 = vmul.bf16 %v4650, %v4865
      %v4875 = vmul.bf16 %v4651, %v4865
      %v4876 = vmul.bf16 %v4652, %v4865
      %v4877 = vmul.bf16 %v4653, %v4865
      %v4878 = vmul.bf16 %v4654, %v4865
      %v4879 = vmul.bf16 %v4655, %v4865
      %v4880 = vmul.bf16 %v4656, %v4865
      %v4881 = vmul.bf16 %v4657, %v4865
      %v4882 = vadd.bf16 %v4842, %v4866
      %v4883 = vadd.bf16 %v4843, %v4867
      %v4884 = vadd.bf16 %v4844, %v4868
      %v4885 = vadd.bf16 %v4845, %v4869
      %v4886 = vadd.bf16 %v4846, %v4870
      %v4887 = vadd.bf16 %v4847, %v4871
      %v4888 = vadd.bf16 %v4848, %v4872
      %v4889 = vadd.bf16 %v4849, %v4873
      %v4890 = vadd.bf16 %v4850, %v4874
      %v4891 = vadd.bf16 %v4851, %v4875
      %v4892 = vadd.bf16 %v4852, %v4876
      %v4893 = vadd.bf16 %v4853, %v4877
      %v4894 = vadd.bf16 %v4854, %v4878
      %v4895 = vadd.bf16 %v4855, %v4879
      %v4896 = vadd.bf16 %v4856, %v4880
      %v4897 = vadd.bf16 %v4857, %v4881
      %v4898 = vshrl.u32 %v4519, 16
      %v4899 = vpack.i.b16 %v4898, %v4898
      %v4901 = vlaneseq
      %v4902 = vshrl.u32 %v4901, 7
      %v4903 = vsub.s32 3, %v4902
      %v4904 = vrot.slane %v4899, %v4903
      %v4905 = vmul.bf16 %v4645, %v4904
      %v4906 = vmul.bf16 %v4646, %v4904
      %v4907 = vmul.bf16 %v4647, %v4904
      %v4908 = vmul.bf16 %v4648, %v4904
      %v4909 = vmul.bf16 %v4649, %v4904
      %v4910 = vmul.bf16 %v4650, %v4904
      %v4911 = vmul.bf16 %v4651, %v4904
      %v4912 = vmul.bf16 %v4652, %v4904
      %v4913 = vmul.bf16 %v4653, %v4904
      %v4914 = vmul.bf16 %v4654, %v4904
      %v4915 = vmul.bf16 %v4655, %v4904
      %v4916 = vmul.bf16 %v4656, %v4904
      %v4917 = vmul.bf16 %v4657, %v4904
      %v4918 = vmul.bf16 %v4658, %v4904
      %v4919 = vmul.bf16 %v4659, %v4904
      %v4920 = vmul.bf16 %v4660, %v4904
      %v4921 = vadd.bf16 %v4882, %v4905
      %v4922 = vadd.bf16 %v4883, %v4906
      %v4923 = vadd.bf16 %v4884, %v4907
      %v4924 = vadd.bf16 %v4885, %v4908
      %v4925 = vadd.bf16 %v4886, %v4909
      %v4926 = vadd.bf16 %v4887, %v4910
      %v4927 = vadd.bf16 %v4888, %v4911
      %v4928 = vadd.bf16 %v4889, %v4912
      %v4929 = vadd.bf16 %v4890, %v4913
      %v4930 = vadd.bf16 %v4891, %v4914
      %v4931 = vadd.bf16 %v4892, %v4915
      %v4932 = vadd.bf16 %v4893, %v4916
      %v4933 = vadd.bf16 %v4894, %v4917
      %v4934 = vadd.bf16 %v4895, %v4918
      %v4935 = vadd.bf16 %v4896, %v4919
      %v4936 = vadd.bf16 %v4897, %v4920
      %v4937 = vld [vmem:[#allocation3 + $0x19] sm:$0xff]
      %v4938 = vld [vmem:[#allocation3 + $0x21] sm:$0xff]
      %v4939 = vld [vmem:[#allocation3 + $0x49] sm:$0xff]
      %v4940 = vld [vmem:[#allocation3 + $0x51] sm:$0xff]
      %v4941 = vld [vmem:[#allocation3 + $0x79] sm:$0xff]
      %v4942 = vld [vmem:[#allocation3 + $0x81] sm:$0xff]
      %v4943 = vld [vmem:[#allocation3 + $0xa9] sm:$0xff]
      %v4944 = vld [vmem:[#allocation3 + $0xb1] sm:$0xff]
      %v4945 = vld [vmem:[#allocation3 + $0xd9] sm:$0xff]
      %v4946 = vld [vmem:[#allocation3 + $0xe1] sm:$0xff]
      %v4947 = vld [vmem:[#allocation3 + $0x109] sm:$0xff]
      %v4948 = vld [vmem:[#allocation3 + $0x111] sm:$0xff]
      %v4949 = vld [vmem:[#allocation3 + $0x139] sm:$0xff]
      %v4950 = vld [vmem:[#allocation3 + $0x141] sm:$0xff]
      %v4951 = vld [vmem:[#allocation3 + $0x169] sm:$0xff]
      %v4952 = vld [vmem:[#allocation3 + $0x171] sm:$0xff]
      %v4953 = vld [vmem:[#allocation3 + $0x199] sm:$0xff]
      %v4954 = vld [vmem:[#allocation3 + $0x1a1] sm:$0xff]
      %v4955 = vld [vmem:[#allocation3 + $0x1c9] sm:$0xff]
      %v4956 = vld [vmem:[#allocation3 + $0x1d1] sm:$0xff]
      %v4957 = vld [vmem:[#allocation3 + $0x1f9] sm:$0xff]
      %v4958 = vld [vmem:[#allocation3 + $0x201] sm:$0xff]
      %v4959 = vld [vmem:[#allocation3 + $0x229] sm:$0xff]
      %v4960 = vld [vmem:[#allocation3 + $0x231] sm:$0xff]
      %v4961 = vld [vmem:[#allocation3 + $0x259] sm:$0xff]
      %v4962 = vld [vmem:[#allocation3 + $0x261] sm:$0xff]
      %v4963 = vld [vmem:[#allocation3 + $0x289] sm:$0xff]
      %v4964 = vld [vmem:[#allocation3 + $0x291] sm:$0xff]
      %v4965 = vld [vmem:[#allocation3 + $0x2b9] sm:$0xff]
      %v4966 = vld [vmem:[#allocation3 + $0x2c1] sm:$0xff]
      %v4967 = vld [vmem:[#allocation3 + $0x2e9] sm:$0xff]
      %v4968 = vld [vmem:[#allocation3 + $0x2f1] sm:$0xff]
      %v4969 = vld [vmem:[#allocation3 + $0x319] sm:$0xff]
      %v4970 = vld [vmem:[#allocation3 + $0x321] sm:$0xff]
      %v4971 = vld [vmem:[#allocation3 + $0x349] sm:$0xff]
      %v4972 = vld [vmem:[#allocation3 + $0x351] sm:$0xff]
      %v4973 = vld [vmem:[#allocation3 + $0x379] sm:$0xff]
      %v4974 = vld [vmem:[#allocation3 + $0x381] sm:$0xff]
      %v4975 = vld [vmem:[#allocation3 + $0x3a9] sm:$0xff]
      %v4976 = vld [vmem:[#allocation3 + $0x3b1] sm:$0xff]
      %v4977 = vld [vmem:[#allocation3 + $0x3d9] sm:$0xff]
      %v4978 = vld [vmem:[#allocation3 + $0x3e1] sm:$0xff]
      %v4979 = vld [vmem:[#allocation3 + $0x409] sm:$0xff]
      %v4980 = vld [vmem:[#allocation3 + $0x411] sm:$0xff]
      %v4981 = vld [vmem:[#allocation3 + $0x439] sm:$0xff]
      %v4982 = vld [vmem:[#allocation3 + $0x441] sm:$0xff]
      %v4983 = vld [vmem:[#allocation3 + $0x469] sm:$0xff]
      %v4984 = vld [vmem:[#allocation3 + $0x471] sm:$0xff]
      %v4985 = vld [vmem:[#allocation3 + $0x499] sm:$0xff]
      %v4986 = vld [vmem:[#allocation3 + $0x4a1] sm:$0xff]
      %v4987 = vld [vmem:[#allocation3 + $0x4c9] sm:$0xff]
      %v4988 = vld [vmem:[#allocation3 + $0x4d1] sm:$0xff]
      %v4989 = vld [vmem:[#allocation3 + $0x4f9] sm:$0xff]
      %v4990 = vld [vmem:[#allocation3 + $0x501] sm:$0xff]
      %v4991 = vld [vmem:[#allocation3 + $0x529] sm:$0xff]
      %v4992 = vld [vmem:[#allocation3 + $0x531] sm:$0xff]
      %v4993 = vld [vmem:[#allocation3 + $0x559] sm:$0xff]
      %v4994 = vld [vmem:[#allocation3 + $0x561] sm:$0xff]
      %v4995 = vld [vmem:[#allocation3 + $0x589] sm:$0xff]
      %v4996 = vld [vmem:[#allocation3 + $0x591] sm:$0xff]
      %v4997 = vld [vmem:[#allocation3 + $0x5b9] sm:$0xff]
      %v4998 = vld [vmem:[#allocation3 + $0x5c1] sm:$0xff]
      %v4999 = vld [vmem:[#allocation3 + $0x5e9] sm:$0xff]
      %v5000 = vld [vmem:[#allocation3 + $0x5f1] sm:$0xff]
      %v5001 = vld [vmem:[#allocation3 + $0x619] sm:$0xff]
      %v5002 = vld [vmem:[#allocation3 + $0x621] sm:$0xff]
      %v5003 = vld [vmem:[#allocation3 + $0x649] sm:$0xff]
      %v5004 = vld [vmem:[#allocation3 + $0x651] sm:$0xff]
      %v5005 = vpack.c.bf16 %v4938, %v4937
      %v5006 = vpack.c.bf16 %v4940, %v4939
      %v5007 = vpack.c.bf16 %v4942, %v4941
      %v5008 = vpack.c.bf16 %v4944, %v4943
      %v5009 = vpack.c.bf16 %v4946, %v4945
      %v5010 = vpack.c.bf16 %v4948, %v4947
      %v5011 = vpack.c.bf16 %v4950, %v4949
      %v5012 = vpack.c.bf16 %v4952, %v4951
      %v5013 = vpack.c.bf16 %v4954, %v4953
      %v5014 = vpack.c.bf16 %v4956, %v4955
      %v5015 = vpack.c.bf16 %v4958, %v4957
      %v5016 = vpack.c.bf16 %v4960, %v4959
      %v5017 = vpack.c.bf16 %v4962, %v4961
      %v5018 = vpack.c.bf16 %v4964, %v4963
      %v5019 = vpack.c.bf16 %v4966, %v4965
      %v5020 = vpack.c.bf16 %v4968, %v4967
      %v5021 = vpack.c.bf16 %v4970, %v4969
      %v5022 = vpack.c.bf16 %v4972, %v4971
      %v5023 = vpack.c.bf16 %v4974, %v4973
      %v5024 = vpack.c.bf16 %v4976, %v4975
      %v5025 = vpack.c.bf16 %v4978, %v4977
      %v5026 = vpack.c.bf16 %v4980, %v4979
      %v5027 = vpack.c.bf16 %v4982, %v4981
      %v5028 = vpack.c.bf16 %v4984, %v4983
      %v5029 = vpack.c.bf16 %v4986, %v4985
      %v5030 = vpack.c.bf16 %v4988, %v4987
      %v5031 = vpack.c.bf16 %v4990, %v4989
      %v5032 = vpack.c.bf16 %v4992, %v4991
      %v5033 = vpack.c.bf16 %v4994, %v4993
      %v5034 = vpack.c.bf16 %v4996, %v4995
      %v5035 = vpack.c.bf16 %v4998, %v4997
      %v5036 = vpack.c.bf16 %v5000, %v4999
      %v5037 = vpack.c.bf16 %v5002, %v5001
      %v5038 = vpack.c.bf16 %v5004, %v5003
      %v5039 = vpack.i.b16 %v2802, %v2802
      %v5041 = vlaneseq
      %v5042 = vshrl.u32 %v5041, 7
      %v5043 = vsub.s32 3, %v5042
      %v5044 = vrot.slane %v5039, %v5043
      %v5045 = vmul.bf16 %v5005, %v5044
      %v5046 = vmul.bf16 %v5006, %v5044
      %v5047 = vmul.bf16 %v5007, %v5044
      %v5048 = vmul.bf16 %v5008, %v5044
      %v5049 = vmul.bf16 %v5009, %v5044
      %v5050 = vmul.bf16 %v5010, %v5044
      %v5051 = vmul.bf16 %v5011, %v5044
      %v5052 = vmul.bf16 %v5012, %v5044
      %v5053 = vmul.bf16 %v5013, %v5044
      %v5054 = vmul.bf16 %v5014, %v5044
      %v5055 = vmul.bf16 %v5015, %v5044
      %v5056 = vmul.bf16 %v5016, %v5044
      %v5057 = vmul.bf16 %v5017, %v5044
      %v5058 = vmul.bf16 %v5018, %v5044
      %v5059 = vmul.bf16 %v5019, %v5044
      %v5060 = vmul.bf16 %v5020, %v5044
      %v5061 = vadd.bf16 %v4921, %v5045
      %v5062 = vadd.bf16 %v4922, %v5046
      %v5063 = vadd.bf16 %v4923, %v5047
      %v5064 = vadd.bf16 %v4924, %v5048
      %v5065 = vadd.bf16 %v4925, %v5049
      %v5066 = vadd.bf16 %v4926, %v5050
      %v5067 = vadd.bf16 %v4927, %v5051
      %v5068 = vadd.bf16 %v4928, %v5052
      %v5069 = vadd.bf16 %v4929, %v5053
      %v5070 = vadd.bf16 %v4930, %v5054
      %v5071 = vadd.bf16 %v4931, %v5055
      %v5072 = vadd.bf16 %v4932, %v5056
      %v5073 = vadd.bf16 %v4933, %v5057
      %v5074 = vadd.bf16 %v4934, %v5058
      %v5075 = vadd.bf16 %v4935, %v5059
      %v5076 = vadd.bf16 %v4936, %v5060
      %v5077 = vshrl.u32 %v4700, 16
      %v5078 = vpack.i.b16 %v5077, %v5077
      %v5080 = vlaneseq
      %v5081 = vshrl.u32 %v5080, 7
      %v5082 = vsub.s32 2, %v5081
      %v5083 = vrot.slane %v5078, %v5082
      %v5084 = vmul.bf16 %v5008, %v5083
      %v5085 = vmul.bf16 %v5009, %v5083
      %v5086 = vmul.bf16 %v5010, %v5083
      %v5087 = vmul.bf16 %v5011, %v5083
      %v5088 = vmul.bf16 %v5012, %v5083
      %v5089 = vmul.bf16 %v5013, %v5083
      %v5090 = vmul.bf16 %v5014, %v5083
      %v5091 = vmul.bf16 %v5015, %v5083
      %v5092 = vmul.bf16 %v5016, %v5083
      %v5093 = vmul.bf16 %v5017, %v5083
      %v5094 = vmul.bf16 %v5018, %v5083
      %v5095 = vmul.bf16 %v5019, %v5083
      %v5096 = vmul.bf16 %v5020, %v5083
      %v5097 = vmul.bf16 %v5021, %v5083
      %v5098 = vmul.bf16 %v5022, %v5083
      %v5099 = vmul.bf16 %v5023, %v5083
      %v5100 = vadd.bf16 %v5061, %v5084
      %v5101 = vadd.bf16 %v5062, %v5085
      %v5102 = vadd.bf16 %v5063, %v5086
      %v5103 = vadd.bf16 %v5064, %v5087
      %v5104 = vadd.bf16 %v5065, %v5088
      %v5105 = vadd.bf16 %v5066, %v5089
      %v5106 = vadd.bf16 %v5067, %v5090
      %v5107 = vadd.bf16 %v5068, %v5091
      %v5108 = vadd.bf16 %v5069, %v5092
      %v5109 = vadd.bf16 %v5070, %v5093
      %v5110 = vadd.bf16 %v5071, %v5094
      %v5111 = vadd.bf16 %v5072, %v5095
      %v5112 = vadd.bf16 %v5073, %v5096
      %v5113 = vadd.bf16 %v5074, %v5097
      %v5114 = vadd.bf16 %v5075, %v5098
      %v5115 = vadd.bf16 %v5076, %v5099
      %v5116 = vpack.i.b16 %v2883, %v2883
      %v5118 = vlaneseq
      %v5119 = vshrl.u32 %v5118, 7
      %v5120 = vsub.s32 2, %v5119
      %v5121 = vrot.slane %v5116, %v5120
      %v5122 = vmul.bf16 %v5011, %v5121
      %v5123 = vmul.bf16 %v5012, %v5121
      %v5124 = vmul.bf16 %v5013, %v5121
      %v5125 = vmul.bf16 %v5014, %v5121
      %v5126 = vmul.bf16 %v5015, %v5121
      %v5127 = vmul.bf16 %v5016, %v5121
      %v5128 = vmul.bf16 %v5017, %v5121
      %v5129 = vmul.bf16 %v5018, %v5121
      %v5130 = vmul.bf16 %v5019, %v5121
      %v5131 = vmul.bf16 %v5020, %v5121
      %v5132 = vmul.bf16 %v5021, %v5121
      %v5133 = vmul.bf16 %v5022, %v5121
      %v5134 = vmul.bf16 %v5023, %v5121
      %v5135 = vmul.bf16 %v5024, %v5121
      %v5136 = vmul.bf16 %v5025, %v5121
      %v5137 = vmul.bf16 %v5026, %v5121
      %v5138 = vadd.bf16 %v5100, %v5122
      %v5139 = vadd.bf16 %v5101, %v5123
      %v5140 = vadd.bf16 %v5102, %v5124
      %v5141 = vadd.bf16 %v5103, %v5125
      %v5142 = vadd.bf16 %v5104, %v5126
      %v5143 = vadd.bf16 %v5105, %v5127
      %v5144 = vadd.bf16 %v5106, %v5128
      %v5145 = vadd.bf16 %v5107, %v5129
      %v5146 = vadd.bf16 %v5108, %v5130
      %v5147 = vadd.bf16 %v5109, %v5131
      %v5148 = vadd.bf16 %v5110, %v5132
      %v5149 = vadd.bf16 %v5111, %v5133
      %v5150 = vadd.bf16 %v5112, %v5134
      %v5151 = vadd.bf16 %v5113, %v5135
      %v5152 = vadd.bf16 %v5114, %v5136
      %v5153 = vadd.bf16 %v5115, %v5137
      %v5154 = vshrl.u32 %v4779, 16
      %v5155 = vpack.i.b16 %v5154, %v5154
      %v5157 = vlaneseq
      %v5158 = vshrl.u32 %v5157, 7
      %v5159 = vsub.s32 1, %v5158
      %v5160 = vrot.slane %v5155, %v5159
      %v5161 = vmul.bf16 %v5014, %v5160
      %v5162 = vmul.bf16 %v5015, %v5160
      %v5163 = vmul.bf16 %v5016, %v5160
      %v5164 = vmul.bf16 %v5017, %v5160
      %v5165 = vmul.bf16 %v5018, %v5160
      %v5166 = vmul.bf16 %v5019, %v5160
      %v5167 = vmul.bf16 %v5020, %v5160
      %v5168 = vmul.bf16 %v5021, %v5160
      %v5169 = vmul.bf16 %v5022, %v5160
      %v5170 = vmul.bf16 %v5023, %v5160
      %v5171 = vmul.bf16 %v5024, %v5160
      %v5172 = vmul.bf16 %v5025, %v5160
      %v5173 = vmul.bf16 %v5026, %v5160
      %v5174 = vmul.bf16 %v5027, %v5160
      %v5175 = vmul.bf16 %v5028, %v5160
      %v5176 = vmul.bf16 %v5029, %v5160
      %v5177 = vadd.bf16 %v5138, %v5161
      %v5178 = vadd.bf16 %v5139, %v5162
      %v5179 = vadd.bf16 %v5140, %v5163
      %v5180 = vadd.bf16 %v5141, %v5164
      %v5181 = vadd.bf16 %v5142, %v5165
      %v5182 = vadd.bf16 %v5143, %v5166
      %v5183 = vadd.bf16 %v5144, %v5167
      %v5184 = vadd.bf16 %v5145, %v5168
      %v5185 = vadd.bf16 %v5146, %v5169
      %v5186 = vadd.bf16 %v5147, %v5170
      %v5187 = vadd.bf16 %v5148, %v5171
      %v5188 = vadd.bf16 %v5149, %v5172
      %v5189 = vadd.bf16 %v5150, %v5173
      %v5190 = vadd.bf16 %v5151, %v5174
      %v5191 = vadd.bf16 %v5152, %v5175
      %v5192 = vadd.bf16 %v5153, %v5176
      %v5193 = vpack.i.b16 %v2964, %v2964
      %v5195 = vlaneseq
      %v5196 = vshrl.u32 %v5195, 7
      %v5197 = vsub.s32 1, %v5196
      %v5198 = vrot.slane %v5193, %v5197
      %v5199 = vmul.bf16 %v5017, %v5198
      %v5200 = vmul.bf16 %v5018, %v5198
      %v5201 = vmul.bf16 %v5019, %v5198
      %v5202 = vmul.bf16 %v5020, %v5198
      %v5203 = vmul.bf16 %v5021, %v5198
      %v5204 = vmul.bf16 %v5022, %v5198
      %v5205 = vmul.bf16 %v5023, %v5198
      %v5206 = vmul.bf16 %v5024, %v5198
      %v5207 = vmul.bf16 %v5025, %v5198
      %v5208 = vmul.bf16 %v5026, %v5198
      %v5209 = vmul.bf16 %v5027, %v5198
      %v5210 = vmul.bf16 %v5028, %v5198
      %v5211 = vmul.bf16 %v5029, %v5198
      %v5212 = vmul.bf16 %v5030, %v5198
      %v5213 = vmul.bf16 %v5031, %v5198
      %v5214 = vmul.bf16 %v5032, %v5198
      %v5215 = vadd.bf16 %v5177, %v5199
      %v5216 = vadd.bf16 %v5178, %v5200
      %v5217 = vadd.bf16 %v5179, %v5201
      %v5218 = vadd.bf16 %v5180, %v5202
      %v5219 = vadd.bf16 %v5181, %v5203
      %v5220 = vadd.bf16 %v5182, %v5204
      %v5221 = vadd.bf16 %v5183, %v5205
      %v5222 = vadd.bf16 %v5184, %v5206
      %v5223 = vadd.bf16 %v5185, %v5207
      %v5224 = vadd.bf16 %v5186, %v5208
      %v5225 = vadd.bf16 %v5187, %v5209
      %v5226 = vadd.bf16 %v5188, %v5210
      %v5227 = vadd.bf16 %v5189, %v5211
      %v5228 = vadd.bf16 %v5190, %v5212
      %v5229 = vadd.bf16 %v5191, %v5213
      %v5230 = vadd.bf16 %v5192, %v5214
      %v5231 = vshrl.u32 %v4858, 16
      %v5232 = vpack.i.b16 %v5231, %v5231
      %v5234 = vlaneseq
      %v5235 = vshrl.u32 %v5234, 7
      %v5236 = vsub.s32 0, %v5235
      %v5237 = vrot.slane %v5232, %v5236
      %v5238 = vmul.bf16 %v5020, %v5237
      %v5239 = vmul.bf16 %v5021, %v5237
      %v5240 = vmul.bf16 %v5022, %v5237
      %v5241 = vmul.bf16 %v5023, %v5237
      %v5242 = vmul.bf16 %v5024, %v5237
      %v5243 = vmul.bf16 %v5025, %v5237
      %v5244 = vmul.bf16 %v5026, %v5237
      %v5245 = vmul.bf16 %v5027, %v5237
      %v5246 = vmul.bf16 %v5028, %v5237
      %v5247 = vmul.bf16 %v5029, %v5237
      %v5248 = vmul.bf16 %v5030, %v5237
      %v5249 = vmul.bf16 %v5031, %v5237
      %v5250 = vmul.bf16 %v5032, %v5237
      %v5251 = vmul.bf16 %v5033, %v5237
      %v5252 = vmul.bf16 %v5034, %v5237
      %v5253 = vmul.bf16 %v5035, %v5237
      %v5254 = vadd.bf16 %v5215, %v5238
      %v5255 = vadd.bf16 %v5216, %v5239
      %v5256 = vadd.bf16 %v5217, %v5240
      %v5257 = vadd.bf16 %v5218, %v5241
      %v5258 = vadd.bf16 %v5219, %v5242
      %v5259 = vadd.bf16 %v5220, %v5243
      %v5260 = vadd.bf16 %v5221, %v5244
      %v5261 = vadd.bf16 %v5222, %v5245
      %v5262 = vadd.bf16 %v5223, %v5246
      %v5263 = vadd.bf16 %v5224, %v5247
      %v5264 = vadd.bf16 %v5225, %v5248
      %v5265 = vadd.bf16 %v5226, %v5249
      %v5266 = vadd.bf16 %v5227, %v5250
      %v5267 = vadd.bf16 %v5228, %v5251
      %v5268 = vadd.bf16 %v5229, %v5252
      %v5269 = vadd.bf16 %v5230, %v5253
      %v5270 = vld [vmem:[%s5 + $0x18] sm:$0x1]
      %v5272 = vpack.i.b16 %v5270, %v5270
      %v5274 = vlaneseq
      %v5275 = vshrl.u32 %v5274, 7
      %v5276 = vsub.s32 0, %v5275
      %v5277 = vrot.slane %v5272, %v5276
      %v5278 = vmul.bf16 %v5023, %v5277
      %v5279 = vmul.bf16 %v5024, %v5277
      %v5280 = vmul.bf16 %v5025, %v5277
      %v5281 = vmul.bf16 %v5026, %v5277
      %v5282 = vmul.bf16 %v5027, %v5277
      %v5283 = vmul.bf16 %v5028, %v5277
      %v5284 = vmul.bf16 %v5029, %v5277
      %v5285 = vmul.bf16 %v5030, %v5277
      %v5286 = vmul.bf16 %v5031, %v5277
      %v5287 = vmul.bf16 %v5032, %v5277
      %v5288 = vmul.bf16 %v5033, %v5277
      %v5289 = vmul.bf16 %v5034, %v5277
      %v5290 = vmul.bf16 %v5035, %v5277
      %v5291 = vmul.bf16 %v5036, %v5277
      %v5292 = vmul.bf16 %v5037, %v5277
      %v5293 = vmul.bf16 %v5038, %v5277
      %v5294 = vadd.bf16 %v5254, %v5278
      %v5295 = vadd.bf16 %v5255, %v5279
      %v5296 = vadd.bf16 %v5256, %v5280
      %v5297 = vadd.bf16 %v5257, %v5281
      %v5298 = vadd.bf16 %v5258, %v5282
      %v5299 = vadd.bf16 %v5259, %v5283
      %v5300 = vadd.bf16 %v5260, %v5284
      %v5301 = vadd.bf16 %v5261, %v5285
      %v5302 = vadd.bf16 %v5262, %v5286
      %v5303 = vadd.bf16 %v5263, %v5287
      %v5304 = vadd.bf16 %v5264, %v5288
      %v5305 = vadd.bf16 %v5265, %v5289
      %v5306 = vadd.bf16 %v5266, %v5290
      %v5307 = vadd.bf16 %v5267, %v5291
      %v5308 = vadd.bf16 %v5268, %v5292
      %v5309 = vadd.bf16 %v5269, %v5293
      %v5310 = vld [vmem:[%s7] sm:$0xff]
      %v5311 = vld [vmem:[%s7 + $0x8] sm:$0xff]
      %v5312 = vld [vmem:[%s7 + $0x10] sm:$0xff]
      %v5313 = vld [vmem:[%s7 + $0x18] sm:$0xff]
      %v5314 = vld [vmem:[%s7 + $0x20] sm:$0xff]
      %v5315 = vld [vmem:[%s7 + $0x28] sm:$0xff]
      %v5316 = vld [vmem:[%s7 + $0x30] sm:$0xff]
      %v5317 = vld [vmem:[%s7 + $0x38] sm:$0xff]
      %v5318 = vld [vmem:[%s7 + $0x40] sm:$0xff]
      %v5319 = vld [vmem:[%s7 + $0x48] sm:$0xff]
      %v5320 = vld [vmem:[%s7 + $0x50] sm:$0xff]
      %v5321 = vld [vmem:[%s7 + $0x58] sm:$0xff]
      %v5322 = vld [vmem:[%s7 + $0x60] sm:$0xff]
      %v5323 = vld [vmem:[%s7 + $0x68] sm:$0xff]
      %v5324 = vld [vmem:[%s7 + $0x70] sm:$0xff]
      %v5325 = vld [vmem:[%s7 + $0x78] sm:$0xff]
      %v5326 = vld [vmem:[%s8] sm:$0x3]
      %v5328 = vlaneseq
      %v5329 = vshrl.u32 %v5328, 7
      %v5330 = vsub.s32 0, %v5329
      %v5331 = vrot.slane %v5326, %v5330
      %v5332 = vlaneseq
      %v5333 = vshrl.u32 %v5332, 7
      %v5334 = vsub.s32 1, %v5333
      %v5335 = vrot.slane %v5326, %v5334
      %v5354 = vunpack.c.l.b16 %v5310
      %v5355 = vunpack.c.h.b16 %v5310
      %v5356 = vunpack.c.l.b16 %v5311
      %v5357 = vunpack.c.h.b16 %v5311
      %v5358 = vunpack.c.l.b16 %v5312
      %v5359 = vunpack.c.h.b16 %v5312
      %v5360 = vunpack.c.l.b16 %v5313
      %v5361 = vunpack.c.h.b16 %v5313
      %v5362 = vunpack.c.l.b16 %v5314
      %v5363 = vunpack.c.h.b16 %v5314
      %v5364 = vunpack.c.l.b16 %v5315
      %v5365 = vunpack.c.h.b16 %v5315
      %v5366 = vunpack.c.l.b16 %v5316
      %v5367 = vunpack.c.h.b16 %v5316
      %v5368 = vunpack.c.l.b16 %v5317
      %v5369 = vunpack.c.h.b16 %v5317
      %v5370 = vunpack.c.l.b16 %v5318
      %v5371 = vunpack.c.h.b16 %v5318
      %v5372 = vunpack.c.l.b16 %v5319
      %v5373 = vunpack.c.h.b16 %v5319
      %v5374 = vunpack.c.l.b16 %v5320
      %v5375 = vunpack.c.h.b16 %v5320
      %v5376 = vunpack.c.l.b16 %v5321
      %v5377 = vunpack.c.h.b16 %v5321
      %v5378 = vunpack.c.l.b16 %v5322
      %v5379 = vunpack.c.h.b16 %v5322
      %v5380 = vunpack.c.l.b16 %v5323
      %v5381 = vunpack.c.h.b16 %v5323
      %v5382 = vunpack.c.l.b16 %v5324
      %v5383 = vunpack.c.h.b16 %v5324
      %v5384 = vunpack.c.l.b16 %v5325
      %v5385 = vunpack.c.h.b16 %v5325
      %v5386 = vpack.c.b16 %v5356, %v5354
      %v5387 = vpack.c.b16 %v5357, %v5355
      %v5388 = vpack.c.b16 %v5360, %v5358
      %v5389 = vpack.c.b16 %v5361, %v5359
      %v5390 = vpack.c.b16 %v5364, %v5362
      %v5391 = vpack.c.b16 %v5365, %v5363
      %v5392 = vpack.c.b16 %v5368, %v5366
      %v5393 = vpack.c.b16 %v5369, %v5367
      %v5394 = vpack.c.b16 %v5372, %v5370
      %v5395 = vpack.c.b16 %v5373, %v5371
      %v5396 = vpack.c.b16 %v5376, %v5374
      %v5397 = vpack.c.b16 %v5377, %v5375
      %v5398 = vpack.c.b16 %v5380, %v5378
      %v5399 = vpack.c.b16 %v5381, %v5379
      %v5400 = vpack.c.b16 %v5384, %v5382
      %v5401 = vpack.c.b16 %v5385, %v5383
      %5418 = vmatprep.subr.bf16.mxu0 %v5387
      %5419 = vmatpush1.bf16.msra.mxu0 %v5386
      %5420 = vmatprep.subr.bf16.mxu0 %v5389
      %5421 = vmatpush1.bf16.msra.mxu0 %v5388
      %5422 = vmatprep.subr.bf16.mxu0 %v5391
      %5423 = vmatpush1.bf16.msra.mxu0 %v5390
      %5424 = vmatprep.subr.bf16.mxu0 %v5393
      %5425 = vmatpush1.bf16.msra.mxu0 %v5392
      %5426 = vmatprep.subr.bf16.mxu0 %v5395
      %5427 = vmatpush1.bf16.msra.mxu0 %v5394
      %5428 = vmatprep.subr.bf16.mxu0 %v5397
      %5429 = vmatpush1.bf16.msra.mxu0 %v5396
      %5430 = vmatprep.subr.bf16.mxu0 %v5399
      %5431 = vmatpush1.bf16.msra.mxu0 %v5398
      %5432 = vmatprep.subr.bf16.mxu0 %v5401
      %5433 = vmatpush1.bf16.msra.mxu0 %v5400
      %5434 = vmatprep.subr.bf16.mxu0 0
      %5435 = vmatpush1.bf16.msra.mxu0 0
      %5436 = vmatprep.subr.bf16.mxu0 0
      %5437 = vmatpush1.bf16.msra.mxu0 0
      %5438 = vmatprep.subr.bf16.mxu0 0
      %5439 = vmatpush1.bf16.msra.mxu0 0
      %5440 = vmatprep.subr.bf16.mxu0 0
      %5441 = vmatpush1.bf16.msra.mxu0 0
      %5442 = vmatprep.subr.bf16.mxu0 0
      %5443 = vmatpush1.bf16.msra.mxu0 0
      %5444 = vmatprep.subr.bf16.mxu0 0
      %5445 = vmatpush1.bf16.msra.mxu0 0
      %5446 = vmatprep.subr.bf16.mxu0 0
      %5447 = vmatpush1.bf16.msra.mxu0 0
      %5448 = vmatprep.subr.bf16.mxu0 0
      %5449 = vmatpush1.bf16.msra.mxu0 0
      %5450 = vmatprep.mubr.bf16.mxu0 0
      %5451 = vmatmul.mubr.bf16.gmra.mrb[0].mxu0 %v5294
      %v5452 = vpop.f32.mrb[0].mxu0
      %v5453 = vadd.f32 %v5331, %v5452
      %v5454 = vpop.f32.mrb[0].mxu0
      %v5455 = vadd.f32 %v5335, %v5454
      %v5456 = vpop.f32.mrb[0].mxu0
      %v5457 = vadd.f32 %v5331, %v5456
      %v5458 = vpop.f32.mrb[0].mxu0
      %v5459 = vadd.f32 %v5335, %v5458
      %5460 = vmatprep.mubr.bf16.mxu0 0
      %5461 = vmatmul.mubr.bf16.gmra.mrb[0].mxu0 %v5295
      %v5462 = vpop.f32.mrb[0].mxu0
      %v5463 = vadd.f32 %v5331, %v5462
      %v5464 = vpop.f32.mrb[0].mxu0
      %v5465 = vadd.f32 %v5335, %v5464
      %v5466 = vpop.f32.mrb[0].mxu0
      %v5467 = vadd.f32 %v5331, %v5466
      %v5468 = vpop.f32.mrb[0].mxu0
      %v5469 = vadd.f32 %v5335, %v5468
      %5470 = vmatprep.mubr.bf16.mxu0 0
      %5471 = vmatmul.mubr.bf16.gmra.mrb[0].mxu0 %v5296
      %v5472 = vpop.f32.mrb[0].mxu0
      %v5473 = vadd.f32 %v5331, %v5472
      %v5474 = vpop.f32.mrb[0].mxu0
      %v5475 = vadd.f32 %v5335, %v5474
      %v5476 = vpop.f32.mrb[0].mxu0
      %v5477 = vadd.f32 %v5331, %v5476
      %v5478 = vpop.f32.mrb[0].mxu0
      %v5479 = vadd.f32 %v5335, %v5478
      %5480 = vmatprep.mubr.bf16.mxu0 0
      %5481 = vmatmul.mubr.bf16.gmra.mrb[0].mxu0 %v5297
      %v5482 = vpop.f32.mrb[0].mxu0
      %v5483 = vadd.f32 %v5331, %v5482
      %v5484 = vpop.f32.mrb[0].mxu0
      %v5485 = vadd.f32 %v5335, %v5484
      %v5486 = vpop.f32.mrb[0].mxu0
      %v5487 = vadd.f32 %v5331, %v5486
      %v5488 = vpop.f32.mrb[0].mxu0
      %v5489 = vadd.f32 %v5335, %v5488
      %5490 = vmatprep.mubr.bf16.mxu0 0
      %5491 = vmatmul.mubr.bf16.gmra.mrb[0].mxu0 %v5298
      %v5492 = vpop.f32.mrb[0].mxu0
      %v5493 = vadd.f32 %v5331, %v5492
      %v5494 = vpop.f32.mrb[0].mxu0
      %v5495 = vadd.f32 %v5335, %v5494
      %v5496 = vpop.f32.mrb[0].mxu0
      %v5497 = vadd.f32 %v5331, %v5496
      %v5498 = vpop.f32.mrb[0].mxu0
      %v5499 = vadd.f32 %v5335, %v5498
      %5500 = vmatprep.mubr.bf16.mxu0 0
      %5501 = vmatmul.mubr.bf16.gmra.mrb[0].mxu0 %v5299
      %v5502 = vpop.f32.mrb[0].mxu0
      %v5503 = vadd.f32 %v5331, %v5502
      %v5504 = vpop.f32.mrb[0].mxu0
      %v5505 = vadd.f32 %v5335, %v5504
      %v5506 = vpop.f32.mrb[0].mxu0
      %v5507 = vadd.f32 %v5331, %v5506
      %v5508 = vpop.f32.mrb[0].mxu0
      %v5509 = vadd.f32 %v5335, %v5508
      %5510 = vmatprep.mubr.bf16.mxu0 0
      %5511 = vmatmul.mubr.bf16.gmra.mrb[0].mxu0 %v5300
      %v5512 = vpop.f32.mrb[0].mxu0
      %v5513 = vadd.f32 %v5331, %v5512
      %v5514 = vpop.f32.mrb[0].mxu0
      %v5515 = vadd.f32 %v5335, %v5514
      %v5516 = vpop.f32.mrb[0].mxu0
      %v5517 = vadd.f32 %v5331, %v5516
      %v5518 = vpop.f32.mrb[0].mxu0
      %v5519 = vadd.f32 %v5335, %v5518
      %5520 = vmatprep.mubr.bf16.mxu0 0
      %5521 = vmatmul.mubr.bf16.gmra.mrb[0].mxu0 %v5301
      %v5522 = vpop.f32.mrb[0].mxu0
      %v5523 = vadd.f32 %v5331, %v5522
      %v5524 = vpop.f32.mrb[0].mxu0
      %v5525 = vadd.f32 %v5335, %v5524
      %v5526 = vpop.f32.mrb[0].mxu0
      %v5527 = vadd.f32 %v5331, %v5526
      %v5528 = vpop.f32.mrb[0].mxu0
      %v5529 = vadd.f32 %v5335, %v5528
      %5530 = vmatprep.mubr.bf16.mxu0 0
      %5531 = vmatmul.mubr.bf16.gmra.mrb[0].mxu0 %v5302
      %v5532 = vpop.f32.mrb[0].mxu0
      %v5533 = vadd.f32 %v5331, %v5532
      %v5534 = vpop.f32.mrb[0].mxu0
      %v5535 = vadd.f32 %v5335, %v5534
      %v5536 = vpop.f32.mrb[0].mxu0
      %v5537 = vadd.f32 %v5331, %v5536
      %v5538 = vpop.f32.mrb[0].mxu0
      %v5539 = vadd.f32 %v5335, %v5538
      %5540 = vmatprep.mubr.bf16.mxu0 0
      %5541 = vmatmul.mubr.bf16.gmra.mrb[0].mxu0 %v5303
      %v5542 = vpop.f32.mrb[0].mxu0
      %v5543 = vadd.f32 %v5331, %v5542
      %v5544 = vpop.f32.mrb[0].mxu0
      %v5545 = vadd.f32 %v5335, %v5544
      %v5546 = vpop.f32.mrb[0].mxu0
      %v5547 = vadd.f32 %v5331, %v5546
      %v5548 = vpop.f32.mrb[0].mxu0
      %v5549 = vadd.f32 %v5335, %v5548
      %5550 = vmatprep.mubr.bf16.mxu0 0
      %5551 = vmatmul.mubr.bf16.gmra.mrb[0].mxu0 %v5304
      %v5552 = vpop.f32.mrb[0].mxu0
      %v5553 = vadd.f32 %v5331, %v5552
      %v5554 = vpop.f32.mrb[0].mxu0
      %v5555 = vadd.f32 %v5335, %v5554
      %v5556 = vpop.f32.mrb[0].mxu0
      %v5557 = vadd.f32 %v5331, %v5556
      %v5558 = vpop.f32.mrb[0].mxu0
      %v5559 = vadd.f32 %v5335, %v5558
      %5560 = vmatprep.mubr.bf16.mxu0 0
      %5561 = vmatmul.mubr.bf16.gmra.mrb[0].mxu0 %v5305
      %v5562 = vpop.f32.mrb[0].mxu0
      %v5563 = vadd.f32 %v5331, %v5562
      %v5564 = vpop.f32.mrb[0].mxu0
      %v5565 = vadd.f32 %v5335, %v5564
      %v5566 = vpop.f32.mrb[0].mxu0
      %v5567 = vadd.f32 %v5331, %v5566
      %v5568 = vpop.f32.mrb[0].mxu0
      %v5569 = vadd.f32 %v5335, %v5568
      %5570 = vmatprep.mubr.bf16.mxu0 0
      %5571 = vmatmul.mubr.bf16.gmra.mrb[0].mxu0 %v5306
      %v5572 = vpop.f32.mrb[0].mxu0
      %v5573 = vadd.f32 %v5331, %v5572
      %v5574 = vpop.f32.mrb[0].mxu0
      %v5575 = vadd.f32 %v5335, %v5574
      %v5576 = vpop.f32.mrb[0].mxu0
      %v5577 = vadd.f32 %v5331, %v5576
      %v5578 = vpop.f32.mrb[0].mxu0
      %v5579 = vadd.f32 %v5335, %v5578
      %5580 = vmatprep.mubr.bf16.mxu0 0
      %5581 = vmatmul.mubr.bf16.gmra.mrb[0].mxu0 %v5307
      %v5582 = vpop.f32.mrb[0].mxu0
      %v5583 = vadd.f32 %v5331, %v5582
      %v5584 = vpop.f32.mrb[0].mxu0
      %v5585 = vadd.f32 %v5335, %v5584
      %v5586 = vpop.f32.mrb[0].mxu0
      %v5587 = vadd.f32 %v5331, %v5586
      %v5588 = vpop.f32.mrb[0].mxu0
      %v5589 = vadd.f32 %v5335, %v5588
      %5590 = vmatprep.mubr.bf16.mxu0 0
      %5591 = vmatmul.mubr.bf16.gmra.mrb[0].mxu0 %v5308
      %v5592 = vpop.f32.mrb[0].mxu0
      %v5593 = vadd.f32 %v5331, %v5592
      %v5594 = vpop.f32.mrb[0].mxu0
      %v5595 = vadd.f32 %v5335, %v5594
      %v5596 = vpop.f32.mrb[0].mxu0
      %v5597 = vadd.f32 %v5331, %v5596
      %v5598 = vpop.f32.mrb[0].mxu0
      %v5599 = vadd.f32 %v5335, %v5598
      %5600 = vmatprep.mubr.bf16.mxu0 0
      %5601 = vmatmul.mubr.bf16.gmra.mrb[0].mxu0 %v5309
      %v5602 = vpop.f32.mrb[0].mxu0
      %v5603 = vadd.f32 %v5331, %v5602
      %v5604 = vpop.f32.mrb[0].mxu0
      %v5605 = vadd.f32 %v5335, %v5604
      %v5606 = vpop.f32.mrb[0].mxu0
      %v5607 = vadd.f32 %v5331, %v5606
      %v5608 = vpop.f32.mrb[0].mxu0
      %v5609 = vadd.f32 %v5335, %v5608
      %5610 = vdwg.mxu0
      %v5611 = vxor.u32 %v5455, 2147483648
      %v5612 = vxor.u32 %v5459, 2147483648
      %v5613 = vxor.u32 %v5465, 2147483648
      %v5614 = vxor.u32 %v5469, 2147483648
      %v5615 = vxor.u32 %v5475, 2147483648
      %v5616 = vxor.u32 %v5479, 2147483648
      %v5617 = vxor.u32 %v5485, 2147483648
      %v5618 = vxor.u32 %v5489, 2147483648
      %v5619 = vxor.u32 %v5495, 2147483648
      %v5620 = vxor.u32 %v5499, 2147483648
      %v5621 = vxor.u32 %v5505, 2147483648
      %v5622 = vxor.u32 %v5509, 2147483648
      %v5623 = vxor.u32 %v5515, 2147483648
      %v5624 = vxor.u32 %v5519, 2147483648
      %v5625 = vxor.u32 %v5525, 2147483648
      %v5626 = vxor.u32 %v5529, 2147483648
      %v5627 = vxor.u32 %v5535, 2147483648
      %v5628 = vxor.u32 %v5539, 2147483648
      %v5629 = vxor.u32 %v5545, 2147483648
      %v5630 = vxor.u32 %v5549, 2147483648
      %v5631 = vxor.u32 %v5555, 2147483648
      %v5632 = vxor.u32 %v5559, 2147483648
      %v5633 = vxor.u32 %v5565, 2147483648
      %v5634 = vxor.u32 %v5569, 2147483648
      %v5635 = vxor.u32 %v5575, 2147483648
      %v5636 = vxor.u32 %v5579, 2147483648
      %v5637 = vxor.u32 %v5585, 2147483648
      %v5638 = vxor.u32 %v5589, 2147483648
      %v5639 = vxor.u32 %v5595, 2147483648
      %v5640 = vxor.u32 %v5599, 2147483648
      %v5641 = vxor.u32 %v5605, 2147483648
      %v5642 = vxor.u32 %v5609, 2147483648
      %v5643 = vmul.f32 %v5611, 1.442695
      %v5644 = vpow.pop %v5643
      %v5645 = vmul.f32 %v5612, 1.442695
      %v5646 = vpow.pop %v5645
      %v5647 = vmul.f32 %v5613, 1.442695
      %v5648 = vpow.pop %v5647
      %v5649 = vmul.f32 %v5614, 1.442695
      %v5650 = vpow.pop %v5649
      %v5651 = vmul.f32 %v5615, 1.442695
      %v5652 = vpow.pop %v5651
      %v5653 = vmul.f32 %v5616, 1.442695
      %v5654 = vpow.pop %v5653
      %v5655 = vmul.f32 %v5617, 1.442695
      %v5656 = vpow.pop %v5655
      %v5657 = vmul.f32 %v5618, 1.442695
      %v5658 = vpow.pop %v5657
      %v5659 = vmul.f32 %v5619, 1.442695
      %v5660 = vpow.pop %v5659
      %v5661 = vmul.f32 %v5620, 1.442695
      %v5662 = vpow.pop %v5661
      %v5663 = vmul.f32 %v5621, 1.442695
      %v5664 = vpow.pop %v5663
      %v5665 = vmul.f32 %v5622, 1.442695
      %v5666 = vpow.pop %v5665
      %v5667 = vmul.f32 %v5623, 1.442695
      %v5668 = vpow.pop %v5667
      %v5669 = vmul.f32 %v5624, 1.442695
      %v5670 = vpow.pop %v5669
      %v5671 = vmul.f32 %v5625, 1.442695
      %v5672 = vpow.pop %v5671
      %v5673 = vmul.f32 %v5626, 1.442695
      %v5674 = vpow.pop %v5673
      %v5675 = vmul.f32 %v5627, 1.442695
      %v5676 = vpow.pop %v5675
      %v5677 = vmul.f32 %v5628, 1.442695
      %v5678 = vpow.pop %v5677
      %v5679 = vmul.f32 %v5629, 1.442695
      %v5680 = vpow.pop %v5679
      %v5681 = vmul.f32 %v5630, 1.442695
      %v5682 = vpow.pop %v5681
      %v5683 = vmul.f32 %v5631, 1.442695
      %v5684 = vpow.pop %v5683
      %v5685 = vmul.f32 %v5632, 1.442695
      %v5686 = vpow.pop %v5685
      %v5687 = vmul.f32 %v5633, 1.442695
      %v5688 = vpow.pop %v5687
      %v5689 = vmul.f32 %v5634, 1.442695
      %v5690 = vpow.pop %v5689
      %v5691 = vmul.f32 %v5635, 1.442695
      %v5692 = vpow.pop %v5691
      %v5693 = vmul.f32 %v5636, 1.442695
      %v5694 = vpow.pop %v5693
      %v5695 = vmul.f32 %v5637, 1.442695
      %v5696 = vpow.pop %v5695
      %v5697 = vmul.f32 %v5638, 1.442695
      %v5698 = vpow.pop %v5697
      %v5699 = vmul.f32 %v5639, 1.442695
      %v5700 = vpow.pop %v5699
      %v5701 = vmul.f32 %v5640, 1.442695
      %v5702 = vpow.pop %v5701
      %v5703 = vmul.f32 %v5641, 1.442695
      %v5704 = vpow.pop %v5703
      %v5705 = vmul.f32 %v5642, 1.442695
      %v5706 = vpow.pop %v5705
      %v5707 = vadd.f32 %v5644, 1.0
      %v5708 = vadd.f32 %v5646, 1.0
      %v5709 = vadd.f32 %v5648, 1.0
      %v5710 = vadd.f32 %v5650, 1.0
      %v5711 = vadd.f32 %v5652, 1.0
      %v5712 = vadd.f32 %v5654, 1.0
      %v5713 = vadd.f32 %v5656, 1.0
      %v5714 = vadd.f32 %v5658, 1.0
      %v5715 = vadd.f32 %v5660, 1.0
      %v5716 = vadd.f32 %v5662, 1.0
      %v5717 = vadd.f32 %v5664, 1.0
      %v5718 = vadd.f32 %v5666, 1.0
      %v5719 = vadd.f32 %v5668, 1.0
      %v5720 = vadd.f32 %v5670, 1.0
      %v5721 = vadd.f32 %v5672, 1.0
      %v5722 = vadd.f32 %v5674, 1.0
      %v5723 = vadd.f32 %v5676, 1.0
      %v5724 = vadd.f32 %v5678, 1.0
      %v5725 = vadd.f32 %v5680, 1.0
      %v5726 = vadd.f32 %v5682, 1.0
      %v5727 = vadd.f32 %v5684, 1.0
      %v5728 = vadd.f32 %v5686, 1.0
      %v5729 = vadd.f32 %v5688, 1.0
      %v5730 = vadd.f32 %v5690, 1.0
      %v5731 = vadd.f32 %v5692, 1.0
      %v5732 = vadd.f32 %v5694, 1.0
      %v5733 = vadd.f32 %v5696, 1.0
      %v5734 = vadd.f32 %v5698, 1.0
      %v5735 = vadd.f32 %v5700, 1.0
      %v5736 = vadd.f32 %v5702, 1.0
      %v5737 = vadd.f32 %v5704, 1.0
      %v5738 = vadd.f32 %v5706, 1.0
      %v5739 = vrcp.pop %v5707
      %v5740 = vmul.f32 1.0, %v5739
      %v5741 = vrcp.pop %v5708
      %v5742 = vmul.f32 1.0, %v5741
      %v5743 = vrcp.pop %v5709
      %v5744 = vmul.f32 1.0, %v5743
      %v5745 = vrcp.pop %v5710
      %v5746 = vmul.f32 1.0, %v5745
      %v5747 = vrcp.pop %v5711
      %v5748 = vmul.f32 1.0, %v5747
      %v5749 = vrcp.pop %v5712
      %v5750 = vmul.f32 1.0, %v5749
      %v5751 = vrcp.pop %v5713
      %v5752 = vmul.f32 1.0, %v5751
      %v5753 = vrcp.pop %v5714
      %v5754 = vmul.f32 1.0, %v5753
      %v5755 = vrcp.pop %v5715
      %v5756 = vmul.f32 1.0, %v5755
      %v5757 = vrcp.pop %v5716
      %v5758 = vmul.f32 1.0, %v5757
      %v5759 = vrcp.pop %v5717
      %v5760 = vmul.f32 1.0, %v5759
      %v5761 = vrcp.pop %v5718
      %v5762 = vmul.f32 1.0, %v5761
      %v5763 = vrcp.pop %v5719
      %v5764 = vmul.f32 1.0, %v5763
      %v5765 = vrcp.pop %v5720
      %v5766 = vmul.f32 1.0, %v5765
      %v5767 = vrcp.pop %v5721
      %v5768 = vmul.f32 1.0, %v5767
      %v5769 = vrcp.pop %v5722
      %v5770 = vmul.f32 1.0, %v5769
      %v5771 = vrcp.pop %v5723
      %v5772 = vmul.f32 1.0, %v5771
      %v5773 = vrcp.pop %v5724
      %v5774 = vmul.f32 1.0, %v5773
      %v5775 = vrcp.pop %v5725
      %v5776 = vmul.f32 1.0, %v5775
      %v5777 = vrcp.pop %v5726
      %v5778 = vmul.f32 1.0, %v5777
      %v5779 = vrcp.pop %v5727
      %v5780 = vmul.f32 1.0, %v5779
      %v5781 = vrcp.pop %v5728
      %v5782 = vmul.f32 1.0, %v5781
      %v5783 = vrcp.pop %v5729
      %v5784 = vmul.f32 1.0, %v5783
      %v5785 = vrcp.pop %v5730
      %v5786 = vmul.f32 1.0, %v5785
      %v5787 = vrcp.pop %v5731
      %v5788 = vmul.f32 1.0, %v5787
      %v5789 = vrcp.pop %v5732
      %v5790 = vmul.f32 1.0, %v5789
      %v5791 = vrcp.pop %v5733
      %v5792 = vmul.f32 1.0, %v5791
      %v5793 = vrcp.pop %v5734
      %v5794 = vmul.f32 1.0, %v5793
      %v5795 = vrcp.pop %v5735
      %v5796 = vmul.f32 1.0, %v5795
      %v5797 = vrcp.pop %v5736
      %v5798 = vmul.f32 1.0, %v5797
      %v5799 = vrcp.pop %v5737
      %v5800 = vmul.f32 1.0, %v5799
      %v5801 = vrcp.pop %v5738
      %v5802 = vmul.f32 1.0, %v5801
      %v5803 = vmul.f32 %v5740, %v5453
      %v5804 = vmul.f32 %v5742, %v5457
      %v5805 = vmul.f32 %v5744, %v5463
      %v5806 = vmul.f32 %v5746, %v5467
      %v5807 = vmul.f32 %v5748, %v5473
      %v5808 = vmul.f32 %v5750, %v5477
      %v5809 = vmul.f32 %v5752, %v5483
      %v5810 = vmul.f32 %v5754, %v5487
      %v5811 = vmul.f32 %v5756, %v5493
      %v5812 = vmul.f32 %v5758, %v5497
      %v5813 = vmul.f32 %v5760, %v5503
      %v5814 = vmul.f32 %v5762, %v5507
      %v5815 = vmul.f32 %v5764, %v5513
      %v5816 = vmul.f32 %v5766, %v5517
      %v5817 = vmul.f32 %v5768, %v5523
      %v5818 = vmul.f32 %v5770, %v5527
      %v5819 = vmul.f32 %v5772, %v5533
      %v5820 = vmul.f32 %v5774, %v5537
      %v5821 = vmul.f32 %v5776, %v5543
      %v5822 = vmul.f32 %v5778, %v5547
      %v5823 = vmul.f32 %v5780, %v5553
      %v5824 = vmul.f32 %v5782, %v5557
      %v5825 = vmul.f32 %v5784, %v5563
      %v5826 = vmul.f32 %v5786, %v5567
      %v5827 = vmul.f32 %v5788, %v5573
      %v5828 = vmul.f32 %v5790, %v5577
      %v5829 = vmul.f32 %v5792, %v5583
      %v5830 = vmul.f32 %v5794, %v5587
      %v5831 = vmul.f32 %v5796, %v5593
      %v5832 = vmul.f32 %v5798, %v5597
      %v5833 = vmul.f32 %v5800, %v5603
      %v5834 = vmul.f32 %v5802, %v5607
      %v5835 = vpack.c.bf16 %v5804, %v5803
      %v5836 = vpack.c.bf16 %v5806, %v5805
      %v5837 = vpack.c.bf16 %v5808, %v5807
      %v5838 = vpack.c.bf16 %v5810, %v5809
      %v5839 = vpack.c.bf16 %v5812, %v5811
      %v5840 = vpack.c.bf16 %v5814, %v5813
      %v5841 = vpack.c.bf16 %v5816, %v5815
      %v5842 = vpack.c.bf16 %v5818, %v5817
      %v5843 = vpack.c.bf16 %v5820, %v5819
      %v5844 = vpack.c.bf16 %v5822, %v5821
      %v5845 = vpack.c.bf16 %v5824, %v5823
      %v5846 = vpack.c.bf16 %v5826, %v5825
      %v5847 = vpack.c.bf16 %v5828, %v5827
      %v5848 = vpack.c.bf16 %v5830, %v5829
      %v5849 = vpack.c.bf16 %v5832, %v5831
      %v5850 = vpack.c.bf16 %v5834, %v5833
      %v5851 = vld [vmem:[%s9] sm:$0xf]
      %v5852 = vld [vmem:[%s9 + $0x4] sm:$0xf]
      %v5853 = vld [vmem:[%s9 + $0x8] sm:$0xf]
      %v5854 = vld [vmem:[%s9 + $0xc] sm:$0xf]
      %v5855 = vld [vmem:[%s9 + $0x10] sm:$0xf]
      %v5856 = vld [vmem:[%s9 + $0x14] sm:$0xf]
      %v5857 = vld [vmem:[%s9 + $0x18] sm:$0xf]
      %v5858 = vld [vmem:[%s9 + $0x1c] sm:$0xf]
      %v5859 = vld [vmem:[%s9 + $0x20] sm:$0xf]
      %v5860 = vld [vmem:[%s9 + $0x24] sm:$0xf]
      %v5861 = vld [vmem:[%s9 + $0x28] sm:$0xf]
      %v5862 = vld [vmem:[%s9 + $0x2c] sm:$0xf]
      %v5863 = vld [vmem:[%s9 + $0x30] sm:$0xf]
      %v5864 = vld [vmem:[%s9 + $0x34] sm:$0xf]
      %v5865 = vld [vmem:[%s9 + $0x38] sm:$0xf]
      %v5866 = vld [vmem:[%s9 + $0x3c] sm:$0xf]
      %v5867 = vld [vmem:[%s10] sm:$0x1]
      %v5869 = vlaneseq
      %v5870 = vshrl.u32 %v5869, 7
      %v5871 = vsub.s32 0, %v5870
      %v5872 = vrot.slane %v5867, %v5871
      %v5890 = vunpack.c.l.b16 %v5851
      %v5891 = vunpack.c.l.b16 %v5852
      %v5892 = vunpack.c.l.b16 %v5853
      %v5893 = vunpack.c.l.b16 %v5854
      %v5894 = vunpack.c.l.b16 %v5855
      %v5895 = vunpack.c.l.b16 %v5856
      %v5896 = vunpack.c.l.b16 %v5857
      %v5897 = vunpack.c.l.b16 %v5858
      %v5898 = vunpack.c.l.b16 %v5859
      %v5899 = vunpack.c.l.b16 %v5860
      %v5900 = vunpack.c.l.b16 %v5861
      %v5901 = vunpack.c.l.b16 %v5862
      %v5902 = vunpack.c.l.b16 %v5863
      %v5903 = vunpack.c.l.b16 %v5864
      %v5904 = vunpack.c.l.b16 %v5865
      %v5905 = vunpack.c.l.b16 %v5866
      %v5906 = vpack.c.b16 %v5891, %v5890
      %v5907 = vpack.c.b16 %v5893, %v5892
      %v5908 = vpack.c.b16 %v5895, %v5894
      %v5909 = vpack.c.b16 %v5897, %v5896
      %v5910 = vpack.c.b16 %v5899, %v5898
      %v5911 = vpack.c.b16 %v5901, %v5900
      %v5912 = vpack.c.b16 %v5903, %v5902
      %v5913 = vpack.c.b16 %v5905, %v5904
      %5922 = vmatprep.subr.bf16.mxu0 0
      %5923 = vmatpush1.bf16.msra.mxu0 %v5906
      %5924 = vmatprep.subr.bf16.mxu0 0
      %5925 = vmatpush1.bf16.msra.mxu0 %v5907
      %5926 = vmatprep.subr.bf16.mxu0 0
      %5927 = vmatpush1.bf16.msra.mxu0 %v5908
      %5928 = vmatprep.subr.bf16.mxu0 0
      %5929 = vmatpush1.bf16.msra.mxu0 %v5909
      %5930 = vmatprep.subr.bf16.mxu0 0
      %5931 = vmatpush1.bf16.msra.mxu0 %v5910
      %5932 = vmatprep.subr.bf16.mxu0 0
      %5933 = vmatpush1.bf16.msra.mxu0 %v5911
      %5934 = vmatprep.subr.bf16.mxu0 0
      %5935 = vmatpush1.bf16.msra.mxu0 %v5912
      %5936 = vmatprep.subr.bf16.mxu0 0
      %5937 = vmatpush1.bf16.msra.mxu0 %v5913
      %5938 = vmatprep.subr.bf16.mxu0 0
      %5939 = vmatpush1.bf16.msra.mxu0 0
      %5940 = vmatprep.subr.bf16.mxu0 0
      %5941 = vmatpush1.bf16.msra.mxu0 0
      %5942 = vmatprep.subr.bf16.mxu0 0
      %5943 = vmatpush1.bf16.msra.mxu0 0
      %5944 = vmatprep.subr.bf16.mxu0 0
      %5945 = vmatpush1.bf16.msra.mxu0 0
      %5946 = vmatprep.subr.bf16.mxu0 0
      %5947 = vmatpush1.bf16.msra.mxu0 0
      %5948 = vmatprep.subr.bf16.mxu0 0
      %5949 = vmatpush1.bf16.msra.mxu0 0
      %5950 = vmatprep.subr.bf16.mxu0 0
      %5951 = vmatpush1.bf16.msra.mxu0 0
      %5952 = vmatprep.subr.bf16.mxu0 0
      %5953 = vmatpush1.bf16.msra.mxu0 0
      %5954 = vmatprep.mubr.bf16.mxu0 0
      %5955 = vmatmul.mubr.bf16.gmra.mrb[0].mxu0 %v5835
      %v5956 = vpop.f32.mrb[0].mxu0
      %v5957 = vadd.f32 %v5872, %v5956
      %v5958 = vpop.f32.mrb[0].mxu0
      %v5959 = vpop.f32.mrb[0].mxu0
      %v5960 = vadd.f32 %v5872, %v5959
      %v5961 = vpop.f32.mrb[0].mxu0
      %5962 = vmatprep.mubr.bf16.mxu0 0
      %5963 = vmatmul.mubr.bf16.gmra.mrb[0].mxu0 %v5836
      %v5964 = vpop.f32.mrb[0].mxu0
      %v5965 = vadd.f32 %v5872, %v5964
      %v5966 = vpop.f32.mrb[0].mxu0
      %v5967 = vpop.f32.mrb[0].mxu0
      %v5968 = vadd.f32 %v5872, %v5967
      %v5969 = vpop.f32.mrb[0].mxu0
      %5970 = vmatprep.mubr.bf16.mxu0 0
      %5971 = vmatmul.mubr.bf16.gmra.mrb[0].mxu0 %v5837
      %v5972 = vpop.f32.mrb[0].mxu0
      %v5973 = vadd.f32 %v5872, %v5972
      %v5974 = vpop.f32.mrb[0].mxu0
      %v5975 = vpop.f32.mrb[0].mxu0
      %v5976 = vadd.f32 %v5872, %v5975
      %v5977 = vpop.f32.mrb[0].mxu0
      %5978 = vmatprep.mubr.bf16.mxu0 0
      %5979 = vmatmul.mubr.bf16.gmra.mrb[0].mxu0 %v5838
      %v5980 = vpop.f32.mrb[0].mxu0
      %v5981 = vadd.f32 %v5872, %v5980
      %v5982 = vpop.f32.mrb[0].mxu0
      %v5983 = vpop.f32.mrb[0].mxu0
      %v5984 = vadd.f32 %v5872, %v5983
      %v5985 = vpop.f32.mrb[0].mxu0
      %5986 = vmatprep.mubr.bf16.mxu0 0
      %5987 = vmatmul.mubr.bf16.gmra.mrb[0].mxu0 %v5839
      %v5988 = vpop.f32.mrb[0].mxu0
      %v5989 = vadd.f32 %v5872, %v5988
      %v5990 = vpop.f32.mrb[0].mxu0
      %v5991 = vpop.f32.mrb[0].mxu0
      %v5992 = vadd.f32 %v5872, %v5991
      %v5993 = vpop.f32.mrb[0].mxu0
      %5994 = vmatprep.mubr.bf16.mxu0 0
      %5995 = vmatmul.mubr.bf16.gmra.mrb[0].mxu0 %v5840
      %v5996 = vpop.f32.mrb[0].mxu0
      %v5997 = vadd.f32 %v5872, %v5996
      %v5998 = vpop.f32.mrb[0].mxu0
      %v5999 = vpop.f32.mrb[0].mxu0
      %v6000 = vadd.f32 %v5872, %v5999
      %v6001 = vpop.f32.mrb[0].mxu0
      %6002 = vmatprep.mubr.bf16.mxu0 0
      %6003 = vmatmul.mubr.bf16.gmra.mrb[0].mxu0 %v5841
      %v6004 = vpop.f32.mrb[0].mxu0
      %v6005 = vadd.f32 %v5872, %v6004
      %v6006 = vpop.f32.mrb[0].mxu0
      %v6007 = vpop.f32.mrb[0].mxu0
      %v6008 = vadd.f32 %v5872, %v6007
      %v6009 = vpop.f32.mrb[0].mxu0
      %6010 = vmatprep.mubr.bf16.mxu0 0
      %6011 = vmatmul.mubr.bf16.gmra.mrb[0].mxu0 %v5842
      %v6012 = vpop.f32.mrb[0].mxu0
      %v6013 = vadd.f32 %v5872, %v6012
      %v6014 = vpop.f32.mrb[0].mxu0
      %v6015 = vpop.f32.mrb[0].mxu0
      %v6016 = vadd.f32 %v5872, %v6015
      %v6017 = vpop.f32.mrb[0].mxu0
      %6018 = vmatprep.mubr.bf16.mxu0 0
      %6019 = vmatmul.mubr.bf16.gmra.mrb[0].mxu0 %v5843
      %v6020 = vpop.f32.mrb[0].mxu0
      %v6021 = vadd.f32 %v5872, %v6020
      %v6022 = vpop.f32.mrb[0].mxu0
      %v6023 = vpop.f32.mrb[0].mxu0
      %v6024 = vadd.f32 %v5872, %v6023
      %v6025 = vpop.f32.mrb[0].mxu0
      %6026 = vmatprep.mubr.bf16.mxu0 0
      %6027 = vmatmul.mubr.bf16.gmra.mrb[0].mxu0 %v5844
      %v6028 = vpop.f32.mrb[0].mxu0
      %v6029 = vadd.f32 %v5872, %v6028
      %v6030 = vpop.f32.mrb[0].mxu0
      %v6031 = vpop.f32.mrb[0].mxu0
      %v6032 = vadd.f32 %v5872, %v6031
      %v6033 = vpop.f32.mrb[0].mxu0
      %6034 = vmatprep.mubr.bf16.mxu0 0
      %6035 = vmatmul.mubr.bf16.gmra.mrb[0].mxu0 %v5845
      %v6036 = vpop.f32.mrb[0].mxu0
      %v6037 = vadd.f32 %v5872, %v6036
      %v6038 = vpop.f32.mrb[0].mxu0
      %v6039 = vpop.f32.mrb[0].mxu0
      %v6040 = vadd.f32 %v5872, %v6039
      %v6041 = vpop.f32.mrb[0].mxu0
      %6042 = vmatprep.mubr.bf16.mxu0 0
      %6043 = vmatmul.mubr.bf16.gmra.mrb[0].mxu0 %v5846
      %v6044 = vpop.f32.mrb[0].mxu0
      %v6045 = vadd.f32 %v5872, %v6044
      %v6046 = vpop.f32.mrb[0].mxu0
      %v6047 = vpop.f32.mrb[0].mxu0
      %v6048 = vadd.f32 %v5872, %v6047
      %v6049 = vpop.f32.mrb[0].mxu0
      %6050 = vmatprep.mubr.bf16.mxu0 0
      %6051 = vmatmul.mubr.bf16.gmra.mrb[0].mxu0 %v5847
      %v6052 = vpop.f32.mrb[0].mxu0
      %v6053 = vadd.f32 %v5872, %v6052
      %v6054 = vpop.f32.mrb[0].mxu0
      %v6055 = vpop.f32.mrb[0].mxu0
      %v6056 = vadd.f32 %v5872, %v6055
      %v6057 = vpop.f32.mrb[0].mxu0
      %6058 = vmatprep.mubr.bf16.mxu0 0
      %6059 = vmatmul.mubr.bf16.gmra.mrb[0].mxu0 %v5848
      %v6060 = vpop.f32.mrb[0].mxu0
      %v6061 = vadd.f32 %v5872, %v6060
      %v6062 = vpop.f32.mrb[0].mxu0
      %v6063 = vpop.f32.mrb[0].mxu0
      %v6064 = vadd.f32 %v5872, %v6063
      %v6065 = vpop.f32.mrb[0].mxu0
      %6066 = vmatprep.mubr.bf16.mxu0 0
      %6067 = vmatmul.mubr.bf16.gmra.mrb[0].mxu0 %v5849
      %v6068 = vpop.f32.mrb[0].mxu0
      %v6069 = vadd.f32 %v5872, %v6068
      %v6070 = vpop.f32.mrb[0].mxu0
      %v6071 = vpop.f32.mrb[0].mxu0
      %v6072 = vadd.f32 %v5872, %v6071
      %v6073 = vpop.f32.mrb[0].mxu0
      %6074 = vmatprep.mubr.bf16.mxu0 0
      %6075 = vmatmul.mubr.bf16.gmra.mrb[0].mxu0 %v5850
      %v6076 = vpop.f32.mrb[0].mxu0
      %v6077 = vadd.f32 %v5872, %v6076
      %v6078 = vpop.f32.mrb[0].mxu0
      %v6079 = vpop.f32.mrb[0].mxu0
      %v6080 = vadd.f32 %v5872, %v6079
      %v6081 = vpop.f32.mrb[0].mxu0
      %6082 = vdwg.mxu0
      %v6083 = vadd.f32 %v5957, %v690
      %v6084 = vadd.f32 %v5960, %v691
      %v6085 = vadd.f32 %v5965, %v692
      %v6086 = vadd.f32 %v5968, %v693
      %v6087 = vadd.f32 %v5973, %v694
      %v6088 = vadd.f32 %v5976, %v695
      %v6089 = vadd.f32 %v5981, %v696
      %v6090 = vadd.f32 %v5984, %v697
      %v6091 = vadd.f32 %v5989, %v698
      %v6092 = vadd.f32 %v5992, %v699
      %v6093 = vadd.f32 %v5997, %v700
      %v6094 = vadd.f32 %v6000, %v701
      %v6095 = vadd.f32 %v6005, %v702
      %v6096 = vadd.f32 %v6008, %v703
      %v6097 = vadd.f32 %v6013, %v704
      %v6098 = vadd.f32 %v6016, %v705
      %v6099 = vadd.f32 %v6021, %v706
      %v6100 = vadd.f32 %v6024, %v707
      %v6101 = vadd.f32 %v6029, %v708
      %v6102 = vadd.f32 %v6032, %v709
      %v6103 = vadd.f32 %v6037, %v710
      %v6104 = vadd.f32 %v6040, %v711
      %v6105 = vadd.f32 %v6045, %v712
      %v6106 = vadd.f32 %v6048, %v713
      %v6107 = vadd.f32 %v6053, %v714
      %v6108 = vadd.f32 %v6056, %v715
      %v6109 = vadd.f32 %v6061, %v716
      %v6110 = vadd.f32 %v6064, %v717
      %v6111 = vadd.f32 %v6069, %v718
      %v6112 = vadd.f32 %v6072, %v719
      %v6113 = vadd.f32 %v6077, %v720
      %v6114 = vadd.f32 %v6080, %v721
      %6115 = vst [vmem:[%s386] sm:$0xff] %v6083
      %6116 = vst [vmem:[%s386 + $0x8] sm:$0xff] %v6084
      %6117 = vst [vmem:[%s386 + $0x10] sm:$0xff] %v6085
      %6118 = vst [vmem:[%s386 + $0x18] sm:$0xff] %v6086
      %6119 = vst [vmem:[%s386 + $0x20] sm:$0xff] %v6087
      %6120 = vst [vmem:[%s386 + $0x28] sm:$0xff] %v6088
      %6121 = vst [vmem:[%s386 + $0x30] sm:$0xff] %v6089
      %6122 = vst [vmem:[%s386 + $0x38] sm:$0xff] %v6090
      %6123 = vst [vmem:[%s386 + $0x40] sm:$0xff] %v6091
      %6124 = vst [vmem:[%s386 + $0x48] sm:$0xff] %v6092
      %6125 = vst [vmem:[%s386 + $0x50] sm:$0xff] %v6093
      %6126 = vst [vmem:[%s386 + $0x58] sm:$0xff] %v6094
      %6127 = vst [vmem:[%s386 + $0x60] sm:$0xff] %v6095
      %6128 = vst [vmem:[%s386 + $0x68] sm:$0xff] %v6096
      %6129 = vst [vmem:[%s386 + $0x70] sm:$0xff] %v6097
      %6130 = vst [vmem:[%s386 + $0x78] sm:$0xff] %v6098
      %6131 = vst [vmem:[%s386 + $0x80] sm:$0xff] %v6099
      %6132 = vst [vmem:[%s386 + $0x88] sm:$0xff] %v6100
      %6133 = vst [vmem:[%s386 + $0x90] sm:$0xff] %v6101
      %6134 = vst [vmem:[%s386 + $0x98] sm:$0xff] %v6102
      %6135 = vst [vmem:[%s386 + $0xa0] sm:$0xff] %v6103
      %6136 = vst [vmem:[%s386 + $0xa8] sm:$0xff] %v6104
      %6137 = vst [vmem:[%s386 + $0xb0] sm:$0xff] %v6105
      %6138 = vst [vmem:[%s386 + $0xb8] sm:$0xff] %v6106
      %6139 = vst [vmem:[%s386 + $0xc0] sm:$0xff] %v6107
      %6140 = vst [vmem:[%s386 + $0xc8] sm:$0xff] %v6108
      %6141 = vst [vmem:[%s386 + $0xd0] sm:$0xff] %v6109
      %6142 = vst [vmem:[%s386 + $0xd8] sm:$0xff] %v6110
      %6143 = vst [vmem:[%s386 + $0xe0] sm:$0xff] %v6111
      %6144 = vst [vmem:[%s386 + $0xe8] sm:$0xff] %v6112
      %6145 = vst [vmem:[%s386 + $0xf0] sm:$0xff] %v6113
      %6146 = vst [vmem:[%s386 + $0xf8] sm:$0xff] %v6114
      %p6147 = scmp.lt.s32.totalorder %s22, 1
      %s6148 = scalar_select %p6147, %s22, 1
      %s6149 = smul.addr %s6148, 32
      %s6150 = smul.addr %s6149, 8
      %s6151 = scalar_lea.vmem %s11, %s6150
      // Predicated region
      $region65: #{_forward_impl.1} parent=63 // pred_check
        %p6152 = pneg %p276
      $region66: #{_forward_impl.1} parent=63 // pred_check_branch
        %6154 = sbr.rel (%p6152) target = $region68
      $region67: #{_forward_impl.1} parent=63 // pred_region
        _
      $region68: #{_forward_impl.1} parent=63 // pred_fallthru
        _
    $region64: #{_forward_impl.1} parent=5 // pred_fallthru
      _
    %p6155 = scmp.le.s32.totalorder 2, %s17
    // Predicated region
    $region69: #{_forward_impl.1} parent=5 // pred_check
      %p6156 = pneg %p6155
    $region70: #{_forward_impl.1} parent=5 // pred_check_branch
      %6158 = sbr.rel (%p6156) target = $region72
    $region71: #{_forward_impl.1} parent=5 // pred_region
      %s6159 = ssub.s32 %s17, 2
      // Predicated region
      $region73: #{_forward_impl.1} parent=71 // pred_check
        %p6160 = pneg %p282
      $region74: #{_forward_impl.1} parent=71 // pred_check_branch
        %6162 = sbr.rel (%p6160) target = $region76
      $region75: #{_forward_impl.1} parent=71 // pred_region
        %p6163 = scmp.lt.s32.totalorder %s23, 1
        %s6164 = scalar_select %p6163, %s23, 1
        %s6165 = smul.addr %s6164, 32
        %s6166 = smul.addr %s6165, 8
        %s6167 = scalar_lea.vmem %s11, %s6166
      $region76: #{_forward_impl.1} parent=71 // pred_fallthru
        _
    $region72: #{_forward_impl.1} parent=5 // pred_fallthru
      _
  $region6: #{_forward_impl.1} parent=0 // loop_footer
    %s21 = sadd.s32 1, %s17
  $region7: #{_forward_impl.1} parent=0 // loop_footer_branch
    %16 = sbr.rel target = $region3
  $region8: #{_forward_impl.1} parent=0 // loop_exit
    _

</llo_original>
